<compile_context>
chip_gen: v7x
topology: tpu7x:2x2x1
jax: 0.10.0
libtpu: 0.0.40
codegen_flags: <defaults>
</compile_context>

<pallas_src>
import math

import jax
import jax.numpy as jnp
from jax.experimental import pallas as pl
from jax.experimental.pallas import tpu as pltpu

EPS = 1e-5  # BatchNorm2d default eps


# ----------------------------------------------------------------------------
# In-kernel helpers (all in-kernel values stay 2-D (rows, W*C) slabs)
# ----------------------------------------------------------------------------
def _iota2(shape, dim):
    return jax.lax.broadcasted_iota(jnp.int32, shape, dim)


def _chan_sum_mat(wo, c):
    """(wo*c, c) 0/1 matrix: (1, wo*c) row @ this = per-channel spatial sums."""
    assert c & (c - 1) == 0
    r = _iota2((wo * c, c), 0)
    k = _iota2((wo * c, c), 1)
    return jnp.where((r & (c - 1)) == k, 1.0, 0.0).astype(jnp.float32)


def _chan_bcast_mat(c, wo):
    """(c, wo*c) 0/1 matrix: (1, c) per-channel row @ this = per-lane broadcast."""
    assert c & (c - 1) == 0
    r = _iota2((c, wo * c), 0)
    k = _iota2((c, wo * c), 1)
    return jnp.where((k & (c - 1)) == r, 1.0, 0.0).astype(jnp.float32)


def _pool_row_mat(ho, hin, parity):
    """(ho, hin) 0/1 matrix selecting input row 2*i + parity for output row i."""
    r = _iota2((ho, hin), 0)
    k = _iota2((ho, hin), 1)
    return jnp.where(k == 2 * r + parity, 1.0, 0.0).astype(jnp.float32)


def _pool_col_mat(win, wo, c, parity):
    """(win*c, wo*c) 0/1 matrix selecting column-block 2*j + parity for block j."""
    assert c & (c - 1) == 0
    shift = int(math.log2(c))
    r = _iota2((win * c, wo * c), 0)
    k = _iota2((win * c, wo * c), 1)
    ok = ((r >> shift) == 2 * (k >> shift) + parity) & ((r & (c - 1)) == (k & (c - 1)))
    return jnp.where(ok, 1.0, 0.0).astype(jnp.float32)


def _conv_gbn_relu_block(in_ref, out_ref, b_ref):
    """3x3 valid conv (banded-matmul form) + GhostBatchNorm (training-mode stats
    over the whole ghost group, gamma=1, beta=0) + ReLU.

    in_ref : (G, Hin, Win*Cin)   activation slab of one ghost group (VMEM)
    out_ref: (G, Ho,  Wo*Cout)   Ho = Hin-2, Wo = Win-2 (VMEM)
    b_ref  : (3, Win*Cin, Wo*Cout) banded conv weights, one per vertical tap
    """
    G = in_ref.shape[0]
    _, ho, lout = out_ref.shape
    wo = ho                          # square feature maps
    cout = lout // wo

    b0 = b_ref[0]
    b1 = b_ref[1]
    b2 = b_ref[2]

    # --- convolution: one banded matmul per vertical tap, per sample ---------
    for g in range(G):
        acc = jnp.dot(in_ref[g, 0:ho, :], b0, preferred_element_type=jnp.float32)
        acc = acc + jnp.dot(in_ref[g, 1:ho + 1, :], b1, preferred_element_type=jnp.float32)
        acc = acc + jnp.dot(in_ref[g, 2:ho + 2, :], b2, preferred_element_type=jnp.float32)
        out_ref[g] = acc             # raw conv output parked in VMEM

    # --- ghost-batch-norm statistics over the whole ghost group --------------
    sel = _chan_sum_mat(wo, cout)        # (lout, cout)
    bcast = _chan_bcast_mat(cout, wo)    # (cout, lout)
    inv_cnt = 1.0 / float(G * ho * wo)

    srow = jnp.zeros((1, lout), jnp.float32)
    for g in range(G):
        srow = srow + jnp.sum(out_ref[g], axis=0, keepdims=True)
    mean_c = jnp.dot(srow, sel, preferred_element_type=jnp.float32) * inv_cnt   # (1, cout)
    mean_l = jnp.dot(mean_c, bcast, preferred_element_type=jnp.float32)         # (1, lout)

    vrow = jnp.zeros((1, lout), jnp.float32)
    for g in range(G):
        d = out_ref[g] - mean_l
        vrow = vrow + jnp.sum(d * d, axis=0, keepdims=True)
    var_c = jnp.dot(vrow, sel, preferred_element_type=jnp.float32) * inv_cnt    # (1, cout)
    inv_l = jnp.dot(jax.lax.rsqrt(var_c + EPS), bcast,
                    preferred_element_type=jnp.float32)                         # (1, lout)

    # --- normalize (gamma=1, beta=0) + ReLU -----------------------------------
    for g in range(G):
        out_ref[g] = jnp.maximum((out_ref[g] - mean_l) * inv_l, 0.0)


def _maxpool2x2_block(in_ref, out_ref):
    """2x2 / stride-2 max pool, entirely in VMEM via exact 0/1 selection matmuls."""
    G, hin, lin = in_ref.shape
    _, ho, lout = out_ref.shape
    cch = lin // hin
    wo = lout // cch

    re = _pool_row_mat(ho, hin, 0)           # (ho, hin)
    ro = _pool_row_mat(ho, hin, 1)
    pe = _pool_col_mat(hin, wo, cch, 0)      # (lin, lout)
    po = _pool_col_mat(hin, wo, cch, 1)

    for g in range(G):
        v = in_ref[g]
        ym = jnp.maximum(jnp.dot(re, v, preferred_element_type=jnp.float32),
                         jnp.dot(ro, v, preferred_element_type=jnp.float32))
        out_ref[g] = jnp.maximum(jnp.dot(ym, pe, preferred_element_type=jnp.float32),
                                 jnp.dot(ym, po, preferred_element_type=jnp.float32))


def _gap_fc_logsoftmax_block(in_ref, w9_ref, o_ref):
    """Global average pool + (commuted) bias-free 1x1 conv + log_softmax.

    AvgPool and the 1x1 conv commute, so we pool the 16-channel 5x5 map first and
    only then apply the tiny (16, 10) matmul (25x less matmul work, no (N,5,5,10)
    intermediate)."""
    G, hsp, lin = in_ref.shape
    cch = lin // hsp
    sel = _chan_sum_mat(hsp, cch)            # (lin, cch)
    inv_cnt = 1.0 / float(hsp * hsp)
    w9 = w9_ref[...]                         # (cch, num_classes)

    for g in range(G):
        srow = jnp.sum(in_ref[g], axis=0, keepdims=True)                        # (1, lin)
        gap = jnp.dot(srow, sel, preferred_element_type=jnp.float32) * inv_cnt  # (1, cch)
        logits = jnp.dot(gap, w9, preferred_element_type=jnp.float32)           # (1, ncls)
        m = jnp.max(logits, axis=-1, keepdims=True)
        e = logits - m
        lse = jnp.log(jnp.sum(jnp.exp(e), axis=-1, keepdims=True))
        o_ref[g:g + 1, :] = e - lse


def _gbnnet_kernel(x_ref, b1, b2, b3, b4, b5, b6, w9_ref, o_ref,
                   a1, a2, a3, ap, a4, a5, a6):
    """Whole GBNNet forward for one ghost-batch group (one grid step)."""
    _conv_gbn_relu_block(x_ref, a1, b1)      # 28 -> 26, C 1 -> 8
    _conv_gbn_relu_block(a1, a2, b2)         # 26 -> 24
    _conv_gbn_relu_block(a2, a3, b3)         # 24 -> 22
    _maxpool2x2_block(a3, ap)                # 22 -> 11
    _conv_gbn_relu_block(ap, a4, b4)         # 11 -> 9,  C 8 -> 16
    _conv_gbn_relu_block(a4, a5, b5)         # 9  -> 7
    _conv_gbn_relu_block(a5, a6, b6)         # 7  -> 5
    _gap_fc_logsoftmax_block(a6, w9_ref, o_ref)


# ----------------------------------------------------------------------------
# Host-side glue: weight expansion (batch independent) and the pallas_call
# ----------------------------------------------------------------------------
def _banded_weights(w, w_in):
    """Expand a (3,3,Cin,Cout) conv weight into 3 banded matrices (one per dy) of
    shape (w_in*Cin, w_out*Cout) so a 'valid' 3x3 conv of a lane-dense (H, W*C)
    activation slab becomes 3 plain 2-D matmuls inside the kernel."""
    kh, kw, cin, cout = w.shape
    w_out = w_in - kw + 1
    mats = []
    for dy in range(kh):
        b4 = jnp.zeros((w_in, w_out, cin, cout), w.dtype)
        for dx in range(kw):
            diag = jnp.eye(w_in, w_out, k=-dx, dtype=w.dtype)
            b4 = b4 + diag[:, :, None, None] * w[dy, dx][None, None, :, :]
        mats.append(jnp.transpose(b4, (0, 2, 1, 3)).reshape(w_in * cin, w_out * cout))
    return jnp.stack(mats, axis=0)           # (3, w_in*cin, w_out*cout)


def gbnnet_forward(x_nchw, params, num_splits):
    """x_nchw: (N, 1, 28, 28) -> (N, 10) log-probabilities (training-mode GBN)."""
    N, cin, H, W = x_nchw.shape
    S = int(num_splits)
    assert cin == 1 and H == W and N % S == 0
    G = N // S

    conv_ws = [params["w1"], params["w2"], params["w3"],
               params["w4"], params["w5"], params["w6"]]

    banded = []
    scratch = []
    wcur = W
    for li, w in enumerate(conv_ws):
        if li == 3:                          # 2x2 max-pool sits between conv3 and conv4
            wcur = wcur // 2
        banded.append(_banded_weights(w, wcur))
        ho = wcur - 2
        cout = w.shape[-1]
        scratch.append(pltpu.VMEM((G, ho, ho * cout), jnp.float32))
        if li == 2:                          # pooled-activation scratch
            hp = ho // 2
            scratch.append(pltpu.VMEM((G, hp, hp * cout), jnp.float32))
        wcur = ho

    w9 = params["w9"]
    w9m = w9.reshape(w9.shape[2], w9.shape[3])           # (16, 10)
    ncls = w9m.shape[1]

    # Ghost grouping without any HBM transpose: sample n -> (g, s) = (n // S, n % S),
    # exactly matching the .view(-1, C*num_splits, H, W) trick in PyTorch.
    x4 = x_nchw.reshape(G, S, H, W)

    in_specs = [pl.BlockSpec((G, None, H, W), lambda s: (0, s, 0, 0))]
    for b in banded:
        in_specs.append(pl.BlockSpec(b.shape, lambda s: (0, 0, 0)))
    in_specs.append(pl.BlockSpec(w9m.shape, lambda s: (0, 0)))

    out = pl.pallas_call(
        _gbnnet_kernel,
        out_shape=jax.ShapeDtypeStruct((S, G, ncls), jnp.float32),
        grid=(S,),
        in_specs=in_specs,
        out_specs=pl.BlockSpec((None, G, ncls), lambda s: (s, 0, 0)),
        scratch_shapes=scratch,
        compiler_params=pltpu.CompilerParams(dimension_semantics=("parallel",)),
    )(x4, *banded, w9m)

    # out[s, g] holds sample n = g*S + s
    return jnp.transpose(out, (1, 0, 2)).reshape(N, ncls)


# ----------------------------------------------------------------------------
# Pure-JAX reference (for validation) and parameter init
# ----------------------------------------------------------------------------
def gbnnet_reference(x_nchw, params, num_splits):
    S = int(num_splits)

    def conv(x, w):
        return jax.lax.conv_general_dilated(
            x, w, window_strides=(1, 1), padding="VALID",
            dimension_numbers=("NHWC", "HWIO", "NHWC"),
            precision=jax.lax.Precision.HIGHEST)

    def gbn_relu(y):
        n = y.shape[0]
        g = n // S
        yg = y.reshape(g, S, *y.shape[1:])
        mean = jnp.mean(yg, axis=(0, 2, 3), keepdims=True)
        var = jnp.mean(jnp.square(yg - mean), axis=(0, 2, 3), keepdims=True)
        yn = (yg - mean) * jax.lax.rsqrt(var + EPS)
        return jnp.maximum(yn.reshape(y.shape), 0.0)

    x = jnp.transpose(x_nchw, (0, 2, 3, 1))
    x = gbn_relu(conv(x, params["w1"]))
    x = gbn_relu(conv(x, params["w2"]))
    x = gbn_relu(conv(x, params["w3"]))
    n, h, w, c = x.shape
    x = x.reshape(n, h // 2, 2, w // 2, 2, c).max(axis=(2, 4))
    x = gbn_relu(conv(x, params["w4"]))
    x = gbn_relu(conv(x, params["w5"]))
    x = gbn_relu(conv(x, params["w6"]))
    x = conv(x, params["w9"])                    # 1x1 conv, 16 -> 10
    logits = jnp.mean(x, axis=(1, 2))            # AvgPool2d(5) on a 5x5 map
    return jax.nn.log_softmax(logits, axis=-1)


def init_params(key):
    def conv_w(k, kh, cin, cout):
        fan_in = kh * kh * cin
        return jax.random.normal(k, (kh, kh, cin, cout), jnp.float32) / jnp.sqrt(fan_in)

    ks = jax.random.split(key, 7)
    return {
        "w1": conv_w(ks[0], 3, 1, 8),
        "w2": conv_w(ks[1], 3, 8, 8),
        "w3": conv_w(ks[2], 3, 8, 8),
        "w4": conv_w(ks[3], 3, 8, 16),
        "w5": conv_w(ks[4], 3, 16, 16),
        "w6": conv_w(ks[5], 3, 16, 16),
        "w9": conv_w(ks[6], 1, 16, 10),
    }


if __name__ == "__main__":
    key = jax.random.PRNGKey(0)
    k_params, k_x = jax.random.split(key)

    N = 4              # batch
    GBN_SPLITS = 2     # ghost-batch splits (module default 0 is degenerate in PyTorch)
    params = init_params(k_params)
    x = jax.random.normal(k_x, (N, 1, 28, 28), jnp.float32)   # NCHW, MNIST-shaped

    fwd = jax.jit(gbnnet_forward, static_argnums=2)
    out = jax.block_until_ready(fwd(x, params, GBN_SPLITS))

    assert out.shape == (N, 10), out.shape
    row_sums = jnp.sum(jnp.exp(out), axis=-1)
    assert bool(jnp.all(jnp.abs(row_sums - 1.0) < 1e-3)), row_sums

    ref = gbnnet_reference(x, params, GBN_SPLITS)
    max_err = float(jnp.max(jnp.abs(out - ref)))
    assert max_err < 5e-2, f"max |kernel - reference| = {max_err}"

    print("KERNEL_OK")
</pallas_src>

<mosaic_0001>
module attributes {stable_mosaic.version = 11 : i64} {
  func.func @_gbnnet_kernel(%arg0: i32, %arg1: memref<2x1x28x28xf32, #tpu.memory_space<vmem>>, %arg2: memref<3x28x208xf32, #tpu.memory_space<vmem>>, %arg3: memref<3x208x192xf32, #tpu.memory_space<vmem>>, %arg4: memref<3x192x176xf32, #tpu.memory_space<vmem>>, %arg5: memref<3x88x144xf32, #tpu.memory_space<vmem>>, %arg6: memref<3x144x112xf32, #tpu.memory_space<vmem>>, %arg7: memref<3x112x80xf32, #tpu.memory_space<vmem>>, %arg8: memref<16x10xf32, #tpu.memory_space<vmem>>, %arg9: memref<1x2x10xf32, #tpu.memory_space<vmem>>, %arg10: memref<2x26x208xf32, #tpu.memory_space<vmem>>, %arg11: memref<2x24x192xf32, #tpu.memory_space<vmem>>, %arg12: memref<2x22x176xf32, #tpu.memory_space<vmem>>, %arg13: memref<2x11x88xf32, #tpu.memory_space<vmem>>, %arg14: memref<2x9x144xf32, #tpu.memory_space<vmem>>, %arg15: memref<2x7x112xf32, #tpu.memory_space<vmem>>, %arg16: memref<2x5x80xf32, #tpu.memory_space<vmem>>) attributes {dimension_semantics = [#tpu.dimension_semantics<parallel>], iteration_bounds = array<i64: 2>, scalar_prefetch = 0 : i64, scratch_operands = 7 : i64, tpu.core_type = #tpu.core_type<tc>, window_params = [{transform_indices = @transform_0, window_bounds = array<i64: 2, 1, 28, 28>}, {pipeline_mode = #tpu.pipeline_mode<synchronous>, transform_indices = @transform_1, window_bounds = array<i64: 3, 28, 208>}, {pipeline_mode = #tpu.pipeline_mode<synchronous>, transform_indices = @transform_2, window_bounds = array<i64: 3, 208, 192>}, {pipeline_mode = #tpu.pipeline_mode<synchronous>, transform_indices = @transform_3, window_bounds = array<i64: 3, 192, 176>}, {pipeline_mode = #tpu.pipeline_mode<synchronous>, transform_indices = @transform_4, window_bounds = array<i64: 3, 88, 144>}, {pipeline_mode = #tpu.pipeline_mode<synchronous>, transform_indices = @transform_5, window_bounds = array<i64: 3, 144, 112>}, {pipeline_mode = #tpu.pipeline_mode<synchronous>, transform_indices = @transform_6, window_bounds = array<i64: 3, 112, 80>}, {pipeline_mode = #tpu.pipeline_mode<synchronous>, transform_indices = @transform_7, window_bounds = array<i64: 16, 10>}, {transform_indices = @transform_8, window_bounds = array<i64: 1, 2, 10>}]} {
    %c0 = arith.constant 0 : index
    %c0_0 = arith.constant 0 : index
    %c0_1 = arith.constant 0 : index
    %0 = vector.load %arg2[%c0, %c0_0, %c0_1] : memref<3x28x208xf32, #tpu.memory_space<vmem>>, vector<1x28x208xf32>
    %1 = vector.shape_cast %0 : vector<1x28x208xf32> to vector<28x208xf32>
    %c1 = arith.constant 1 : index
    %c0_2 = arith.constant 0 : index
    %c0_3 = arith.constant 0 : index
    %2 = vector.load %arg2[%c1, %c0_2, %c0_3] : memref<3x28x208xf32, #tpu.memory_space<vmem>>, vector<1x28x208xf32>
    %3 = vector.shape_cast %2 : vector<1x28x208xf32> to vector<28x208xf32>
    %c2 = arith.constant 2 : index
    %c0_4 = arith.constant 0 : index
    %c0_5 = arith.constant 0 : index
    %4 = vector.load %arg2[%c2, %c0_4, %c0_5] : memref<3x28x208xf32, #tpu.memory_space<vmem>>, vector<1x28x208xf32>
    %5 = vector.shape_cast %4 : vector<1x28x208xf32> to vector<28x208xf32>
    %c0_6 = arith.constant 0 : index
    %c0_7 = arith.constant 0 : index
    %c0_8 = arith.constant 0 : index
    %c0_9 = arith.constant 0 : index
    %6 = vector.load %arg1[%c0_6, %c0_7, %c0_8, %c0_9] : memref<2x1x28x28xf32, #tpu.memory_space<vmem>>, vector<1x1x26x28xf32>
    %7 = vector.shape_cast %6 : vector<1x1x26x28xf32> to vector<26x28xf32>
    %cst = arith.constant dense<0.000000e+00> : vector<26x208xf32>
    %8 = tpu.matmul %7, %1, %cst {dimension_numbers = #tpu.dot_dimension_numbers<[1], [0], [0], [1], [0, 0, 1, 1], [], []>} : vector<26x28xf32>, vector<28x208xf32>, vector<26x208xf32> -> vector<26x208xf32>
    %c0_10 = arith.constant 0 : index
    %c0_11 = arith.constant 0 : index
    %c1_12 = arith.constant 1 : index
    %c0_13 = arith.constant 0 : index
    %9 = vector.load %arg1[%c0_10, %c0_11, %c1_12, %c0_13] : memref<2x1x28x28xf32, #tpu.memory_space<vmem>>, vector<1x1x26x28xf32>
    %10 = vector.shape_cast %9 : vector<1x1x26x28xf32> to vector<26x28xf32>
    %cst_14 = arith.constant dense<0.000000e+00> : vector<26x208xf32>
    %11 = tpu.matmul %10, %3, %cst_14 {dimension_numbers = #tpu.dot_dimension_numbers<[1], [0], [0], [1], [0, 0, 1, 1], [], []>} : vector<26x28xf32>, vector<28x208xf32>, vector<26x208xf32> -> vector<26x208xf32>
    %12 = arith.addf %8, %11 : vector<26x208xf32>
    %c0_15 = arith.constant 0 : index
    %c0_16 = arith.constant 0 : index
    %c2_17 = arith.constant 2 : index
    %c0_18 = arith.constant 0 : index
    %13 = vector.load %arg1[%c0_15, %c0_16, %c2_17, %c0_18] : memref<2x1x28x28xf32, #tpu.memory_space<vmem>>, vector<1x1x26x28xf32>
    %14 = vector.shape_cast %13 : vector<1x1x26x28xf32> to vector<26x28xf32>
    %cst_19 = arith.constant dense<0.000000e+00> : vector<26x208xf32>
    %15 = tpu.matmul %14, %5, %cst_19 {dimension_numbers = #tpu.dot_dimension_numbers<[1], [0], [0], [1], [0, 0, 1, 1], [], []>} : vector<26x28xf32>, vector<28x208xf32>, vector<26x208xf32> -> vector<26x208xf32>
    %16 = arith.addf %12, %15 : vector<26x208xf32>
    %c0_20 = arith.constant 0 : index
    %c0_21 = arith.constant 0 : index
    %c0_22 = arith.constant 0 : index
    %17 = vector.load %arg10[%c0_20, %c0_21, %c0_22] : memref<2x26x208xf32, #tpu.memory_space<vmem>>, vector<1x26x208xf32>
    %18 = vector.shape_cast %17 : vector<1x26x208xf32> to vector<26x208xf32>
    %19 = vector.shape_cast %16 : vector<26x208xf32> to vector<1x26x208xf32>
    tpu.vector_store %arg10[%c0_20, %c0_21, %c0_22], %19 {strides = array<i32>} : memref<2x26x208xf32, #tpu.memory_space<vmem>>, vector<1x26x208xf32>,
    %c1_23 = arith.constant 1 : index
    %c0_24 = arith.constant 0 : index
    %c0_25 = arith.constant 0 : index
    %c0_26 = arith.constant 0 : index
    %20 = vector.load %arg1[%c1_23, %c0_24, %c0_25, %c0_26] : memref<2x1x28x28xf32, #tpu.memory_space<vmem>>, vector<1x1x26x28xf32>
    %21 = vector.shape_cast %20 : vector<1x1x26x28xf32> to vector<26x28xf32>
    %cst_27 = arith.constant dense<0.000000e+00> : vector<26x208xf32>
    %22 = tpu.matmul %21, %1, %cst_27 {dimension_numbers = #tpu.dot_dimension_numbers<[1], [0], [0], [1], [0, 0, 1, 1], [], []>} : vector<26x28xf32>, vector<28x208xf32>, vector<26x208xf32> -> vector<26x208xf32>
    %c1_28 = arith.constant 1 : index
    %c0_29 = arith.constant 0 : index
    %c1_30 = arith.constant 1 : index
    %c0_31 = arith.constant 0 : index
    %23 = vector.load %arg1[%c1_28, %c0_29, %c1_30, %c0_31] : memref<2x1x28x28xf32, #tpu.memory_space<vmem>>, vector<1x1x26x28xf32>
    %24 = vector.shape_cast %23 : vector<1x1x26x28xf32> to vector<26x28xf32>
    %cst_32 = arith.constant dense<0.000000e+00> : vector<26x208xf32>
    %25 = tpu.matmul %24, %3, %cst_32 {dimension_numbers = #tpu.dot_dimension_numbers<[1], [0], [0], [1], [0, 0, 1, 1], [], []>} : vector<26x28xf32>, vector<28x208xf32>, vector<26x208xf32> -> vector<26x208xf32>
    %26 = arith.addf %22, %25 : vector<26x208xf32>
    %c1_33 = arith.constant 1 : index
    %c0_34 = arith.constant 0 : index
    %c2_35 = arith.constant 2 : index
    %c0_36 = arith.constant 0 : index
    %27 = vector.load %arg1[%c1_33, %c0_34, %c2_35, %c0_36] : memref<2x1x28x28xf32, #tpu.memory_space<vmem>>, vector<1x1x26x28xf32>
    %28 = vector.shape_cast %27 : vector<1x1x26x28xf32> to vector<26x28xf32>
    %cst_37 = arith.constant dense<0.000000e+00> : vector<26x208xf32>
    %29 = tpu.matmul %28, %5, %cst_37 {dimension_numbers = #tpu.dot_dimension_numbers<[1], [0], [0], [1], [0, 0, 1, 1], [], []>} : vector<26x28xf32>, vector<28x208xf32>, vector<26x208xf32> -> vector<26x208xf32>
    %30 = arith.addf %26, %29 : vector<26x208xf32>
    %c1_38 = arith.constant 1 : index
    %c0_39 = arith.constant 0 : index
    %c0_40 = arith.constant 0 : index
    %31 = vector.load %arg10[%c1_38, %c0_39, %c0_40] : memref<2x26x208xf32, #tpu.memory_space<vmem>>, vector<1x26x208xf32>
    %32 = vector.shape_cast %31 : vector<1x26x208xf32> to vector<26x208xf32>
    %33 = vector.shape_cast %30 : vector<26x208xf32> to vector<1x26x208xf32>
    tpu.vector_store %arg10[%c1_38, %c0_39, %c0_40], %33 {strides = array<i32>} : memref<2x26x208xf32, #tpu.memory_space<vmem>>, vector<1x26x208xf32>,
    %34 = tpu.iota {dimensions = array<i32: 0>} : vector<208x8xi32>
    %35 = tpu.iota {dimensions = array<i32: 1>} : vector<208x8xi32>
    %c7_i32 = arith.constant 7 : i32
    %36 = vector.broadcast %c7_i32 : i32 to vector<208x8xi32>
    %37 = arith.andi %34, %36 : vector<208x8xi32>
    %38 = arith.cmpi eq, %37, %35 : vector<208x8xi32>
    %cst_41 = arith.constant 1.000000e+00 : f32
    %cst_42 = arith.constant 0.000000e+00 : f32
    %39 = vector.broadcast %cst_41 : f32 to vector<208x8xf32>
    %40 = vector.broadcast %cst_42 : f32 to vector<208x8xf32>
    %41 = arith.select %38, %39, %40 : vector<208x8xi1>, vector<208x8xf32>
    %42 = tpu.iota {dimensions = array<i32: 0>} : vector<8x208xi32>
    %43 = tpu.iota {dimensions = array<i32: 1>} : vector<8x208xi32>
    %c7_i32_43 = arith.constant 7 : i32
    %44 = vector.broadcast %c7_i32_43 : i32 to vector<8x208xi32>
    %45 = arith.andi %43, %44 : vector<8x208xi32>
    %46 = arith.cmpi eq, %45, %42 : vector<8x208xi32>
    %cst_44 = arith.constant 1.000000e+00 : f32
    %cst_45 = arith.constant 0.000000e+00 : f32
    %47 = vector.broadcast %cst_44 : f32 to vector<8x208xf32>
    %48 = vector.broadcast %cst_45 : f32 to vector<8x208xf32>
    %49 = arith.select %46, %47, %48 : vector<8x208xi1>, vector<8x208xf32>
    %cst_46 = arith.constant 0.000000e+00 : f32
    %50 = vector.broadcast %cst_46 : f32 to vector<1x208xf32>
    %c0_47 = arith.constant 0 : index
    %c0_48 = arith.constant 0 : index
    %c0_49 = arith.constant 0 : index
    %51 = vector.load %arg10[%c0_47, %c0_48, %c0_49] : memref<2x26x208xf32, #tpu.memory_space<vmem>>, vector<1x26x208xf32>
    %52 = vector.shape_cast %51 : vector<1x26x208xf32> to vector<26x208xf32>
    %cst_50 = arith.constant dense<0.000000e+00> : vector<208xf32>
    %53 = vector.multi_reduction <add>, %52, %cst_50 [0] : vector<26x208xf32> to vector<208xf32>
    %54 = vector.shape_cast %53 : vector<208xf32> to vector<1x208xf32>
    %55 = arith.addf %50, %54 : vector<1x208xf32>
    %c1_51 = arith.constant 1 : index
    %c0_52 = arith.constant 0 : index
    %c0_53 = arith.constant 0 : index
    %56 = vector.load %arg10[%c1_51, %c0_52, %c0_53] : memref<2x26x208xf32, #tpu.memory_space<vmem>>, vector<1x26x208xf32>
    %57 = vector.shape_cast %56 : vector<1x26x208xf32> to vector<26x208xf32>
    %cst_54 = arith.constant dense<0.000000e+00> : vector<208xf32>
    %58 = vector.multi_reduction <add>, %57, %cst_54 [0] : vector<26x208xf32> to vector<208xf32>
    %59 = vector.shape_cast %58 : vector<208xf32> to vector<1x208xf32>
    %60 = arith.addf %55, %59 : vector<1x208xf32>
    %cst_55 = arith.constant dense<0.000000e+00> : vector<1x8xf32>
    %61 = tpu.matmul %60, %41, %cst_55 {dimension_numbers = #tpu.dot_dimension_numbers<[1], [0], [0], [1], [0, 0, 1, 1], [], []>} : vector<1x208xf32>, vector<208x8xf32>, vector<1x8xf32> -> vector<1x8xf32>
    %cst_56 = arith.constant 7.396450e-04 : f32
    %62 = vector.broadcast %cst_56 : f32 to vector<1x8xf32>
    %63 = arith.mulf %61, %62 : vector<1x8xf32>
    %cst_57 = arith.constant dense<0.000000e+00> : vector<1x208xf32>
    %64 = tpu.matmul %63, %49, %cst_57 {dimension_numbers = #tpu.dot_dimension_numbers<[1], [0], [0], [1], [0, 0, 1, 1], [], []>} : vector<1x8xf32>, vector<8x208xf32>, vector<1x208xf32> -> vector<1x208xf32>
    %cst_58 = arith.constant 0.000000e+00 : f32
    %65 = vector.broadcast %cst_58 : f32 to vector<1x208xf32>
    %c0_59 = arith.constant 0 : index
    %c0_60 = arith.constant 0 : index
    %c0_61 = arith.constant 0 : index
    %66 = vector.load %arg10[%c0_59, %c0_60, %c0_61] : memref<2x26x208xf32, #tpu.memory_space<vmem>>, vector<1x26x208xf32>
    %67 = vector.shape_cast %66 : vector<1x26x208xf32> to vector<26x208xf32>
    %68 = vector.broadcast %64 : vector<1x208xf32> to vector<26x208xf32>
    %69 = arith.subf %67, %68 : vector<26x208xf32>
    %70 = arith.mulf %69, %69 : vector<26x208xf32>
    %cst_62 = arith.constant dense<0.000000e+00> : vector<208xf32>
    %71 = vector.multi_reduction <add>, %70, %cst_62 [0] : vector<26x208xf32> to vector<208xf32>
    %72 = vector.shape_cast %71 : vector<208xf32> to vector<1x208xf32>
    %73 = arith.addf %65, %72 : vector<1x208xf32>
    %c1_63 = arith.constant 1 : index
    %c0_64 = arith.constant 0 : index
    %c0_65 = arith.constant 0 : index
    %74 = vector.load %arg10[%c1_63, %c0_64, %c0_65] : memref<2x26x208xf32, #tpu.memory_space<vmem>>, vector<1x26x208xf32>
    %75 = vector.shape_cast %74 : vector<1x26x208xf32> to vector<26x208xf32>
    %76 = vector.broadcast %64 : vector<1x208xf32> to vector<26x208xf32>
    %77 = arith.subf %75, %76 : vector<26x208xf32>
    %78 = arith.mulf %77, %77 : vector<26x208xf32>
    %cst_66 = arith.constant dense<0.000000e+00> : vector<208xf32>
    %79 = vector.multi_reduction <add>, %78, %cst_66 [0] : vector<26x208xf32> to vector<208xf32>
    %80 = vector.shape_cast %79 : vector<208xf32> to vector<1x208xf32>
    %81 = arith.addf %73, %80 : vector<1x208xf32>
    %cst_67 = arith.constant dense<0.000000e+00> : vector<1x8xf32>
    %82 = tpu.matmul %81, %41, %cst_67 {dimension_numbers = #tpu.dot_dimension_numbers<[1], [0], [0], [1], [0, 0, 1, 1], [], []>} : vector<1x208xf32>, vector<208x8xf32>, vector<1x8xf32> -> vector<1x8xf32>
    %cst_68 = arith.constant 7.396450e-04 : f32
    %83 = vector.broadcast %cst_68 : f32 to vector<1x8xf32>
    %84 = arith.mulf %82, %83 : vector<1x8xf32>
    %cst_69 = arith.constant 9.99999974E-6 : f32
    %85 = vector.broadcast %cst_69 : f32 to vector<1x8xf32>
    %86 = arith.addf %84, %85 : vector<1x8xf32>
    %87 = math.rsqrt %86 : vector<1x8xf32>
    %cst_70 = arith.constant dense<0.000000e+00> : vector<1x208xf32>
    %88 = tpu.matmul %87, %49, %cst_70 {dimension_numbers = #tpu.dot_dimension_numbers<[1], [0], [0], [1], [0, 0, 1, 1], [], []>} : vector<1x8xf32>, vector<8x208xf32>, vector<1x208xf32> -> vector<1x208xf32>
    %c0_71 = arith.constant 0 : index
    %c0_72 = arith.constant 0 : index
    %c0_73 = arith.constant 0 : index
    %89 = vector.load %arg10[%c0_71, %c0_72, %c0_73] : memref<2x26x208xf32, #tpu.memory_space<vmem>>, vector<1x26x208xf32>
    %90 = vector.shape_cast %89 : vector<1x26x208xf32> to vector<26x208xf32>
    %91 = vector.broadcast %64 : vector<1x208xf32> to vector<26x208xf32>
    %92 = arith.subf %90, %91 : vector<26x208xf32>
    %93 = vector.broadcast %88 : vector<1x208xf32> to vector<26x208xf32>
    %94 = arith.mulf %92, %93 : vector<26x208xf32>
    %cst_74 = arith.constant 0.000000e+00 : f32
    %95 = vector.broadcast %cst_74 : f32 to vector<26x208xf32>
    %96 = arith.maximumf %94, %95 : vector<26x208xf32>
    %c0_75 = arith.constant 0 : index
    %c0_76 = arith.constant 0 : index
    %c0_77 = arith.constant 0 : index
    %97 = vector.load %arg10[%c0_75, %c0_76, %c0_77] : memref<2x26x208xf32, #tpu.memory_space<vmem>>, vector<1x26x208xf32>
    %98 = vector.shape_cast %97 : vector<1x26x208xf32> to vector<26x208xf32>
    %99 = vector.shape_cast %96 : vector<26x208xf32> to vector<1x26x208xf32>
    tpu.vector_store %arg10[%c0_75, %c0_76, %c0_77], %99 {strides = array<i32>} : memref<2x26x208xf32, #tpu.memory_space<vmem>>, vector<1x26x208xf32>,
    %c1_78 = arith.constant 1 : index
    %c0_79 = arith.constant 0 : index
    %c0_80 = arith.constant 0 : index
    %100 = vector.load %arg10[%c1_78, %c0_79, %c0_80] : memref<2x26x208xf32, #tpu.memory_space<vmem>>, vector<1x26x208xf32>
    %101 = vector.shape_cast %100 : vector<1x26x208xf32> to vector<26x208xf32>
    %102 = vector.broadcast %64 : vector<1x208xf32> to vector<26x208xf32>
    %103 = arith.subf %101, %102 : vector<26x208xf32>
    %104 = vector.broadcast %88 : vector<1x208xf32> to vector<26x208xf32>
    %105 = arith.mulf %103, %104 : vector<26x208xf32>
    %cst_81 = arith.constant 0.000000e+00 : f32
    %106 = vector.broadcast %cst_81 : f32 to vector<26x208xf32>
    %107 = arith.maximumf %105, %106 : vector<26x208xf32>
    %c1_82 = arith.constant 1 : index
    %c0_83 = arith.constant 0 : index
    %c0_84 = arith.constant 0 : index
    %108 = vector.load %arg10[%c1_82, %c0_83, %c0_84] : memref<2x26x208xf32, #tpu.memory_space<vmem>>, vector<1x26x208xf32>
    %109 = vector.shape_cast %108 : vector<1x26x208xf32> to vector<26x208xf32>
    %110 = vector.shape_cast %107 : vector<26x208xf32> to vector<1x26x208xf32>
    tpu.vector_store %arg10[%c1_82, %c0_83, %c0_84], %110 {strides = array<i32>} : memref<2x26x208xf32, #tpu.memory_space<vmem>>, vector<1x26x208xf32>,
    %c0_85 = arith.constant 0 : index
    %c0_86 = arith.constant 0 : index
    %c0_87 = arith.constant 0 : index
    %111 = vector.load %arg3[%c0_85, %c0_86, %c0_87] : memref<3x208x192xf32, #tpu.memory_space<vmem>>, vector<1x208x192xf32>
    %112 = vector.shape_cast %111 : vector<1x208x192xf32> to vector<208x192xf32>
    %c1_88 = arith.constant 1 : index
    %c0_89 = arith.constant 0 : index
    %c0_90 = arith.constant 0 : index
    %113 = vector.load %arg3[%c1_88, %c0_89, %c0_90] : memref<3x208x192xf32, #tpu.memory_space<vmem>>, vector<1x208x192xf32>
    %114 = vector.shape_cast %113 : vector<1x208x192xf32> to vector<208x192xf32>
    %c2_91 = arith.constant 2 : index
    %c0_92 = arith.constant 0 : index
    %c0_93 = arith.constant 0 : index
    %115 = vector.load %arg3[%c2_91, %c0_92, %c0_93] : memref<3x208x192xf32, #tpu.memory_space<vmem>>, vector<1x208x192xf32>
    %116 = vector.shape_cast %115 : vector<1x208x192xf32> to vector<208x192xf32>
    %c0_94 = arith.constant 0 : index
    %c0_95 = arith.constant 0 : index
    %c0_96 = arith.constant 0 : index
    %117 = vector.load %arg10[%c0_94, %c0_95, %c0_96] : memref<2x26x208xf32, #tpu.memory_space<vmem>>, vector<1x24x208xf32>
    %118 = vector.shape_cast %117 : vector<1x24x208xf32> to vector<24x208xf32>
    %cst_97 = arith.constant dense<0.000000e+00> : vector<24x192xf32>
    %119 = tpu.matmul %118, %112, %cst_97 {dimension_numbers = #tpu.dot_dimension_numbers<[1], [0], [0], [1], [0, 0, 1, 1], [], []>} : vector<24x208xf32>, vector<208x192xf32>, vector<24x192xf32> -> vector<24x192xf32>
    %c0_98 = arith.constant 0 : index
    %c1_99 = arith.constant 1 : index
    %c0_100 = arith.constant 0 : index
    %120 = vector.load %arg10[%c0_98, %c1_99, %c0_100] : memref<2x26x208xf32, #tpu.memory_space<vmem>>, vector<1x24x208xf32>
    %121 = vector.shape_cast %120 : vector<1x24x208xf32> to vector<24x208xf32>
    %cst_101 = arith.constant dense<0.000000e+00> : vector<24x192xf32>
    %122 = tpu.matmul %121, %114, %cst_101 {dimension_numbers = #tpu.dot_dimension_numbers<[1], [0], [0], [1], [0, 0, 1, 1], [], []>} : vector<24x208xf32>, vector<208x192xf32>, vector<24x192xf32> -> vector<24x192xf32>
    %123 = arith.addf %119, %122 : vector<24x192xf32>
    %c0_102 = arith.constant 0 : index
    %c2_103 = arith.constant 2 : index
    %c0_104 = arith.constant 0 : index
    %124 = vector.load %arg10[%c0_102, %c2_103, %c0_104] : memref<2x26x208xf32, #tpu.memory_space<vmem>>, vector<1x24x208xf32>
    %125 = vector.shape_cast %124 : vector<1x24x208xf32> to vector<24x208xf32>
    %cst_105 = arith.constant dense<0.000000e+00> : vector<24x192xf32>
    %126 = tpu.matmul %125, %116, %cst_105 {dimension_numbers = #tpu.dot_dimension_numbers<[1], [0], [0], [1], [0, 0, 1, 1], [], []>} : vector<24x208xf32>, vector<208x192xf32>, vector<24x192xf32> -> vector<24x192xf32>
    %127 = arith.addf %123, %126 : vector<24x192xf32>
    %c0_106 = arith.constant 0 : index
    %c0_107 = arith.constant 0 : index
    %c0_108 = arith.constant 0 : index
    %128 = vector.load %arg11[%c0_106, %c0_107, %c0_108] : memref<2x24x192xf32, #tpu.memory_space<vmem>>, vector<1x24x192xf32>
    %129 = vector.shape_cast %128 : vector<1x24x192xf32> to vector<24x192xf32>
    %130 = vector.shape_cast %127 : vector<24x192xf32> to vector<1x24x192xf32>
    tpu.vector_store %arg11[%c0_106, %c0_107, %c0_108], %130 {strides = array<i32>} : memref<2x24x192xf32, #tpu.memory_space<vmem>>, vector<1x24x192xf32>,
    %c1_109 = arith.constant 1 : index
    %c0_110 = arith.constant 0 : index
    %c0_111 = arith.constant 0 : index
    %131 = vector.load %arg10[%c1_109, %c0_110, %c0_111] : memref<2x26x208xf32, #tpu.memory_space<vmem>>, vector<1x24x208xf32>
    %132 = vector.shape_cast %131 : vector<1x24x208xf32> to vector<24x208xf32>
    %cst_112 = arith.constant dense<0.000000e+00> : vector<24x192xf32>
    %133 = tpu.matmul %132, %112, %cst_112 {dimension_numbers = #tpu.dot_dimension_numbers<[1], [0], [0], [1], [0, 0, 1, 1], [], []>} : vector<24x208xf32>, vector<208x192xf32>, vector<24x192xf32> -> vector<24x192xf32>
    %c1_113 = arith.constant 1 : index
    %c1_114 = arith.constant 1 : index
    %c0_115 = arith.constant 0 : index
    %134 = vector.load %arg10[%c1_113, %c1_114, %c0_115] : memref<2x26x208xf32, #tpu.memory_space<vmem>>, vector<1x24x208xf32>
    %135 = vector.shape_cast %134 : vector<1x24x208xf32> to vector<24x208xf32>
    %cst_116 = arith.constant dense<0.000000e+00> : vector<24x192xf32>
    %136 = tpu.matmul %135, %114, %cst_116 {dimension_numbers = #tpu.dot_dimension_numbers<[1], [0], [0], [1], [0, 0, 1, 1], [], []>} : vector<24x208xf32>, vector<208x192xf32>, vector<24x192xf32> -> vector<24x192xf32>
    %137 = arith.addf %133, %136 : vector<24x192xf32>
    %c1_117 = arith.constant 1 : index
    %c2_118 = arith.constant 2 : index
    %c0_119 = arith.constant 0 : index
    %138 = vector.load %arg10[%c1_117, %c2_118, %c0_119] : memref<2x26x208xf32, #tpu.memory_space<vmem>>, vector<1x24x208xf32>
    %139 = vector.shape_cast %138 : vector<1x24x208xf32> to vector<24x208xf32>
    %cst_120 = arith.constant dense<0.000000e+00> : vector<24x192xf32>
    %140 = tpu.matmul %139, %116, %cst_120 {dimension_numbers = #tpu.dot_dimension_numbers<[1], [0], [0], [1], [0, 0, 1, 1], [], []>} : vector<24x208xf32>, vector<208x192xf32>, vector<24x192xf32> -> vector<24x192xf32>
    %141 = arith.addf %137, %140 : vector<24x192xf32>
    %c1_121 = arith.constant 1 : index
    %c0_122 = arith.constant 0 : index
    %c0_123 = arith.constant 0 : index
    %142 = vector.load %arg11[%c1_121, %c0_122, %c0_123] : memref<2x24x192xf32, #tpu.memory_space<vmem>>, vector<1x24x192xf32>
    %143 = vector.shape_cast %142 : vector<1x24x192xf32> to vector<24x192xf32>
    %144 = vector.shape_cast %141 : vector<24x192xf32> to vector<1x24x192xf32>
    tpu.vector_store %arg11[%c1_121, %c0_122, %c0_123], %144 {strides = array<i32>} : memref<2x24x192xf32, #tpu.memory_space<vmem>>, vector<1x24x192xf32>,
    %145 = tpu.iota {dimensions = array<i32: 0>} : vector<192x8xi32>
    %146 = tpu.iota {dimensions = array<i32: 1>} : vector<192x8xi32>
    %c7_i32_124 = arith.constant 7 : i32
    %147 = vector.broadcast %c7_i32_124 : i32 to vector<192x8xi32>
    %148 = arith.andi %145, %147 : vector<192x8xi32>
    %149 = arith.cmpi eq, %148, %146 : vector<192x8xi32>
    %cst_125 = arith.constant 1.000000e+00 : f32
    %cst_126 = arith.constant 0.000000e+00 : f32
    %150 = vector.broadcast %cst_125 : f32 to vector<192x8xf32>
    %151 = vector.broadcast %cst_126 : f32 to vector<192x8xf32>
    %152 = arith.select %149, %150, %151 : vector<192x8xi1>, vector<192x8xf32>
    %153 = tpu.iota {dimensions = array<i32: 0>} : vector<8x192xi32>
    %154 = tpu.iota {dimensions = array<i32: 1>} : vector<8x192xi32>
    %c7_i32_127 = arith.constant 7 : i32
    %155 = vector.broadcast %c7_i32_127 : i32 to vector<8x192xi32>
    %156 = arith.andi %154, %155 : vector<8x192xi32>
    %157 = arith.cmpi eq, %156, %153 : vector<8x192xi32>
    %cst_128 = arith.constant 1.000000e+00 : f32
    %cst_129 = arith.constant 0.000000e+00 : f32
    %158 = vector.broadcast %cst_128 : f32 to vector<8x192xf32>
    %159 = vector.broadcast %cst_129 : f32 to vector<8x192xf32>
    %160 = arith.select %157, %158, %159 : vector<8x192xi1>, vector<8x192xf32>
    %cst_130 = arith.constant 0.000000e+00 : f32
    %161 = vector.broadcast %cst_130 : f32 to vector<1x192xf32>
    %c0_131 = arith.constant 0 : index
    %c0_132 = arith.constant 0 : index
    %c0_133 = arith.constant 0 : index
    %162 = vector.load %arg11[%c0_131, %c0_132, %c0_133] : memref<2x24x192xf32, #tpu.memory_space<vmem>>, vector<1x24x192xf32>
    %163 = vector.shape_cast %162 : vector<1x24x192xf32> to vector<24x192xf32>
    %cst_134 = arith.constant dense<0.000000e+00> : vector<192xf32>
    %164 = vector.multi_reduction <add>, %163, %cst_134 [0] : vector<24x192xf32> to vector<192xf32>
    %165 = vector.shape_cast %164 : vector<192xf32> to vector<1x192xf32>
    %166 = arith.addf %161, %165 : vector<1x192xf32>
    %c1_135 = arith.constant 1 : index
    %c0_136 = arith.constant 0 : index
    %c0_137 = arith.constant 0 : index
    %167 = vector.load %arg11[%c1_135, %c0_136, %c0_137] : memref<2x24x192xf32, #tpu.memory_space<vmem>>, vector<1x24x192xf32>
    %168 = vector.shape_cast %167 : vector<1x24x192xf32> to vector<24x192xf32>
    %cst_138 = arith.constant dense<0.000000e+00> : vector<192xf32>
    %169 = vector.multi_reduction <add>, %168, %cst_138 [0] : vector<24x192xf32> to vector<192xf32>
    %170 = vector.shape_cast %169 : vector<192xf32> to vector<1x192xf32>
    %171 = arith.addf %166, %170 : vector<1x192xf32>
    %cst_139 = arith.constant dense<0.000000e+00> : vector<1x8xf32>
    %172 = tpu.matmul %171, %152, %cst_139 {dimension_numbers = #tpu.dot_dimension_numbers<[1], [0], [0], [1], [0, 0, 1, 1], [], []>} : vector<1x192xf32>, vector<192x8xf32>, vector<1x8xf32> -> vector<1x8xf32>
    %cst_140 = arith.constant 8.68055562E-4 : f32
    %173 = vector.broadcast %cst_140 : f32 to vector<1x8xf32>
    %174 = arith.mulf %172, %173 : vector<1x8xf32>
    %cst_141 = arith.constant dense<0.000000e+00> : vector<1x192xf32>
    %175 = tpu.matmul %174, %160, %cst_141 {dimension_numbers = #tpu.dot_dimension_numbers<[1], [0], [0], [1], [0, 0, 1, 1], [], []>} : vector<1x8xf32>, vector<8x192xf32>, vector<1x192xf32> -> vector<1x192xf32>
    %cst_142 = arith.constant 0.000000e+00 : f32
    %176 = vector.broadcast %cst_142 : f32 to vector<1x192xf32>
    %c0_143 = arith.constant 0 : index
    %c0_144 = arith.constant 0 : index
    %c0_145 = arith.constant 0 : index
    %177 = vector.load %arg11[%c0_143, %c0_144, %c0_145] : memref<2x24x192xf32, #tpu.memory_space<vmem>>, vector<1x24x192xf32>
    %178 = vector.shape_cast %177 : vector<1x24x192xf32> to vector<24x192xf32>
    %179 = vector.broadcast %175 : vector<1x192xf32> to vector<24x192xf32>
    %180 = arith.subf %178, %179 : vector<24x192xf32>
    %181 = arith.mulf %180, %180 : vector<24x192xf32>
    %cst_146 = arith.constant dense<0.000000e+00> : vector<192xf32>
    %182 = vector.multi_reduction <add>, %181, %cst_146 [0] : vector<24x192xf32> to vector<192xf32>
    %183 = vector.shape_cast %182 : vector<192xf32> to vector<1x192xf32>
    %184 = arith.addf %176, %183 : vector<1x192xf32>
    %c1_147 = arith.constant 1 : index
    %c0_148 = arith.constant 0 : index
    %c0_149 = arith.constant 0 : index
    %185 = vector.load %arg11[%c1_147, %c0_148, %c0_149] : memref<2x24x192xf32, #tpu.memory_space<vmem>>, vector<1x24x192xf32>
    %186 = vector.shape_cast %185 : vector<1x24x192xf32> to vector<24x192xf32>
    %187 = vector.broadcast %175 : vector<1x192xf32> to vector<24x192xf32>
    %188 = arith.subf %186, %187 : vector<24x192xf32>
    %189 = arith.mulf %188, %188 : vector<24x192xf32>
    %cst_150 = arith.constant dense<0.000000e+00> : vector<192xf32>
    %190 = vector.multi_reduction <add>, %189, %cst_150 [0] : vector<24x192xf32> to vector<192xf32>
    %191 = vector.shape_cast %190 : vector<192xf32> to vector<1x192xf32>
    %192 = arith.addf %184, %191 : vector<1x192xf32>
    %cst_151 = arith.constant dense<0.000000e+00> : vector<1x8xf32>
    %193 = tpu.matmul %192, %152, %cst_151 {dimension_numbers = #tpu.dot_dimension_numbers<[1], [0], [0], [1], [0, 0, 1, 1], [], []>} : vector<1x192xf32>, vector<192x8xf32>, vector<1x8xf32> -> vector<1x8xf32>
    %cst_152 = arith.constant 8.68055562E-4 : f32
    %194 = vector.broadcast %cst_152 : f32 to vector<1x8xf32>
    %195 = arith.mulf %193, %194 : vector<1x8xf32>
    %cst_153 = arith.constant 9.99999974E-6 : f32
    %196 = vector.broadcast %cst_153 : f32 to vector<1x8xf32>
    %197 = arith.addf %195, %196 : vector<1x8xf32>
    %198 = math.rsqrt %197 : vector<1x8xf32>
    %cst_154 = arith.constant dense<0.000000e+00> : vector<1x192xf32>
    %199 = tpu.matmul %198, %160, %cst_154 {dimension_numbers = #tpu.dot_dimension_numbers<[1], [0], [0], [1], [0, 0, 1, 1], [], []>} : vector<1x8xf32>, vector<8x192xf32>, vector<1x192xf32> -> vector<1x192xf32>
    %c0_155 = arith.constant 0 : index
    %c0_156 = arith.constant 0 : index
    %c0_157 = arith.constant 0 : index
    %200 = vector.load %arg11[%c0_155, %c0_156, %c0_157] : memref<2x24x192xf32, #tpu.memory_space<vmem>>, vector<1x24x192xf32>
    %201 = vector.shape_cast %200 : vector<1x24x192xf32> to vector<24x192xf32>
    %202 = vector.broadcast %175 : vector<1x192xf32> to vector<24x192xf32>
    %203 = arith.subf %201, %202 : vector<24x192xf32>
    %204 = vector.broadcast %199 : vector<1x192xf32> to vector<24x192xf32>
    %205 = arith.mulf %203, %204 : vector<24x192xf32>
    %cst_158 = arith.constant 0.000000e+00 : f32
    %206 = vector.broadcast %cst_158 : f32 to vector<24x192xf32>
    %207 = arith.maximumf %205, %206 : vector<24x192xf32>
    %c0_159 = arith.constant 0 : index
    %c0_160 = arith.constant 0 : index
    %c0_161 = arith.constant 0 : index
    %208 = vector.load %arg11[%c0_159, %c0_160, %c0_161] : memref<2x24x192xf32, #tpu.memory_space<vmem>>, vector<1x24x192xf32>
    %209 = vector.shape_cast %208 : vector<1x24x192xf32> to vector<24x192xf32>
    %210 = vector.shape_cast %207 : vector<24x192xf32> to vector<1x24x192xf32>
    tpu.vector_store %arg11[%c0_159, %c0_160, %c0_161], %210 {strides = array<i32>} : memref<2x24x192xf32, #tpu.memory_space<vmem>>, vector<1x24x192xf32>,
    %c1_162 = arith.constant 1 : index
    %c0_163 = arith.constant 0 : index
    %c0_164 = arith.constant 0 : index
    %211 = vector.load %arg11[%c1_162, %c0_163, %c0_164] : memref<2x24x192xf32, #tpu.memory_space<vmem>>, vector<1x24x192xf32>
    %212 = vector.shape_cast %211 : vector<1x24x192xf32> to vector<24x192xf32>
    %213 = vector.broadcast %175 : vector<1x192xf32> to vector<24x192xf32>
    %214 = arith.subf %212, %213 : vector<24x192xf32>
    %215 = vector.broadcast %199 : vector<1x192xf32> to vector<24x192xf32>
    %216 = arith.mulf %214, %215 : vector<24x192xf32>
    %cst_165 = arith.constant 0.000000e+00 : f32
    %217 = vector.broadcast %cst_165 : f32 to vector<24x192xf32>
    %218 = arith.maximumf %216, %217 : vector<24x192xf32>
    %c1_166 = arith.constant 1 : index
    %c0_167 = arith.constant 0 : index
    %c0_168 = arith.constant 0 : index
    %219 = vector.load %arg11[%c1_166, %c0_167, %c0_168] : memref<2x24x192xf32, #tpu.memory_space<vmem>>, vector<1x24x192xf32>
    %220 = vector.shape_cast %219 : vector<1x24x192xf32> to vector<24x192xf32>
    %221 = vector.shape_cast %218 : vector<24x192xf32> to vector<1x24x192xf32>
    tpu.vector_store %arg11[%c1_166, %c0_167, %c0_168], %221 {strides = array<i32>} : memref<2x24x192xf32, #tpu.memory_space<vmem>>, vector<1x24x192xf32>,
    %c0_169 = arith.constant 0 : index
    %c0_170 = arith.constant 0 : index
    %c0_171 = arith.constant 0 : index
    %222 = vector.load %arg4[%c0_169, %c0_170, %c0_171] : memref<3x192x176xf32, #tpu.memory_space<vmem>>, vector<1x192x176xf32>
    %223 = vector.shape_cast %222 : vector<1x192x176xf32> to vector<192x176xf32>
    %c1_172 = arith.constant 1 : index
    %c0_173 = arith.constant 0 : index
    %c0_174 = arith.constant 0 : index
    %224 = vector.load %arg4[%c1_172, %c0_173, %c0_174] : memref<3x192x176xf32, #tpu.memory_space<vmem>>, vector<1x192x176xf32>
    %225 = vector.shape_cast %224 : vector<1x192x176xf32> to vector<192x176xf32>
    %c2_175 = arith.constant 2 : index
    %c0_176 = arith.constant 0 : index
    %c0_177 = arith.constant 0 : index
    %226 = vector.load %arg4[%c2_175, %c0_176, %c0_177] : memref<3x192x176xf32, #tpu.memory_space<vmem>>, vector<1x192x176xf32>
    %227 = vector.shape_cast %226 : vector<1x192x176xf32> to vector<192x176xf32>
    %c0_178 = arith.constant 0 : index
    %c0_179 = arith.constant 0 : index
    %c0_180 = arith.constant 0 : index
    %228 = vector.load %arg11[%c0_178, %c0_179, %c0_180] : memref<2x24x192xf32, #tpu.memory_space<vmem>>, vector<1x22x192xf32>
    %229 = vector.shape_cast %228 : vector<1x22x192xf32> to vector<22x192xf32>
    %cst_181 = arith.constant dense<0.000000e+00> : vector<22x176xf32>
    %230 = tpu.matmul %229, %223, %cst_181 {dimension_numbers = #tpu.dot_dimension_numbers<[1], [0], [0], [1], [0, 0, 1, 1], [], []>} : vector<22x192xf32>, vector<192x176xf32>, vector<22x176xf32> -> vector<22x176xf32>
    %c0_182 = arith.constant 0 : index
    %c1_183 = arith.constant 1 : index
    %c0_184 = arith.constant 0 : index
    %231 = vector.load %arg11[%c0_182, %c1_183, %c0_184] : memref<2x24x192xf32, #tpu.memory_space<vmem>>, vector<1x22x192xf32>
    %232 = vector.shape_cast %231 : vector<1x22x192xf32> to vector<22x192xf32>
    %cst_185 = arith.constant dense<0.000000e+00> : vector<22x176xf32>
    %233 = tpu.matmul %232, %225, %cst_185 {dimension_numbers = #tpu.dot_dimension_numbers<[1], [0], [0], [1], [0, 0, 1, 1], [], []>} : vector<22x192xf32>, vector<192x176xf32>, vector<22x176xf32> -> vector<22x176xf32>
    %234 = arith.addf %230, %233 : vector<22x176xf32>
    %c0_186 = arith.constant 0 : index
    %c2_187 = arith.constant 2 : index
    %c0_188 = arith.constant 0 : index
    %235 = vector.load %arg11[%c0_186, %c2_187, %c0_188] : memref<2x24x192xf32, #tpu.memory_space<vmem>>, vector<1x22x192xf32>
    %236 = vector.shape_cast %235 : vector<1x22x192xf32> to vector<22x192xf32>
    %cst_189 = arith.constant dense<0.000000e+00> : vector<22x176xf32>
    %237 = tpu.matmul %236, %227, %cst_189 {dimension_numbers = #tpu.dot_dimension_numbers<[1], [0], [0], [1], [0, 0, 1, 1], [], []>} : vector<22x192xf32>, vector<192x176xf32>, vector<22x176xf32> -> vector<22x176xf32>
    %238 = arith.addf %234, %237 : vector<22x176xf32>
    %c0_190 = arith.constant 0 : index
    %c0_191 = arith.constant 0 : index
    %c0_192 = arith.constant 0 : index
    %239 = vector.load %arg12[%c0_190, %c0_191, %c0_192] : memref<2x22x176xf32, #tpu.memory_space<vmem>>, vector<1x22x176xf32>
    %240 = vector.shape_cast %239 : vector<1x22x176xf32> to vector<22x176xf32>
    %241 = vector.shape_cast %238 : vector<22x176xf32> to vector<1x22x176xf32>
    tpu.vector_store %arg12[%c0_190, %c0_191, %c0_192], %241 {strides = array<i32>} : memref<2x22x176xf32, #tpu.memory_space<vmem>>, vector<1x22x176xf32>,
    %c1_193 = arith.constant 1 : index
    %c0_194 = arith.constant 0 : index
    %c0_195 = arith.constant 0 : index
    %242 = vector.load %arg11[%c1_193, %c0_194, %c0_195] : memref<2x24x192xf32, #tpu.memory_space<vmem>>, vector<1x22x192xf32>
    %243 = vector.shape_cast %242 : vector<1x22x192xf32> to vector<22x192xf32>
    %cst_196 = arith.constant dense<0.000000e+00> : vector<22x176xf32>
    %244 = tpu.matmul %243, %223, %cst_196 {dimension_numbers = #tpu.dot_dimension_numbers<[1], [0], [0], [1], [0, 0, 1, 1], [], []>} : vector<22x192xf32>, vector<192x176xf32>, vector<22x176xf32> -> vector<22x176xf32>
    %c1_197 = arith.constant 1 : index
    %c1_198 = arith.constant 1 : index
    %c0_199 = arith.constant 0 : index
    %245 = vector.load %arg11[%c1_197, %c1_198, %c0_199] : memref<2x24x192xf32, #tpu.memory_space<vmem>>, vector<1x22x192xf32>
    %246 = vector.shape_cast %245 : vector<1x22x192xf32> to vector<22x192xf32>
    %cst_200 = arith.constant dense<0.000000e+00> : vector<22x176xf32>
    %247 = tpu.matmul %246, %225, %cst_200 {dimension_numbers = #tpu.dot_dimension_numbers<[1], [0], [0], [1], [0, 0, 1, 1], [], []>} : vector<22x192xf32>, vector<192x176xf32>, vector<22x176xf32> -> vector<22x176xf32>
    %248 = arith.addf %244, %247 : vector<22x176xf32>
    %c1_201 = arith.constant 1 : index
    %c2_202 = arith.constant 2 : index
    %c0_203 = arith.constant 0 : index
    %249 = vector.load %arg11[%c1_201, %c2_202, %c0_203] : memref<2x24x192xf32, #tpu.memory_space<vmem>>, vector<1x22x192xf32>
    %250 = vector.shape_cast %249 : vector<1x22x192xf32> to vector<22x192xf32>
    %cst_204 = arith.constant dense<0.000000e+00> : vector<22x176xf32>
    %251 = tpu.matmul %250, %227, %cst_204 {dimension_numbers = #tpu.dot_dimension_numbers<[1], [0], [0], [1], [0, 0, 1, 1], [], []>} : vector<22x192xf32>, vector<192x176xf32>, vector<22x176xf32> -> vector<22x176xf32>
    %252 = arith.addf %248, %251 : vector<22x176xf32>
    %c1_205 = arith.constant 1 : index
    %c0_206 = arith.constant 0 : index
    %c0_207 = arith.constant 0 : index
    %253 = vector.load %arg12[%c1_205, %c0_206, %c0_207] : memref<2x22x176xf32, #tpu.memory_space<vmem>>, vector<1x22x176xf32>
    %254 = vector.shape_cast %253 : vector<1x22x176xf32> to vector<22x176xf32>
    %255 = vector.shape_cast %252 : vector<22x176xf32> to vector<1x22x176xf32>
    tpu.vector_store %arg12[%c1_205, %c0_206, %c0_207], %255 {strides = array<i32>} : memref<2x22x176xf32, #tpu.memory_space<vmem>>, vector<1x22x176xf32>,
    %256 = tpu.iota {dimensions = array<i32: 0>} : vector<176x8xi32>
    %257 = tpu.iota {dimensions = array<i32: 1>} : vector<176x8xi32>
    %c7_i32_208 = arith.constant 7 : i32
    %258 = vector.broadcast %c7_i32_208 : i32 to vector<176x8xi32>
    %259 = arith.andi %256, %258 : vector<176x8xi32>
    %260 = arith.cmpi eq, %259, %257 : vector<176x8xi32>
    %cst_209 = arith.constant 1.000000e+00 : f32
    %cst_210 = arith.constant 0.000000e+00 : f32
    %261 = vector.broadcast %cst_209 : f32 to vector<176x8xf32>
    %262 = vector.broadcast %cst_210 : f32 to vector<176x8xf32>
    %263 = arith.select %260, %261, %262 : vector<176x8xi1>, vector<176x8xf32>
    %264 = tpu.iota {dimensions = array<i32: 0>} : vector<8x176xi32>
    %265 = tpu.iota {dimensions = array<i32: 1>} : vector<8x176xi32>
    %c7_i32_211 = arith.constant 7 : i32
    %266 = vector.broadcast %c7_i32_211 : i32 to vector<8x176xi32>
    %267 = arith.andi %265, %266 : vector<8x176xi32>
    %268 = arith.cmpi eq, %267, %264 : vector<8x176xi32>
    %cst_212 = arith.constant 1.000000e+00 : f32
    %cst_213 = arith.constant 0.000000e+00 : f32
    %269 = vector.broadcast %cst_212 : f32 to vector<8x176xf32>
    %270 = vector.broadcast %cst_213 : f32 to vector<8x176xf32>
    %271 = arith.select %268, %269, %270 : vector<8x176xi1>, vector<8x176xf32>
    %cst_214 = arith.constant 0.000000e+00 : f32
    %272 = vector.broadcast %cst_214 : f32 to vector<1x176xf32>
    %c0_215 = arith.constant 0 : index
    %c0_216 = arith.constant 0 : index
    %c0_217 = arith.constant 0 : index
    %273 = vector.load %arg12[%c0_215, %c0_216, %c0_217] : memref<2x22x176xf32, #tpu.memory_space<vmem>>, vector<1x22x176xf32>
    %274 = vector.shape_cast %273 : vector<1x22x176xf32> to vector<22x176xf32>
    %cst_218 = arith.constant dense<0.000000e+00> : vector<176xf32>
    %275 = vector.multi_reduction <add>, %274, %cst_218 [0] : vector<22x176xf32> to vector<176xf32>
    %276 = vector.shape_cast %275 : vector<176xf32> to vector<1x176xf32>
    %277 = arith.addf %272, %276 : vector<1x176xf32>
    %c1_219 = arith.constant 1 : index
    %c0_220 = arith.constant 0 : index
    %c0_221 = arith.constant 0 : index
    %278 = vector.load %arg12[%c1_219, %c0_220, %c0_221] : memref<2x22x176xf32, #tpu.memory_space<vmem>>, vector<1x22x176xf32>
    %279 = vector.shape_cast %278 : vector<1x22x176xf32> to vector<22x176xf32>
    %cst_222 = arith.constant dense<0.000000e+00> : vector<176xf32>
    %280 = vector.multi_reduction <add>, %279, %cst_222 [0] : vector<22x176xf32> to vector<176xf32>
    %281 = vector.shape_cast %280 : vector<176xf32> to vector<1x176xf32>
    %282 = arith.addf %277, %281 : vector<1x176xf32>
    %cst_223 = arith.constant dense<0.000000e+00> : vector<1x8xf32>
    %283 = tpu.matmul %282, %263, %cst_223 {dimension_numbers = #tpu.dot_dimension_numbers<[1], [0], [0], [1], [0, 0, 1, 1], [], []>} : vector<1x176xf32>, vector<176x8xf32>, vector<1x8xf32> -> vector<1x8xf32>
    %cst_224 = arith.constant 0.00103305781 : f32
    %284 = vector.broadcast %cst_224 : f32 to vector<1x8xf32>
    %285 = arith.mulf %283, %284 : vector<1x8xf32>
    %cst_225 = arith.constant dense<0.000000e+00> : vector<1x176xf32>
    %286 = tpu.matmul %285, %271, %cst_225 {dimension_numbers = #tpu.dot_dimension_numbers<[1], [0], [0], [1], [0, 0, 1, 1], [], []>} : vector<1x8xf32>, vector<8x176xf32>, vector<1x176xf32> -> vector<1x176xf32>
    %cst_226 = arith.constant 0.000000e+00 : f32
    %287 = vector.broadcast %cst_226 : f32 to vector<1x176xf32>
    %c0_227 = arith.constant 0 : index
    %c0_228 = arith.constant 0 : index
    %c0_229 = arith.constant 0 : index
    %288 = vector.load %arg12[%c0_227, %c0_228, %c0_229] : memref<2x22x176xf32, #tpu.memory_space<vmem>>, vector<1x22x176xf32>
    %289 = vector.shape_cast %288 : vector<1x22x176xf32> to vector<22x176xf32>
    %290 = vector.broadcast %286 : vector<1x176xf32> to vector<22x176xf32>
    %291 = arith.subf %289, %290 : vector<22x176xf32>
    %292 = arith.mulf %291, %291 : vector<22x176xf32>
    %cst_230 = arith.constant dense<0.000000e+00> : vector<176xf32>
    %293 = vector.multi_reduction <add>, %292, %cst_230 [0] : vector<22x176xf32> to vector<176xf32>
    %294 = vector.shape_cast %293 : vector<176xf32> to vector<1x176xf32>
    %295 = arith.addf %287, %294 : vector<1x176xf32>
    %c1_231 = arith.constant 1 : index
    %c0_232 = arith.constant 0 : index
    %c0_233 = arith.constant 0 : index
    %296 = vector.load %arg12[%c1_231, %c0_232, %c0_233] : memref<2x22x176xf32, #tpu.memory_space<vmem>>, vector<1x22x176xf32>
    %297 = vector.shape_cast %296 : vector<1x22x176xf32> to vector<22x176xf32>
    %298 = vector.broadcast %286 : vector<1x176xf32> to vector<22x176xf32>
    %299 = arith.subf %297, %298 : vector<22x176xf32>
    %300 = arith.mulf %299, %299 : vector<22x176xf32>
    %cst_234 = arith.constant dense<0.000000e+00> : vector<176xf32>
    %301 = vector.multi_reduction <add>, %300, %cst_234 [0] : vector<22x176xf32> to vector<176xf32>
    %302 = vector.shape_cast %301 : vector<176xf32> to vector<1x176xf32>
    %303 = arith.addf %295, %302 : vector<1x176xf32>
    %cst_235 = arith.constant dense<0.000000e+00> : vector<1x8xf32>
    %304 = tpu.matmul %303, %263, %cst_235 {dimension_numbers = #tpu.dot_dimension_numbers<[1], [0], [0], [1], [0, 0, 1, 1], [], []>} : vector<1x176xf32>, vector<176x8xf32>, vector<1x8xf32> -> vector<1x8xf32>
    %cst_236 = arith.constant 0.00103305781 : f32
    %305 = vector.broadcast %cst_236 : f32 to vector<1x8xf32>
    %306 = arith.mulf %304, %305 : vector<1x8xf32>
    %cst_237 = arith.constant 9.99999974E-6 : f32
    %307 = vector.broadcast %cst_237 : f32 to vector<1x8xf32>
    %308 = arith.addf %306, %307 : vector<1x8xf32>
    %309 = math.rsqrt %308 : vector<1x8xf32>
    %cst_238 = arith.constant dense<0.000000e+00> : vector<1x176xf32>
    %310 = tpu.matmul %309, %271, %cst_238 {dimension_numbers = #tpu.dot_dimension_numbers<[1], [0], [0], [1], [0, 0, 1, 1], [], []>} : vector<1x8xf32>, vector<8x176xf32>, vector<1x176xf32> -> vector<1x176xf32>
    %c0_239 = arith.constant 0 : index
    %c0_240 = arith.constant 0 : index
    %c0_241 = arith.constant 0 : index
    %311 = vector.load %arg12[%c0_239, %c0_240, %c0_241] : memref<2x22x176xf32, #tpu.memory_space<vmem>>, vector<1x22x176xf32>
    %312 = vector.shape_cast %311 : vector<1x22x176xf32> to vector<22x176xf32>
    %313 = vector.broadcast %286 : vector<1x176xf32> to vector<22x176xf32>
    %314 = arith.subf %312, %313 : vector<22x176xf32>
    %315 = vector.broadcast %310 : vector<1x176xf32> to vector<22x176xf32>
    %316 = arith.mulf %314, %315 : vector<22x176xf32>
    %cst_242 = arith.constant 0.000000e+00 : f32
    %317 = vector.broadcast %cst_242 : f32 to vector<22x176xf32>
    %318 = arith.maximumf %316, %317 : vector<22x176xf32>
    %c0_243 = arith.constant 0 : index
    %c0_244 = arith.constant 0 : index
    %c0_245 = arith.constant 0 : index
    %319 = vector.load %arg12[%c0_243, %c0_244, %c0_245] : memref<2x22x176xf32, #tpu.memory_space<vmem>>, vector<1x22x176xf32>
    %320 = vector.shape_cast %319 : vector<1x22x176xf32> to vector<22x176xf32>
    %321 = vector.shape_cast %318 : vector<22x176xf32> to vector<1x22x176xf32>
    tpu.vector_store %arg12[%c0_243, %c0_244, %c0_245], %321 {strides = array<i32>} : memref<2x22x176xf32, #tpu.memory_space<vmem>>, vector<1x22x176xf32>,
    %c1_246 = arith.constant 1 : index
    %c0_247 = arith.constant 0 : index
    %c0_248 = arith.constant 0 : index
    %322 = vector.load %arg12[%c1_246, %c0_247, %c0_248] : memref<2x22x176xf32, #tpu.memory_space<vmem>>, vector<1x22x176xf32>
    %323 = vector.shape_cast %322 : vector<1x22x176xf32> to vector<22x176xf32>
    %324 = vector.broadcast %286 : vector<1x176xf32> to vector<22x176xf32>
    %325 = arith.subf %323, %324 : vector<22x176xf32>
    %326 = vector.broadcast %310 : vector<1x176xf32> to vector<22x176xf32>
    %327 = arith.mulf %325, %326 : vector<22x176xf32>
    %cst_249 = arith.constant 0.000000e+00 : f32
    %328 = vector.broadcast %cst_249 : f32 to vector<22x176xf32>
    %329 = arith.maximumf %327, %328 : vector<22x176xf32>
    %c1_250 = arith.constant 1 : index
    %c0_251 = arith.constant 0 : index
    %c0_252 = arith.constant 0 : index
    %330 = vector.load %arg12[%c1_250, %c0_251, %c0_252] : memref<2x22x176xf32, #tpu.memory_space<vmem>>, vector<1x22x176xf32>
    %331 = vector.shape_cast %330 : vector<1x22x176xf32> to vector<22x176xf32>
    %332 = vector.shape_cast %329 : vector<22x176xf32> to vector<1x22x176xf32>
    tpu.vector_store %arg12[%c1_250, %c0_251, %c0_252], %332 {strides = array<i32>} : memref<2x22x176xf32, #tpu.memory_space<vmem>>, vector<1x22x176xf32>,
    %333 = tpu.iota {dimensions = array<i32: 0>} : vector<11x22xi32>
    %334 = tpu.iota {dimensions = array<i32: 1>} : vector<11x22xi32>
    %c2_i32 = arith.constant 2 : i32
    %335 = vector.broadcast %c2_i32 : i32 to vector<11x22xi32>
    %336 = arith.muli %335, %333 : vector<11x22xi32>
    %c0_i32 = arith.constant 0 : i32
    %337 = vector.broadcast %c0_i32 : i32 to vector<11x22xi32>
    %338 = arith.addi %336, %337 : vector<11x22xi32>
    %339 = arith.cmpi eq, %334, %338 : vector<11x22xi32>
    %cst_253 = arith.constant 1.000000e+00 : f32
    %cst_254 = arith.constant 0.000000e+00 : f32
    %340 = vector.broadcast %cst_253 : f32 to vector<11x22xf32>
    %341 = vector.broadcast %cst_254 : f32 to vector<11x22xf32>
    %342 = arith.select %339, %340, %341 : vector<11x22xi1>, vector<11x22xf32>
    %343 = tpu.iota {dimensions = array<i32: 0>} : vector<11x22xi32>
    %344 = tpu.iota {dimensions = array<i32: 1>} : vector<11x22xi32>
    %c2_i32_255 = arith.constant 2 : i32
    %345 = vector.broadcast %c2_i32_255 : i32 to vector<11x22xi32>
    %346 = arith.muli %345, %343 : vector<11x22xi32>
    %c1_i32 = arith.constant 1 : i32
    %347 = vector.broadcast %c1_i32 : i32 to vector<11x22xi32>
    %348 = arith.addi %346, %347 : vector<11x22xi32>
    %349 = arith.cmpi eq, %344, %348 : vector<11x22xi32>
    %cst_256 = arith.constant 1.000000e+00 : f32
    %cst_257 = arith.constant 0.000000e+00 : f32
    %350 = vector.broadcast %cst_256 : f32 to vector<11x22xf32>
    %351 = vector.broadcast %cst_257 : f32 to vector<11x22xf32>
    %352 = arith.select %349, %350, %351 : vector<11x22xi1>, vector<11x22xf32>
    %353 = tpu.iota {dimensions = array<i32: 0>} : vector<176x88xi32>
    %354 = tpu.iota {dimensions = array<i32: 1>} : vector<176x88xi32>
    %c3_i32 = arith.constant 3 : i32
    %355 = vector.broadcast %c3_i32 : i32 to vector<176x88xi32>
    %356 = arith.shrsi %353, %355 : vector<176x88xi32>
    %c3_i32_258 = arith.constant 3 : i32
    %357 = vector.broadcast %c3_i32_258 : i32 to vector<176x88xi32>
    %358 = arith.shrsi %354, %357 : vector<176x88xi32>
    %c2_i32_259 = arith.constant 2 : i32
    %359 = vector.broadcast %c2_i32_259 : i32 to vector<176x88xi32>
    %360 = arith.muli %359, %358 : vector<176x88xi32>
    %c0_i32_260 = arith.constant 0 : i32
    %361 = vector.broadcast %c0_i32_260 : i32 to vector<176x88xi32>
    %362 = arith.addi %360, %361 : vector<176x88xi32>
    %363 = arith.cmpi eq, %356, %362 : vector<176x88xi32>
    %c7_i32_261 = arith.constant 7 : i32
    %364 = vector.broadcast %c7_i32_261 : i32 to vector<176x88xi32>
    %365 = arith.andi %353, %364 : vector<176x88xi32>
    %c7_i32_262 = arith.constant 7 : i32
    %366 = vector.broadcast %c7_i32_262 : i32 to vector<176x88xi32>
    %367 = arith.andi %354, %366 : vector<176x88xi32>
    %368 = arith.cmpi eq, %365, %367 : vector<176x88xi32>
    %369 = arith.andi %363, %368 : vector<176x88xi1>
    %cst_263 = arith.constant 1.000000e+00 : f32
    %cst_264 = arith.constant 0.000000e+00 : f32
    %370 = vector.broadcast %cst_263 : f32 to vector<176x88xf32>
    %371 = vector.broadcast %cst_264 : f32 to vector<176x88xf32>
    %372 = arith.select %369, %370, %371 : vector<176x88xi1>, vector<176x88xf32>
    %373 = tpu.iota {dimensions = array<i32: 0>} : vector<176x88xi32>
    %374 = tpu.iota {dimensions = array<i32: 1>} : vector<176x88xi32>
    %c3_i32_265 = arith.constant 3 : i32
    %375 = vector.broadcast %c3_i32_265 : i32 to vector<176x88xi32>
    %376 = arith.shrsi %373, %375 : vector<176x88xi32>
    %c3_i32_266 = arith.constant 3 : i32
    %377 = vector.broadcast %c3_i32_266 : i32 to vector<176x88xi32>
    %378 = arith.shrsi %374, %377 : vector<176x88xi32>
    %c2_i32_267 = arith.constant 2 : i32
    %379 = vector.broadcast %c2_i32_267 : i32 to vector<176x88xi32>
    %380 = arith.muli %379, %378 : vector<176x88xi32>
    %c1_i32_268 = arith.constant 1 : i32
    %381 = vector.broadcast %c1_i32_268 : i32 to vector<176x88xi32>
    %382 = arith.addi %380, %381 : vector<176x88xi32>
    %383 = arith.cmpi eq, %376, %382 : vector<176x88xi32>
    %c7_i32_269 = arith.constant 7 : i32
    %384 = vector.broadcast %c7_i32_269 : i32 to vector<176x88xi32>
    %385 = arith.andi %373, %384 : vector<176x88xi32>
    %c7_i32_270 = arith.constant 7 : i32
    %386 = vector.broadcast %c7_i32_270 : i32 to vector<176x88xi32>
    %387 = arith.andi %374, %386 : vector<176x88xi32>
    %388 = arith.cmpi eq, %385, %387 : vector<176x88xi32>
    %389 = arith.andi %383, %388 : vector<176x88xi1>
    %cst_271 = arith.constant 1.000000e+00 : f32
    %cst_272 = arith.constant 0.000000e+00 : f32
    %390 = vector.broadcast %cst_271 : f32 to vector<176x88xf32>
    %391 = vector.broadcast %cst_272 : f32 to vector<176x88xf32>
    %392 = arith.select %389, %390, %391 : vector<176x88xi1>, vector<176x88xf32>
    %c0_273 = arith.constant 0 : index
    %c0_274 = arith.constant 0 : index
    %c0_275 = arith.constant 0 : index
    %393 = vector.load %arg12[%c0_273, %c0_274, %c0_275] : memref<2x22x176xf32, #tpu.memory_space<vmem>>, vector<1x22x176xf32>
    %394 = vector.shape_cast %393 : vector<1x22x176xf32> to vector<22x176xf32>
    %cst_276 = arith.constant dense<0.000000e+00> : vector<11x176xf32>
    %395 = tpu.matmul %342, %394, %cst_276 {dimension_numbers = #tpu.dot_dimension_numbers<[1], [0], [0], [1], [0, 0, 1, 1], [], []>} : vector<11x22xf32>, vector<22x176xf32>, vector<11x176xf32> -> vector<11x176xf32>
    %cst_277 = arith.constant dense<0.000000e+00> : vector<11x176xf32>
    %396 = tpu.matmul %352, %394, %cst_277 {dimension_numbers = #tpu.dot_dimension_numbers<[1], [0], [0], [1], [0, 0, 1, 1], [], []>} : vector<11x22xf32>, vector<22x176xf32>, vector<11x176xf32> -> vector<11x176xf32>
    %397 = arith.maximumf %395, %396 : vector<11x176xf32>
    %cst_278 = arith.constant dense<0.000000e+00> : vector<11x88xf32>
    %398 = tpu.matmul %397, %372, %cst_278 {dimension_numbers = #tpu.dot_dimension_numbers<[1], [0], [0], [1], [0, 0, 1, 1], [], []>} : vector<11x176xf32>, vector<176x88xf32>, vector<11x88xf32> -> vector<11x88xf32>
    %cst_279 = arith.constant dense<0.000000e+00> : vector<11x88xf32>
    %399 = tpu.matmul %397, %392, %cst_279 {dimension_numbers = #tpu.dot_dimension_numbers<[1], [0], [0], [1], [0, 0, 1, 1], [], []>} : vector<11x176xf32>, vector<176x88xf32>, vector<11x88xf32> -> vector<11x88xf32>
    %400 = arith.maximumf %398, %399 : vector<11x88xf32>
    %c0_280 = arith.constant 0 : index
    %c0_281 = arith.constant 0 : index
    %c0_282 = arith.constant 0 : index
    %401 = vector.load %arg13[%c0_280, %c0_281, %c0_282] : memref<2x11x88xf32, #tpu.memory_space<vmem>>, vector<1x11x88xf32>
    %402 = vector.shape_cast %401 : vector<1x11x88xf32> to vector<11x88xf32>
    %403 = vector.shape_cast %400 : vector<11x88xf32> to vector<1x11x88xf32>
    tpu.vector_store %arg13[%c0_280, %c0_281, %c0_282], %403 {strides = array<i32>} : memref<2x11x88xf32, #tpu.memory_space<vmem>>, vector<1x11x88xf32>,
    %c1_283 = arith.constant 1 : index
    %c0_284 = arith.constant 0 : index
    %c0_285 = arith.constant 0 : index
    %404 = vector.load %arg12[%c1_283, %c0_284, %c0_285] : memref<2x22x176xf32, #tpu.memory_space<vmem>>, vector<1x22x176xf32>
    %405 = vector.shape_cast %404 : vector<1x22x176xf32> to vector<22x176xf32>
    %cst_286 = arith.constant dense<0.000000e+00> : vector<11x176xf32>
    %406 = tpu.matmul %342, %405, %cst_286 {dimension_numbers = #tpu.dot_dimension_numbers<[1], [0], [0], [1], [0, 0, 1, 1], [], []>} : vector<11x22xf32>, vector<22x176xf32>, vector<11x176xf32> -> vector<11x176xf32>
    %cst_287 = arith.constant dense<0.000000e+00> : vector<11x176xf32>
    %407 = tpu.matmul %352, %405, %cst_287 {dimension_numbers = #tpu.dot_dimension_numbers<[1], [0], [0], [1], [0, 0, 1, 1], [], []>} : vector<11x22xf32>, vector<22x176xf32>, vector<11x176xf32> -> vector<11x176xf32>
    %408 = arith.maximumf %406, %407 : vector<11x176xf32>
    %cst_288 = arith.constant dense<0.000000e+00> : vector<11x88xf32>
    %409 = tpu.matmul %408, %372, %cst_288 {dimension_numbers = #tpu.dot_dimension_numbers<[1], [0], [0], [1], [0, 0, 1, 1], [], []>} : vector<11x176xf32>, vector<176x88xf32>, vector<11x88xf32> -> vector<11x88xf32>
    %cst_289 = arith.constant dense<0.000000e+00> : vector<11x88xf32>
    %410 = tpu.matmul %408, %392, %cst_289 {dimension_numbers = #tpu.dot_dimension_numbers<[1], [0], [0], [1], [0, 0, 1, 1], [], []>} : vector<11x176xf32>, vector<176x88xf32>, vector<11x88xf32> -> vector<11x88xf32>
    %411 = arith.maximumf %409, %410 : vector<11x88xf32>
    %c1_290 = arith.constant 1 : index
    %c0_291 = arith.constant 0 : index
    %c0_292 = arith.constant 0 : index
    %412 = vector.load %arg13[%c1_290, %c0_291, %c0_292] : memref<2x11x88xf32, #tpu.memory_space<vmem>>, vector<1x11x88xf32>
    %413 = vector.shape_cast %412 : vector<1x11x88xf32> to vector<11x88xf32>
    %414 = vector.shape_cast %411 : vector<11x88xf32> to vector<1x11x88xf32>
    tpu.vector_store %arg13[%c1_290, %c0_291, %c0_292], %414 {strides = array<i32>} : memref<2x11x88xf32, #tpu.memory_space<vmem>>, vector<1x11x88xf32>,
    %c0_293 = arith.constant 0 : index
    %c0_294 = arith.constant 0 : index
    %c0_295 = arith.constant 0 : index
    %415 = vector.load %arg5[%c0_293, %c0_294, %c0_295] : memref<3x88x144xf32, #tpu.memory_space<vmem>>, vector<1x88x144xf32>
    %416 = vector.shape_cast %415 : vector<1x88x144xf32> to vector<88x144xf32>
    %c1_296 = arith.constant 1 : index
    %c0_297 = arith.constant 0 : index
    %c0_298 = arith.constant 0 : index
    %417 = vector.load %arg5[%c1_296, %c0_297, %c0_298] : memref<3x88x144xf32, #tpu.memory_space<vmem>>, vector<1x88x144xf32>
    %418 = vector.shape_cast %417 : vector<1x88x144xf32> to vector<88x144xf32>
    %c2_299 = arith.constant 2 : index
    %c0_300 = arith.constant 0 : index
    %c0_301 = arith.constant 0 : index
    %419 = vector.load %arg5[%c2_299, %c0_300, %c0_301] : memref<3x88x144xf32, #tpu.memory_space<vmem>>, vector<1x88x144xf32>
    %420 = vector.shape_cast %419 : vector<1x88x144xf32> to vector<88x144xf32>
    %c0_302 = arith.constant 0 : index
    %c0_303 = arith.constant 0 : index
    %c0_304 = arith.constant 0 : index
    %421 = vector.load %arg13[%c0_302, %c0_303, %c0_304] : memref<2x11x88xf32, #tpu.memory_space<vmem>>, vector<1x9x88xf32>
    %422 = vector.shape_cast %421 : vector<1x9x88xf32> to vector<9x88xf32>
    %cst_305 = arith.constant dense<0.000000e+00> : vector<9x144xf32>
    %423 = tpu.matmul %422, %416, %cst_305 {dimension_numbers = #tpu.dot_dimension_numbers<[1], [0], [0], [1], [0, 0, 1, 1], [], []>} : vector<9x88xf32>, vector<88x144xf32>, vector<9x144xf32> -> vector<9x144xf32>
    %c0_306 = arith.constant 0 : index
    %c1_307 = arith.constant 1 : index
    %c0_308 = arith.constant 0 : index
    %424 = vector.load %arg13[%c0_306, %c1_307, %c0_308] : memref<2x11x88xf32, #tpu.memory_space<vmem>>, vector<1x9x88xf32>
    %425 = vector.shape_cast %424 : vector<1x9x88xf32> to vector<9x88xf32>
    %cst_309 = arith.constant dense<0.000000e+00> : vector<9x144xf32>
    %426 = tpu.matmul %425, %418, %cst_309 {dimension_numbers = #tpu.dot_dimension_numbers<[1], [0], [0], [1], [0, 0, 1, 1], [], []>} : vector<9x88xf32>, vector<88x144xf32>, vector<9x144xf32> -> vector<9x144xf32>
    %427 = arith.addf %423, %426 : vector<9x144xf32>
    %c0_310 = arith.constant 0 : index
    %c2_311 = arith.constant 2 : index
    %c0_312 = arith.constant 0 : index
    %428 = vector.load %arg13[%c0_310, %c2_311, %c0_312] : memref<2x11x88xf32, #tpu.memory_space<vmem>>, vector<1x9x88xf32>
    %429 = vector.shape_cast %428 : vector<1x9x88xf32> to vector<9x88xf32>
    %cst_313 = arith.constant dense<0.000000e+00> : vector<9x144xf32>
    %430 = tpu.matmul %429, %420, %cst_313 {dimension_numbers = #tpu.dot_dimension_numbers<[1], [0], [0], [1], [0, 0, 1, 1], [], []>} : vector<9x88xf32>, vector<88x144xf32>, vector<9x144xf32> -> vector<9x144xf32>
    %431 = arith.addf %427, %430 : vector<9x144xf32>
    %c0_314 = arith.constant 0 : index
    %c0_315 = arith.constant 0 : index
    %c0_316 = arith.constant 0 : index
    %432 = vector.load %arg14[%c0_314, %c0_315, %c0_316] : memref<2x9x144xf32, #tpu.memory_space<vmem>>, vector<1x9x144xf32>
    %433 = vector.shape_cast %432 : vector<1x9x144xf32> to vector<9x144xf32>
    %434 = vector.shape_cast %431 : vector<9x144xf32> to vector<1x9x144xf32>
    tpu.vector_store %arg14[%c0_314, %c0_315, %c0_316], %434 {strides = array<i32>} : memref<2x9x144xf32, #tpu.memory_space<vmem>>, vector<1x9x144xf32>,
    %c1_317 = arith.constant 1 : index
    %c0_318 = arith.constant 0 : index
    %c0_319 = arith.constant 0 : index
    %435 = vector.load %arg13[%c1_317, %c0_318, %c0_319] : memref<2x11x88xf32, #tpu.memory_space<vmem>>, vector<1x9x88xf32>
    %436 = vector.shape_cast %435 : vector<1x9x88xf32> to vector<9x88xf32>
    %cst_320 = arith.constant dense<0.000000e+00> : vector<9x144xf32>
    %437 = tpu.matmul %436, %416, %cst_320 {dimension_numbers = #tpu.dot_dimension_numbers<[1], [0], [0], [1], [0, 0, 1, 1], [], []>} : vector<9x88xf32>, vector<88x144xf32>, vector<9x144xf32> -> vector<9x144xf32>
    %c1_321 = arith.constant 1 : index
    %c1_322 = arith.constant 1 : index
    %c0_323 = arith.constant 0 : index
    %438 = vector.load %arg13[%c1_321, %c1_322, %c0_323] : memref<2x11x88xf32, #tpu.memory_space<vmem>>, vector<1x9x88xf32>
    %439 = vector.shape_cast %438 : vector<1x9x88xf32> to vector<9x88xf32>
    %cst_324 = arith.constant dense<0.000000e+00> : vector<9x144xf32>
    %440 = tpu.matmul %439, %418, %cst_324 {dimension_numbers = #tpu.dot_dimension_numbers<[1], [0], [0], [1], [0, 0, 1, 1], [], []>} : vector<9x88xf32>, vector<88x144xf32>, vector<9x144xf32> -> vector<9x144xf32>
    %441 = arith.addf %437, %440 : vector<9x144xf32>
    %c1_325 = arith.constant 1 : index
    %c2_326 = arith.constant 2 : index
    %c0_327 = arith.constant 0 : index
    %442 = vector.load %arg13[%c1_325, %c2_326, %c0_327] : memref<2x11x88xf32, #tpu.memory_space<vmem>>, vector<1x9x88xf32>
    %443 = vector.shape_cast %442 : vector<1x9x88xf32> to vector<9x88xf32>
    %cst_328 = arith.constant dense<0.000000e+00> : vector<9x144xf32>
    %444 = tpu.matmul %443, %420, %cst_328 {dimension_numbers = #tpu.dot_dimension_numbers<[1], [0], [0], [1], [0, 0, 1, 1], [], []>} : vector<9x88xf32>, vector<88x144xf32>, vector<9x144xf32> -> vector<9x144xf32>
    %445 = arith.addf %441, %444 : vector<9x144xf32>
    %c1_329 = arith.constant 1 : index
    %c0_330 = arith.constant 0 : index
    %c0_331 = arith.constant 0 : index
    %446 = vector.load %arg14[%c1_329, %c0_330, %c0_331] : memref<2x9x144xf32, #tpu.memory_space<vmem>>, vector<1x9x144xf32>
    %447 = vector.shape_cast %446 : vector<1x9x144xf32> to vector<9x144xf32>
    %448 = vector.shape_cast %445 : vector<9x144xf32> to vector<1x9x144xf32>
    tpu.vector_store %arg14[%c1_329, %c0_330, %c0_331], %448 {strides = array<i32>} : memref<2x9x144xf32, #tpu.memory_space<vmem>>, vector<1x9x144xf32>,
    %449 = tpu.iota {dimensions = array<i32: 0>} : vector<144x16xi32>
    %450 = tpu.iota {dimensions = array<i32: 1>} : vector<144x16xi32>
    %c15_i32 = arith.constant 15 : i32
    %451 = vector.broadcast %c15_i32 : i32 to vector<144x16xi32>
    %452 = arith.andi %449, %451 : vector<144x16xi32>
    %453 = arith.cmpi eq, %452, %450 : vector<144x16xi32>
    %cst_332 = arith.constant 1.000000e+00 : f32
    %cst_333 = arith.constant 0.000000e+00 : f32
    %454 = vector.broadcast %cst_332 : f32 to vector<144x16xf32>
    %455 = vector.broadcast %cst_333 : f32 to vector<144x16xf32>
    %456 = arith.select %453, %454, %455 : vector<144x16xi1>, vector<144x16xf32>
    %457 = tpu.iota {dimensions = array<i32: 0>} : vector<16x144xi32>
    %458 = tpu.iota {dimensions = array<i32: 1>} : vector<16x144xi32>
    %c15_i32_334 = arith.constant 15 : i32
    %459 = vector.broadcast %c15_i32_334 : i32 to vector<16x144xi32>
    %460 = arith.andi %458, %459 : vector<16x144xi32>
    %461 = arith.cmpi eq, %460, %457 : vector<16x144xi32>
    %cst_335 = arith.constant 1.000000e+00 : f32
    %cst_336 = arith.constant 0.000000e+00 : f32
    %462 = vector.broadcast %cst_335 : f32 to vector<16x144xf32>
    %463 = vector.broadcast %cst_336 : f32 to vector<16x144xf32>
    %464 = arith.select %461, %462, %463 : vector<16x144xi1>, vector<16x144xf32>
    %cst_337 = arith.constant 0.000000e+00 : f32
    %465 = vector.broadcast %cst_337 : f32 to vector<1x144xf32>
    %c0_338 = arith.constant 0 : index
    %c0_339 = arith.constant 0 : index
    %c0_340 = arith.constant 0 : index
    %466 = vector.load %arg14[%c0_338, %c0_339, %c0_340] : memref<2x9x144xf32, #tpu.memory_space<vmem>>, vector<1x9x144xf32>
    %467 = vector.shape_cast %466 : vector<1x9x144xf32> to vector<9x144xf32>
    %cst_341 = arith.constant dense<0.000000e+00> : vector<144xf32>
    %468 = vector.multi_reduction <add>, %467, %cst_341 [0] : vector<9x144xf32> to vector<144xf32>
    %469 = vector.shape_cast %468 : vector<144xf32> to vector<1x144xf32>
    %470 = arith.addf %465, %469 : vector<1x144xf32>
    %c1_342 = arith.constant 1 : index
    %c0_343 = arith.constant 0 : index
    %c0_344 = arith.constant 0 : index
    %471 = vector.load %arg14[%c1_342, %c0_343, %c0_344] : memref<2x9x144xf32, #tpu.memory_space<vmem>>, vector<1x9x144xf32>
    %472 = vector.shape_cast %471 : vector<1x9x144xf32> to vector<9x144xf32>
    %cst_345 = arith.constant dense<0.000000e+00> : vector<144xf32>
    %473 = vector.multi_reduction <add>, %472, %cst_345 [0] : vector<9x144xf32> to vector<144xf32>
    %474 = vector.shape_cast %473 : vector<144xf32> to vector<1x144xf32>
    %475 = arith.addf %470, %474 : vector<1x144xf32>
    %cst_346 = arith.constant dense<0.000000e+00> : vector<1x16xf32>
    %476 = tpu.matmul %475, %456, %cst_346 {dimension_numbers = #tpu.dot_dimension_numbers<[1], [0], [0], [1], [0, 0, 1, 1], [], []>} : vector<1x144xf32>, vector<144x16xf32>, vector<1x16xf32> -> vector<1x16xf32>
    %cst_347 = arith.constant 0.00617283955 : f32
    %477 = vector.broadcast %cst_347 : f32 to vector<1x16xf32>
    %478 = arith.mulf %476, %477 : vector<1x16xf32>
    %cst_348 = arith.constant dense<0.000000e+00> : vector<1x144xf32>
    %479 = tpu.matmul %478, %464, %cst_348 {dimension_numbers = #tpu.dot_dimension_numbers<[1], [0], [0], [1], [0, 0, 1, 1], [], []>} : vector<1x16xf32>, vector<16x144xf32>, vector<1x144xf32> -> vector<1x144xf32>
    %cst_349 = arith.constant 0.000000e+00 : f32
    %480 = vector.broadcast %cst_349 : f32 to vector<1x144xf32>
    %c0_350 = arith.constant 0 : index
    %c0_351 = arith.constant 0 : index
    %c0_352 = arith.constant 0 : index
    %481 = vector.load %arg14[%c0_350, %c0_351, %c0_352] : memref<2x9x144xf32, #tpu.memory_space<vmem>>, vector<1x9x144xf32>
    %482 = vector.shape_cast %481 : vector<1x9x144xf32> to vector<9x144xf32>
    %483 = vector.broadcast %479 : vector<1x144xf32> to vector<9x144xf32>
    %484 = arith.subf %482, %483 : vector<9x144xf32>
    %485 = arith.mulf %484, %484 : vector<9x144xf32>
    %cst_353 = arith.constant dense<0.000000e+00> : vector<144xf32>
    %486 = vector.multi_reduction <add>, %485, %cst_353 [0] : vector<9x144xf32> to vector<144xf32>
    %487 = vector.shape_cast %486 : vector<144xf32> to vector<1x144xf32>
    %488 = arith.addf %480, %487 : vector<1x144xf32>
    %c1_354 = arith.constant 1 : index
    %c0_355 = arith.constant 0 : index
    %c0_356 = arith.constant 0 : index
    %489 = vector.load %arg14[%c1_354, %c0_355, %c0_356] : memref<2x9x144xf32, #tpu.memory_space<vmem>>, vector<1x9x144xf32>
    %490 = vector.shape_cast %489 : vector<1x9x144xf32> to vector<9x144xf32>
    %491 = vector.broadcast %479 : vector<1x144xf32> to vector<9x144xf32>
    %492 = arith.subf %490, %491 : vector<9x144xf32>
    %493 = arith.mulf %492, %492 : vector<9x144xf32>
    %cst_357 = arith.constant dense<0.000000e+00> : vector<144xf32>
    %494 = vector.multi_reduction <add>, %493, %cst_357 [0] : vector<9x144xf32> to vector<144xf32>
    %495 = vector.shape_cast %494 : vector<144xf32> to vector<1x144xf32>
    %496 = arith.addf %488, %495 : vector<1x144xf32>
    %cst_358 = arith.constant dense<0.000000e+00> : vector<1x16xf32>
    %497 = tpu.matmul %496, %456, %cst_358 {dimension_numbers = #tpu.dot_dimension_numbers<[1], [0], [0], [1], [0, 0, 1, 1], [], []>} : vector<1x144xf32>, vector<144x16xf32>, vector<1x16xf32> -> vector<1x16xf32>
    %cst_359 = arith.constant 0.00617283955 : f32
    %498 = vector.broadcast %cst_359 : f32 to vector<1x16xf32>
    %499 = arith.mulf %497, %498 : vector<1x16xf32>
    %cst_360 = arith.constant 9.99999974E-6 : f32
    %500 = vector.broadcast %cst_360 : f32 to vector<1x16xf32>
    %501 = arith.addf %499, %500 : vector<1x16xf32>
    %502 = math.rsqrt %501 : vector<1x16xf32>
    %cst_361 = arith.constant dense<0.000000e+00> : vector<1x144xf32>
    %503 = tpu.matmul %502, %464, %cst_361 {dimension_numbers = #tpu.dot_dimension_numbers<[1], [0], [0], [1], [0, 0, 1, 1], [], []>} : vector<1x16xf32>, vector<16x144xf32>, vector<1x144xf32> -> vector<1x144xf32>
    %c0_362 = arith.constant 0 : index
    %c0_363 = arith.constant 0 : index
    %c0_364 = arith.constant 0 : index
    %504 = vector.load %arg14[%c0_362, %c0_363, %c0_364] : memref<2x9x144xf32, #tpu.memory_space<vmem>>, vector<1x9x144xf32>
    %505 = vector.shape_cast %504 : vector<1x9x144xf32> to vector<9x144xf32>
    %506 = vector.broadcast %479 : vector<1x144xf32> to vector<9x144xf32>
    %507 = arith.subf %505, %506 : vector<9x144xf32>
    %508 = vector.broadcast %503 : vector<1x144xf32> to vector<9x144xf32>
    %509 = arith.mulf %507, %508 : vector<9x144xf32>
    %cst_365 = arith.constant 0.000000e+00 : f32
    %510 = vector.broadcast %cst_365 : f32 to vector<9x144xf32>
    %511 = arith.maximumf %509, %510 : vector<9x144xf32>
    %c0_366 = arith.constant 0 : index
    %c0_367 = arith.constant 0 : index
    %c0_368 = arith.constant 0 : index
    %512 = vector.load %arg14[%c0_366, %c0_367, %c0_368] : memref<2x9x144xf32, #tpu.memory_space<vmem>>, vector<1x9x144xf32>
    %513 = vector.shape_cast %512 : vector<1x9x144xf32> to vector<9x144xf32>
    %514 = vector.shape_cast %511 : vector<9x144xf32> to vector<1x9x144xf32>
    tpu.vector_store %arg14[%c0_366, %c0_367, %c0_368], %514 {strides = array<i32>} : memref<2x9x144xf32, #tpu.memory_space<vmem>>, vector<1x9x144xf32>,
    %c1_369 = arith.constant 1 : index
    %c0_370 = arith.constant 0 : index
    %c0_371 = arith.constant 0 : index
    %515 = vector.load %arg14[%c1_369, %c0_370, %c0_371] : memref<2x9x144xf32, #tpu.memory_space<vmem>>, vector<1x9x144xf32>
    %516 = vector.shape_cast %515 : vector<1x9x144xf32> to vector<9x144xf32>
    %517 = vector.broadcast %479 : vector<1x144xf32> to vector<9x144xf32>
    %518 = arith.subf %516, %517 : vector<9x144xf32>
    %519 = vector.broadcast %503 : vector<1x144xf32> to vector<9x144xf32>
    %520 = arith.mulf %518, %519 : vector<9x144xf32>
    %cst_372 = arith.constant 0.000000e+00 : f32
    %521 = vector.broadcast %cst_372 : f32 to vector<9x144xf32>
    %522 = arith.maximumf %520, %521 : vector<9x144xf32>
    %c1_373 = arith.constant 1 : index
    %c0_374 = arith.constant 0 : index
    %c0_375 = arith.constant 0 : index
    %523 = vector.load %arg14[%c1_373, %c0_374, %c0_375] : memref<2x9x144xf32, #tpu.memory_space<vmem>>, vector<1x9x144xf32>
    %524 = vector.shape_cast %523 : vector<1x9x144xf32> to vector<9x144xf32>
    %525 = vector.shape_cast %522 : vector<9x144xf32> to vector<1x9x144xf32>
    tpu.vector_store %arg14[%c1_373, %c0_374, %c0_375], %525 {strides = array<i32>} : memref<2x9x144xf32, #tpu.memory_space<vmem>>, vector<1x9x144xf32>,
    %c0_376 = arith.constant 0 : index
    %c0_377 = arith.constant 0 : index
    %c0_378 = arith.constant 0 : index
    %526 = vector.load %arg6[%c0_376, %c0_377, %c0_378] : memref<3x144x112xf32, #tpu.memory_space<vmem>>, vector<1x144x112xf32>
    %527 = vector.shape_cast %526 : vector<1x144x112xf32> to vector<144x112xf32>
    %c1_379 = arith.constant 1 : index
    %c0_380 = arith.constant 0 : index
    %c0_381 = arith.constant 0 : index
    %528 = vector.load %arg6[%c1_379, %c0_380, %c0_381] : memref<3x144x112xf32, #tpu.memory_space<vmem>>, vector<1x144x112xf32>
    %529 = vector.shape_cast %528 : vector<1x144x112xf32> to vector<144x112xf32>
    %c2_382 = arith.constant 2 : index
    %c0_383 = arith.constant 0 : index
    %c0_384 = arith.constant 0 : index
    %530 = vector.load %arg6[%c2_382, %c0_383, %c0_384] : memref<3x144x112xf32, #tpu.memory_space<vmem>>, vector<1x144x112xf32>
    %531 = vector.shape_cast %530 : vector<1x144x112xf32> to vector<144x112xf32>
    %c0_385 = arith.constant 0 : index
    %c0_386 = arith.constant 0 : index
    %c0_387 = arith.constant 0 : index
    %532 = vector.load %arg14[%c0_385, %c0_386, %c0_387] : memref<2x9x144xf32, #tpu.memory_space<vmem>>, vector<1x7x144xf32>
    %533 = vector.shape_cast %532 : vector<1x7x144xf32> to vector<7x144xf32>
    %cst_388 = arith.constant dense<0.000000e+00> : vector<7x112xf32>
    %534 = tpu.matmul %533, %527, %cst_388 {dimension_numbers = #tpu.dot_dimension_numbers<[1], [0], [0], [1], [0, 0, 1, 1], [], []>} : vector<7x144xf32>, vector<144x112xf32>, vector<7x112xf32> -> vector<7x112xf32>
    %c0_389 = arith.constant 0 : index
    %c1_390 = arith.constant 1 : index
    %c0_391 = arith.constant 0 : index
    %535 = vector.load %arg14[%c0_389, %c1_390, %c0_391] : memref<2x9x144xf32, #tpu.memory_space<vmem>>, vector<1x7x144xf32>
    %536 = vector.shape_cast %535 : vector<1x7x144xf32> to vector<7x144xf32>
    %cst_392 = arith.constant dense<0.000000e+00> : vector<7x112xf32>
    %537 = tpu.matmul %536, %529, %cst_392 {dimension_numbers = #tpu.dot_dimension_numbers<[1], [0], [0], [1], [0, 0, 1, 1], [], []>} : vector<7x144xf32>, vector<144x112xf32>, vector<7x112xf32> -> vector<7x112xf32>
    %538 = arith.addf %534, %537 : vector<7x112xf32>
    %c0_393 = arith.constant 0 : index
    %c2_394 = arith.constant 2 : index
    %c0_395 = arith.constant 0 : index
    %539 = vector.load %arg14[%c0_393, %c2_394, %c0_395] : memref<2x9x144xf32, #tpu.memory_space<vmem>>, vector<1x7x144xf32>
    %540 = vector.shape_cast %539 : vector<1x7x144xf32> to vector<7x144xf32>
    %cst_396 = arith.constant dense<0.000000e+00> : vector<7x112xf32>
    %541 = tpu.matmul %540, %531, %cst_396 {dimension_numbers = #tpu.dot_dimension_numbers<[1], [0], [0], [1], [0, 0, 1, 1], [], []>} : vector<7x144xf32>, vector<144x112xf32>, vector<7x112xf32> -> vector<7x112xf32>
    %542 = arith.addf %538, %541 : vector<7x112xf32>
    %c0_397 = arith.constant 0 : index
    %c0_398 = arith.constant 0 : index
    %c0_399 = arith.constant 0 : index
    %543 = vector.load %arg15[%c0_397, %c0_398, %c0_399] : memref<2x7x112xf32, #tpu.memory_space<vmem>>, vector<1x7x112xf32>
    %544 = vector.shape_cast %543 : vector<1x7x112xf32> to vector<7x112xf32>
    %545 = vector.shape_cast %542 : vector<7x112xf32> to vector<1x7x112xf32>
    tpu.vector_store %arg15[%c0_397, %c0_398, %c0_399], %545 {strides = array<i32>} : memref<2x7x112xf32, #tpu.memory_space<vmem>>, vector<1x7x112xf32>,
    %c1_400 = arith.constant 1 : index
    %c0_401 = arith.constant 0 : index
    %c0_402 = arith.constant 0 : index
    %546 = vector.load %arg14[%c1_400, %c0_401, %c0_402] : memref<2x9x144xf32, #tpu.memory_space<vmem>>, vector<1x7x144xf32>
    %547 = vector.shape_cast %546 : vector<1x7x144xf32> to vector<7x144xf32>
    %cst_403 = arith.constant dense<0.000000e+00> : vector<7x112xf32>
    %548 = tpu.matmul %547, %527, %cst_403 {dimension_numbers = #tpu.dot_dimension_numbers<[1], [0], [0], [1], [0, 0, 1, 1], [], []>} : vector<7x144xf32>, vector<144x112xf32>, vector<7x112xf32> -> vector<7x112xf32>
    %c1_404 = arith.constant 1 : index
    %c1_405 = arith.constant 1 : index
    %c0_406 = arith.constant 0 : index
    %549 = vector.load %arg14[%c1_404, %c1_405, %c0_406] : memref<2x9x144xf32, #tpu.memory_space<vmem>>, vector<1x7x144xf32>
    %550 = vector.shape_cast %549 : vector<1x7x144xf32> to vector<7x144xf32>
    %cst_407 = arith.constant dense<0.000000e+00> : vector<7x112xf32>
    %551 = tpu.matmul %550, %529, %cst_407 {dimension_numbers = #tpu.dot_dimension_numbers<[1], [0], [0], [1], [0, 0, 1, 1], [], []>} : vector<7x144xf32>, vector<144x112xf32>, vector<7x112xf32> -> vector<7x112xf32>
    %552 = arith.addf %548, %551 : vector<7x112xf32>
    %c1_408 = arith.constant 1 : index
    %c2_409 = arith.constant 2 : index
    %c0_410 = arith.constant 0 : index
    %553 = vector.load %arg14[%c1_408, %c2_409, %c0_410] : memref<2x9x144xf32, #tpu.memory_space<vmem>>, vector<1x7x144xf32>
    %554 = vector.shape_cast %553 : vector<1x7x144xf32> to vector<7x144xf32>
    %cst_411 = arith.constant dense<0.000000e+00> : vector<7x112xf32>
    %555 = tpu.matmul %554, %531, %cst_411 {dimension_numbers = #tpu.dot_dimension_numbers<[1], [0], [0], [1], [0, 0, 1, 1], [], []>} : vector<7x144xf32>, vector<144x112xf32>, vector<7x112xf32> -> vector<7x112xf32>
    %556 = arith.addf %552, %555 : vector<7x112xf32>
    %c1_412 = arith.constant 1 : index
    %c0_413 = arith.constant 0 : index
    %c0_414 = arith.constant 0 : index
    %557 = vector.load %arg15[%c1_412, %c0_413, %c0_414] : memref<2x7x112xf32, #tpu.memory_space<vmem>>, vector<1x7x112xf32>
    %558 = vector.shape_cast %557 : vector<1x7x112xf32> to vector<7x112xf32>
    %559 = vector.shape_cast %556 : vector<7x112xf32> to vector<1x7x112xf32>
    tpu.vector_store %arg15[%c1_412, %c0_413, %c0_414], %559 {strides = array<i32>} : memref<2x7x112xf32, #tpu.memory_space<vmem>>, vector<1x7x112xf32>,
    %560 = tpu.iota {dimensions = array<i32: 0>} : vector<112x16xi32>
    %561 = tpu.iota {dimensions = array<i32: 1>} : vector<112x16xi32>
    %c15_i32_415 = arith.constant 15 : i32
    %562 = vector.broadcast %c15_i32_415 : i32 to vector<112x16xi32>
    %563 = arith.andi %560, %562 : vector<112x16xi32>
    %564 = arith.cmpi eq, %563, %561 : vector<112x16xi32>
    %cst_416 = arith.constant 1.000000e+00 : f32
    %cst_417 = arith.constant 0.000000e+00 : f32
    %565 = vector.broadcast %cst_416 : f32 to vector<112x16xf32>
    %566 = vector.broadcast %cst_417 : f32 to vector<112x16xf32>
    %567 = arith.select %564, %565, %566 : vector<112x16xi1>, vector<112x16xf32>
    %568 = tpu.iota {dimensions = array<i32: 0>} : vector<16x112xi32>
    %569 = tpu.iota {dimensions = array<i32: 1>} : vector<16x112xi32>
    %c15_i32_418 = arith.constant 15 : i32
    %570 = vector.broadcast %c15_i32_418 : i32 to vector<16x112xi32>
    %571 = arith.andi %569, %570 : vector<16x112xi32>
    %572 = arith.cmpi eq, %571, %568 : vector<16x112xi32>
    %cst_419 = arith.constant 1.000000e+00 : f32
    %cst_420 = arith.constant 0.000000e+00 : f32
    %573 = vector.broadcast %cst_419 : f32 to vector<16x112xf32>
    %574 = vector.broadcast %cst_420 : f32 to vector<16x112xf32>
    %575 = arith.select %572, %573, %574 : vector<16x112xi1>, vector<16x112xf32>
    %cst_421 = arith.constant 0.000000e+00 : f32
    %576 = vector.broadcast %cst_421 : f32 to vector<1x112xf32>
    %c0_422 = arith.constant 0 : index
    %c0_423 = arith.constant 0 : index
    %c0_424 = arith.constant 0 : index
    %577 = vector.load %arg15[%c0_422, %c0_423, %c0_424] : memref<2x7x112xf32, #tpu.memory_space<vmem>>, vector<1x7x112xf32>
    %578 = vector.shape_cast %577 : vector<1x7x112xf32> to vector<7x112xf32>
    %cst_425 = arith.constant dense<0.000000e+00> : vector<112xf32>
    %579 = vector.multi_reduction <add>, %578, %cst_425 [0] : vector<7x112xf32> to vector<112xf32>
    %580 = vector.shape_cast %579 : vector<112xf32> to vector<1x112xf32>
    %581 = arith.addf %576, %580 : vector<1x112xf32>
    %c1_426 = arith.constant 1 : index
    %c0_427 = arith.constant 0 : index
    %c0_428 = arith.constant 0 : index
    %582 = vector.load %arg15[%c1_426, %c0_427, %c0_428] : memref<2x7x112xf32, #tpu.memory_space<vmem>>, vector<1x7x112xf32>
    %583 = vector.shape_cast %582 : vector<1x7x112xf32> to vector<7x112xf32>
    %cst_429 = arith.constant dense<0.000000e+00> : vector<112xf32>
    %584 = vector.multi_reduction <add>, %583, %cst_429 [0] : vector<7x112xf32> to vector<112xf32>
    %585 = vector.shape_cast %584 : vector<112xf32> to vector<1x112xf32>
    %586 = arith.addf %581, %585 : vector<1x112xf32>
    %cst_430 = arith.constant dense<0.000000e+00> : vector<1x16xf32>
    %587 = tpu.matmul %586, %567, %cst_430 {dimension_numbers = #tpu.dot_dimension_numbers<[1], [0], [0], [1], [0, 0, 1, 1], [], []>} : vector<1x112xf32>, vector<112x16xf32>, vector<1x16xf32> -> vector<1x16xf32>
    %cst_431 = arith.constant 0.0102040814 : f32
    %588 = vector.broadcast %cst_431 : f32 to vector<1x16xf32>
    %589 = arith.mulf %587, %588 : vector<1x16xf32>
    %cst_432 = arith.constant dense<0.000000e+00> : vector<1x112xf32>
    %590 = tpu.matmul %589, %575, %cst_432 {dimension_numbers = #tpu.dot_dimension_numbers<[1], [0], [0], [1], [0, 0, 1, 1], [], []>} : vector<1x16xf32>, vector<16x112xf32>, vector<1x112xf32> -> vector<1x112xf32>
    %cst_433 = arith.constant 0.000000e+00 : f32
    %591 = vector.broadcast %cst_433 : f32 to vector<1x112xf32>
    %c0_434 = arith.constant 0 : index
    %c0_435 = arith.constant 0 : index
    %c0_436 = arith.constant 0 : index
    %592 = vector.load %arg15[%c0_434, %c0_435, %c0_436] : memref<2x7x112xf32, #tpu.memory_space<vmem>>, vector<1x7x112xf32>
    %593 = vector.shape_cast %592 : vector<1x7x112xf32> to vector<7x112xf32>
    %594 = vector.broadcast %590 : vector<1x112xf32> to vector<7x112xf32>
    %595 = arith.subf %593, %594 : vector<7x112xf32>
    %596 = arith.mulf %595, %595 : vector<7x112xf32>
    %cst_437 = arith.constant dense<0.000000e+00> : vector<112xf32>
    %597 = vector.multi_reduction <add>, %596, %cst_437 [0] : vector<7x112xf32> to vector<112xf32>
    %598 = vector.shape_cast %597 : vector<112xf32> to vector<1x112xf32>
    %599 = arith.addf %591, %598 : vector<1x112xf32>
    %c1_438 = arith.constant 1 : index
    %c0_439 = arith.constant 0 : index
    %c0_440 = arith.constant 0 : index
    %600 = vector.load %arg15[%c1_438, %c0_439, %c0_440] : memref<2x7x112xf32, #tpu.memory_space<vmem>>, vector<1x7x112xf32>
    %601 = vector.shape_cast %600 : vector<1x7x112xf32> to vector<7x112xf32>
    %602 = vector.broadcast %590 : vector<1x112xf32> to vector<7x112xf32>
    %603 = arith.subf %601, %602 : vector<7x112xf32>
    %604 = arith.mulf %603, %603 : vector<7x112xf32>
    %cst_441 = arith.constant dense<0.000000e+00> : vector<112xf32>
    %605 = vector.multi_reduction <add>, %604, %cst_441 [0] : vector<7x112xf32> to vector<112xf32>
    %606 = vector.shape_cast %605 : vector<112xf32> to vector<1x112xf32>
    %607 = arith.addf %599, %606 : vector<1x112xf32>
    %cst_442 = arith.constant dense<0.000000e+00> : vector<1x16xf32>
    %608 = tpu.matmul %607, %567, %cst_442 {dimension_numbers = #tpu.dot_dimension_numbers<[1], [0], [0], [1], [0, 0, 1, 1], [], []>} : vector<1x112xf32>, vector<112x16xf32>, vector<1x16xf32> -> vector<1x16xf32>
    %cst_443 = arith.constant 0.0102040814 : f32
    %609 = vector.broadcast %cst_443 : f32 to vector<1x16xf32>
    %610 = arith.mulf %608, %609 : vector<1x16xf32>
    %cst_444 = arith.constant 9.99999974E-6 : f32
    %611 = vector.broadcast %cst_444 : f32 to vector<1x16xf32>
    %612 = arith.addf %610, %611 : vector<1x16xf32>
    %613 = math.rsqrt %612 : vector<1x16xf32>
    %cst_445 = arith.constant dense<0.000000e+00> : vector<1x112xf32>
    %614 = tpu.matmul %613, %575, %cst_445 {dimension_numbers = #tpu.dot_dimension_numbers<[1], [0], [0], [1], [0, 0, 1, 1], [], []>} : vector<1x16xf32>, vector<16x112xf32>, vector<1x112xf32> -> vector<1x112xf32>
    %c0_446 = arith.constant 0 : index
    %c0_447 = arith.constant 0 : index
    %c0_448 = arith.constant 0 : index
    %615 = vector.load %arg15[%c0_446, %c0_447, %c0_448] : memref<2x7x112xf32, #tpu.memory_space<vmem>>, vector<1x7x112xf32>
    %616 = vector.shape_cast %615 : vector<1x7x112xf32> to vector<7x112xf32>
    %617 = vector.broadcast %590 : vector<1x112xf32> to vector<7x112xf32>
    %618 = arith.subf %616, %617 : vector<7x112xf32>
    %619 = vector.broadcast %614 : vector<1x112xf32> to vector<7x112xf32>
    %620 = arith.mulf %618, %619 : vector<7x112xf32>
    %cst_449 = arith.constant 0.000000e+00 : f32
    %621 = vector.broadcast %cst_449 : f32 to vector<7x112xf32>
    %622 = arith.maximumf %620, %621 : vector<7x112xf32>
    %c0_450 = arith.constant 0 : index
    %c0_451 = arith.constant 0 : index
    %c0_452 = arith.constant 0 : index
    %623 = vector.load %arg15[%c0_450, %c0_451, %c0_452] : memref<2x7x112xf32, #tpu.memory_space<vmem>>, vector<1x7x112xf32>
    %624 = vector.shape_cast %623 : vector<1x7x112xf32> to vector<7x112xf32>
    %625 = vector.shape_cast %622 : vector<7x112xf32> to vector<1x7x112xf32>
    tpu.vector_store %arg15[%c0_450, %c0_451, %c0_452], %625 {strides = array<i32>} : memref<2x7x112xf32, #tpu.memory_space<vmem>>, vector<1x7x112xf32>,
    %c1_453 = arith.constant 1 : index
    %c0_454 = arith.constant 0 : index
    %c0_455 = arith.constant 0 : index
    %626 = vector.load %arg15[%c1_453, %c0_454, %c0_455] : memref<2x7x112xf32, #tpu.memory_space<vmem>>, vector<1x7x112xf32>
    %627 = vector.shape_cast %626 : vector<1x7x112xf32> to vector<7x112xf32>
    %628 = vector.broadcast %590 : vector<1x112xf32> to vector<7x112xf32>
    %629 = arith.subf %627, %628 : vector<7x112xf32>
    %630 = vector.broadcast %614 : vector<1x112xf32> to vector<7x112xf32>
    %631 = arith.mulf %629, %630 : vector<7x112xf32>
    %cst_456 = arith.constant 0.000000e+00 : f32
    %632 = vector.broadcast %cst_456 : f32 to vector<7x112xf32>
    %633 = arith.maximumf %631, %632 : vector<7x112xf32>
    %c1_457 = arith.constant 1 : index
    %c0_458 = arith.constant 0 : index
    %c0_459 = arith.constant 0 : index
    %634 = vector.load %arg15[%c1_457, %c0_458, %c0_459] : memref<2x7x112xf32, #tpu.memory_space<vmem>>, vector<1x7x112xf32>
    %635 = vector.shape_cast %634 : vector<1x7x112xf32> to vector<7x112xf32>
    %636 = vector.shape_cast %633 : vector<7x112xf32> to vector<1x7x112xf32>
    tpu.vector_store %arg15[%c1_457, %c0_458, %c0_459], %636 {strides = array<i32>} : memref<2x7x112xf32, #tpu.memory_space<vmem>>, vector<1x7x112xf32>,
    %c0_460 = arith.constant 0 : index
    %c0_461 = arith.constant 0 : index
    %c0_462 = arith.constant 0 : index
    %637 = vector.load %arg7[%c0_460, %c0_461, %c0_462] : memref<3x112x80xf32, #tpu.memory_space<vmem>>, vector<1x112x80xf32>
    %638 = vector.shape_cast %637 : vector<1x112x80xf32> to vector<112x80xf32>
    %c1_463 = arith.constant 1 : index
    %c0_464 = arith.constant 0 : index
    %c0_465 = arith.constant 0 : index
    %639 = vector.load %arg7[%c1_463, %c0_464, %c0_465] : memref<3x112x80xf32, #tpu.memory_space<vmem>>, vector<1x112x80xf32>
    %640 = vector.shape_cast %639 : vector<1x112x80xf32> to vector<112x80xf32>
    %c2_466 = arith.constant 2 : index
    %c0_467 = arith.constant 0 : index
    %c0_468 = arith.constant 0 : index
    %641 = vector.load %arg7[%c2_466, %c0_467, %c0_468] : memref<3x112x80xf32, #tpu.memory_space<vmem>>, vector<1x112x80xf32>
    %642 = vector.shape_cast %641 : vector<1x112x80xf32> to vector<112x80xf32>
    %c0_469 = arith.constant 0 : index
    %c0_470 = arith.constant 0 : index
    %c0_471 = arith.constant 0 : index
    %643 = vector.load %arg15[%c0_469, %c0_470, %c0_471] : memref<2x7x112xf32, #tpu.memory_space<vmem>>, vector<1x5x112xf32>
    %644 = vector.shape_cast %643 : vector<1x5x112xf32> to vector<5x112xf32>
    %cst_472 = arith.constant dense<0.000000e+00> : vector<5x80xf32>
    %645 = tpu.matmul %644, %638, %cst_472 {dimension_numbers = #tpu.dot_dimension_numbers<[1], [0], [0], [1], [0, 0, 1, 1], [], []>} : vector<5x112xf32>, vector<112x80xf32>, vector<5x80xf32> -> vector<5x80xf32>
    %c0_473 = arith.constant 0 : index
    %c1_474 = arith.constant 1 : index
    %c0_475 = arith.constant 0 : index
    %646 = vector.load %arg15[%c0_473, %c1_474, %c0_475] : memref<2x7x112xf32, #tpu.memory_space<vmem>>, vector<1x5x112xf32>
    %647 = vector.shape_cast %646 : vector<1x5x112xf32> to vector<5x112xf32>
    %cst_476 = arith.constant dense<0.000000e+00> : vector<5x80xf32>
    %648 = tpu.matmul %647, %640, %cst_476 {dimension_numbers = #tpu.dot_dimension_numbers<[1], [0], [0], [1], [0, 0, 1, 1], [], []>} : vector<5x112xf32>, vector<112x80xf32>, vector<5x80xf32> -> vector<5x80xf32>
    %649 = arith.addf %645, %648 : vector<5x80xf32>
    %c0_477 = arith.constant 0 : index
    %c2_478 = arith.constant 2 : index
    %c0_479 = arith.constant 0 : index
    %650 = vector.load %arg15[%c0_477, %c2_478, %c0_479] : memref<2x7x112xf32, #tpu.memory_space<vmem>>, vector<1x5x112xf32>
    %651 = vector.shape_cast %650 : vector<1x5x112xf32> to vector<5x112xf32>
    %cst_480 = arith.constant dense<0.000000e+00> : vector<5x80xf32>
    %652 = tpu.matmul %651, %642, %cst_480 {dimension_numbers = #tpu.dot_dimension_numbers<[1], [0], [0], [1], [0, 0, 1, 1], [], []>} : vector<5x112xf32>, vector<112x80xf32>, vector<5x80xf32> -> vector<5x80xf32>
    %653 = arith.addf %649, %652 : vector<5x80xf32>
    %c0_481 = arith.constant 0 : index
    %c0_482 = arith.constant 0 : index
    %c0_483 = arith.constant 0 : index
    %654 = vector.load %arg16[%c0_481, %c0_482, %c0_483] : memref<2x5x80xf32, #tpu.memory_space<vmem>>, vector<1x5x80xf32>
    %655 = vector.shape_cast %654 : vector<1x5x80xf32> to vector<5x80xf32>
    %656 = vector.shape_cast %653 : vector<5x80xf32> to vector<1x5x80xf32>
    tpu.vector_store %arg16[%c0_481, %c0_482, %c0_483], %656 {strides = array<i32>} : memref<2x5x80xf32, #tpu.memory_space<vmem>>, vector<1x5x80xf32>,
    %c1_484 = arith.constant 1 : index
    %c0_485 = arith.constant 0 : index
    %c0_486 = arith.constant 0 : index
    %657 = vector.load %arg15[%c1_484, %c0_485, %c0_486] : memref<2x7x112xf32, #tpu.memory_space<vmem>>, vector<1x5x112xf32>
    %658 = vector.shape_cast %657 : vector<1x5x112xf32> to vector<5x112xf32>
    %cst_487 = arith.constant dense<0.000000e+00> : vector<5x80xf32>
    %659 = tpu.matmul %658, %638, %cst_487 {dimension_numbers = #tpu.dot_dimension_numbers<[1], [0], [0], [1], [0, 0, 1, 1], [], []>} : vector<5x112xf32>, vector<112x80xf32>, vector<5x80xf32> -> vector<5x80xf32>
    %c1_488 = arith.constant 1 : index
    %c1_489 = arith.constant 1 : index
    %c0_490 = arith.constant 0 : index
    %660 = vector.load %arg15[%c1_488, %c1_489, %c0_490] : memref<2x7x112xf32, #tpu.memory_space<vmem>>, vector<1x5x112xf32>
    %661 = vector.shape_cast %660 : vector<1x5x112xf32> to vector<5x112xf32>
    %cst_491 = arith.constant dense<0.000000e+00> : vector<5x80xf32>
    %662 = tpu.matmul %661, %640, %cst_491 {dimension_numbers = #tpu.dot_dimension_numbers<[1], [0], [0], [1], [0, 0, 1, 1], [], []>} : vector<5x112xf32>, vector<112x80xf32>, vector<5x80xf32> -> vector<5x80xf32>
    %663 = arith.addf %659, %662 : vector<5x80xf32>
    %c1_492 = arith.constant 1 : index
    %c2_493 = arith.constant 2 : index
    %c0_494 = arith.constant 0 : index
    %664 = vector.load %arg15[%c1_492, %c2_493, %c0_494] : memref<2x7x112xf32, #tpu.memory_space<vmem>>, vector<1x5x112xf32>
    %665 = vector.shape_cast %664 : vector<1x5x112xf32> to vector<5x112xf32>
    %cst_495 = arith.constant dense<0.000000e+00> : vector<5x80xf32>
    %666 = tpu.matmul %665, %642, %cst_495 {dimension_numbers = #tpu.dot_dimension_numbers<[1], [0], [0], [1], [0, 0, 1, 1], [], []>} : vector<5x112xf32>, vector<112x80xf32>, vector<5x80xf32> -> vector<5x80xf32>
    %667 = arith.addf %663, %666 : vector<5x80xf32>
    %c1_496 = arith.constant 1 : index
    %c0_497 = arith.constant 0 : index
    %c0_498 = arith.constant 0 : index
    %668 = vector.load %arg16[%c1_496, %c0_497, %c0_498] : memref<2x5x80xf32, #tpu.memory_space<vmem>>, vector<1x5x80xf32>
    %669 = vector.shape_cast %668 : vector<1x5x80xf32> to vector<5x80xf32>
    %670 = vector.shape_cast %667 : vector<5x80xf32> to vector<1x5x80xf32>
    tpu.vector_store %arg16[%c1_496, %c0_497, %c0_498], %670 {strides = array<i32>} : memref<2x5x80xf32, #tpu.memory_space<vmem>>, vector<1x5x80xf32>,
    %671 = tpu.iota {dimensions = array<i32: 0>} : vector<80x16xi32>
    %672 = tpu.iota {dimensions = array<i32: 1>} : vector<80x16xi32>
    %c15_i32_499 = arith.constant 15 : i32
    %673 = vector.broadcast %c15_i32_499 : i32 to vector<80x16xi32>
    %674 = arith.andi %671, %673 : vector<80x16xi32>
    %675 = arith.cmpi eq, %674, %672 : vector<80x16xi32>
    %cst_500 = arith.constant 1.000000e+00 : f32
    %cst_501 = arith.constant 0.000000e+00 : f32
    %676 = vector.broadcast %cst_500 : f32 to vector<80x16xf32>
    %677 = vector.broadcast %cst_501 : f32 to vector<80x16xf32>
    %678 = arith.select %675, %676, %677 : vector<80x16xi1>, vector<80x16xf32>
    %679 = tpu.iota {dimensions = array<i32: 0>} : vector<16x80xi32>
    %680 = tpu.iota {dimensions = array<i32: 1>} : vector<16x80xi32>
    %c15_i32_502 = arith.constant 15 : i32
    %681 = vector.broadcast %c15_i32_502 : i32 to vector<16x80xi32>
    %682 = arith.andi %680, %681 : vector<16x80xi32>
    %683 = arith.cmpi eq, %682, %679 : vector<16x80xi32>
    %cst_503 = arith.constant 1.000000e+00 : f32
    %cst_504 = arith.constant 0.000000e+00 : f32
    %684 = vector.broadcast %cst_503 : f32 to vector<16x80xf32>
    %685 = vector.broadcast %cst_504 : f32 to vector<16x80xf32>
    %686 = arith.select %683, %684, %685 : vector<16x80xi1>, vector<16x80xf32>
    %cst_505 = arith.constant 0.000000e+00 : f32
    %687 = vector.broadcast %cst_505 : f32 to vector<1x80xf32>
    %c0_506 = arith.constant 0 : index
    %c0_507 = arith.constant 0 : index
    %c0_508 = arith.constant 0 : index
    %688 = vector.load %arg16[%c0_506, %c0_507, %c0_508] : memref<2x5x80xf32, #tpu.memory_space<vmem>>, vector<1x5x80xf32>
    %689 = vector.shape_cast %688 : vector<1x5x80xf32> to vector<5x80xf32>
    %cst_509 = arith.constant dense<0.000000e+00> : vector<80xf32>
    %690 = vector.multi_reduction <add>, %689, %cst_509 [0] : vector<5x80xf32> to vector<80xf32>
    %691 = vector.shape_cast %690 : vector<80xf32> to vector<1x80xf32>
    %692 = arith.addf %687, %691 : vector<1x80xf32>
    %c1_510 = arith.constant 1 : index
    %c0_511 = arith.constant 0 : index
    %c0_512 = arith.constant 0 : index
    %693 = vector.load %arg16[%c1_510, %c0_511, %c0_512] : memref<2x5x80xf32, #tpu.memory_space<vmem>>, vector<1x5x80xf32>
    %694 = vector.shape_cast %693 : vector<1x5x80xf32> to vector<5x80xf32>
    %cst_513 = arith.constant dense<0.000000e+00> : vector<80xf32>
    %695 = vector.multi_reduction <add>, %694, %cst_513 [0] : vector<5x80xf32> to vector<80xf32>
    %696 = vector.shape_cast %695 : vector<80xf32> to vector<1x80xf32>
    %697 = arith.addf %692, %696 : vector<1x80xf32>
    %cst_514 = arith.constant dense<0.000000e+00> : vector<1x16xf32>
    %698 = tpu.matmul %697, %678, %cst_514 {dimension_numbers = #tpu.dot_dimension_numbers<[1], [0], [0], [1], [0, 0, 1, 1], [], []>} : vector<1x80xf32>, vector<80x16xf32>, vector<1x16xf32> -> vector<1x16xf32>
    %cst_515 = arith.constant 2.000000e-02 : f32
    %699 = vector.broadcast %cst_515 : f32 to vector<1x16xf32>
    %700 = arith.mulf %698, %699 : vector<1x16xf32>
    %cst_516 = arith.constant dense<0.000000e+00> : vector<1x80xf32>
    %701 = tpu.matmul %700, %686, %cst_516 {dimension_numbers = #tpu.dot_dimension_numbers<[1], [0], [0], [1], [0, 0, 1, 1], [], []>} : vector<1x16xf32>, vector<16x80xf32>, vector<1x80xf32> -> vector<1x80xf32>
    %cst_517 = arith.constant 0.000000e+00 : f32
    %702 = vector.broadcast %cst_517 : f32 to vector<1x80xf32>
    %c0_518 = arith.constant 0 : index
    %c0_519 = arith.constant 0 : index
    %c0_520 = arith.constant 0 : index
    %703 = vector.load %arg16[%c0_518, %c0_519, %c0_520] : memref<2x5x80xf32, #tpu.memory_space<vmem>>, vector<1x5x80xf32>
    %704 = vector.shape_cast %703 : vector<1x5x80xf32> to vector<5x80xf32>
    %705 = vector.broadcast %701 : vector<1x80xf32> to vector<5x80xf32>
    %706 = arith.subf %704, %705 : vector<5x80xf32>
    %707 = arith.mulf %706, %706 : vector<5x80xf32>
    %cst_521 = arith.constant dense<0.000000e+00> : vector<80xf32>
    %708 = vector.multi_reduction <add>, %707, %cst_521 [0] : vector<5x80xf32> to vector<80xf32>
    %709 = vector.shape_cast %708 : vector<80xf32> to vector<1x80xf32>
    %710 = arith.addf %702, %709 : vector<1x80xf32>
    %c1_522 = arith.constant 1 : index
    %c0_523 = arith.constant 0 : index
    %c0_524 = arith.constant 0 : index
    %711 = vector.load %arg16[%c1_522, %c0_523, %c0_524] : memref<2x5x80xf32, #tpu.memory_space<vmem>>, vector<1x5x80xf32>
    %712 = vector.shape_cast %711 : vector<1x5x80xf32> to vector<5x80xf32>
    %713 = vector.broadcast %701 : vector<1x80xf32> to vector<5x80xf32>
    %714 = arith.subf %712, %713 : vector<5x80xf32>
    %715 = arith.mulf %714, %714 : vector<5x80xf32>
    %cst_525 = arith.constant dense<0.000000e+00> : vector<80xf32>
    %716 = vector.multi_reduction <add>, %715, %cst_525 [0] : vector<5x80xf32> to vector<80xf32>
    %717 = vector.shape_cast %716 : vector<80xf32> to vector<1x80xf32>
    %718 = arith.addf %710, %717 : vector<1x80xf32>
    %cst_526 = arith.constant dense<0.000000e+00> : vector<1x16xf32>
    %719 = tpu.matmul %718, %678, %cst_526 {dimension_numbers = #tpu.dot_dimension_numbers<[1], [0], [0], [1], [0, 0, 1, 1], [], []>} : vector<1x80xf32>, vector<80x16xf32>, vector<1x16xf32> -> vector<1x16xf32>
    %cst_527 = arith.constant 2.000000e-02 : f32
    %720 = vector.broadcast %cst_527 : f32 to vector<1x16xf32>
    %721 = arith.mulf %719, %720 : vector<1x16xf32>
    %cst_528 = arith.constant 9.99999974E-6 : f32
    %722 = vector.broadcast %cst_528 : f32 to vector<1x16xf32>
    %723 = arith.addf %721, %722 : vector<1x16xf32>
    %724 = math.rsqrt %723 : vector<1x16xf32>
    %cst_529 = arith.constant dense<0.000000e+00> : vector<1x80xf32>
    %725 = tpu.matmul %724, %686, %cst_529 {dimension_numbers = #tpu.dot_dimension_numbers<[1], [0], [0], [1], [0, 0, 1, 1], [], []>} : vector<1x16xf32>, vector<16x80xf32>, vector<1x80xf32> -> vector<1x80xf32>
    %c0_530 = arith.constant 0 : index
    %c0_531 = arith.constant 0 : index
    %c0_532 = arith.constant 0 : index
    %726 = vector.load %arg16[%c0_530, %c0_531, %c0_532] : memref<2x5x80xf32, #tpu.memory_space<vmem>>, vector<1x5x80xf32>
    %727 = vector.shape_cast %726 : vector<1x5x80xf32> to vector<5x80xf32>
    %728 = vector.broadcast %701 : vector<1x80xf32> to vector<5x80xf32>
    %729 = arith.subf %727, %728 : vector<5x80xf32>
    %730 = vector.broadcast %725 : vector<1x80xf32> to vector<5x80xf32>
    %731 = arith.mulf %729, %730 : vector<5x80xf32>
    %cst_533 = arith.constant 0.000000e+00 : f32
    %732 = vector.broadcast %cst_533 : f32 to vector<5x80xf32>
    %733 = arith.maximumf %731, %732 : vector<5x80xf32>
    %c0_534 = arith.constant 0 : index
    %c0_535 = arith.constant 0 : index
    %c0_536 = arith.constant 0 : index
    %734 = vector.load %arg16[%c0_534, %c0_535, %c0_536] : memref<2x5x80xf32, #tpu.memory_space<vmem>>, vector<1x5x80xf32>
    %735 = vector.shape_cast %734 : vector<1x5x80xf32> to vector<5x80xf32>
    %736 = vector.shape_cast %733 : vector<5x80xf32> to vector<1x5x80xf32>
    tpu.vector_store %arg16[%c0_534, %c0_535, %c0_536], %736 {strides = array<i32>} : memref<2x5x80xf32, #tpu.memory_space<vmem>>, vector<1x5x80xf32>,
    %c1_537 = arith.constant 1 : index
    %c0_538 = arith.constant 0 : index
    %c0_539 = arith.constant 0 : index
    %737 = vector.load %arg16[%c1_537, %c0_538, %c0_539] : memref<2x5x80xf32, #tpu.memory_space<vmem>>, vector<1x5x80xf32>
    %738 = vector.shape_cast %737 : vector<1x5x80xf32> to vector<5x80xf32>
    %739 = vector.broadcast %701 : vector<1x80xf32> to vector<5x80xf32>
    %740 = arith.subf %738, %739 : vector<5x80xf32>
    %741 = vector.broadcast %725 : vector<1x80xf32> to vector<5x80xf32>
    %742 = arith.mulf %740, %741 : vector<5x80xf32>
    %cst_540 = arith.constant 0.000000e+00 : f32
    %743 = vector.broadcast %cst_540 : f32 to vector<5x80xf32>
    %744 = arith.maximumf %742, %743 : vector<5x80xf32>
    %c1_541 = arith.constant 1 : index
    %c0_542 = arith.constant 0 : index
    %c0_543 = arith.constant 0 : index
    %745 = vector.load %arg16[%c1_541, %c0_542, %c0_543] : memref<2x5x80xf32, #tpu.memory_space<vmem>>, vector<1x5x80xf32>
    %746 = vector.shape_cast %745 : vector<1x5x80xf32> to vector<5x80xf32>
    %747 = vector.shape_cast %744 : vector<5x80xf32> to vector<1x5x80xf32>
    tpu.vector_store %arg16[%c1_541, %c0_542, %c0_543], %747 {strides = array<i32>} : memref<2x5x80xf32, #tpu.memory_space<vmem>>, vector<1x5x80xf32>,
    %748 = tpu.iota {dimensions = array<i32: 0>} : vector<80x16xi32>
    %749 = tpu.iota {dimensions = array<i32: 1>} : vector<80x16xi32>
    %c15_i32_544 = arith.constant 15 : i32
    %750 = vector.broadcast %c15_i32_544 : i32 to vector<80x16xi32>
    %751 = arith.andi %748, %750 : vector<80x16xi32>
    %752 = arith.cmpi eq, %751, %749 : vector<80x16xi32>
    %cst_545 = arith.constant 1.000000e+00 : f32
    %cst_546 = arith.constant 0.000000e+00 : f32
    %753 = vector.broadcast %cst_545 : f32 to vector<80x16xf32>
    %754 = vector.broadcast %cst_546 : f32 to vector<80x16xf32>
    %755 = arith.select %752, %753, %754 : vector<80x16xi1>, vector<80x16xf32>
    %c0_547 = arith.constant 0 : index
    %c0_548 = arith.constant 0 : index
    %756 = vector.load %arg8[%c0_547, %c0_548] : memref<16x10xf32, #tpu.memory_space<vmem>>, vector<16x10xf32>
    %c0_549 = arith.constant 0 : index
    %c0_550 = arith.constant 0 : index
    %c0_551 = arith.constant 0 : index
    %757 = vector.load %arg16[%c0_549, %c0_550, %c0_551] : memref<2x5x80xf32, #tpu.memory_space<vmem>>, vector<1x5x80xf32>
    %758 = vector.shape_cast %757 : vector<1x5x80xf32> to vector<5x80xf32>
    %cst_552 = arith.constant dense<0.000000e+00> : vector<80xf32>
    %759 = vector.multi_reduction <add>, %758, %cst_552 [0] : vector<5x80xf32> to vector<80xf32>
    %760 = vector.shape_cast %759 : vector<80xf32> to vector<1x80xf32>
    %cst_553 = arith.constant dense<0.000000e+00> : vector<1x16xf32>
    %761 = tpu.matmul %760, %755, %cst_553 {dimension_numbers = #tpu.dot_dimension_numbers<[1], [0], [0], [1], [0, 0, 1, 1], [], []>} : vector<1x80xf32>, vector<80x16xf32>, vector<1x16xf32> -> vector<1x16xf32>
    %cst_554 = arith.constant 4.000000e-02 : f32
    %762 = vector.broadcast %cst_554 : f32 to vector<1x16xf32>
    %763 = arith.mulf %761, %762 : vector<1x16xf32>
    %cst_555 = arith.constant dense<0.000000e+00> : vector<1x10xf32>
    %764 = tpu.matmul %763, %756, %cst_555 {dimension_numbers = #tpu.dot_dimension_numbers<[1], [0], [0], [1], [0, 0, 1, 1], [], []>} : vector<1x16xf32>, vector<16x10xf32>, vector<1x10xf32> -> vector<1x10xf32>
    %cst_556 = arith.constant dense<0xFF800000> : vector<1xf32>
    %765 = vector.multi_reduction <maximumf>, %764, %cst_556 [1] : vector<1x10xf32> to vector<1xf32>
    %766 = vector.shape_cast %765 : vector<1xf32> to vector<1x1xf32>
    %767 = vector.broadcast %766 : vector<1x1xf32> to vector<1x10xf32>
    %768 = arith.subf %764, %767 : vector<1x10xf32>
    %769 = math.exp %768 : vector<1x10xf32>
    %cst_557 = arith.constant dense<0.000000e+00> : vector<1xf32>
    %770 = vector.multi_reduction <add>, %769, %cst_557 [1] : vector<1x10xf32> to vector<1xf32>
    %771 = vector.shape_cast %770 : vector<1xf32> to vector<1x1xf32>
    %772 = math.log %771 : vector<1x1xf32>
    %773 = vector.broadcast %772 : vector<1x1xf32> to vector<1x10xf32>
    %774 = arith.subf %768, %773 : vector<1x10xf32>
    %c0_558 = arith.constant 0 : index
    %c0_559 = arith.constant 0 : index
    %c0_560 = arith.constant 0 : index
    %775 = vector.load %arg9[%c0_558, %c0_559, %c0_560] : memref<1x2x10xf32, #tpu.memory_space<vmem>>, vector<1x1x10xf32>
    %776 = vector.shape_cast %775 : vector<1x1x10xf32> to vector<1x10xf32>
    %777 = vector.shape_cast %774 : vector<1x10xf32> to vector<1x1x10xf32>
    tpu.vector_store %arg9[%c0_558, %c0_559, %c0_560], %777 {strides = array<i32>} : memref<1x2x10xf32, #tpu.memory_space<vmem>>, vector<1x1x10xf32>,
    %c1_561 = arith.constant 1 : index
    %c0_562 = arith.constant 0 : index
    %c0_563 = arith.constant 0 : index
    %778 = vector.load %arg16[%c1_561, %c0_562, %c0_563] : memref<2x5x80xf32, #tpu.memory_space<vmem>>, vector<1x5x80xf32>
    %779 = vector.shape_cast %778 : vector<1x5x80xf32> to vector<5x80xf32>
    %cst_564 = arith.constant dense<0.000000e+00> : vector<80xf32>
    %780 = vector.multi_reduction <add>, %779, %cst_564 [0] : vector<5x80xf32> to vector<80xf32>
    %781 = vector.shape_cast %780 : vector<80xf32> to vector<1x80xf32>
    %cst_565 = arith.constant dense<0.000000e+00> : vector<1x16xf32>
    %782 = tpu.matmul %781, %755, %cst_565 {dimension_numbers = #tpu.dot_dimension_numbers<[1], [0], [0], [1], [0, 0, 1, 1], [], []>} : vector<1x80xf32>, vector<80x16xf32>, vector<1x16xf32> -> vector<1x16xf32>
    %cst_566 = arith.constant 4.000000e-02 : f32
    %783 = vector.broadcast %cst_566 : f32 to vector<1x16xf32>
    %784 = arith.mulf %782, %783 : vector<1x16xf32>
    %cst_567 = arith.constant dense<0.000000e+00> : vector<1x10xf32>
    %785 = tpu.matmul %784, %756, %cst_567 {dimension_numbers = #tpu.dot_dimension_numbers<[1], [0], [0], [1], [0, 0, 1, 1], [], []>} : vector<1x16xf32>, vector<16x10xf32>, vector<1x10xf32> -> vector<1x10xf32>
    %cst_568 = arith.constant dense<0xFF800000> : vector<1xf32>
    %786 = vector.multi_reduction <maximumf>, %785, %cst_568 [1] : vector<1x10xf32> to vector<1xf32>
    %787 = vector.shape_cast %786 : vector<1xf32> to vector<1x1xf32>
    %788 = vector.broadcast %787 : vector<1x1xf32> to vector<1x10xf32>
    %789 = arith.subf %785, %788 : vector<1x10xf32>
    %790 = math.exp %789 : vector<1x10xf32>
    %cst_569 = arith.constant dense<0.000000e+00> : vector<1xf32>
    %791 = vector.multi_reduction <add>, %790, %cst_569 [1] : vector<1x10xf32> to vector<1xf32>
    %792 = vector.shape_cast %791 : vector<1xf32> to vector<1x1xf32>
    %793 = math.log %792 : vector<1x1xf32>
    %794 = vector.broadcast %793 : vector<1x1xf32> to vector<1x10xf32>
    %795 = arith.subf %789, %794 : vector<1x10xf32>
    %c0_570 = arith.constant 0 : index
    %c1_571 = arith.constant 1 : index
    %c0_572 = arith.constant 0 : index
    %796 = vector.load %arg9[%c0_570, %c1_571, %c0_572] : memref<1x2x10xf32, #tpu.memory_space<vmem>>, vector<1x1x10xf32>
    %797 = vector.shape_cast %796 : vector<1x1x10xf32> to vector<1x10xf32>
    %798 = vector.shape_cast %795 : vector<1x10xf32> to vector<1x1x10xf32>
    tpu.vector_store %arg9[%c0_570, %c1_571, %c0_572], %798 {strides = array<i32>} : memref<1x2x10xf32, #tpu.memory_space<vmem>>, vector<1x1x10xf32>,
    return
  }
  func.func @transform_0(%arg0: i32) -> (i32, i32, i32, i32) {
    %c0_i32 = arith.constant 0 : i32
    %c0_i32_0 = arith.constant 0 : i32
    %c0_i32_1 = arith.constant 0 : i32
    %c0_i32_2 = arith.constant 0 : i32
    return %c0_i32, %arg0, %c0_i32_0, %c0_i32_1 : i32, i32, i32, i32
  }
  func.func @transform_1(%arg0: i32) -> (i32, i32, i32) {
    %c0_i32 = arith.constant 0 : i32
    %c0_i32_0 = arith.constant 0 : i32
    %c0_i32_1 = arith.constant 0 : i32
    %c0_i32_2 = arith.constant 0 : i32
    return %c0_i32, %c0_i32_0, %c0_i32_1 : i32, i32, i32
  }
  func.func @transform_2(%arg0: i32) -> (i32, i32, i32) {
    %c0_i32 = arith.constant 0 : i32
    %c0_i32_0 = arith.constant 0 : i32
    %c0_i32_1 = arith.constant 0 : i32
    %c0_i32_2 = arith.constant 0 : i32
    return %c0_i32, %c0_i32_0, %c0_i32_1 : i32, i32, i32
  }
  func.func @transform_3(%arg0: i32) -> (i32, i32, i32) {
    %c0_i32 = arith.constant 0 : i32
    %c0_i32_0 = arith.constant 0 : i32
    %c0_i32_1 = arith.constant 0 : i32
    %c0_i32_2 = arith.constant 0 : i32
    return %c0_i32, %c0_i32_0, %c0_i32_1 : i32, i32, i32
  }
  func.func @transform_4(%arg0: i32) -> (i32, i32, i32) {
    %c0_i32 = arith.constant 0 : i32
    %c0_i32_0 = arith.constant 0 : i32
    %c0_i32_1 = arith.constant 0 : i32
    %c0_i32_2 = arith.constant 0 : i32
    return %c0_i32, %c0_i32_0, %c0_i32_1 : i32, i32, i32
  }
  func.func @transform_5(%arg0: i32) -> (i32, i32, i32) {
    %c0_i32 = arith.constant 0 : i32
    %c0_i32_0 = arith.constant 0 : i32
    %c0_i32_1 = arith.constant 0 : i32
    %c0_i32_2 = arith.constant 0 : i32
    return %c0_i32, %c0_i32_0, %c0_i32_1 : i32, i32, i32
  }
  func.func @transform_6(%arg0: i32) -> (i32, i32, i32) {
    %c0_i32 = arith.constant 0 : i32
    %c0_i32_0 = arith.constant 0 : i32
    %c0_i32_1 = arith.constant 0 : i32
    %c0_i32_2 = arith.constant 0 : i32
    return %c0_i32, %c0_i32_0, %c0_i32_1 : i32, i32, i32
  }
  func.func @transform_7(%arg0: i32) -> (i32, i32) {
    %c0_i32 = arith.constant 0 : i32
    %c0_i32_0 = arith.constant 0 : i32
    %c0_i32_1 = arith.constant 0 : i32
    return %c0_i32, %c0_i32_0 : i32, i32
  }
  func.func @transform_8(%arg0: i32) -> (i32, i32, i32) {
    %c0_i32 = arith.constant 0 : i32
    %c0_i32_0 = arith.constant 0 : i32
    %c0_i32_1 = arith.constant 0 : i32
    return %arg0, %c0_i32, %c0_i32_0 : i32, i32, i32
  }
}

</mosaic_0001>

<llo_original>
// kernel: gbnnet_forward.1
$region0: #{gbnnet_forward.1}
  #allocation0 [shape = 'u32[]', space=smem, size = 0x4, offset = 0x4, fixed_abs, tag = 'smem constant byte address 0x4 - core index']
  #allocation1 [shape = 'u32[144,128]{1,0:T(1,128)}', space=vmem, size = 0x12000, scoped, tag = 'internal scratch']
  #allocation2 [shape = 'f32[2,26,208]{2,1,0:T(8,128)}', space=vmem, size = 0x10000, scoped, tag = 'scratch operand']
  #allocation3 [shape = 'f32[2,24,192]{2,1,0:T(8,128)}', space=vmem, size = 0xc000, scoped, tag = 'scratch operand']
  #allocation4 [shape = 'f32[2,22,176]{2,1,0:T(8,128)}', space=vmem, size = 0xc000, scoped, tag = 'scratch operand']
  #allocation5 [shape = 'f32[2,11,88]{2,1,0:T(8,128)}', space=vmem, size = 0x4000, scoped, tag = 'scratch operand']
  #allocation6 [shape = 'f32[2,9,144]{2,1,0:T(8,128)}', space=vmem, size = 0x8000, scoped, tag = 'scratch operand']
  #allocation7 [shape = 'f32[2,7,112]{2,1,0:T(8,128)}', space=vmem, size = 0x2000, scoped, tag = 'scratch operand']
  #allocation8 [shape = 'f32[2,5,80]{2,1,0:T(8,128)}', space=vmem, size = 0x2000, scoped, tag = 'scratch operand']
  %s0 = inlined_call_operand.vmem [shape: f32[2,2,28,28], index: 0, kind: input, shape index: {}]
  %s1 = inlined_call_operand.vmem [shape: f32[3,28,208], index: 1, kind: input, shape index: {}]
  %s2 = inlined_call_operand.vmem [shape: f32[3,208,192], index: 2, kind: input, shape index: {}]
  %s3 = inlined_call_operand.vmem [shape: f32[3,192,176], index: 3, kind: input, shape index: {}]
  %s4 = inlined_call_operand.vmem [shape: f32[3,88,144], index: 4, kind: input, shape index: {}]
  %s5 = inlined_call_operand.vmem [shape: f32[3,144,112], index: 5, kind: input, shape index: {}]
  %s6 = inlined_call_operand.vmem [shape: f32[3,112,80], index: 6, kind: input, shape index: {}]
  %s7 = inlined_call_operand.vmem [shape: f32[16,10], index: 7, kind: input, shape index: {}]
  %s8 = inlined_call_operand.vmem [shape: f32[2,2,10], index: 8, kind: output, shape index: {}]
  %s9 = sld [smem:[#allocation0]]
  $region103: #{gbnnet_forward.1} parent=0
    _
  %s11 = ssub.s32 1, %s9
  %s12 = scalar_select 0, %s11, %s9
  $region1: #{gbnnet_forward.1} parent=0
    #allocation9 [shape = 'u8[65536]{0}', space=vmem, size = 0x10000, scoped, tag = 'input window, operand 0']
    loop: start=0, step=1, limit=4
    $region2: #{gbnnet_forward.1} parent=1 // loop_pre_header
      _
    $region3: #{gbnnet_forward.1} parent=1 // loop_header
      %s14 = sphi 0, %s18
      %p15 = scmp.ge.s32.totalorder %s14, 4
      %s24 = sphi 0, %s26
      %s27 = sphi 0, %s24
      %s28 = sphi 0, %s27
      %s44 = sphi 0, %s28
      %s48 = sphi 0, %s48
      %s50 = sphi 0, %s48
      %s51 = sphi 0, %s50
      %s65 = sphi 0, %s51
      %s69 = sphi 0, %s69
      %s71 = sphi 0, %s69
      %s72 = sphi 0, %s71
      %s86 = sphi 0, %s72
      %s90 = sphi 0, %s90
      %s92 = sphi 0, %s90
      %s93 = sphi 0, %s92
      %s107 = sphi 0, %s93
      %s111 = sphi 0, %s111
      %s113 = sphi 0, %s111
      %s114 = sphi 0, %s113
      %s128 = sphi 0, %s114
      %s132 = sphi 0, %s132
      %s134 = sphi 0, %s132
      %s135 = sphi 0, %s134
      %s149 = sphi 0, %s135
      %s153 = sphi 0, %s153
      %s155 = sphi 0, %s153
      %s156 = sphi 0, %s155
      %s170 = sphi 0, %s156
      %s174 = sphi 0, %s174
      %s176 = sphi 0, %s174
      %s177 = sphi 0, %s176
      %s191 = sphi 0, %s177
      %s197 = sphi 0, %s199
      %s200 = sphi 0, %s197
      %s201 = sphi 0, %s200
      %s217 = sphi 0, %s201
    $region4: #{gbnnet_forward.1} parent=1 // loop_header_branch
      %17 = sbr.rel (%p15) target = $region8
    $region5: #{gbnnet_forward.1} parent=1 // loop_body
      %s19 = ssub.s32 %s14, 1
      %s20 = ssub.s32 %s14, 2
      %s21 = sadd.s32 %s14, 1
      %s22 = ssub.s32 %s14, %s21
      %p23 = scmp.eq.s32.totalorder %s22, 0
      %s25 = sadd.s32 %s24, 1
      %s26 = scalar_select %p23, %s24, %s25
      %p29 = pneg %p23
      %p30 = scmp.eq.s32.totalorder %s14, 1
      %p31 = por %p29, %p30
      %p32 = scmp.ne.s32.totalorder %s24, %s27
      %p33 = scmp.eq.s32.totalorder %s14, 0
      %p34 = por %p32, %p33
      %p35 = scmp.ne.s32.totalorder %s24, %s27
      %p36 = scmp.eq.s32.totalorder %s19, 1
      %p37 = por %p35, %p36
      %p38 = scmp.ne.s32.totalorder %s27, %s28
      %p39 = scmp.eq.s32.totalorder %s19, 0
      %p40 = por %p38, %p39
      %p41 = scmp.ne.s32.totalorder %s27, %s28
      %p42 = scmp.eq.s32.totalorder %s20, 1
      %p43 = por %p41, %p42
      %p45 = scmp.ne.s32.totalorder %s28, %s44
      %p46 = scmp.eq.s32.totalorder %s20, 0
      %p47 = por %p45, %p46
      %s49 = sadd.s32 %s48, 1
      %p52 = scmp.eq.s32.totalorder %s14, 1
      %p53 = scmp.ne.s32.totalorder %s48, %s50
      %p54 = scmp.eq.s32.totalorder %s14, 0
      %p55 = por %p53, %p54
      %p56 = scmp.ne.s32.totalorder %s48, %s50
      %p57 = scmp.eq.s32.totalorder %s19, 1
      %p58 = por %p56, %p57
      %p59 = scmp.ne.s32.totalorder %s50, %s51
      %p60 = scmp.eq.s32.totalorder %s19, 0
      %p61 = por %p59, %p60
      %p62 = scmp.ne.s32.totalorder %s50, %s51
      %p63 = scmp.eq.s32.totalorder %s20, 1
      %p64 = por %p62, %p63
      %p66 = scmp.ne.s32.totalorder %s51, %s65
      %p67 = scmp.eq.s32.totalorder %s20, 0
      %p68 = por %p66, %p67
      %s70 = sadd.s32 %s69, 1
      %p73 = scmp.eq.s32.totalorder %s14, 1
      %p74 = scmp.ne.s32.totalorder %s69, %s71
      %p75 = scmp.eq.s32.totalorder %s14, 0
      %p76 = por %p74, %p75
      %p77 = scmp.ne.s32.totalorder %s69, %s71
      %p78 = scmp.eq.s32.totalorder %s19, 1
      %p79 = por %p77, %p78
      %p80 = scmp.ne.s32.totalorder %s71, %s72
      %p81 = scmp.eq.s32.totalorder %s19, 0
      %p82 = por %p80, %p81
      %p83 = scmp.ne.s32.totalorder %s71, %s72
      %p84 = scmp.eq.s32.totalorder %s20, 1
      %p85 = por %p83, %p84
      %p87 = scmp.ne.s32.totalorder %s72, %s86
      %p88 = scmp.eq.s32.totalorder %s20, 0
      %p89 = por %p87, %p88
      %s91 = sadd.s32 %s90, 1
      %p94 = scmp.eq.s32.totalorder %s14, 1
      %p95 = scmp.ne.s32.totalorder %s90, %s92
      %p96 = scmp.eq.s32.totalorder %s14, 0
      %p97 = por %p95, %p96
      %p98 = scmp.ne.s32.totalorder %s90, %s92
      %p99 = scmp.eq.s32.totalorder %s19, 1
      %p100 = por %p98, %p99
      %p101 = scmp.ne.s32.totalorder %s92, %s93
      %p102 = scmp.eq.s32.totalorder %s19, 0
      %p103 = por %p101, %p102
      %p104 = scmp.ne.s32.totalorder %s92, %s93
      %p105 = scmp.eq.s32.totalorder %s20, 1
      %p106 = por %p104, %p105
      %p108 = scmp.ne.s32.totalorder %s93, %s107
      %p109 = scmp.eq.s32.totalorder %s20, 0
      %p110 = por %p108, %p109
      %s112 = sadd.s32 %s111, 1
      %p115 = scmp.eq.s32.totalorder %s14, 1
      %p116 = scmp.ne.s32.totalorder %s111, %s113
      %p117 = scmp.eq.s32.totalorder %s14, 0
      %p118 = por %p116, %p117
      %p119 = scmp.ne.s32.totalorder %s111, %s113
      %p120 = scmp.eq.s32.totalorder %s19, 1
      %p121 = por %p119, %p120
      %p122 = scmp.ne.s32.totalorder %s113, %s114
      %p123 = scmp.eq.s32.totalorder %s19, 0
      %p124 = por %p122, %p123
      %p125 = scmp.ne.s32.totalorder %s113, %s114
      %p126 = scmp.eq.s32.totalorder %s20, 1
      %p127 = por %p125, %p126
      %p129 = scmp.ne.s32.totalorder %s114, %s128
      %p130 = scmp.eq.s32.totalorder %s20, 0
      %p131 = por %p129, %p130
      %s133 = sadd.s32 %s132, 1
      %p136 = scmp.eq.s32.totalorder %s14, 1
      %p137 = scmp.ne.s32.totalorder %s132, %s134
      %p138 = scmp.eq.s32.totalorder %s14, 0
      %p139 = por %p137, %p138
      %p140 = scmp.ne.s32.totalorder %s132, %s134
      %p141 = scmp.eq.s32.totalorder %s19, 1
      %p142 = por %p140, %p141
      %p143 = scmp.ne.s32.totalorder %s134, %s135
      %p144 = scmp.eq.s32.totalorder %s19, 0
      %p145 = por %p143, %p144
      %p146 = scmp.ne.s32.totalorder %s134, %s135
      %p147 = scmp.eq.s32.totalorder %s20, 1
      %p148 = por %p146, %p147
      %p150 = scmp.ne.s32.totalorder %s135, %s149
      %p151 = scmp.eq.s32.totalorder %s20, 0
      %p152 = por %p150, %p151
      %s154 = sadd.s32 %s153, 1
      %p157 = scmp.eq.s32.totalorder %s14, 1
      %p158 = scmp.ne.s32.totalorder %s153, %s155
      %p159 = scmp.eq.s32.totalorder %s14, 0
      %p160 = por %p158, %p159
      %p161 = scmp.ne.s32.totalorder %s153, %s155
      %p162 = scmp.eq.s32.totalorder %s19, 1
      %p163 = por %p161, %p162
      %p164 = scmp.ne.s32.totalorder %s155, %s156
      %p165 = scmp.eq.s32.totalorder %s19, 0
      %p166 = por %p164, %p165
      %p167 = scmp.ne.s32.totalorder %s155, %s156
      %p168 = scmp.eq.s32.totalorder %s20, 1
      %p169 = por %p167, %p168
      %p171 = scmp.ne.s32.totalorder %s156, %s170
      %p172 = scmp.eq.s32.totalorder %s20, 0
      %p173 = por %p171, %p172
      %s175 = sadd.s32 %s174, 1
      %p178 = scmp.eq.s32.totalorder %s14, 1
      %p179 = scmp.ne.s32.totalorder %s174, %s176
      %p180 = scmp.eq.s32.totalorder %s14, 0
      %p181 = por %p179, %p180
      %p182 = scmp.ne.s32.totalorder %s174, %s176
      %p183 = scmp.eq.s32.totalorder %s19, 1
      %p184 = por %p182, %p183
      %p185 = scmp.ne.s32.totalorder %s176, %s177
      %p186 = scmp.eq.s32.totalorder %s19, 0
      %p187 = por %p185, %p186
      %p188 = scmp.ne.s32.totalorder %s176, %s177
      %p189 = scmp.eq.s32.totalorder %s20, 1
      %p190 = por %p188, %p189
      %p192 = scmp.ne.s32.totalorder %s177, %s191
      %p193 = scmp.eq.s32.totalorder %s20, 0
      %p194 = por %p192, %p193
      %s195 = ssub.s32 %s14, %s21
      %p196 = scmp.eq.s32.totalorder %s195, 0
      %s198 = sadd.s32 %s197, 1
      %s199 = scalar_select %p196, %s197, %s198
      %p202 = pneg %p196
      %p203 = scmp.eq.s32.totalorder %s14, 1
      %p204 = por %p202, %p203
      %p205 = scmp.ne.s32.totalorder %s197, %s200
      %p206 = scmp.eq.s32.totalorder %s14, 0
      %p207 = por %p205, %p206
      %p208 = scmp.ne.s32.totalorder %s197, %s200
      %p209 = scmp.eq.s32.totalorder %s19, 1
      %p210 = por %p208, %p209
      %p211 = scmp.ne.s32.totalorder %s200, %s201
      %p212 = scmp.eq.s32.totalorder %s19, 0
      %p213 = por %p211, %p212
      %p214 = scmp.ne.s32.totalorder %s200, %s201
      %p215 = scmp.eq.s32.totalorder %s20, 1
      %p216 = por %p214, %p215
      %p218 = scmp.ne.s32.totalorder %s201, %s217
      %p219 = scmp.eq.s32.totalorder %s20, 0
      %p220 = por %p218, %p219
      %p221 = scmp.le.s32.totalorder 1, %s14
      %p222 = scmp.lt.s32.totalorder %s14, 3
      %p223 = pnand %p221, %p222
      %p224 = pneg %p223
      // Predicated region
      $region9: #{gbnnet_forward.1} parent=5 // pred_check
        _
      $region10: #{gbnnet_forward.1} parent=5 // pred_check_branch
        %226 = sbr.rel (%p223) target = $region12
      $region11: #{gbnnet_forward.1} parent=5 // pred_region
        %s227 = ssub.s32 %s14, 1
        // Predicated region
        $region13: #{gbnnet_forward.1} parent=11 // pred_check
          %p228 = pneg %p61
        $region14: #{gbnnet_forward.1} parent=11 // pred_check_branch
          %230 = sbr.rel (%p228) target = $region16
        $region15: #{gbnnet_forward.1} parent=11 // pred_region
          _
        $region16: #{gbnnet_forward.1} parent=11 // pred_fallthru
          _
        // Predicated region
        $region17: #{gbnnet_forward.1} parent=11 // pred_check
          %p231 = pneg %p82
        $region18: #{gbnnet_forward.1} parent=11 // pred_check_branch
          %233 = sbr.rel (%p231) target = $region20
        $region19: #{gbnnet_forward.1} parent=11 // pred_region
          _
        $region20: #{gbnnet_forward.1} parent=11 // pred_fallthru
          _
        // Predicated region
        $region21: #{gbnnet_forward.1} parent=11 // pred_check
          %p234 = pneg %p103
        $region22: #{gbnnet_forward.1} parent=11 // pred_check_branch
          %236 = sbr.rel (%p234) target = $region24
        $region23: #{gbnnet_forward.1} parent=11 // pred_region
          _
        $region24: #{gbnnet_forward.1} parent=11 // pred_fallthru
          _
        // Predicated region
        $region25: #{gbnnet_forward.1} parent=11 // pred_check
          %p237 = pneg %p124
        $region26: #{gbnnet_forward.1} parent=11 // pred_check_branch
          %239 = sbr.rel (%p237) target = $region28
        $region27: #{gbnnet_forward.1} parent=11 // pred_region
          _
        $region28: #{gbnnet_forward.1} parent=11 // pred_fallthru
          _
        // Predicated region
        $region29: #{gbnnet_forward.1} parent=11 // pred_check
          %p240 = pneg %p145
        $region30: #{gbnnet_forward.1} parent=11 // pred_check_branch
          %242 = sbr.rel (%p240) target = $region32
        $region31: #{gbnnet_forward.1} parent=11 // pred_region
          _
        $region32: #{gbnnet_forward.1} parent=11 // pred_fallthru
          _
        // Predicated region
        $region33: #{gbnnet_forward.1} parent=11 // pred_check
          %p243 = pneg %p166
        $region34: #{gbnnet_forward.1} parent=11 // pred_check_branch
          %245 = sbr.rel (%p243) target = $region36
        $region35: #{gbnnet_forward.1} parent=11 // pred_region
          _
        $region36: #{gbnnet_forward.1} parent=11 // pred_fallthru
          _
        // Predicated region
        $region37: #{gbnnet_forward.1} parent=11 // pred_check
          %p246 = pneg %p187
        $region38: #{gbnnet_forward.1} parent=11 // pred_check_branch
          %248 = sbr.rel (%p246) target = $region40
        $region39: #{gbnnet_forward.1} parent=11 // pred_region
          _
        $region40: #{gbnnet_forward.1} parent=11 // pred_fallthru
          _
      $region12: #{gbnnet_forward.1} parent=5 // pred_fallthru
        _
      %p249 = scmp.lt.s32.totalorder %s14, 2
      // Predicated region
      $region41: #{gbnnet_forward.1} parent=5 // pred_check
        %p250 = pneg %p249
      $region42: #{gbnnet_forward.1} parent=5 // pred_check_branch
        %252 = sbr.rel (%p250) target = $region44
      $region43: #{gbnnet_forward.1} parent=5 // pred_region
        // Predicated region
        $region45: #{gbnnet_forward.1} parent=43 // pred_check
          %p253 = pneg %p34
        $region46: #{gbnnet_forward.1} parent=43 // pred_check_branch
          %255 = sbr.rel (%p253) target = $region48
        $region47: #{gbnnet_forward.1} parent=43 // pred_region
          %s256 = sand.u32 %s24, 1
          %s257 = sand.u32 %s24, 1
          %s258 = smul.addr %s257, 64
          %s259 = scalar_lea.vmem [#allocation9], %s258
          %s260 = smul.addr %s14, 4
          %s261 = smul.addr %s260, 8
          %s262 = scalar_lea.vmem %s0, %s261
          // Predicated region
          $region49: #{gbnnet_forward.1} parent=47 // pred_check
            _
          $region50: #{gbnnet_forward.1} parent=47 // pred_check_branch
            %264 = sbr.rel (0) target = $region52
          $region51: #{gbnnet_forward.1} parent=47 // pred_region
            // Predicated region
            $region53: #{gbnnet_forward.1} parent=51 // pred_check
              _
            $region54: #{gbnnet_forward.1} parent=51 // pred_check_branch
              %266 = sbr.rel (0) target = $region56
            $region55: #{gbnnet_forward.1} parent=51 // pred_region
              // Predicated region
              $region68: #{gbnnet_forward.1} parent=55 // pred_check
                _
              $region69: #{gbnnet_forward.1} parent=55 // pred_check_branch
                %295 = sbr.rel (0) target = $region71
              $region70: #{gbnnet_forward.1} parent=55 // pred_region
                loop: start=0, step=1, limit=1
                $region72: #{gbnnet_forward.1} parent=70 // loop_pre_header
                  _
                $region73: #{gbnnet_forward.1} parent=70 // loop_header
                  %s297 = sphi 0, %s301
                  %p298 = scmp.ge.s32.totalorder %s297, 1
                  %s302 = sphi %s262, %s262
                  %s303 = sphi %s259, %s259
                $region74: #{gbnnet_forward.1} parent=70 // loop_header_branch
                  %300 = sbr.rel (%p298) target = $region78
                $region75: #{gbnnet_forward.1} parent=70 // loop_body
                  %v304 = vld [vmem:[%s302] sm:$0xff]
                  %305 = vst [vmem:[%s303] sm:$0xff] %v304
                  %v306 = vld [vmem:[%s302 + $0x8] sm:$0xff]
                  %307 = vst [vmem:[%s303 + $0x8] sm:$0xff] %v306
                  %v308 = vld [vmem:[%s302 + $0x10] sm:$0xff]
                  %309 = vst [vmem:[%s303 + $0x10] sm:$0xff] %v308
                  %v310 = vld [vmem:[%s302 + $0x18] sm:$0xff]
                  %311 = vst [vmem:[%s303 + $0x18] sm:$0xff] %v310
                  %v312 = vld [vmem:[%s302 + $0x40] sm:$0xff]
                  %313 = vst [vmem:[%s303 + $0x20] sm:$0xff] %v312
                  %v314 = vld [vmem:[%s302 + $0x48] sm:$0xff]
                  %315 = vst [vmem:[%s303 + $0x28] sm:$0xff] %v314
                  %v316 = vld [vmem:[%s302 + $0x50] sm:$0xff]
                  %317 = vst [vmem:[%s303 + $0x30] sm:$0xff] %v316
                  %v318 = vld [vmem:[%s302 + $0x58] sm:$0xff]
                  %319 = vst [vmem:[%s303 + $0x38] sm:$0xff] %v318
                $region76: #{gbnnet_forward.1} parent=70 // loop_footer
                  %s301 = sadd.s32 1, %s297
                $region77: #{gbnnet_forward.1} parent=70 // loop_footer_branch
                  %296 = sbr.rel target = $region73
                $region78: #{gbnnet_forward.1} parent=70 // loop_exit
                  _
              $region71: #{gbnnet_forward.1} parent=55 // pred_fallthru
                _
              // Predicated region
              $region79: #{gbnnet_forward.1} parent=55 // pred_check
                _
              $region80: #{gbnnet_forward.1} parent=55 // pred_check_branch
                %321 = sbr.rel target = $region82
              $region81: #{gbnnet_forward.1} parent=55 // pred_region
                _
              $region82: #{gbnnet_forward.1} parent=55 // pred_fallthru
                _
            $region56: #{gbnnet_forward.1} parent=51 // pred_fallthru
              _
            // Predicated region
            $region57: #{gbnnet_forward.1} parent=51 // pred_check
              _
            $region58: #{gbnnet_forward.1} parent=51 // pred_check_branch
              %268 = sbr.rel target = $region60
            $region59: #{gbnnet_forward.1} parent=51 // pred_region
              loop: start=0, step=1, limit=1
              $region61: #{gbnnet_forward.1} parent=59 // loop_pre_header
                _
              $region62: #{gbnnet_forward.1} parent=59 // loop_header
                %s271 = sphi 0, %s275
                %p272 = scmp.ge.s32.totalorder %s271, 1
                %s276 = sphi %s262, %s262
                %s277 = sphi %s259, %s259
              $region63: #{gbnnet_forward.1} parent=59 // loop_header_branch
                %274 = sbr.rel (%p272) target = $region67
              $region64: #{gbnnet_forward.1} parent=59 // loop_body
                %v278 = vld [vmem:[%s276] sm:$0xff]
                %279 = vst [vmem:[%s277] sm:$0xff] %v278
                %v280 = vld [vmem:[%s276 + $0x8] sm:$0xff]
                %281 = vst [vmem:[%s277 + $0x8] sm:$0xff] %v280
                %v282 = vld [vmem:[%s276 + $0x10] sm:$0xff]
                %283 = vst [vmem:[%s277 + $0x10] sm:$0xff] %v282
                %v284 = vld [vmem:[%s276 + $0x18] sm:$0xff]
                %285 = vst [vmem:[%s277 + $0x18] sm:$0xff] %v284
                %v286 = vld [vmem:[%s276 + $0x40] sm:$0xff]
                %287 = vst [vmem:[%s277 + $0x20] sm:$0xff] %v286
                %v288 = vld [vmem:[%s276 + $0x48] sm:$0xff]
                %289 = vst [vmem:[%s277 + $0x28] sm:$0xff] %v288
                %v290 = vld [vmem:[%s276 + $0x50] sm:$0xff]
                %291 = vst [vmem:[%s277 + $0x30] sm:$0xff] %v290
                %v292 = vld [vmem:[%s276 + $0x58] sm:$0xff]
                %293 = vst [vmem:[%s277 + $0x38] sm:$0xff] %v292
              $region65: #{gbnnet_forward.1} parent=59 // loop_footer
                %s275 = sadd.s32 1, %s271
              $region66: #{gbnnet_forward.1} parent=59 // loop_footer_branch
                %270 = sbr.rel target = $region62
              $region67: #{gbnnet_forward.1} parent=59 // loop_exit
                _
            $region60: #{gbnnet_forward.1} parent=51 // pred_fallthru
              _
          $region52: #{gbnnet_forward.1} parent=47 // pred_fallthru
            _
          %322 = vnop
        $region48: #{gbnnet_forward.1} parent=43 // pred_fallthru
          _
      $region44: #{gbnnet_forward.1} parent=5 // pred_fallthru
        _
      %p323 = scmp.le.s32.totalorder 1, %s14
      %p324 = scmp.lt.s32.totalorder %s14, 3
      %p325 = pnand %p323, %p324
      %p326 = pneg %p325
      // Predicated region
      $region83: #{gbnnet_forward.1} parent=5 // pred_check
        _
      $region84: #{gbnnet_forward.1} parent=5 // pred_check_branch
        %328 = sbr.rel (%p325) target = $region86
      $region85: #{gbnnet_forward.1} parent=5 // pred_region
        %s329 = ssub.s32 %s14, 1
        %s330 = sand.u32 %s27, 1
        %s331 = sand.u32 %s27, 1
        %s332 = smul.addr %s331, 64
        %s333 = scalar_lea.vmem [#allocation9], %s332
        // Predicated region
        $region87: #{gbnnet_forward.1} parent=85 // pred_check
          %p334 = pneg %p40
        $region88: #{gbnnet_forward.1} parent=85 // pred_check_branch
          %336 = sbr.rel (%p334) target = $region90
        $region89: #{gbnnet_forward.1} parent=85 // pred_region
          _
        $region90: #{gbnnet_forward.1} parent=85 // pred_fallthru
          _
        %s337 = sand.u32 %s27, 1
        %s338 = sand.u32 %s27, 1
        %s339 = smul.addr %s338, 64
        %s340 = scalar_lea.vmem [#allocation9], %s339
        %p341 = pneg %p40
        %p342 = pneg %p37
        %p343 = pneg %p61
        %p344 = pneg %p58
        %p345 = pneg %p82
        %p346 = pneg %p79
        %p347 = pneg %p103
        %p348 = pneg %p100
        %p349 = pneg %p124
        %p350 = pneg %p121
        %p351 = pneg %p145
        %p352 = pneg %p142
        %p353 = pneg %p166
        %p354 = pneg %p163
        %p355 = pneg %p187
        %p356 = pneg %p184
        %p357 = pneg %p213
        %p358 = pneg %p210
        %p359 = scmp.lt.s32.totalorder %s19, 1
        %s360 = scalar_select %p359, %s19, 1
        %s361 = smul.addr %s360, 2
        %s362 = scalar_lea.vmem %s8, %s361
        %p363 = scmp.lt.s32.totalorder %s19, 1
        %s364 = scalar_select %p363, %s19, 1
        %s365 = smul.addr %s364, 2
        %s366 = scalar_lea.vmem %s8, %s365
        %v367 = vld [vmem:[%s1] sm:$0xff]
        %v368 = vld [vmem:[%s1 + $0x8] sm:$0xff]
        %v369 = vld [vmem:[%s1 + $0x10] sm:$0xff]
        %v370 = vld [vmem:[%s1 + $0x18] sm:$0xff]
        %v371 = vld [vmem:[%s1 + $0x20] sm:$0xff]
        %v372 = vld [vmem:[%s1 + $0x28] sm:$0xff]
        %v373 = vld [vmem:[%s1 + $0x30] sm:$0xf]
        %v374 = vld [vmem:[%s1 + $0x38] sm:$0xf]
        %s375 = scalar_lea.vmem %s1, 64
        %v376 = vld [vmem:[%s375] sm:$0xff]
        %v377 = vld [vmem:[%s375 + $0x8] sm:$0xff]
        %v378 = vld [vmem:[%s375 + $0x10] sm:$0xff]
        %v379 = vld [vmem:[%s375 + $0x18] sm:$0xff]
        %v380 = vld [vmem:[%s375 + $0x20] sm:$0xff]
        %v381 = vld [vmem:[%s375 + $0x28] sm:$0xff]
        %v382 = vld [vmem:[%s375 + $0x30] sm:$0xf]
        %v383 = vld [vmem:[%s375 + $0x38] sm:$0xf]
        %s384 = scalar_lea.vmem %s1, 128
        %v385 = vld [vmem:[%s384] sm:$0xff]
        %v386 = vld [vmem:[%s384 + $0x8] sm:$0xff]
        %v387 = vld [vmem:[%s384 + $0x10] sm:$0xff]
        %v388 = vld [vmem:[%s384 + $0x18] sm:$0xff]
        %v389 = vld [vmem:[%s384 + $0x20] sm:$0xff]
        %v390 = vld [vmem:[%s384 + $0x28] sm:$0xff]
        %v391 = vld [vmem:[%s384 + $0x30] sm:$0xf]
        %v392 = vld [vmem:[%s384 + $0x38] sm:$0xf]
        %v393 = vld [vmem:[%s333] sm:$0xff]
        %v394 = vld [vmem:[%s333 + $0x8] sm:$0xff]
        %v395 = vld [vmem:[%s333 + $0x10] sm:$0xff]
        %v396 = vld [vmem:[%s333 + $0x18] sm:$0x3]
        %v397 = vld [vmem:[%s333 + $0x1] sm:$0xff]
        %v398 = vld [vmem:[%s333 + $0x9] sm:$0xff]
        %v399 = vld [vmem:[%s333 + $0x11] sm:$0xff]
        %v400 = vld [vmem:[%s333 + $0x19] sm:$0x3]
        %vm401 = vcmask 228352
        %v403 = vsel %vm401, %v397, 0
        %v406 = vsel %vm401, %v398, 0
        %v409 = vsel %vm401, %v399, 0
        %v412 = vsel %vm401, %v400, 0
        %vm414 = vcmask 1043456
        %v416 = vsel %vm414, %v382, 0
        %v419 = vsel %vm414, %v383, 0
        %421 = vmatprep.subr.mxu0 %v377
        %422 = vmatpush1.msra.mxu0 %v376
        %423 = vmatprep.subr.mxu0 %v379
        %424 = vmatpush1.msra.mxu0 %v378
        %425 = vmatprep.subr.mxu0 %v381
        %426 = vmatpush1.msra.mxu0 %v380
        %427 = vmatprep.subr.mxu0 %v419
        %428 = vmatpush1.msra.mxu0 %v416
        %429 = vmatprep.subr.mxu0 0.0
        %430 = vmatpush1.msra.mxu0 0.0
        %431 = vmatprep.subr.mxu0 0.0
        %432 = vmatpush1.msra.mxu0 0.0
        %433 = vmatprep.subr.mxu0 0.0
        %434 = vmatpush1.msra.mxu0 0.0
        %435 = vmatprep.subr.mxu0 0.0
        %436 = vmatpush1.msra.mxu0 0.0
        %437 = vmatprep.subr.mxu0 0.0
        %438 = vmatpush1.msra.mxu0 0.0
        %439 = vmatprep.subr.mxu0 0.0
        %440 = vmatpush1.msra.mxu0 0.0
        %441 = vmatprep.subr.mxu0 0.0
        %442 = vmatpush1.msra.mxu0 0.0
        %443 = vmatprep.subr.mxu0 0.0
        %444 = vmatpush1.msra.mxu0 0.0
        %445 = vmatprep.subr.mxu0 0.0
        %446 = vmatpush1.msra.mxu0 0.0
        %447 = vmatprep.subr.mxu0 0.0
        %448 = vmatpush1.msra.mxu0 0.0
        %449 = vmatprep.subr.mxu0 0.0
        %450 = vmatpush1.msra.mxu0 0.0
        %451 = vmatprep.subr.mxu0 0.0
        %452 = vmatpush1.msra.mxu0 0.0
        %453 = vmatprep.subr.mxu0 0.0
        %454 = vmatpush1.msra.mxu0 0.0
        %455 = vmatprep.subr.mxu0 0.0
        %456 = vmatpush1.msra.mxu0 0.0
        %457 = vmatprep.subr.mxu0 0.0
        %458 = vmatpush1.msra.mxu0 0.0
        %459 = vmatprep.subr.mxu0 0.0
        %460 = vmatpush1.msra.mxu0 0.0
        %461 = vmatprep.subr.mxu0 0.0
        %462 = vmatpush1.msra.mxu0 0.0
        %463 = vmatprep.subr.mxu0 0.0
        %464 = vmatpush1.msra.mxu0 0.0
        %465 = vmatprep.subr.mxu0 0.0
        %466 = vmatpush1.msra.mxu0 0.0
        %467 = vmatprep.subr.mxu0 0.0
        %468 = vmatpush1.msra.mxu0 0.0
        %469 = vmatprep.subr.mxu0 0.0
        %470 = vmatpush1.msra.mxu0 0.0
        %471 = vmatprep.subr.mxu0 0.0
        %472 = vmatpush1.msra.mxu0 0.0
        %473 = vmatprep.subr.mxu0 0.0
        %474 = vmatpush1.msra.mxu0 0.0
        %475 = vmatprep.subr.mxu0 0.0
        %476 = vmatpush1.msra.mxu0 0.0
        %477 = vmatprep.subr.mxu0 0.0
        %478 = vmatpush1.msra.mxu0 0.0
        %479 = vmatprep.subr.mxu0 0.0
        %480 = vmatpush1.msra.mxu0 0.0
        %481 = vmatprep.subr.mxu0 0.0
        %482 = vmatpush1.msra.mxu0 0.0
        %483 = vmatprep.subr.mxu0 0.0
        %484 = vmatpush1.msra.mxu0 0.0
        %485 = vmatprep.mubr.f32.mxu0 0.0
        %486 = vmatmul.mubr.f32.gmra.mrb[0].mxu0 %v403
        %v487 = vpop.f32.mrb[0].mxu0
        %v488 = vadd.f32 0.0, %v487
        %v489 = vpop.f32.mrb[0].mxu0
        %v490 = vadd.f32 0.0, %v489
        %491 = vmatprep.mubr.f32.mxu0 0.0
        %492 = vmatmul.mubr.f32.gmra.mrb[0].mxu0 %v406
        %v493 = vpop.f32.mrb[0].mxu0
        %v494 = vadd.f32 0.0, %v493
        %v495 = vpop.f32.mrb[0].mxu0
        %v496 = vadd.f32 0.0, %v495
        %497 = vmatprep.mubr.f32.mxu0 0.0
        %498 = vmatmul.mubr.f32.gmra.mrb[0].mxu0 %v409
        %v499 = vpop.f32.mrb[0].mxu0
        %v500 = vadd.f32 0.0, %v499
        %v501 = vpop.f32.mrb[0].mxu0
        %v502 = vadd.f32 0.0, %v501
        %503 = vmatprep.mubr.f32.mxu0 0.0
        %504 = vmatmul.mubr.f32.gmra.mrb[0].mxu0 %v412
        %v505 = vpop.f32.mrb[0].mxu0
        %v506 = vadd.f32 0.0, %v505
        %v507 = vpop.f32.mrb[0].mxu0
        %v508 = vadd.f32 0.0, %v507
        %509 = vdwg.mxu0
        %v511 = vsel %vm401, %v393, 0
        %v514 = vsel %vm401, %v394, 0
        %v517 = vsel %vm401, %v395, 0
        %v520 = vsel %vm401, %v396, 0
        %v523 = vsel %vm414, %v373, 0
        %v526 = vsel %vm414, %v374, 0
        %528 = vmatprep.subr.mxu0 %v368
        %529 = vmatpush1.msra.mxu0 %v367
        %530 = vmatprep.subr.mxu0 %v370
        %531 = vmatpush1.msra.mxu0 %v369
        %532 = vmatprep.subr.mxu0 %v372
        %533 = vmatpush1.msra.mxu0 %v371
        %534 = vmatprep.subr.mxu0 %v526
        %535 = vmatpush1.msra.mxu0 %v523
        %536 = vmatprep.subr.mxu0 0.0
        %537 = vmatpush1.msra.mxu0 0.0
        %538 = vmatprep.subr.mxu0 0.0
        %539 = vmatpush1.msra.mxu0 0.0
        %540 = vmatprep.subr.mxu0 0.0
        %541 = vmatpush1.msra.mxu0 0.0
        %542 = vmatprep.subr.mxu0 0.0
        %543 = vmatpush1.msra.mxu0 0.0
        %544 = vmatprep.subr.mxu0 0.0
        %545 = vmatpush1.msra.mxu0 0.0
        %546 = vmatprep.subr.mxu0 0.0
        %547 = vmatpush1.msra.mxu0 0.0
        %548 = vmatprep.subr.mxu0 0.0
        %549 = vmatpush1.msra.mxu0 0.0
        %550 = vmatprep.subr.mxu0 0.0
        %551 = vmatpush1.msra.mxu0 0.0
        %552 = vmatprep.subr.mxu0 0.0
        %553 = vmatpush1.msra.mxu0 0.0
        %554 = vmatprep.subr.mxu0 0.0
        %555 = vmatpush1.msra.mxu0 0.0
        %556 = vmatprep.subr.mxu0 0.0
        %557 = vmatpush1.msra.mxu0 0.0
        %558 = vmatprep.subr.mxu0 0.0
        %559 = vmatpush1.msra.mxu0 0.0
        %560 = vmatprep.subr.mxu0 0.0
        %561 = vmatpush1.msra.mxu0 0.0
        %562 = vmatprep.subr.mxu0 0.0
        %563 = vmatpush1.msra.mxu0 0.0
        %564 = vmatprep.subr.mxu0 0.0
        %565 = vmatpush1.msra.mxu0 0.0
        %566 = vmatprep.subr.mxu0 0.0
        %567 = vmatpush1.msra.mxu0 0.0
        %568 = vmatprep.subr.mxu0 0.0
        %569 = vmatpush1.msra.mxu0 0.0
        %570 = vmatprep.subr.mxu0 0.0
        %571 = vmatpush1.msra.mxu0 0.0
        %572 = vmatprep.subr.mxu0 0.0
        %573 = vmatpush1.msra.mxu0 0.0
        %574 = vmatprep.subr.mxu0 0.0
        %575 = vmatpush1.msra.mxu0 0.0
        %576 = vmatprep.subr.mxu0 0.0
        %577 = vmatpush1.msra.mxu0 0.0
        %578 = vmatprep.subr.mxu0 0.0
        %579 = vmatpush1.msra.mxu0 0.0
        %580 = vmatprep.subr.mxu0 0.0
        %581 = vmatpush1.msra.mxu0 0.0
        %582 = vmatprep.subr.mxu0 0.0
        %583 = vmatpush1.msra.mxu0 0.0
        %584 = vmatprep.subr.mxu0 0.0
        %585 = vmatpush1.msra.mxu0 0.0
        %586 = vmatprep.subr.mxu0 0.0
        %587 = vmatpush1.msra.mxu0 0.0
        %588 = vmatprep.subr.mxu0 0.0
        %589 = vmatpush1.msra.mxu0 0.0
        %590 = vmatprep.subr.mxu0 0.0
        %591 = vmatpush1.msra.mxu0 0.0
        %592 = vmatprep.mubr.f32.mxu0 0.0
        %593 = vmatmul.mubr.f32.gmra.mrb[0].mxu0 %v511
        %v594 = vpop.f32.mrb[0].mxu0
        %v595 = vadd.f32 %v488, %v594
        %v596 = vpop.f32.mrb[0].mxu0
        %v597 = vadd.f32 %v490, %v596
        %598 = vmatprep.mubr.f32.mxu0 0.0
        %599 = vmatmul.mubr.f32.gmra.mrb[0].mxu0 %v514
        %v600 = vpop.f32.mrb[0].mxu0
        %v601 = vadd.f32 %v494, %v600
        %v602 = vpop.f32.mrb[0].mxu0
        %v603 = vadd.f32 %v496, %v602
        %604 = vmatprep.mubr.f32.mxu0 0.0
        %605 = vmatmul.mubr.f32.gmra.mrb[0].mxu0 %v517
        %v606 = vpop.f32.mrb[0].mxu0
        %v607 = vadd.f32 %v500, %v606
        %v608 = vpop.f32.mrb[0].mxu0
        %v609 = vadd.f32 %v502, %v608
        %610 = vmatprep.mubr.f32.mxu0 0.0
        %611 = vmatmul.mubr.f32.gmra.mrb[0].mxu0 %v520
        %v612 = vpop.f32.mrb[0].mxu0
        %v613 = vadd.f32 %v506, %v612
        %v614 = vpop.f32.mrb[0].mxu0
        %v615 = vadd.f32 %v508, %v614
        %616 = vdwg.mxu0
        %v617 = vld [vmem:[%s333 + $0x2] sm:$0xff]
        %v618 = vld [vmem:[%s333 + $0xa] sm:$0xff]
        %v619 = vld [vmem:[%s333 + $0x12] sm:$0xff]
        %v620 = vld [vmem:[%s333 + $0x1a] sm:$0x3]
        %v622 = vsel %vm401, %v617, 0
        %v625 = vsel %vm401, %v618, 0
        %v628 = vsel %vm401, %v619, 0
        %v631 = vsel %vm401, %v620, 0
        %v634 = vsel %vm414, %v391, 0
        %v637 = vsel %vm414, %v392, 0
        %639 = vmatprep.subr.mxu0 %v386
        %640 = vmatpush1.msra.mxu0 %v385
        %641 = vmatprep.subr.mxu0 %v388
        %642 = vmatpush1.msra.mxu0 %v387
        %643 = vmatprep.subr.mxu0 %v390
        %644 = vmatpush1.msra.mxu0 %v389
        %645 = vmatprep.subr.mxu0 %v637
        %646 = vmatpush1.msra.mxu0 %v634
        %647 = vmatprep.subr.mxu0 0.0
        %648 = vmatpush1.msra.mxu0 0.0
        %649 = vmatprep.subr.mxu0 0.0
        %650 = vmatpush1.msra.mxu0 0.0
        %651 = vmatprep.subr.mxu0 0.0
        %652 = vmatpush1.msra.mxu0 0.0
        %653 = vmatprep.subr.mxu0 0.0
        %654 = vmatpush1.msra.mxu0 0.0
        %655 = vmatprep.subr.mxu0 0.0
        %656 = vmatpush1.msra.mxu0 0.0
        %657 = vmatprep.subr.mxu0 0.0
        %658 = vmatpush1.msra.mxu0 0.0
        %659 = vmatprep.subr.mxu0 0.0
        %660 = vmatpush1.msra.mxu0 0.0
        %661 = vmatprep.subr.mxu0 0.0
        %662 = vmatpush1.msra.mxu0 0.0
        %663 = vmatprep.subr.mxu0 0.0
        %664 = vmatpush1.msra.mxu0 0.0
        %665 = vmatprep.subr.mxu0 0.0
        %666 = vmatpush1.msra.mxu0 0.0
        %667 = vmatprep.subr.mxu0 0.0
        %668 = vmatpush1.msra.mxu0 0.0
        %669 = vmatprep.subr.mxu0 0.0
        %670 = vmatpush1.msra.mxu0 0.0
        %671 = vmatprep.subr.mxu0 0.0
        %672 = vmatpush1.msra.mxu0 0.0
        %673 = vmatprep.subr.mxu0 0.0
        %674 = vmatpush1.msra.mxu0 0.0
        %675 = vmatprep.subr.mxu0 0.0
        %676 = vmatpush1.msra.mxu0 0.0
        %677 = vmatprep.subr.mxu0 0.0
        %678 = vmatpush1.msra.mxu0 0.0
        %679 = vmatprep.subr.mxu0 0.0
        %680 = vmatpush1.msra.mxu0 0.0
        %681 = vmatprep.subr.mxu0 0.0
        %682 = vmatpush1.msra.mxu0 0.0
        %683 = vmatprep.subr.mxu0 0.0
        %684 = vmatpush1.msra.mxu0 0.0
        %685 = vmatprep.subr.mxu0 0.0
        %686 = vmatpush1.msra.mxu0 0.0
        %687 = vmatprep.subr.mxu0 0.0
        %688 = vmatpush1.msra.mxu0 0.0
        %689 = vmatprep.subr.mxu0 0.0
        %690 = vmatpush1.msra.mxu0 0.0
        %691 = vmatprep.subr.mxu0 0.0
        %692 = vmatpush1.msra.mxu0 0.0
        %693 = vmatprep.subr.mxu0 0.0
        %694 = vmatpush1.msra.mxu0 0.0
        %695 = vmatprep.subr.mxu0 0.0
        %696 = vmatpush1.msra.mxu0 0.0
        %697 = vmatprep.subr.mxu0 0.0
        %698 = vmatpush1.msra.mxu0 0.0
        %699 = vmatprep.subr.mxu0 0.0
        %700 = vmatpush1.msra.mxu0 0.0
        %701 = vmatprep.subr.mxu0 0.0
        %702 = vmatpush1.msra.mxu0 0.0
        %703 = vmatprep.mubr.f32.mxu0 0.0
        %704 = vmatmul.mubr.f32.gmra.mrb[0].mxu0 %v622
        %v705 = vpop.f32.mrb[0].mxu0
        %v706 = vadd.f32 0.0, %v705
        %v707 = vpop.f32.mrb[0].mxu0
        %v708 = vadd.f32 0.0, %v707
        %709 = vmatprep.mubr.f32.mxu0 0.0
        %710 = vmatmul.mubr.f32.gmra.mrb[0].mxu0 %v625
        %v711 = vpop.f32.mrb[0].mxu0
        %v712 = vadd.f32 0.0, %v711
        %v713 = vpop.f32.mrb[0].mxu0
        %v714 = vadd.f32 0.0, %v713
        %715 = vmatprep.mubr.f32.mxu0 0.0
        %716 = vmatmul.mubr.f32.gmra.mrb[0].mxu0 %v628
        %v717 = vpop.f32.mrb[0].mxu0
        %v718 = vadd.f32 0.0, %v717
        %v719 = vpop.f32.mrb[0].mxu0
        %v720 = vadd.f32 0.0, %v719
        %721 = vmatprep.mubr.f32.mxu0 0.0
        %722 = vmatmul.mubr.f32.gmra.mrb[0].mxu0 %v631
        %v723 = vpop.f32.mrb[0].mxu0
        %v724 = vadd.f32 0.0, %v723
        %v725 = vpop.f32.mrb[0].mxu0
        %v726 = vadd.f32 0.0, %v725
        %727 = vdwg.mxu0
        %v728 = vadd.f32 %v595, %v706
        %v729 = vadd.f32 %v597, %v708
        %v730 = vadd.f32 %v601, %v712
        %v731 = vadd.f32 %v603, %v714
        %v732 = vadd.f32 %v607, %v718
        %v733 = vadd.f32 %v609, %v720
        %v734 = vadd.f32 %v613, %v724
        %v735 = vadd.f32 %v615, %v726
        %736 = vst [vmem:[#allocation2] sm:$0xff] %v728
        %vm737 = vcmask 654336
        %738 = vst.msk [vmem:[#allocation2 + $0x8] sm:$0xff] %vm737, %v729
        %739 = vst [vmem:[#allocation2 + $0x10] sm:$0xff] %v730
        %740 = vst.msk [vmem:[#allocation2 + $0x18] sm:$0xff] %vm737, %v731
        %741 = vst [vmem:[#allocation2 + $0x20] sm:$0xff] %v732
        %742 = vst.msk [vmem:[#allocation2 + $0x28] sm:$0xff] %vm737, %v733
        %743 = vst [vmem:[#allocation2 + $0x30] sm:$0x3] %v734
        %vm744 = vcmask 648192
        %745 = vst.msk [vmem:[#allocation2 + $0x38] sm:$0x3] %vm744, %v735
        %s746 = scalar_lea.vmem %s333, 32 [#allocation9]
        %v747 = vld [vmem:[%s746] sm:$0xff]
        %v748 = vld [vmem:[%s746 + $0x8] sm:$0xff]
        %v749 = vld [vmem:[%s746 + $0x10] sm:$0xff]
        %v750 = vld [vmem:[%s746 + $0x18] sm:$0x3]
        %v751 = vld [vmem:[%s746 + $0x1] sm:$0xff]
        %v752 = vld [vmem:[%s746 + $0x9] sm:$0xff]
        %v753 = vld [vmem:[%s746 + $0x11] sm:$0xff]
        %v754 = vld [vmem:[%s746 + $0x19] sm:$0x3]
        %v756 = vsel %vm401, %v751, 0
        %v759 = vsel %vm401, %v752, 0
        %v762 = vsel %vm401, %v753, 0
        %v765 = vsel %vm401, %v754, 0
        %767 = vmatprep.subr.mxu0 %v377
        %768 = vmatpush1.msra.mxu0 %v376
        %769 = vmatprep.subr.mxu0 %v379
        %770 = vmatpush1.msra.mxu0 %v378
        %771 = vmatprep.subr.mxu0 %v381
        %772 = vmatpush1.msra.mxu0 %v380
        %773 = vmatprep.subr.mxu0 %v419
        %774 = vmatpush1.msra.mxu0 %v416
        %775 = vmatprep.subr.mxu0 0.0
        %776 = vmatpush1.msra.mxu0 0.0
        %777 = vmatprep.subr.mxu0 0.0
        %778 = vmatpush1.msra.mxu0 0.0
        %779 = vmatprep.subr.mxu0 0.0
        %780 = vmatpush1.msra.mxu0 0.0
        %781 = vmatprep.subr.mxu0 0.0
        %782 = vmatpush1.msra.mxu0 0.0
        %783 = vmatprep.subr.mxu0 0.0
        %784 = vmatpush1.msra.mxu0 0.0
        %785 = vmatprep.subr.mxu0 0.0
        %786 = vmatpush1.msra.mxu0 0.0
        %787 = vmatprep.subr.mxu0 0.0
        %788 = vmatpush1.msra.mxu0 0.0
        %789 = vmatprep.subr.mxu0 0.0
        %790 = vmatpush1.msra.mxu0 0.0
        %791 = vmatprep.subr.mxu0 0.0
        %792 = vmatpush1.msra.mxu0 0.0
        %793 = vmatprep.subr.mxu0 0.0
        %794 = vmatpush1.msra.mxu0 0.0
        %795 = vmatprep.subr.mxu0 0.0
        %796 = vmatpush1.msra.mxu0 0.0
        %797 = vmatprep.subr.mxu0 0.0
        %798 = vmatpush1.msra.mxu0 0.0
        %799 = vmatprep.subr.mxu0 0.0
        %800 = vmatpush1.msra.mxu0 0.0
        %801 = vmatprep.subr.mxu0 0.0
        %802 = vmatpush1.msra.mxu0 0.0
        %803 = vmatprep.subr.mxu0 0.0
        %804 = vmatpush1.msra.mxu0 0.0
        %805 = vmatprep.subr.mxu0 0.0
        %806 = vmatpush1.msra.mxu0 0.0
        %807 = vmatprep.subr.mxu0 0.0
        %808 = vmatpush1.msra.mxu0 0.0
        %809 = vmatprep.subr.mxu0 0.0
        %810 = vmatpush1.msra.mxu0 0.0
        %811 = vmatprep.subr.mxu0 0.0
        %812 = vmatpush1.msra.mxu0 0.0
        %813 = vmatprep.subr.mxu0 0.0
        %814 = vmatpush1.msra.mxu0 0.0
        %815 = vmatprep.subr.mxu0 0.0
        %816 = vmatpush1.msra.mxu0 0.0
        %817 = vmatprep.subr.mxu0 0.0
        %818 = vmatpush1.msra.mxu0 0.0
        %819 = vmatprep.subr.mxu0 0.0
        %820 = vmatpush1.msra.mxu0 0.0
        %821 = vmatprep.subr.mxu0 0.0
        %822 = vmatpush1.msra.mxu0 0.0
        %823 = vmatprep.subr.mxu0 0.0
        %824 = vmatpush1.msra.mxu0 0.0
        %825 = vmatprep.subr.mxu0 0.0
        %826 = vmatpush1.msra.mxu0 0.0
        %827 = vmatprep.subr.mxu0 0.0
        %828 = vmatpush1.msra.mxu0 0.0
        %829 = vmatprep.subr.mxu0 0.0
        %830 = vmatpush1.msra.mxu0 0.0
        %831 = vmatprep.mubr.f32.mxu0 0.0
        %832 = vmatmul.mubr.f32.gmra.mrb[0].mxu0 %v756
        %v833 = vpop.f32.mrb[0].mxu0
        %v834 = vadd.f32 0.0, %v833
        %v835 = vpop.f32.mrb[0].mxu0
        %v836 = vadd.f32 0.0, %v835
        %837 = vmatprep.mubr.f32.mxu0 0.0
        %838 = vmatmul.mubr.f32.gmra.mrb[0].mxu0 %v759
        %v839 = vpop.f32.mrb[0].mxu0
        %v840 = vadd.f32 0.0, %v839
        %v841 = vpop.f32.mrb[0].mxu0
        %v842 = vadd.f32 0.0, %v841
        %843 = vmatprep.mubr.f32.mxu0 0.0
        %844 = vmatmul.mubr.f32.gmra.mrb[0].mxu0 %v762
        %v845 = vpop.f32.mrb[0].mxu0
        %v846 = vadd.f32 0.0, %v845
        %v847 = vpop.f32.mrb[0].mxu0
        %v848 = vadd.f32 0.0, %v847
        %849 = vmatprep.mubr.f32.mxu0 0.0
        %850 = vmatmul.mubr.f32.gmra.mrb[0].mxu0 %v765
        %v851 = vpop.f32.mrb[0].mxu0
        %v852 = vadd.f32 0.0, %v851
        %v853 = vpop.f32.mrb[0].mxu0
        %v854 = vadd.f32 0.0, %v853
        %855 = vdwg.mxu0
        %v857 = vsel %vm401, %v747, 0
        %v860 = vsel %vm401, %v748, 0
        %v863 = vsel %vm401, %v749, 0
        %v866 = vsel %vm401, %v750, 0
        %868 = vmatprep.subr.mxu0 %v368
        %869 = vmatpush1.msra.mxu0 %v367
        %870 = vmatprep.subr.mxu0 %v370
        %871 = vmatpush1.msra.mxu0 %v369
        %872 = vmatprep.subr.mxu0 %v372
        %873 = vmatpush1.msra.mxu0 %v371
        %874 = vmatprep.subr.mxu0 %v526
        %875 = vmatpush1.msra.mxu0 %v523
        %876 = vmatprep.subr.mxu0 0.0
        %877 = vmatpush1.msra.mxu0 0.0
        %878 = vmatprep.subr.mxu0 0.0
        %879 = vmatpush1.msra.mxu0 0.0
        %880 = vmatprep.subr.mxu0 0.0
        %881 = vmatpush1.msra.mxu0 0.0
        %882 = vmatprep.subr.mxu0 0.0
        %883 = vmatpush1.msra.mxu0 0.0
        %884 = vmatprep.subr.mxu0 0.0
        %885 = vmatpush1.msra.mxu0 0.0
        %886 = vmatprep.subr.mxu0 0.0
        %887 = vmatpush1.msra.mxu0 0.0
        %888 = vmatprep.subr.mxu0 0.0
        %889 = vmatpush1.msra.mxu0 0.0
        %890 = vmatprep.subr.mxu0 0.0
        %891 = vmatpush1.msra.mxu0 0.0
        %892 = vmatprep.subr.mxu0 0.0
        %893 = vmatpush1.msra.mxu0 0.0
        %894 = vmatprep.subr.mxu0 0.0
        %895 = vmatpush1.msra.mxu0 0.0
        %896 = vmatprep.subr.mxu0 0.0
        %897 = vmatpush1.msra.mxu0 0.0
        %898 = vmatprep.subr.mxu0 0.0
        %899 = vmatpush1.msra.mxu0 0.0
        %900 = vmatprep.subr.mxu0 0.0
        %901 = vmatpush1.msra.mxu0 0.0
        %902 = vmatprep.subr.mxu0 0.0
        %903 = vmatpush1.msra.mxu0 0.0
        %904 = vmatprep.subr.mxu0 0.0
        %905 = vmatpush1.msra.mxu0 0.0
        %906 = vmatprep.subr.mxu0 0.0
        %907 = vmatpush1.msra.mxu0 0.0
        %908 = vmatprep.subr.mxu0 0.0
        %909 = vmatpush1.msra.mxu0 0.0
        %910 = vmatprep.subr.mxu0 0.0
        %911 = vmatpush1.msra.mxu0 0.0
        %912 = vmatprep.subr.mxu0 0.0
        %913 = vmatpush1.msra.mxu0 0.0
        %914 = vmatprep.subr.mxu0 0.0
        %915 = vmatpush1.msra.mxu0 0.0
        %916 = vmatprep.subr.mxu0 0.0
        %917 = vmatpush1.msra.mxu0 0.0
        %918 = vmatprep.subr.mxu0 0.0
        %919 = vmatpush1.msra.mxu0 0.0
        %920 = vmatprep.subr.mxu0 0.0
        %921 = vmatpush1.msra.mxu0 0.0
        %922 = vmatprep.subr.mxu0 0.0
        %923 = vmatpush1.msra.mxu0 0.0
        %924 = vmatprep.subr.mxu0 0.0
        %925 = vmatpush1.msra.mxu0 0.0
        %926 = vmatprep.subr.mxu0 0.0
        %927 = vmatpush1.msra.mxu0 0.0
        %928 = vmatprep.subr.mxu0 0.0
        %929 = vmatpush1.msra.mxu0 0.0
        %930 = vmatprep.subr.mxu0 0.0
        %931 = vmatpush1.msra.mxu0 0.0
        %932 = vmatprep.mubr.f32.mxu0 0.0
        %933 = vmatmul.mubr.f32.gmra.mrb[0].mxu0 %v857
        %v934 = vpop.f32.mrb[0].mxu0
        %v935 = vadd.f32 %v834, %v934
        %v936 = vpop.f32.mrb[0].mxu0
        %v937 = vadd.f32 %v836, %v936
        %938 = vmatprep.mubr.f32.mxu0 0.0
        %939 = vmatmul.mubr.f32.gmra.mrb[0].mxu0 %v860
        %v940 = vpop.f32.mrb[0].mxu0
        %v941 = vadd.f32 %v840, %v940
        %v942 = vpop.f32.mrb[0].mxu0
        %v943 = vadd.f32 %v842, %v942
        %944 = vmatprep.mubr.f32.mxu0 0.0
        %945 = vmatmul.mubr.f32.gmra.mrb[0].mxu0 %v863
        %v946 = vpop.f32.mrb[0].mxu0
        %v947 = vadd.f32 %v846, %v946
        %v948 = vpop.f32.mrb[0].mxu0
        %v949 = vadd.f32 %v848, %v948
        %950 = vmatprep.mubr.f32.mxu0 0.0
        %951 = vmatmul.mubr.f32.gmra.mrb[0].mxu0 %v866
        %v952 = vpop.f32.mrb[0].mxu0
        %v953 = vadd.f32 %v852, %v952
        %v954 = vpop.f32.mrb[0].mxu0
        %v955 = vadd.f32 %v854, %v954
        %956 = vdwg.mxu0
        %v957 = vld [vmem:[%s746 + $0x2] sm:$0xff]
        %v958 = vld [vmem:[%s746 + $0xa] sm:$0xff]
        %v959 = vld [vmem:[%s746 + $0x12] sm:$0xff]
        %v960 = vld [vmem:[%s746 + $0x1a] sm:$0x3]
        %v962 = vsel %vm401, %v957, 0
        %v965 = vsel %vm401, %v958, 0
        %v968 = vsel %vm401, %v959, 0
        %v971 = vsel %vm401, %v960, 0
        %973 = vmatprep.subr.mxu0 %v386
        %974 = vmatpush1.msra.mxu0 %v385
        %975 = vmatprep.subr.mxu0 %v388
        %976 = vmatpush1.msra.mxu0 %v387
        %977 = vmatprep.subr.mxu0 %v390
        %978 = vmatpush1.msra.mxu0 %v389
        %979 = vmatprep.subr.mxu0 %v637
        %980 = vmatpush1.msra.mxu0 %v634
        %981 = vmatprep.subr.mxu0 0.0
        %982 = vmatpush1.msra.mxu0 0.0
        %983 = vmatprep.subr.mxu0 0.0
        %984 = vmatpush1.msra.mxu0 0.0
        %985 = vmatprep.subr.mxu0 0.0
        %986 = vmatpush1.msra.mxu0 0.0
        %987 = vmatprep.subr.mxu0 0.0
        %988 = vmatpush1.msra.mxu0 0.0
        %989 = vmatprep.subr.mxu0 0.0
        %990 = vmatpush1.msra.mxu0 0.0
        %991 = vmatprep.subr.mxu0 0.0
        %992 = vmatpush1.msra.mxu0 0.0
        %993 = vmatprep.subr.mxu0 0.0
        %994 = vmatpush1.msra.mxu0 0.0
        %995 = vmatprep.subr.mxu0 0.0
        %996 = vmatpush1.msra.mxu0 0.0
        %997 = vmatprep.subr.mxu0 0.0
        %998 = vmatpush1.msra.mxu0 0.0
        %999 = vmatprep.subr.mxu0 0.0
        %1000 = vmatpush1.msra.mxu0 0.0
        %1001 = vmatprep.subr.mxu0 0.0
        %1002 = vmatpush1.msra.mxu0 0.0
        %1003 = vmatprep.subr.mxu0 0.0
        %1004 = vmatpush1.msra.mxu0 0.0
        %1005 = vmatprep.subr.mxu0 0.0
        %1006 = vmatpush1.msra.mxu0 0.0
        %1007 = vmatprep.subr.mxu0 0.0
        %1008 = vmatpush1.msra.mxu0 0.0
        %1009 = vmatprep.subr.mxu0 0.0
        %1010 = vmatpush1.msra.mxu0 0.0
        %1011 = vmatprep.subr.mxu0 0.0
        %1012 = vmatpush1.msra.mxu0 0.0
        %1013 = vmatprep.subr.mxu0 0.0
        %1014 = vmatpush1.msra.mxu0 0.0
        %1015 = vmatprep.subr.mxu0 0.0
        %1016 = vmatpush1.msra.mxu0 0.0
        %1017 = vmatprep.subr.mxu0 0.0
        %1018 = vmatpush1.msra.mxu0 0.0
        %1019 = vmatprep.subr.mxu0 0.0
        %1020 = vmatpush1.msra.mxu0 0.0
        %1021 = vmatprep.subr.mxu0 0.0
        %1022 = vmatpush1.msra.mxu0 0.0
        %1023 = vmatprep.subr.mxu0 0.0
        %1024 = vmatpush1.msra.mxu0 0.0
        %1025 = vmatprep.subr.mxu0 0.0
        %1026 = vmatpush1.msra.mxu0 0.0
        %1027 = vmatprep.subr.mxu0 0.0
        %1028 = vmatpush1.msra.mxu0 0.0
        %1029 = vmatprep.subr.mxu0 0.0
        %1030 = vmatpush1.msra.mxu0 0.0
        %1031 = vmatprep.subr.mxu0 0.0
        %1032 = vmatpush1.msra.mxu0 0.0
        %1033 = vmatprep.subr.mxu0 0.0
        %1034 = vmatpush1.msra.mxu0 0.0
        %1035 = vmatprep.subr.mxu0 0.0
        %1036 = vmatpush1.msra.mxu0 0.0
        %1037 = vmatprep.mubr.f32.mxu0 0.0
        %1038 = vmatmul.mubr.f32.gmra.mrb[0].mxu0 %v962
        %v1039 = vpop.f32.mrb[0].mxu0
        %v1040 = vadd.f32 0.0, %v1039
        %v1041 = vpop.f32.mrb[0].mxu0
        %v1042 = vadd.f32 0.0, %v1041
        %1043 = vmatprep.mubr.f32.mxu0 0.0
        %1044 = vmatmul.mubr.f32.gmra.mrb[0].mxu0 %v965
        %v1045 = vpop.f32.mrb[0].mxu0
        %v1046 = vadd.f32 0.0, %v1045
        %v1047 = vpop.f32.mrb[0].mxu0
        %v1048 = vadd.f32 0.0, %v1047
        %1049 = vmatprep.mubr.f32.mxu0 0.0
        %1050 = vmatmul.mubr.f32.gmra.mrb[0].mxu0 %v968
        %v1051 = vpop.f32.mrb[0].mxu0
        %v1052 = vadd.f32 0.0, %v1051
        %v1053 = vpop.f32.mrb[0].mxu0
        %v1054 = vadd.f32 0.0, %v1053
        %1055 = vmatprep.mubr.f32.mxu0 0.0
        %1056 = vmatmul.mubr.f32.gmra.mrb[0].mxu0 %v971
        %v1057 = vpop.f32.mrb[0].mxu0
        %v1058 = vadd.f32 0.0, %v1057
        %v1059 = vpop.f32.mrb[0].mxu0
        %v1060 = vadd.f32 0.0, %v1059
        %1061 = vdwg.mxu0
        %v1062 = vadd.f32 %v935, %v1040
        %v1063 = vadd.f32 %v937, %v1042
        %v1064 = vadd.f32 %v941, %v1046
        %v1065 = vadd.f32 %v943, %v1048
        %v1066 = vadd.f32 %v947, %v1052
        %v1067 = vadd.f32 %v949, %v1054
        %v1068 = vadd.f32 %v953, %v1058
        %v1069 = vadd.f32 %v955, %v1060
        %s1070 = scalar_lea.vmem [#allocation2], 64
        %1071 = vst [vmem:[%s1070] sm:$0xff] %v1062
        %1072 = vst.msk [vmem:[%s1070 + $0x8] sm:$0xff] %vm737, %v1063
        %1073 = vst [vmem:[%s1070 + $0x10] sm:$0xff] %v1064
        %1074 = vst.msk [vmem:[%s1070 + $0x18] sm:$0xff] %vm737, %v1065
        %1075 = vst [vmem:[%s1070 + $0x20] sm:$0xff] %v1066
        %1076 = vst.msk [vmem:[%s1070 + $0x28] sm:$0xff] %vm737, %v1067
        %1077 = vst [vmem:[%s1070 + $0x30] sm:$0x3] %v1068
        %1078 = vst.msk [vmem:[%s1070 + $0x38] sm:$0x3] %vm744, %v1069
        %v1079 = vlaneseq
        %v1080 = vshrl.u32 %v1079, 7
        %v1081 = vadd.s32 %v1080, 8
        %v1082 = vadd.s32 %v1080, 16
        %v1083 = vadd.s32 %v1080, 24
        %v1084 = vadd.s32 %v1080, 32
        %v1085 = vadd.s32 %v1080, 40
        %v1086 = vadd.s32 %v1080, 48
        %v1087 = vadd.s32 %v1080, 56
        %v1088 = vadd.s32 %v1080, 64
        %v1089 = vadd.s32 %v1080, 72
        %v1090 = vadd.s32 %v1080, 80
        %v1091 = vadd.s32 %v1080, 88
        %v1092 = vadd.s32 %v1080, 96
        %v1093 = vadd.s32 %v1080, 104
        %v1094 = vadd.s32 %v1080, 112
        %v1095 = vadd.s32 %v1080, 120
        %v1096 = vadd.s32 %v1080, 128
        %v1097 = vadd.s32 %v1080, 136
        %v1098 = vadd.s32 %v1080, 144
        %v1099 = vadd.s32 %v1080, 152
        %v1100 = vadd.s32 %v1080, 160
        %v1101 = vadd.s32 %v1080, 168
        %v1102 = vadd.s32 %v1080, 176
        %v1103 = vadd.s32 %v1080, 184
        %v1104 = vadd.s32 %v1080, 192
        %v1105 = vadd.s32 %v1080, 200
        %v1106 = vlaneseq
        %v1107 = vand.u32 %v1106, 127
        %v1108 = vand.u32 %v1080, 7
        %v1109 = vand.u32 %v1081, 7
        %v1110 = vand.u32 %v1082, 7
        %v1111 = vand.u32 %v1083, 7
        %v1112 = vand.u32 %v1084, 7
        %v1113 = vand.u32 %v1085, 7
        %v1114 = vand.u32 %v1086, 7
        %v1115 = vand.u32 %v1087, 7
        %v1116 = vand.u32 %v1088, 7
        %v1117 = vand.u32 %v1089, 7
        %v1118 = vand.u32 %v1090, 7
        %v1119 = vand.u32 %v1091, 7
        %v1120 = vand.u32 %v1092, 7
        %v1121 = vand.u32 %v1093, 7
        %v1122 = vand.u32 %v1094, 7
        %v1123 = vand.u32 %v1095, 7
        %v1124 = vand.u32 %v1096, 7
        %v1125 = vand.u32 %v1097, 7
        %v1126 = vand.u32 %v1098, 7
        %v1127 = vand.u32 %v1099, 7
        %v1128 = vand.u32 %v1100, 7
        %v1129 = vand.u32 %v1101, 7
        %v1130 = vand.u32 %v1102, 7
        %v1131 = vand.u32 %v1103, 7
        %v1132 = vand.u32 %v1104, 7
        %v1133 = vand.u32 %v1105, 7
        %vm1134 = vcmp.eq.s32.totalorder %v1108, %v1107
        %vm1135 = vcmp.eq.s32.totalorder %v1109, %v1107
        %vm1136 = vcmp.eq.s32.totalorder %v1110, %v1107
        %vm1137 = vcmp.eq.s32.totalorder %v1111, %v1107
        %vm1138 = vcmp.eq.s32.totalorder %v1112, %v1107
        %vm1139 = vcmp.eq.s32.totalorder %v1113, %v1107
        %vm1140 = vcmp.eq.s32.totalorder %v1114, %v1107
        %vm1141 = vcmp.eq.s32.totalorder %v1115, %v1107
        %vm1142 = vcmp.eq.s32.totalorder %v1116, %v1107
        %vm1143 = vcmp.eq.s32.totalorder %v1117, %v1107
        %vm1144 = vcmp.eq.s32.totalorder %v1118, %v1107
        %vm1145 = vcmp.eq.s32.totalorder %v1119, %v1107
        %vm1146 = vcmp.eq.s32.totalorder %v1120, %v1107
        %vm1147 = vcmp.eq.s32.totalorder %v1121, %v1107
        %vm1148 = vcmp.eq.s32.totalorder %v1122, %v1107
        %vm1149 = vcmp.eq.s32.totalorder %v1123, %v1107
        %vm1150 = vcmp.eq.s32.totalorder %v1124, %v1107
        %vm1151 = vcmp.eq.s32.totalorder %v1125, %v1107
        %vm1152 = vcmp.eq.s32.totalorder %v1126, %v1107
        %vm1153 = vcmp.eq.s32.totalorder %v1127, %v1107
        %vm1154 = vcmp.eq.s32.totalorder %v1128, %v1107
        %vm1155 = vcmp.eq.s32.totalorder %v1129, %v1107
        %vm1156 = vcmp.eq.s32.totalorder %v1130, %v1107
        %vm1157 = vcmp.eq.s32.totalorder %v1131, %v1107
        %vm1158 = vcmp.eq.s32.totalorder %v1132, %v1107
        %vm1159 = vcmp.eq.s32.totalorder %v1133, %v1107
        %v1160 = vsel %vm1134, 1.0, 0.0
        %v1161 = vsel %vm1135, 1.0, 0.0
        %v1162 = vsel %vm1136, 1.0, 0.0
        %v1163 = vsel %vm1137, 1.0, 0.0
        %v1164 = vsel %vm1138, 1.0, 0.0
        %v1165 = vsel %vm1139, 1.0, 0.0
        %v1166 = vsel %vm1140, 1.0, 0.0
        %v1167 = vsel %vm1141, 1.0, 0.0
        %v1168 = vsel %vm1142, 1.0, 0.0
        %v1169 = vsel %vm1143, 1.0, 0.0
        %v1170 = vsel %vm1144, 1.0, 0.0
        %v1171 = vsel %vm1145, 1.0, 0.0
        %v1172 = vsel %vm1146, 1.0, 0.0
        %v1173 = vsel %vm1147, 1.0, 0.0
        %v1174 = vsel %vm1148, 1.0, 0.0
        %v1175 = vsel %vm1149, 1.0, 0.0
        %v1176 = vsel %vm1150, 1.0, 0.0
        %v1177 = vsel %vm1151, 1.0, 0.0
        %v1178 = vsel %vm1152, 1.0, 0.0
        %v1179 = vsel %vm1153, 1.0, 0.0
        %v1180 = vsel %vm1154, 1.0, 0.0
        %v1181 = vsel %vm1155, 1.0, 0.0
        %v1182 = vsel %vm1156, 1.0, 0.0
        %v1183 = vsel %vm1157, 1.0, 0.0
        %v1184 = vsel %vm1158, 1.0, 0.0
        %v1185 = vsel %vm1159, 1.0, 0.0
        %v1186 = vadd.s32 %v1107, 128
        %v1187 = vand.u32 %v1107, 7
        %v1188 = vand.u32 %v1186, 7
        %vm1189 = vcmp.eq.s32.totalorder %v1187, %v1080
        %vm1190 = vcmp.eq.s32.totalorder %v1188, %v1080
        %v1191 = vsel %vm1189, 1.0, 0.0
        %v1192 = vsel %vm1190, 1.0, 0.0
        %v1193 = vld [vmem:[#allocation2] sm:$0xff]
        %v1194 = vld [vmem:[#allocation2 + $0x8] sm:$0xff]
        %v1195 = vld [vmem:[#allocation2 + $0x10] sm:$0xff]
        %v1196 = vld [vmem:[#allocation2 + $0x18] sm:$0xff]
        %v1197 = vld [vmem:[#allocation2 + $0x20] sm:$0xff]
        %v1198 = vld [vmem:[#allocation2 + $0x28] sm:$0xff]
        %v1199 = vld [vmem:[#allocation2 + $0x30] sm:$0x3]
        %v1200 = vld [vmem:[#allocation2 + $0x38] sm:$0x3]
        %v1201 = vadd.f32 %v1193, %v1195
        %v1202 = vadd.f32 %v1201, %v1197
        %vm1203 = vcmask 1041408
        %v1204 = vsel %vm1203, %v1199, 0.0
        %v1205 = vadd.f32 %v1202, %v1204
        %v1206 = vrot.slane %v1205, 4
        %v1207 = vadd.f32 %v1205, %v1206
        %v1208 = vrot.slane %v1207, 2
        %v1209 = vadd.f32 %v1207, %v1208
        %v1210 = vrot.slane %v1209, 1
        %v1211 = vadd.f32 %v1209, %v1210
        %v1212 = vsel %vm737, %v1194, 0.0
        %v1213 = vsel %vm737, %v1196, 0.0
        %v1214 = vadd.f32 %v1212, %v1213
        %v1215 = vsel %vm737, %v1198, 0.0
        %v1216 = vadd.f32 %v1214, %v1215
        %v1217 = vsel %vm744, %v1200, 0.0
        %v1218 = vadd.f32 %v1216, %v1217
        %v1219 = vrot.slane %v1218, 4
        %v1220 = vadd.f32 %v1218, %v1219
        %v1221 = vrot.slane %v1220, 2
        %v1222 = vadd.f32 %v1220, %v1221
        %v1223 = vrot.slane %v1222, 1
        %v1224 = vadd.f32 %v1222, %v1223
        %v1225 = vadd.f32 %v1211, 0.0
        %v1226 = vadd.f32 %v1224, 0.0
        %v1227 = vld [vmem:[%s1070] sm:$0xff]
        %v1228 = vld [vmem:[%s1070 + $0x8] sm:$0xff]
        %v1229 = vld [vmem:[%s1070 + $0x10] sm:$0xff]
        %v1230 = vld [vmem:[%s1070 + $0x18] sm:$0xff]
        %v1231 = vld [vmem:[%s1070 + $0x20] sm:$0xff]
        %v1232 = vld [vmem:[%s1070 + $0x28] sm:$0xff]
        %v1233 = vld [vmem:[%s1070 + $0x30] sm:$0x3]
        %v1234 = vld [vmem:[%s1070 + $0x38] sm:$0x3]
        %v1235 = vadd.f32 %v1227, %v1229
        %v1236 = vadd.f32 %v1235, %v1231
        %v1237 = vsel %vm1203, %v1233, 0.0
        %v1238 = vadd.f32 %v1236, %v1237
        %v1239 = vrot.slane %v1238, 4
        %v1240 = vadd.f32 %v1238, %v1239
        %v1241 = vrot.slane %v1240, 2
        %v1242 = vadd.f32 %v1240, %v1241
        %v1243 = vrot.slane %v1242, 1
        %v1244 = vadd.f32 %v1242, %v1243
        %v1245 = vsel %vm737, %v1228, 0.0
        %v1246 = vsel %vm737, %v1230, 0.0
        %v1247 = vadd.f32 %v1245, %v1246
        %v1248 = vsel %vm737, %v1232, 0.0
        %v1249 = vadd.f32 %v1247, %v1248
        %v1250 = vsel %vm744, %v1234, 0.0
        %v1251 = vadd.f32 %v1249, %v1250
        %v1252 = vrot.slane %v1251, 4
        %v1253 = vadd.f32 %v1251, %v1252
        %v1254 = vrot.slane %v1253, 2
        %v1255 = vadd.f32 %v1253, %v1254
        %v1256 = vrot.slane %v1255, 1
        %v1257 = vadd.f32 %v1255, %v1256
        %v1258 = vadd.f32 %v1225, %v1244
        %v1259 = vadd.f32 %v1226, %v1257
        %v1261 = vsel %vm737, %v1259, 0
        %1263 = vmatprep.subr.mxu0 0.0
        %1264 = vmatpush1.msra.mxu0 %v1160
        %1265 = vmatprep.subr.mxu0 0.0
        %1266 = vmatpush1.msra.mxu0 %v1161
        %1267 = vmatprep.subr.mxu0 0.0
        %1268 = vmatpush1.msra.mxu0 %v1162
        %1269 = vmatprep.subr.mxu0 0.0
        %1270 = vmatpush1.msra.mxu0 %v1163
        %1271 = vmatprep.subr.mxu0 0.0
        %1272 = vmatpush1.msra.mxu0 %v1164
        %1273 = vmatprep.subr.mxu0 0.0
        %1274 = vmatpush1.msra.mxu0 %v1165
        %1275 = vmatprep.subr.mxu0 0.0
        %1276 = vmatpush1.msra.mxu0 %v1166
        %1277 = vmatprep.subr.mxu0 0.0
        %1278 = vmatpush1.msra.mxu0 %v1167
        %1279 = vmatprep.subr.mxu0 0.0
        %1280 = vmatpush1.msra.mxu0 %v1168
        %1281 = vmatprep.subr.mxu0 0.0
        %1282 = vmatpush1.msra.mxu0 %v1169
        %1283 = vmatprep.subr.mxu0 0.0
        %1284 = vmatpush1.msra.mxu0 %v1170
        %1285 = vmatprep.subr.mxu0 0.0
        %1286 = vmatpush1.msra.mxu0 %v1171
        %1287 = vmatprep.subr.mxu0 0.0
        %1288 = vmatpush1.msra.mxu0 %v1172
        %1289 = vmatprep.subr.mxu0 0.0
        %1290 = vmatpush1.msra.mxu0 %v1173
        %1291 = vmatprep.subr.mxu0 0.0
        %1292 = vmatpush1.msra.mxu0 %v1174
        %1293 = vmatprep.subr.mxu0 0.0
        %1294 = vmatpush1.msra.mxu0 %v1175
        %1295 = vmatprep.subr.mxu0 0.0
        %1296 = vmatpush1.msra.mxu0 %v1176
        %1297 = vmatprep.subr.mxu0 0.0
        %1298 = vmatpush1.msra.mxu0 %v1177
        %1299 = vmatprep.subr.mxu0 0.0
        %1300 = vmatpush1.msra.mxu0 %v1178
        %1301 = vmatprep.subr.mxu0 0.0
        %1302 = vmatpush1.msra.mxu0 %v1179
        %1303 = vmatprep.subr.mxu0 0.0
        %1304 = vmatpush1.msra.mxu0 %v1180
        %1305 = vmatprep.subr.mxu0 0.0
        %1306 = vmatpush1.msra.mxu0 %v1181
        %1307 = vmatprep.subr.mxu0 0.0
        %1308 = vmatpush1.msra.mxu0 %v1182
        %1309 = vmatprep.subr.mxu0 0.0
        %1310 = vmatpush1.msra.mxu0 %v1183
        %1311 = vmatprep.subr.mxu0 0.0
        %1312 = vmatpush1.msra.mxu0 %v1184
        %1313 = vmatprep.subr.mxu0 0.0
        %1314 = vmatpush1.msra.mxu0 %v1185
        %1315 = vmatprep.subr.mxu0 0.0
        %1316 = vmatpush1.msra.mxu0 0.0
        %1317 = vmatprep.subr.mxu0 0.0
        %1318 = vmatpush1.msra.mxu0 0.0
        %1319 = vmatprep.subr.mxu0 0.0
        %1320 = vmatpush1.msra.mxu0 0.0
        %1321 = vmatprep.subr.mxu0 0.0
        %1322 = vmatpush1.msra.mxu0 0.0
        %1323 = vmatprep.subr.mxu0 0.0
        %1324 = vmatpush1.msra.mxu0 0.0
        %1325 = vmatprep.subr.mxu0 0.0
        %1326 = vmatpush1.msra.mxu0 0.0
        %1327 = vmatprep.mubr.f32.mxu0 %v1261
        %1328 = vmatmul.mubr.f32.gmra.mrb[0].mxu0 %v1258
        %v1329 = vpop.f32.mrb[0].mxu0
        %v1330 = vadd.f32 0.0, %v1329
        %v1331 = vpop.f32.mrb[0].mxu0
        %1332 = vdwg.mxu0
        %v1333 = vmul.f32 %v1330, 0.000739645
        %vm1334 = vcmask 64512
        %v1336 = vsel %vm1334, %v1333, 0
        %1338 = vmatprep.subr.mxu0 %v1192
        %1339 = vmatpush1.msra.mxu0 %v1191
        %1340 = vmatprep.subr.mxu0 0.0
        %1341 = vmatpush1.msra.mxu0 0.0
        %1342 = vmatprep.subr.mxu0 0.0
        %1343 = vmatpush1.msra.mxu0 0.0
        %1344 = vmatprep.subr.mxu0 0.0
        %1345 = vmatpush1.msra.mxu0 0.0
        %1346 = vmatprep.subr.mxu0 0.0
        %1347 = vmatpush1.msra.mxu0 0.0
        %1348 = vmatprep.subr.mxu0 0.0
        %1349 = vmatpush1.msra.mxu0 0.0
        %1350 = vmatprep.subr.mxu0 0.0
        %1351 = vmatpush1.msra.mxu0 0.0
        %1352 = vmatprep.subr.mxu0 0.0
        %1353 = vmatpush1.msra.mxu0 0.0
        %1354 = vmatprep.subr.mxu0 0.0
        %1355 = vmatpush1.msra.mxu0 0.0
        %1356 = vmatprep.subr.mxu0 0.0
        %1357 = vmatpush1.msra.mxu0 0.0
        %1358 = vmatprep.subr.mxu0 0.0
        %1359 = vmatpush1.msra.mxu0 0.0
        %1360 = vmatprep.subr.mxu0 0.0
        %1361 = vmatpush1.msra.mxu0 0.0
        %1362 = vmatprep.subr.mxu0 0.0
        %1363 = vmatpush1.msra.mxu0 0.0
        %1364 = vmatprep.subr.mxu0 0.0
        %1365 = vmatpush1.msra.mxu0 0.0
        %1366 = vmatprep.subr.mxu0 0.0
        %1367 = vmatpush1.msra.mxu0 0.0
        %1368 = vmatprep.subr.mxu0 0.0
        %1369 = vmatpush1.msra.mxu0 0.0
        %1370 = vmatprep.subr.mxu0 0.0
        %1371 = vmatpush1.msra.mxu0 0.0
        %1372 = vmatprep.subr.mxu0 0.0
        %1373 = vmatpush1.msra.mxu0 0.0
        %1374 = vmatprep.subr.mxu0 0.0
        %1375 = vmatpush1.msra.mxu0 0.0
        %1376 = vmatprep.subr.mxu0 0.0
        %1377 = vmatpush1.msra.mxu0 0.0
        %1378 = vmatprep.subr.mxu0 0.0
        %1379 = vmatpush1.msra.mxu0 0.0
        %1380 = vmatprep.subr.mxu0 0.0
        %1381 = vmatpush1.msra.mxu0 0.0
        %1382 = vmatprep.subr.mxu0 0.0
        %1383 = vmatpush1.msra.mxu0 0.0
        %1384 = vmatprep.subr.mxu0 0.0
        %1385 = vmatpush1.msra.mxu0 0.0
        %1386 = vmatprep.subr.mxu0 0.0
        %1387 = vmatpush1.msra.mxu0 0.0
        %1388 = vmatprep.subr.mxu0 0.0
        %1389 = vmatpush1.msra.mxu0 0.0
        %1390 = vmatprep.subr.mxu0 0.0
        %1391 = vmatpush1.msra.mxu0 0.0
        %1392 = vmatprep.subr.mxu0 0.0
        %1393 = vmatpush1.msra.mxu0 0.0
        %1394 = vmatprep.subr.mxu0 0.0
        %1395 = vmatpush1.msra.mxu0 0.0
        %1396 = vmatprep.subr.mxu0 0.0
        %1397 = vmatpush1.msra.mxu0 0.0
        %1398 = vmatprep.subr.mxu0 0.0
        %1399 = vmatpush1.msra.mxu0 0.0
        %1400 = vmatprep.subr.mxu0 0.0
        %1401 = vmatpush1.msra.mxu0 0.0
        %1402 = vmatprep.mubr.f32.mxu0 0.0
        %1403 = vmatmul.mubr.f32.gmra.mrb[0].mxu0 %v1336
        %v1404 = vpop.f32.mrb[0].mxu0
        %v1405 = vadd.f32 0.0, %v1404
        %v1406 = vpop.f32.mrb[0].mxu0
        %v1407 = vadd.f32 0.0, %v1406
        %1408 = vdwg.mxu0
        %v1409 = vlaneseq
        %v1410 = vshrl.u32 %v1409, 7
        %v1411 = vsub.s32 0, %v1410
        %v1412 = vrot.slane %v1405, %v1411
        %v1413 = vlaneseq
        %v1414 = vshrl.u32 %v1413, 7
        %v1415 = vsub.s32 0, %v1414
        %v1416 = vrot.slane %v1407, %v1415
        %v1417 = vsub.f32 %v1193, %v1412
        %v1418 = vsub.f32 %v1194, %v1416
        %v1419 = vsub.f32 %v1195, %v1412
        %v1420 = vsub.f32 %v1196, %v1416
        %v1421 = vsub.f32 %v1197, %v1412
        %v1422 = vsub.f32 %v1198, %v1416
        %v1423 = vsub.f32 %v1199, %v1412
        %v1424 = vsub.f32 %v1200, %v1416
        %v1425 = vmul.f32 %v1417, %v1417
        %v1426 = vmul.f32 %v1418, %v1418
        %v1427 = vmul.f32 %v1419, %v1419
        %v1428 = vmul.f32 %v1420, %v1420
        %v1429 = vmul.f32 %v1421, %v1421
        %v1430 = vmul.f32 %v1422, %v1422
        %v1431 = vmul.f32 %v1423, %v1423
        %v1432 = vmul.f32 %v1424, %v1424
        %v1433 = vadd.f32 %v1425, %v1427
        %v1434 = vadd.f32 %v1433, %v1429
        %v1435 = vsel %vm1203, %v1431, 0.0
        %v1436 = vadd.f32 %v1434, %v1435
        %v1437 = vrot.slane %v1436, 4
        %v1438 = vadd.f32 %v1436, %v1437
        %v1439 = vrot.slane %v1438, 2
        %v1440 = vadd.f32 %v1438, %v1439
        %v1441 = vrot.slane %v1440, 1
        %v1442 = vadd.f32 %v1440, %v1441
        %v1443 = vsel %vm737, %v1426, 0.0
        %v1444 = vsel %vm737, %v1428, 0.0
        %v1445 = vadd.f32 %v1443, %v1444
        %v1446 = vsel %vm737, %v1430, 0.0
        %v1447 = vadd.f32 %v1445, %v1446
        %v1448 = vsel %vm744, %v1432, 0.0
        %v1449 = vadd.f32 %v1447, %v1448
        %v1450 = vrot.slane %v1449, 4
        %v1451 = vadd.f32 %v1449, %v1450
        %v1452 = vrot.slane %v1451, 2
        %v1453 = vadd.f32 %v1451, %v1452
        %v1454 = vrot.slane %v1453, 1
        %v1455 = vadd.f32 %v1453, %v1454
        %v1456 = vadd.f32 %v1442, 0.0
        %v1457 = vadd.f32 %v1455, 0.0
        %v1458 = vsub.f32 %v1227, %v1412
        %v1459 = vsub.f32 %v1228, %v1416
        %v1460 = vsub.f32 %v1229, %v1412
        %v1461 = vsub.f32 %v1230, %v1416
        %v1462 = vsub.f32 %v1231, %v1412
        %v1463 = vsub.f32 %v1232, %v1416
        %v1464 = vsub.f32 %v1233, %v1412
        %v1465 = vsub.f32 %v1234, %v1416
        %v1466 = vmul.f32 %v1458, %v1458
        %v1467 = vmul.f32 %v1459, %v1459
        %v1468 = vmul.f32 %v1460, %v1460
        %v1469 = vmul.f32 %v1461, %v1461
        %v1470 = vmul.f32 %v1462, %v1462
        %v1471 = vmul.f32 %v1463, %v1463
        %v1472 = vmul.f32 %v1464, %v1464
        %v1473 = vmul.f32 %v1465, %v1465
        %v1474 = vadd.f32 %v1466, %v1468
        %v1475 = vadd.f32 %v1474, %v1470
        %v1476 = vsel %vm1203, %v1472, 0.0
        %v1477 = vadd.f32 %v1475, %v1476
        %v1478 = vrot.slane %v1477, 4
        %v1479 = vadd.f32 %v1477, %v1478
        %v1480 = vrot.slane %v1479, 2
        %v1481 = vadd.f32 %v1479, %v1480
        %v1482 = vrot.slane %v1481, 1
        %v1483 = vadd.f32 %v1481, %v1482
        %v1484 = vsel %vm737, %v1467, 0.0
        %v1485 = vsel %vm737, %v1469, 0.0
        %v1486 = vadd.f32 %v1484, %v1485
        %v1487 = vsel %vm737, %v1471, 0.0
        %v1488 = vadd.f32 %v1486, %v1487
        %v1489 = vsel %vm744, %v1473, 0.0
        %v1490 = vadd.f32 %v1488, %v1489
        %v1491 = vrot.slane %v1490, 4
        %v1492 = vadd.f32 %v1490, %v1491
        %v1493 = vrot.slane %v1492, 2
        %v1494 = vadd.f32 %v1492, %v1493
        %v1495 = vrot.slane %v1494, 1
        %v1496 = vadd.f32 %v1494, %v1495
        %v1497 = vadd.f32 %v1456, %v1483
        %v1498 = vadd.f32 %v1457, %v1496
        %v1500 = vsel %vm737, %v1498, 0
        %1502 = vmatprep.subr.mxu0 0.0
        %1503 = vmatpush1.msra.mxu0 %v1160
        %1504 = vmatprep.subr.mxu0 0.0
        %1505 = vmatpush1.msra.mxu0 %v1161
        %1506 = vmatprep.subr.mxu0 0.0
        %1507 = vmatpush1.msra.mxu0 %v1162
        %1508 = vmatprep.subr.mxu0 0.0
        %1509 = vmatpush1.msra.mxu0 %v1163
        %1510 = vmatprep.subr.mxu0 0.0
        %1511 = vmatpush1.msra.mxu0 %v1164
        %1512 = vmatprep.subr.mxu0 0.0
        %1513 = vmatpush1.msra.mxu0 %v1165
        %1514 = vmatprep.subr.mxu0 0.0
        %1515 = vmatpush1.msra.mxu0 %v1166
        %1516 = vmatprep.subr.mxu0 0.0
        %1517 = vmatpush1.msra.mxu0 %v1167
        %1518 = vmatprep.subr.mxu0 0.0
        %1519 = vmatpush1.msra.mxu0 %v1168
        %1520 = vmatprep.subr.mxu0 0.0
        %1521 = vmatpush1.msra.mxu0 %v1169
        %1522 = vmatprep.subr.mxu0 0.0
        %1523 = vmatpush1.msra.mxu0 %v1170
        %1524 = vmatprep.subr.mxu0 0.0
        %1525 = vmatpush1.msra.mxu0 %v1171
        %1526 = vmatprep.subr.mxu0 0.0
        %1527 = vmatpush1.msra.mxu0 %v1172
        %1528 = vmatprep.subr.mxu0 0.0
        %1529 = vmatpush1.msra.mxu0 %v1173
        %1530 = vmatprep.subr.mxu0 0.0
        %1531 = vmatpush1.msra.mxu0 %v1174
        %1532 = vmatprep.subr.mxu0 0.0
        %1533 = vmatpush1.msra.mxu0 %v1175
        %1534 = vmatprep.subr.mxu0 0.0
        %1535 = vmatpush1.msra.mxu0 %v1176
        %1536 = vmatprep.subr.mxu0 0.0
        %1537 = vmatpush1.msra.mxu0 %v1177
        %1538 = vmatprep.subr.mxu0 0.0
        %1539 = vmatpush1.msra.mxu0 %v1178
        %1540 = vmatprep.subr.mxu0 0.0
        %1541 = vmatpush1.msra.mxu0 %v1179
        %1542 = vmatprep.subr.mxu0 0.0
        %1543 = vmatpush1.msra.mxu0 %v1180
        %1544 = vmatprep.subr.mxu0 0.0
        %1545 = vmatpush1.msra.mxu0 %v1181
        %1546 = vmatprep.subr.mxu0 0.0
        %1547 = vmatpush1.msra.mxu0 %v1182
        %1548 = vmatprep.subr.mxu0 0.0
        %1549 = vmatpush1.msra.mxu0 %v1183
        %1550 = vmatprep.subr.mxu0 0.0
        %1551 = vmatpush1.msra.mxu0 %v1184
        %1552 = vmatprep.subr.mxu0 0.0
        %1553 = vmatpush1.msra.mxu0 %v1185
        %1554 = vmatprep.subr.mxu0 0.0
        %1555 = vmatpush1.msra.mxu0 0.0
        %1556 = vmatprep.subr.mxu0 0.0
        %1557 = vmatpush1.msra.mxu0 0.0
        %1558 = vmatprep.subr.mxu0 0.0
        %1559 = vmatpush1.msra.mxu0 0.0
        %1560 = vmatprep.subr.mxu0 0.0
        %1561 = vmatpush1.msra.mxu0 0.0
        %1562 = vmatprep.subr.mxu0 0.0
        %1563 = vmatpush1.msra.mxu0 0.0
        %1564 = vmatprep.subr.mxu0 0.0
        %1565 = vmatpush1.msra.mxu0 0.0
        %1566 = vmatprep.mubr.f32.mxu0 %v1500
        %1567 = vmatmul.mubr.f32.gmra.mrb[0].mxu0 %v1497
        %v1568 = vpop.f32.mrb[0].mxu0
        %v1569 = vadd.f32 0.0, %v1568
        %v1570 = vpop.f32.mrb[0].mxu0
        %1571 = vdwg.mxu0
        %v1572 = vmul.f32 %v1569, 0.000739645
        %v1573 = vadd.f32 %v1572, 1e-05
        %v1574 = vrsqrt.pop %v1573
        %v1576 = vsel %vm1334, %v1574, 0
        %1578 = vmatprep.subr.mxu0 %v1192
        %1579 = vmatpush1.msra.mxu0 %v1191
        %1580 = vmatprep.subr.mxu0 0.0
        %1581 = vmatpush1.msra.mxu0 0.0
        %1582 = vmatprep.subr.mxu0 0.0
        %1583 = vmatpush1.msra.mxu0 0.0
        %1584 = vmatprep.subr.mxu0 0.0
        %1585 = vmatpush1.msra.mxu0 0.0
        %1586 = vmatprep.subr.mxu0 0.0
        %1587 = vmatpush1.msra.mxu0 0.0
        %1588 = vmatprep.subr.mxu0 0.0
        %1589 = vmatpush1.msra.mxu0 0.0
        %1590 = vmatprep.subr.mxu0 0.0
        %1591 = vmatpush1.msra.mxu0 0.0
        %1592 = vmatprep.subr.mxu0 0.0
        %1593 = vmatpush1.msra.mxu0 0.0
        %1594 = vmatprep.subr.mxu0 0.0
        %1595 = vmatpush1.msra.mxu0 0.0
        %1596 = vmatprep.subr.mxu0 0.0
        %1597 = vmatpush1.msra.mxu0 0.0
        %1598 = vmatprep.subr.mxu0 0.0
        %1599 = vmatpush1.msra.mxu0 0.0
        %1600 = vmatprep.subr.mxu0 0.0
        %1601 = vmatpush1.msra.mxu0 0.0
        %1602 = vmatprep.subr.mxu0 0.0
        %1603 = vmatpush1.msra.mxu0 0.0
        %1604 = vmatprep.subr.mxu0 0.0
        %1605 = vmatpush1.msra.mxu0 0.0
        %1606 = vmatprep.subr.mxu0 0.0
        %1607 = vmatpush1.msra.mxu0 0.0
        %1608 = vmatprep.subr.mxu0 0.0
        %1609 = vmatpush1.msra.mxu0 0.0
        %1610 = vmatprep.subr.mxu0 0.0
        %1611 = vmatpush1.msra.mxu0 0.0
        %1612 = vmatprep.subr.mxu0 0.0
        %1613 = vmatpush1.msra.mxu0 0.0
        %1614 = vmatprep.subr.mxu0 0.0
        %1615 = vmatpush1.msra.mxu0 0.0
        %1616 = vmatprep.subr.mxu0 0.0
        %1617 = vmatpush1.msra.mxu0 0.0
        %1618 = vmatprep.subr.mxu0 0.0
        %1619 = vmatpush1.msra.mxu0 0.0
        %1620 = vmatprep.subr.mxu0 0.0
        %1621 = vmatpush1.msra.mxu0 0.0
        %1622 = vmatprep.subr.mxu0 0.0
        %1623 = vmatpush1.msra.mxu0 0.0
        %1624 = vmatprep.subr.mxu0 0.0
        %1625 = vmatpush1.msra.mxu0 0.0
        %1626 = vmatprep.subr.mxu0 0.0
        %1627 = vmatpush1.msra.mxu0 0.0
        %1628 = vmatprep.subr.mxu0 0.0
        %1629 = vmatpush1.msra.mxu0 0.0
        %1630 = vmatprep.subr.mxu0 0.0
        %1631 = vmatpush1.msra.mxu0 0.0
        %1632 = vmatprep.subr.mxu0 0.0
        %1633 = vmatpush1.msra.mxu0 0.0
        %1634 = vmatprep.subr.mxu0 0.0
        %1635 = vmatpush1.msra.mxu0 0.0
        %1636 = vmatprep.subr.mxu0 0.0
        %1637 = vmatpush1.msra.mxu0 0.0
        %1638 = vmatprep.subr.mxu0 0.0
        %1639 = vmatpush1.msra.mxu0 0.0
        %1640 = vmatprep.subr.mxu0 0.0
        %1641 = vmatpush1.msra.mxu0 0.0
        %1642 = vmatprep.mubr.f32.mxu0 0.0
        %1643 = vmatmul.mubr.f32.gmra.mrb[0].mxu0 %v1576
        %v1644 = vpop.f32.mrb[0].mxu0
        %v1645 = vadd.f32 0.0, %v1644
        %v1646 = vpop.f32.mrb[0].mxu0
        %v1647 = vadd.f32 0.0, %v1646
        %1648 = vdwg.mxu0
        %v1649 = vlaneseq
        %v1650 = vshrl.u32 %v1649, 7
        %v1651 = vsub.s32 0, %v1650
        %v1652 = vrot.slane %v1645, %v1651
        %v1653 = vlaneseq
        %v1654 = vshrl.u32 %v1653, 7
        %v1655 = vsub.s32 0, %v1654
        %v1656 = vrot.slane %v1647, %v1655
        %v1657 = vmul.f32 %v1417, %v1652
        %v1658 = vmul.f32 %v1418, %v1656
        %v1659 = vmul.f32 %v1419, %v1652
        %v1660 = vmul.f32 %v1420, %v1656
        %v1661 = vmul.f32 %v1421, %v1652
        %v1662 = vmul.f32 %v1422, %v1656
        %v1663 = vmul.f32 %v1423, %v1652
        %v1664 = vmul.f32 %v1424, %v1656
        %v1665 = vmax.f32 %v1657, 0.0
        %v1666 = vmax.f32 %v1658, 0.0
        %v1667 = vmax.f32 %v1659, 0.0
        %v1668 = vmax.f32 %v1660, 0.0
        %v1669 = vmax.f32 %v1661, 0.0
        %v1670 = vmax.f32 %v1662, 0.0
        %v1671 = vmax.f32 %v1663, 0.0
        %v1672 = vmax.f32 %v1664, 0.0
        %1673 = vst [vmem:[#allocation2] sm:$0xff] %v1665
        %1674 = vst.msk [vmem:[#allocation2 + $0x8] sm:$0xff] %vm737, %v1666
        %1675 = vst [vmem:[#allocation2 + $0x10] sm:$0xff] %v1667
        %1676 = vst.msk [vmem:[#allocation2 + $0x18] sm:$0xff] %vm737, %v1668
        %1677 = vst [vmem:[#allocation2 + $0x20] sm:$0xff] %v1669
        %1678 = vst.msk [vmem:[#allocation2 + $0x28] sm:$0xff] %vm737, %v1670
        %1679 = vst [vmem:[#allocation2 + $0x30] sm:$0x3] %v1671
        %1680 = vst.msk [vmem:[#allocation2 + $0x38] sm:$0x3] %vm744, %v1672
        %v1681 = vld [vmem:[%s1070] sm:$0xff]
        %v1682 = vld [vmem:[%s1070 + $0x8] sm:$0xff]
        %v1683 = vld [vmem:[%s1070 + $0x10] sm:$0xff]
        %v1684 = vld [vmem:[%s1070 + $0x18] sm:$0xff]
        %v1685 = vld [vmem:[%s1070 + $0x20] sm:$0xff]
        %v1686 = vld [vmem:[%s1070 + $0x28] sm:$0xff]
        %v1687 = vld [vmem:[%s1070 + $0x30] sm:$0x3]
        %v1688 = vld [vmem:[%s1070 + $0x38] sm:$0x3]
        %v1689 = vsub.f32 %v1681, %v1412
        %v1690 = vsub.f32 %v1682, %v1416
        %v1691 = vsub.f32 %v1683, %v1412
        %v1692 = vsub.f32 %v1684, %v1416
        %v1693 = vsub.f32 %v1685, %v1412
        %v1694 = vsub.f32 %v1686, %v1416
        %v1695 = vsub.f32 %v1687, %v1412
        %v1696 = vsub.f32 %v1688, %v1416
        %v1697 = vmul.f32 %v1689, %v1652
        %v1698 = vmul.f32 %v1690, %v1656
        %v1699 = vmul.f32 %v1691, %v1652
        %v1700 = vmul.f32 %v1692, %v1656
        %v1701 = vmul.f32 %v1693, %v1652
        %v1702 = vmul.f32 %v1694, %v1656
        %v1703 = vmul.f32 %v1695, %v1652
        %v1704 = vmul.f32 %v1696, %v1656
        %v1705 = vmax.f32 %v1697, 0.0
        %v1706 = vmax.f32 %v1698, 0.0
        %v1707 = vmax.f32 %v1699, 0.0
        %v1708 = vmax.f32 %v1700, 0.0
        %v1709 = vmax.f32 %v1701, 0.0
        %v1710 = vmax.f32 %v1702, 0.0
        %v1711 = vmax.f32 %v1703, 0.0
        %v1712 = vmax.f32 %v1704, 0.0
        %1713 = vst [vmem:[%s1070] sm:$0xff] %v1705
        %1714 = vst.msk [vmem:[%s1070 + $0x8] sm:$0xff] %vm737, %v1706
        %1715 = vst [vmem:[%s1070 + $0x10] sm:$0xff] %v1707
        %1716 = vst.msk [vmem:[%s1070 + $0x18] sm:$0xff] %vm737, %v1708
        %1717 = vst [vmem:[%s1070 + $0x20] sm:$0xff] %v1709
        %1718 = vst.msk [vmem:[%s1070 + $0x28] sm:$0xff] %vm737, %v1710
        %1719 = vst [vmem:[%s1070 + $0x30] sm:$0x3] %v1711
        %1720 = vst.msk [vmem:[%s1070 + $0x38] sm:$0x3] %vm744, %v1712
        %v1721 = vld [vmem:[%s2] sm:$0xff]
        %v1722 = vld [vmem:[%s2 + $0x8] sm:$0xff]
        %v1723 = vld [vmem:[%s2 + $0x10] sm:$0xff]
        %v1724 = vld [vmem:[%s2 + $0x18] sm:$0xff]
        %v1725 = vld [vmem:[%s2 + $0x20] sm:$0xff]
        %v1726 = vld [vmem:[%s2 + $0x28] sm:$0xff]
        %v1727 = vld [vmem:[%s2 + $0x30] sm:$0xff]
        %v1728 = vld [vmem:[%s2 + $0x38] sm:$0xff]
        %v1729 = vld [vmem:[%s2 + $0x40] sm:$0xff]
        %v1730 = vld [vmem:[%s2 + $0x48] sm:$0xff]
        %v1731 = vld [vmem:[%s2 + $0x50] sm:$0xff]
        %v1732 = vld [vmem:[%s2 + $0x58] sm:$0xff]
        %v1733 = vld [vmem:[%s2 + $0x60] sm:$0xff]
        %v1734 = vld [vmem:[%s2 + $0x68] sm:$0xff]
        %v1735 = vld [vmem:[%s2 + $0x70] sm:$0xff]
        %v1736 = vld [vmem:[%s2 + $0x78] sm:$0xff]
        %v1737 = vld [vmem:[%s2 + $0x80] sm:$0xff]
        %v1738 = vld [vmem:[%s2 + $0x88] sm:$0xff]
        %v1739 = vld [vmem:[%s2 + $0x90] sm:$0xff]
        %v1740 = vld [vmem:[%s2 + $0x98] sm:$0xff]
        %v1741 = vld [vmem:[%s2 + $0xa0] sm:$0xff]
        %v1742 = vld [vmem:[%s2 + $0xa8] sm:$0xff]
        %v1743 = vld [vmem:[%s2 + $0xb0] sm:$0xff]
        %v1744 = vld [vmem:[%s2 + $0xb8] sm:$0xff]
        %v1745 = vld [vmem:[%s2 + $0xc0] sm:$0xff]
        %v1746 = vld [vmem:[%s2 + $0xc8] sm:$0xff]
        %v1747 = vld [vmem:[%s2 + $0xd0] sm:$0xff]
        %v1748 = vld [vmem:[%s2 + $0xd8] sm:$0xff]
        %v1749 = vld [vmem:[%s2 + $0xe0] sm:$0xff]
        %v1750 = vld [vmem:[%s2 + $0xe8] sm:$0xff]
        %v1751 = vld [vmem:[%s2 + $0xf0] sm:$0xff]
        %v1752 = vld [vmem:[%s2 + $0xf8] sm:$0xff]
        %v1753 = vld [vmem:[%s2 + $0x100] sm:$0xff]
        %v1754 = vld [vmem:[%s2 + $0x108] sm:$0xff]
        %v1755 = vld [vmem:[%s2 + $0x110] sm:$0xff]
        %v1756 = vld [vmem:[%s2 + $0x118] sm:$0xff]
        %v1757 = vld [vmem:[%s2 + $0x120] sm:$0xff]
        %v1758 = vld [vmem:[%s2 + $0x128] sm:$0xff]
        %v1759 = vld [vmem:[%s2 + $0x130] sm:$0xff]
        %v1760 = vld [vmem:[%s2 + $0x138] sm:$0xff]
        %v1761 = vld [vmem:[%s2 + $0x140] sm:$0xff]
        %v1762 = vld [vmem:[%s2 + $0x148] sm:$0xff]
        %v1763 = vld [vmem:[%s2 + $0x150] sm:$0xff]
        %v1764 = vld [vmem:[%s2 + $0x158] sm:$0xff]
        %v1765 = vld [vmem:[%s2 + $0x160] sm:$0xff]
        %v1766 = vld [vmem:[%s2 + $0x168] sm:$0xff]
        %v1767 = vld [vmem:[%s2 + $0x170] sm:$0xff]
        %v1768 = vld [vmem:[%s2 + $0x178] sm:$0xff]
        %v1769 = vld [vmem:[%s2 + $0x180] sm:$0xff]
        %v1770 = vld [vmem:[%s2 + $0x188] sm:$0xff]
        %v1771 = vld [vmem:[%s2 + $0x190] sm:$0xff]
        %v1772 = vld [vmem:[%s2 + $0x198] sm:$0xff]
        %s1773 = scalar_lea.vmem %s2, 416
        %v1774 = vld [vmem:[%s1773] sm:$0xff]
        %v1775 = vld [vmem:[%s1773 + $0x8] sm:$0xff]
        %v1776 = vld [vmem:[%s1773 + $0x10] sm:$0xff]
        %v1777 = vld [vmem:[%s1773 + $0x18] sm:$0xff]
        %v1778 = vld [vmem:[%s1773 + $0x20] sm:$0xff]
        %v1779 = vld [vmem:[%s1773 + $0x28] sm:$0xff]
        %v1780 = vld [vmem:[%s1773 + $0x30] sm:$0xff]
        %v1781 = vld [vmem:[%s1773 + $0x38] sm:$0xff]
        %v1782 = vld [vmem:[%s1773 + $0x40] sm:$0xff]
        %v1783 = vld [vmem:[%s1773 + $0x48] sm:$0xff]
        %v1784 = vld [vmem:[%s1773 + $0x50] sm:$0xff]
        %v1785 = vld [vmem:[%s1773 + $0x58] sm:$0xff]
        %v1786 = vld [vmem:[%s1773 + $0x60] sm:$0xff]
        %v1787 = vld [vmem:[%s1773 + $0x68] sm:$0xff]
        %v1788 = vld [vmem:[%s1773 + $0x70] sm:$0xff]
        %v1789 = vld [vmem:[%s1773 + $0x78] sm:$0xff]
        %v1790 = vld [vmem:[%s1773 + $0x80] sm:$0xff]
        %v1791 = vld [vmem:[%s1773 + $0x88] sm:$0xff]
        %v1792 = vld [vmem:[%s1773 + $0x90] sm:$0xff]
        %v1793 = vld [vmem:[%s1773 + $0x98] sm:$0xff]
        %v1794 = vld [vmem:[%s1773 + $0xa0] sm:$0xff]
        %v1795 = vld [vmem:[%s1773 + $0xa8] sm:$0xff]
        %v1796 = vld [vmem:[%s1773 + $0xb0] sm:$0xff]
        %v1797 = vld [vmem:[%s1773 + $0xb8] sm:$0xff]
        %v1798 = vld [vmem:[%s1773 + $0xc0] sm:$0xff]
        %v1799 = vld [vmem:[%s1773 + $0xc8] sm:$0xff]
        %v1800 = vld [vmem:[%s1773 + $0xd0] sm:$0xff]
        %v1801 = vld [vmem:[%s1773 + $0xd8] sm:$0xff]
        %v1802 = vld [vmem:[%s1773 + $0xe0] sm:$0xff]
        %v1803 = vld [vmem:[%s1773 + $0xe8] sm:$0xff]
        %v1804 = vld [vmem:[%s1773 + $0xf0] sm:$0xff]
        %v1805 = vld [vmem:[%s1773 + $0xf8] sm:$0xff]
        %v1806 = vld [vmem:[%s1773 + $0x100] sm:$0xff]
        %v1807 = vld [vmem:[%s1773 + $0x108] sm:$0xff]
        %v1808 = vld [vmem:[%s1773 + $0x110] sm:$0xff]
        %v1809 = vld [vmem:[%s1773 + $0x118] sm:$0xff]
        %v1810 = vld [vmem:[%s1773 + $0x120] sm:$0xff]
        %v1811 = vld [vmem:[%s1773 + $0x128] sm:$0xff]
        %v1812 = vld [vmem:[%s1773 + $0x130] sm:$0xff]
        %v1813 = vld [vmem:[%s1773 + $0x138] sm:$0xff]
        %v1814 = vld [vmem:[%s1773 + $0x140] sm:$0xff]
        %v1815 = vld [vmem:[%s1773 + $0x148] sm:$0xff]
        %v1816 = vld [vmem:[%s1773 + $0x150] sm:$0xff]
        %v1817 = vld [vmem:[%s1773 + $0x158] sm:$0xff]
        %v1818 = vld [vmem:[%s1773 + $0x160] sm:$0xff]
        %v1819 = vld [vmem:[%s1773 + $0x168] sm:$0xff]
        %v1820 = vld [vmem:[%s1773 + $0x170] sm:$0xff]
        %v1821 = vld [vmem:[%s1773 + $0x178] sm:$0xff]
        %v1822 = vld [vmem:[%s1773 + $0x180] sm:$0xff]
        %v1823 = vld [vmem:[%s1773 + $0x188] sm:$0xff]
        %v1824 = vld [vmem:[%s1773 + $0x190] sm:$0xff]
        %v1825 = vld [vmem:[%s1773 + $0x198] sm:$0xff]
        %s1826 = scalar_lea.vmem %s2, 832
        %v1827 = vld [vmem:[%s1826] sm:$0xff]
        %v1828 = vld [vmem:[%s1826 + $0x8] sm:$0xff]
        %v1829 = vld [vmem:[%s1826 + $0x10] sm:$0xff]
        %v1830 = vld [vmem:[%s1826 + $0x18] sm:$0xff]
        %v1831 = vld [vmem:[%s1826 + $0x20] sm:$0xff]
        %v1832 = vld [vmem:[%s1826 + $0x28] sm:$0xff]
        %v1833 = vld [vmem:[%s1826 + $0x30] sm:$0xff]
        %v1834 = vld [vmem:[%s1826 + $0x38] sm:$0xff]
        %v1835 = vld [vmem:[%s1826 + $0x40] sm:$0xff]
        %v1836 = vld [vmem:[%s1826 + $0x48] sm:$0xff]
        %v1837 = vld [vmem:[%s1826 + $0x50] sm:$0xff]
        %v1838 = vld [vmem:[%s1826 + $0x58] sm:$0xff]
        %v1839 = vld [vmem:[%s1826 + $0x60] sm:$0xff]
        %v1840 = vld [vmem:[%s1826 + $0x68] sm:$0xff]
        %v1841 = vld [vmem:[%s1826 + $0x70] sm:$0xff]
        %v1842 = vld [vmem:[%s1826 + $0x78] sm:$0xff]
        %v1843 = vld [vmem:[%s1826 + $0x80] sm:$0xff]
        %v1844 = vld [vmem:[%s1826 + $0x88] sm:$0xff]
        %v1845 = vld [vmem:[%s1826 + $0x90] sm:$0xff]
        %v1846 = vld [vmem:[%s1826 + $0x98] sm:$0xff]
        %v1847 = vld [vmem:[%s1826 + $0xa0] sm:$0xff]
        %v1848 = vld [vmem:[%s1826 + $0xa8] sm:$0xff]
        %v1849 = vld [vmem:[%s1826 + $0xb0] sm:$0xff]
        %v1850 = vld [vmem:[%s1826 + $0xb8] sm:$0xff]
        %v1851 = vld [vmem:[%s1826 + $0xc0] sm:$0xff]
        %v1852 = vld [vmem:[%s1826 + $0xc8] sm:$0xff]
        %v1853 = vld [vmem:[%s1826 + $0xd0] sm:$0xff]
        %v1854 = vld [vmem:[%s1826 + $0xd8] sm:$0xff]
        %v1855 = vld [vmem:[%s1826 + $0xe0] sm:$0xff]
        %v1856 = vld [vmem:[%s1826 + $0xe8] sm:$0xff]
        %v1857 = vld [vmem:[%s1826 + $0xf0] sm:$0xff]
        %v1858 = vld [vmem:[%s1826 + $0xf8] sm:$0xff]
        %v1859 = vld [vmem:[%s1826 + $0x100] sm:$0xff]
        %v1860 = vld [vmem:[%s1826 + $0x108] sm:$0xff]
        %v1861 = vld [vmem:[%s1826 + $0x110] sm:$0xff]
        %v1862 = vld [vmem:[%s1826 + $0x118] sm:$0xff]
        %v1863 = vld [vmem:[%s1826 + $0x120] sm:$0xff]
        %v1864 = vld [vmem:[%s1826 + $0x128] sm:$0xff]
        %v1865 = vld [vmem:[%s1826 + $0x130] sm:$0xff]
        %v1866 = vld [vmem:[%s1826 + $0x138] sm:$0xff]
        %v1867 = vld [vmem:[%s1826 + $0x140] sm:$0xff]
        %v1868 = vld [vmem:[%s1826 + $0x148] sm:$0xff]
        %v1869 = vld [vmem:[%s1826 + $0x150] sm:$0xff]
        %v1870 = vld [vmem:[%s1826 + $0x158] sm:$0xff]
        %v1871 = vld [vmem:[%s1826 + $0x160] sm:$0xff]
        %v1872 = vld [vmem:[%s1826 + $0x168] sm:$0xff]
        %v1873 = vld [vmem:[%s1826 + $0x170] sm:$0xff]
        %v1874 = vld [vmem:[%s1826 + $0x178] sm:$0xff]
        %v1875 = vld [vmem:[%s1826 + $0x180] sm:$0xff]
        %v1876 = vld [vmem:[%s1826 + $0x188] sm:$0xff]
        %v1877 = vld [vmem:[%s1826 + $0x190] sm:$0xff]
        %v1878 = vld [vmem:[%s1826 + $0x198] sm:$0xff]
        %v1879 = vld [vmem:[#allocation2] sm:$0xff]
        %v1880 = vld [vmem:[#allocation2 + $0x8] sm:$0xff]
        %v1881 = vld [vmem:[#allocation2 + $0x10] sm:$0xff]
        %v1882 = vld [vmem:[#allocation2 + $0x18] sm:$0xff]
        %v1883 = vld [vmem:[#allocation2 + $0x20] sm:$0xff]
        %v1884 = vld [vmem:[#allocation2 + $0x28] sm:$0xff]
        %v1885 = vld [vmem:[#allocation2] sm:$0xfe]
        %v1886 = vld [vmem:[#allocation2 + $0x8] sm:$0xfe]
        %v1887 = vld [vmem:[#allocation2 + $0x30] sm:$0x1]
        %v1888 = vld [vmem:[#allocation2 + $0x38] sm:$0x1]
        %vm1897 = vcmask 1046528
        %v1898 = vrot.slane %v1885, 1
        %v1899 = vrot.slane %v1881, 1
        %v1900 = vsel %vm1897, %v1898, %v1899
        %v1901 = vrot.slane %v1886, 1
        %v1902 = vrot.slane %v1882, 1
        %v1903 = vsel %vm1897, %v1901, %v1902
        %v1904 = vrot.slane %v1883, 1
        %v1905 = vsel %vm1897, %v1899, %v1904
        %v1906 = vrot.slane %v1884, 1
        %v1907 = vsel %vm1897, %v1902, %v1906
        %v1908 = vrot.slane %v1887, 1
        %v1909 = vsel %vm1897, %v1904, %v1908
        %v1910 = vrot.slane %v1888, 1
        %v1911 = vsel %vm1897, %v1906, %v1910
        %v1915 = vsel %vm737, %v1903, 0
        %v1917 = vsel %vm737, %v1907, 0
        %v1919 = vsel %vm737, %v1911, 0
        %1921 = vmatprep.subr.mxu0 %v1775
        %1922 = vmatpush1.msra.mxu0 %v1774
        %1923 = vmatprep.subr.mxu0 %v1777
        %1924 = vmatpush1.msra.mxu0 %v1776
        %1925 = vmatprep.subr.mxu0 %v1779
        %1926 = vmatpush1.msra.mxu0 %v1778
        %1927 = vmatprep.subr.mxu0 %v1781
        %1928 = vmatpush1.msra.mxu0 %v1780
        %1929 = vmatprep.subr.mxu0 %v1783
        %1930 = vmatpush1.msra.mxu0 %v1782
        %1931 = vmatprep.subr.mxu0 %v1785
        %1932 = vmatpush1.msra.mxu0 %v1784
        %1933 = vmatprep.subr.mxu0 %v1787
        %1934 = vmatpush1.msra.mxu0 %v1786
        %1935 = vmatprep.subr.mxu0 %v1789
        %1936 = vmatpush1.msra.mxu0 %v1788
        %1937 = vmatprep.subr.mxu0 %v1791
        %1938 = vmatpush1.msra.mxu0 %v1790
        %1939 = vmatprep.subr.mxu0 %v1793
        %1940 = vmatpush1.msra.mxu0 %v1792
        %1941 = vmatprep.subr.mxu0 %v1795
        %1942 = vmatpush1.msra.mxu0 %v1794
        %1943 = vmatprep.subr.mxu0 %v1797
        %1944 = vmatpush1.msra.mxu0 %v1796
        %1945 = vmatprep.subr.mxu0 %v1799
        %1946 = vmatpush1.msra.mxu0 %v1798
        %1947 = vmatprep.subr.mxu0 %v1801
        %1948 = vmatpush1.msra.mxu0 %v1800
        %1949 = vmatprep.subr.mxu0 %v1803
        %1950 = vmatpush1.msra.mxu0 %v1802
        %1951 = vmatprep.subr.mxu0 %v1805
        %1952 = vmatpush1.msra.mxu0 %v1804
        %1953 = vmatprep.subr.mxu0 %v1807
        %1954 = vmatpush1.msra.mxu0 %v1806
        %1955 = vmatprep.subr.mxu0 %v1809
        %1956 = vmatpush1.msra.mxu0 %v1808
        %1957 = vmatprep.subr.mxu0 %v1811
        %1958 = vmatpush1.msra.mxu0 %v1810
        %1959 = vmatprep.subr.mxu0 %v1813
        %1960 = vmatpush1.msra.mxu0 %v1812
        %1961 = vmatprep.subr.mxu0 %v1815
        %1962 = vmatpush1.msra.mxu0 %v1814
        %1963 = vmatprep.subr.mxu0 %v1817
        %1964 = vmatpush1.msra.mxu0 %v1816
        %1965 = vmatprep.subr.mxu0 %v1819
        %1966 = vmatpush1.msra.mxu0 %v1818
        %1967 = vmatprep.subr.mxu0 %v1821
        %1968 = vmatpush1.msra.mxu0 %v1820
        %1969 = vmatprep.subr.mxu0 %v1823
        %1970 = vmatpush1.msra.mxu0 %v1822
        %1971 = vmatprep.subr.mxu0 %v1825
        %1972 = vmatpush1.msra.mxu0 %v1824
        %1973 = vmatprep.subr.mxu0 0.0
        %1974 = vmatpush1.msra.mxu0 0.0
        %1975 = vmatprep.subr.mxu0 0.0
        %1976 = vmatpush1.msra.mxu0 0.0
        %1977 = vmatprep.subr.mxu0 0.0
        %1978 = vmatpush1.msra.mxu0 0.0
        %1979 = vmatprep.subr.mxu0 0.0
        %1980 = vmatpush1.msra.mxu0 0.0
        %1981 = vmatprep.subr.mxu0 0.0
        %1982 = vmatpush1.msra.mxu0 0.0
        %1983 = vmatprep.subr.mxu0 0.0
        %1984 = vmatpush1.msra.mxu0 0.0
        %1985 = vmatprep.mubr.f32.mxu0 %v1915
        %1986 = vmatmul.mubr.f32.gmra.mrb[0].mxu0 %v1900
        %v1987 = vpop.f32.mrb[0].mxu0
        %v1988 = vadd.f32 0.0, %v1987
        %v1989 = vpop.f32.mrb[0].mxu0
        %v1990 = vadd.f32 0.0, %v1989
        %1991 = vmatprep.mubr.f32.mxu0 %v1917
        %1992 = vmatmul.mubr.f32.gmra.mrb[0].mxu0 %v1905
        %v1993 = vpop.f32.mrb[0].mxu0
        %v1994 = vadd.f32 0.0, %v1993
        %v1995 = vpop.f32.mrb[0].mxu0
        %v1996 = vadd.f32 0.0, %v1995
        %1997 = vmatprep.mubr.f32.mxu0 %v1919
        %1998 = vmatmul.mubr.f32.gmra.mrb[0].mxu0 %v1909
        %v1999 = vpop.f32.mrb[0].mxu0
        %v2000 = vadd.f32 0.0, %v1999
        %v2001 = vpop.f32.mrb[0].mxu0
        %v2002 = vadd.f32 0.0, %v2001
        %2003 = vdwg.mxu0
        %v2005 = vsel %vm737, %v1880, 0
        %v2007 = vsel %vm737, %v1882, 0
        %v2009 = vsel %vm737, %v1884, 0
        %2011 = vmatprep.subr.mxu0 %v1722
        %2012 = vmatpush1.msra.mxu0 %v1721
        %2013 = vmatprep.subr.mxu0 %v1724
        %2014 = vmatpush1.msra.mxu0 %v1723
        %2015 = vmatprep.subr.mxu0 %v1726
        %2016 = vmatpush1.msra.mxu0 %v1725
        %2017 = vmatprep.subr.mxu0 %v1728
        %2018 = vmatpush1.msra.mxu0 %v1727
        %2019 = vmatprep.subr.mxu0 %v1730
        %2020 = vmatpush1.msra.mxu0 %v1729
        %2021 = vmatprep.subr.mxu0 %v1732
        %2022 = vmatpush1.msra.mxu0 %v1731
        %2023 = vmatprep.subr.mxu0 %v1734
        %2024 = vmatpush1.msra.mxu0 %v1733
        %2025 = vmatprep.subr.mxu0 %v1736
        %2026 = vmatpush1.msra.mxu0 %v1735
        %2027 = vmatprep.subr.mxu0 %v1738
        %2028 = vmatpush1.msra.mxu0 %v1737
        %2029 = vmatprep.subr.mxu0 %v1740
        %2030 = vmatpush1.msra.mxu0 %v1739
        %2031 = vmatprep.subr.mxu0 %v1742
        %2032 = vmatpush1.msra.mxu0 %v1741
        %2033 = vmatprep.subr.mxu0 %v1744
        %2034 = vmatpush1.msra.mxu0 %v1743
        %2035 = vmatprep.subr.mxu0 %v1746
        %2036 = vmatpush1.msra.mxu0 %v1745
        %2037 = vmatprep.subr.mxu0 %v1748
        %2038 = vmatpush1.msra.mxu0 %v1747
        %2039 = vmatprep.subr.mxu0 %v1750
        %2040 = vmatpush1.msra.mxu0 %v1749
        %2041 = vmatprep.subr.mxu0 %v1752
        %2042 = vmatpush1.msra.mxu0 %v1751
        %2043 = vmatprep.subr.mxu0 %v1754
        %2044 = vmatpush1.msra.mxu0 %v1753
        %2045 = vmatprep.subr.mxu0 %v1756
        %2046 = vmatpush1.msra.mxu0 %v1755
        %2047 = vmatprep.subr.mxu0 %v1758
        %2048 = vmatpush1.msra.mxu0 %v1757
        %2049 = vmatprep.subr.mxu0 %v1760
        %2050 = vmatpush1.msra.mxu0 %v1759
        %2051 = vmatprep.subr.mxu0 %v1762
        %2052 = vmatpush1.msra.mxu0 %v1761
        %2053 = vmatprep.subr.mxu0 %v1764
        %2054 = vmatpush1.msra.mxu0 %v1763
        %2055 = vmatprep.subr.mxu0 %v1766
        %2056 = vmatpush1.msra.mxu0 %v1765
        %2057 = vmatprep.subr.mxu0 %v1768
        %2058 = vmatpush1.msra.mxu0 %v1767
        %2059 = vmatprep.subr.mxu0 %v1770
        %2060 = vmatpush1.msra.mxu0 %v1769
        %2061 = vmatprep.subr.mxu0 %v1772
        %2062 = vmatpush1.msra.mxu0 %v1771
        %2063 = vmatprep.subr.mxu0 0.0
        %2064 = vmatpush1.msra.mxu0 0.0
        %2065 = vmatprep.subr.mxu0 0.0
        %2066 = vmatpush1.msra.mxu0 0.0
        %2067 = vmatprep.subr.mxu0 0.0
        %2068 = vmatpush1.msra.mxu0 0.0
        %2069 = vmatprep.subr.mxu0 0.0
        %2070 = vmatpush1.msra.mxu0 0.0
        %2071 = vmatprep.subr.mxu0 0.0
        %2072 = vmatpush1.msra.mxu0 0.0
        %2073 = vmatprep.subr.mxu0 0.0
        %2074 = vmatpush1.msra.mxu0 0.0
        %2075 = vmatprep.mubr.f32.mxu0 %v2005
        %2076 = vmatmul.mubr.f32.gmra.mrb[0].mxu0 %v1879
        %v2077 = vpop.f32.mrb[0].mxu0
        %v2078 = vadd.f32 %v1988, %v2077
        %v2079 = vpop.f32.mrb[0].mxu0
        %v2080 = vadd.f32 %v1990, %v2079
        %2081 = vmatprep.mubr.f32.mxu0 %v2007
        %2082 = vmatmul.mubr.f32.gmra.mrb[0].mxu0 %v1881
        %v2083 = vpop.f32.mrb[0].mxu0
        %v2084 = vadd.f32 %v1994, %v2083
        %v2085 = vpop.f32.mrb[0].mxu0
        %v2086 = vadd.f32 %v1996, %v2085
        %2087 = vmatprep.mubr.f32.mxu0 %v2009
        %2088 = vmatmul.mubr.f32.gmra.mrb[0].mxu0 %v1883
        %v2089 = vpop.f32.mrb[0].mxu0
        %v2090 = vadd.f32 %v2000, %v2089
        %v2091 = vpop.f32.mrb[0].mxu0
        %v2092 = vadd.f32 %v2002, %v2091
        %2093 = vdwg.mxu0
        %v2094 = vld [vmem:[#allocation2] sm:$0xfc]
        %v2095 = vld [vmem:[#allocation2 + $0x8] sm:$0xfc]
        %v2096 = vld [vmem:[#allocation2 + $0x30] sm:$0x3]
        %v2097 = vld [vmem:[#allocation2 + $0x38] sm:$0x3]
        %vm2102 = vcmask 1045504
        %v2103 = vrot.slane %v2094, 2
        %v2104 = vrot.slane %v1881, 2
        %v2105 = vsel %vm2102, %v2103, %v2104
        %v2106 = vrot.slane %v2095, 2
        %v2107 = vrot.slane %v1882, 2
        %v2108 = vsel %vm2102, %v2106, %v2107
        %v2109 = vrot.slane %v1883, 2
        %v2110 = vsel %vm2102, %v2104, %v2109
        %v2111 = vrot.slane %v1884, 2
        %v2112 = vsel %vm2102, %v2107, %v2111
        %v2113 = vrot.slane %v2096, 2
        %v2114 = vsel %vm2102, %v2109, %v2113
        %v2115 = vrot.slane %v2097, 2
        %v2116 = vsel %vm2102, %v2111, %v2115
        %v2120 = vsel %vm737, %v2108, 0
        %v2122 = vsel %vm737, %v2112, 0
        %v2124 = vsel %vm737, %v2116, 0
        %2126 = vmatprep.subr.mxu0 %v1828
        %2127 = vmatpush1.msra.mxu0 %v1827
        %2128 = vmatprep.subr.mxu0 %v1830
        %2129 = vmatpush1.msra.mxu0 %v1829
        %2130 = vmatprep.subr.mxu0 %v1832
        %2131 = vmatpush1.msra.mxu0 %v1831
        %2132 = vmatprep.subr.mxu0 %v1834
        %2133 = vmatpush1.msra.mxu0 %v1833
        %2134 = vmatprep.subr.mxu0 %v1836
        %2135 = vmatpush1.msra.mxu0 %v1835
        %2136 = vmatprep.subr.mxu0 %v1838
        %2137 = vmatpush1.msra.mxu0 %v1837
        %2138 = vmatprep.subr.mxu0 %v1840
        %2139 = vmatpush1.msra.mxu0 %v1839
        %2140 = vmatprep.subr.mxu0 %v1842
        %2141 = vmatpush1.msra.mxu0 %v1841
        %2142 = vmatprep.subr.mxu0 %v1844
        %2143 = vmatpush1.msra.mxu0 %v1843
        %2144 = vmatprep.subr.mxu0 %v1846
        %2145 = vmatpush1.msra.mxu0 %v1845
        %2146 = vmatprep.subr.mxu0 %v1848
        %2147 = vmatpush1.msra.mxu0 %v1847
        %2148 = vmatprep.subr.mxu0 %v1850
        %2149 = vmatpush1.msra.mxu0 %v1849
        %2150 = vmatprep.subr.mxu0 %v1852
        %2151 = vmatpush1.msra.mxu0 %v1851
        %2152 = vmatprep.subr.mxu0 %v1854
        %2153 = vmatpush1.msra.mxu0 %v1853
        %2154 = vmatprep.subr.mxu0 %v1856
        %2155 = vmatpush1.msra.mxu0 %v1855
        %2156 = vmatprep.subr.mxu0 %v1858
        %2157 = vmatpush1.msra.mxu0 %v1857
        %2158 = vmatprep.subr.mxu0 %v1860
        %2159 = vmatpush1.msra.mxu0 %v1859
        %2160 = vmatprep.subr.mxu0 %v1862
        %2161 = vmatpush1.msra.mxu0 %v1861
        %2162 = vmatprep.subr.mxu0 %v1864
        %2163 = vmatpush1.msra.mxu0 %v1863
        %2164 = vmatprep.subr.mxu0 %v1866
        %2165 = vmatpush1.msra.mxu0 %v1865
        %2166 = vmatprep.subr.mxu0 %v1868
        %2167 = vmatpush1.msra.mxu0 %v1867
        %2168 = vmatprep.subr.mxu0 %v1870
        %2169 = vmatpush1.msra.mxu0 %v1869
        %2170 = vmatprep.subr.mxu0 %v1872
        %2171 = vmatpush1.msra.mxu0 %v1871
        %2172 = vmatprep.subr.mxu0 %v1874
        %2173 = vmatpush1.msra.mxu0 %v1873
        %2174 = vmatprep.subr.mxu0 %v1876
        %2175 = vmatpush1.msra.mxu0 %v1875
        %2176 = vmatprep.subr.mxu0 %v1878
        %2177 = vmatpush1.msra.mxu0 %v1877
        %2178 = vmatprep.subr.mxu0 0.0
        %2179 = vmatpush1.msra.mxu0 0.0
        %2180 = vmatprep.subr.mxu0 0.0
        %2181 = vmatpush1.msra.mxu0 0.0
        %2182 = vmatprep.subr.mxu0 0.0
        %2183 = vmatpush1.msra.mxu0 0.0
        %2184 = vmatprep.subr.mxu0 0.0
        %2185 = vmatpush1.msra.mxu0 0.0
        %2186 = vmatprep.subr.mxu0 0.0
        %2187 = vmatpush1.msra.mxu0 0.0
        %2188 = vmatprep.subr.mxu0 0.0
        %2189 = vmatpush1.msra.mxu0 0.0
        %2190 = vmatprep.mubr.f32.mxu0 %v2120
        %2191 = vmatmul.mubr.f32.gmra.mrb[0].mxu0 %v2105
        %v2192 = vpop.f32.mrb[0].mxu0
        %v2193 = vadd.f32 0.0, %v2192
        %v2194 = vpop.f32.mrb[0].mxu0
        %v2195 = vadd.f32 0.0, %v2194
        %2196 = vmatprep.mubr.f32.mxu0 %v2122
        %2197 = vmatmul.mubr.f32.gmra.mrb[0].mxu0 %v2110
        %v2198 = vpop.f32.mrb[0].mxu0
        %v2199 = vadd.f32 0.0, %v2198
        %v2200 = vpop.f32.mrb[0].mxu0
        %v2201 = vadd.f32 0.0, %v2200
        %2202 = vmatprep.mubr.f32.mxu0 %v2124
        %2203 = vmatmul.mubr.f32.gmra.mrb[0].mxu0 %v2114
        %v2204 = vpop.f32.mrb[0].mxu0
        %v2205 = vadd.f32 0.0, %v2204
        %v2206 = vpop.f32.mrb[0].mxu0
        %v2207 = vadd.f32 0.0, %v2206
        %2208 = vdwg.mxu0
        %v2209 = vadd.f32 %v2078, %v2193
        %v2210 = vadd.f32 %v2080, %v2195
        %v2211 = vadd.f32 %v2084, %v2199
        %v2212 = vadd.f32 %v2086, %v2201
        %v2213 = vadd.f32 %v2090, %v2205
        %v2214 = vadd.f32 %v2092, %v2207
        %2215 = vst [vmem:[#allocation3] sm:$0xff] %v2209
        %vm2216 = vcmask 523264
        %2217 = vst.msk [vmem:[#allocation3 + $0x8] sm:$0xff] %vm2216, %v2210
        %2218 = vst [vmem:[#allocation3 + $0x10] sm:$0xff] %v2211
        %2219 = vst.msk [vmem:[#allocation3 + $0x18] sm:$0xff] %vm2216, %v2212
        %2220 = vst [vmem:[#allocation3 + $0x20] sm:$0xff] %v2213
        %2221 = vst.msk [vmem:[#allocation3 + $0x28] sm:$0xff] %vm2216, %v2214
        %v2222 = vld [vmem:[%s1070] sm:$0xff]
        %v2223 = vld [vmem:[%s1070 + $0x8] sm:$0xff]
        %v2224 = vld [vmem:[%s1070 + $0x10] sm:$0xff]
        %v2225 = vld [vmem:[%s1070 + $0x18] sm:$0xff]
        %v2226 = vld [vmem:[%s1070 + $0x20] sm:$0xff]
        %v2227 = vld [vmem:[%s1070 + $0x28] sm:$0xff]
        %v2228 = vld [vmem:[%s1070] sm:$0xfe]
        %v2229 = vld [vmem:[%s1070 + $0x8] sm:$0xfe]
        %v2230 = vld [vmem:[%s1070 + $0x30] sm:$0x1]
        %v2231 = vld [vmem:[%s1070 + $0x38] sm:$0x1]
        %v2240 = vrot.slane %v2228, 1
        %v2241 = vrot.slane %v2224, 1
        %v2242 = vsel %vm1897, %v2240, %v2241
        %v2243 = vrot.slane %v2229, 1
        %v2244 = vrot.slane %v2225, 1
        %v2245 = vsel %vm1897, %v2243, %v2244
        %v2246 = vrot.slane %v2226, 1
        %v2247 = vsel %vm1897, %v2241, %v2246
        %v2248 = vrot.slane %v2227, 1
        %v2249 = vsel %vm1897, %v2244, %v2248
        %v2250 = vrot.slane %v2230, 1
        %v2251 = vsel %vm1897, %v2246, %v2250
        %v2252 = vrot.slane %v2231, 1
        %v2253 = vsel %vm1897, %v2248, %v2252
        %v2257 = vsel %vm737, %v2245, 0
        %v2259 = vsel %vm737, %v2249, 0
        %v2261 = vsel %vm737, %v2253, 0
        %2263 = vmatprep.subr.mxu0 %v1775
        %2264 = vmatpush1.msra.mxu0 %v1774
        %2265 = vmatprep.subr.mxu0 %v1777
        %2266 = vmatpush1.msra.mxu0 %v1776
        %2267 = vmatprep.subr.mxu0 %v1779
        %2268 = vmatpush1.msra.mxu0 %v1778
        %2269 = vmatprep.subr.mxu0 %v1781
        %2270 = vmatpush1.msra.mxu0 %v1780
        %2271 = vmatprep.subr.mxu0 %v1783
        %2272 = vmatpush1.msra.mxu0 %v1782
        %2273 = vmatprep.subr.mxu0 %v1785
        %2274 = vmatpush1.msra.mxu0 %v1784
        %2275 = vmatprep.subr.mxu0 %v1787
        %2276 = vmatpush1.msra.mxu0 %v1786
        %2277 = vmatprep.subr.mxu0 %v1789
        %2278 = vmatpush1.msra.mxu0 %v1788
        %2279 = vmatprep.subr.mxu0 %v1791
        %2280 = vmatpush1.msra.mxu0 %v1790
        %2281 = vmatprep.subr.mxu0 %v1793
        %2282 = vmatpush1.msra.mxu0 %v1792
        %2283 = vmatprep.subr.mxu0 %v1795
        %2284 = vmatpush1.msra.mxu0 %v1794
        %2285 = vmatprep.subr.mxu0 %v1797
        %2286 = vmatpush1.msra.mxu0 %v1796
        %2287 = vmatprep.subr.mxu0 %v1799
        %2288 = vmatpush1.msra.mxu0 %v1798
        %2289 = vmatprep.subr.mxu0 %v1801
        %2290 = vmatpush1.msra.mxu0 %v1800
        %2291 = vmatprep.subr.mxu0 %v1803
        %2292 = vmatpush1.msra.mxu0 %v1802
        %2293 = vmatprep.subr.mxu0 %v1805
        %2294 = vmatpush1.msra.mxu0 %v1804
        %2295 = vmatprep.subr.mxu0 %v1807
        %2296 = vmatpush1.msra.mxu0 %v1806
        %2297 = vmatprep.subr.mxu0 %v1809
        %2298 = vmatpush1.msra.mxu0 %v1808
        %2299 = vmatprep.subr.mxu0 %v1811
        %2300 = vmatpush1.msra.mxu0 %v1810
        %2301 = vmatprep.subr.mxu0 %v1813
        %2302 = vmatpush1.msra.mxu0 %v1812
        %2303 = vmatprep.subr.mxu0 %v1815
        %2304 = vmatpush1.msra.mxu0 %v1814
        %2305 = vmatprep.subr.mxu0 %v1817
        %2306 = vmatpush1.msra.mxu0 %v1816
        %2307 = vmatprep.subr.mxu0 %v1819
        %2308 = vmatpush1.msra.mxu0 %v1818
        %2309 = vmatprep.subr.mxu0 %v1821
        %2310 = vmatpush1.msra.mxu0 %v1820
        %2311 = vmatprep.subr.mxu0 %v1823
        %2312 = vmatpush1.msra.mxu0 %v1822
        %2313 = vmatprep.subr.mxu0 %v1825
        %2314 = vmatpush1.msra.mxu0 %v1824
        %2315 = vmatprep.subr.mxu0 0.0
        %2316 = vmatpush1.msra.mxu0 0.0
        %2317 = vmatprep.subr.mxu0 0.0
        %2318 = vmatpush1.msra.mxu0 0.0
        %2319 = vmatprep.subr.mxu0 0.0
        %2320 = vmatpush1.msra.mxu0 0.0
        %2321 = vmatprep.subr.mxu0 0.0
        %2322 = vmatpush1.msra.mxu0 0.0
        %2323 = vmatprep.subr.mxu0 0.0
        %2324 = vmatpush1.msra.mxu0 0.0
        %2325 = vmatprep.subr.mxu0 0.0
        %2326 = vmatpush1.msra.mxu0 0.0
        %2327 = vmatprep.mubr.f32.mxu0 %v2257
        %2328 = vmatmul.mubr.f32.gmra.mrb[0].mxu0 %v2242
        %v2329 = vpop.f32.mrb[0].mxu0
        %v2330 = vadd.f32 0.0, %v2329
        %v2331 = vpop.f32.mrb[0].mxu0
        %v2332 = vadd.f32 0.0, %v2331
        %2333 = vmatprep.mubr.f32.mxu0 %v2259
        %2334 = vmatmul.mubr.f32.gmra.mrb[0].mxu0 %v2247
        %v2335 = vpop.f32.mrb[0].mxu0
        %v2336 = vadd.f32 0.0, %v2335
        %v2337 = vpop.f32.mrb[0].mxu0
        %v2338 = vadd.f32 0.0, %v2337
        %2339 = vmatprep.mubr.f32.mxu0 %v2261
        %2340 = vmatmul.mubr.f32.gmra.mrb[0].mxu0 %v2251
        %v2341 = vpop.f32.mrb[0].mxu0
        %v2342 = vadd.f32 0.0, %v2341
        %v2343 = vpop.f32.mrb[0].mxu0
        %v2344 = vadd.f32 0.0, %v2343
        %2345 = vdwg.mxu0
        %v2347 = vsel %vm737, %v2223, 0
        %v2349 = vsel %vm737, %v2225, 0
        %v2351 = vsel %vm737, %v2227, 0
        %2353 = vmatprep.subr.mxu0 %v1722
        %2354 = vmatpush1.msra.mxu0 %v1721
        %2355 = vmatprep.subr.mxu0 %v1724
        %2356 = vmatpush1.msra.mxu0 %v1723
        %2357 = vmatprep.subr.mxu0 %v1726
        %2358 = vmatpush1.msra.mxu0 %v1725
        %2359 = vmatprep.subr.mxu0 %v1728
        %2360 = vmatpush1.msra.mxu0 %v1727
        %2361 = vmatprep.subr.mxu0 %v1730
        %2362 = vmatpush1.msra.mxu0 %v1729
        %2363 = vmatprep.subr.mxu0 %v1732
        %2364 = vmatpush1.msra.mxu0 %v1731
        %2365 = vmatprep.subr.mxu0 %v1734
        %2366 = vmatpush1.msra.mxu0 %v1733
        %2367 = vmatprep.subr.mxu0 %v1736
        %2368 = vmatpush1.msra.mxu0 %v1735
        %2369 = vmatprep.subr.mxu0 %v1738
        %2370 = vmatpush1.msra.mxu0 %v1737
        %2371 = vmatprep.subr.mxu0 %v1740
        %2372 = vmatpush1.msra.mxu0 %v1739
        %2373 = vmatprep.subr.mxu0 %v1742
        %2374 = vmatpush1.msra.mxu0 %v1741
        %2375 = vmatprep.subr.mxu0 %v1744
        %2376 = vmatpush1.msra.mxu0 %v1743
        %2377 = vmatprep.subr.mxu0 %v1746
        %2378 = vmatpush1.msra.mxu0 %v1745
        %2379 = vmatprep.subr.mxu0 %v1748
        %2380 = vmatpush1.msra.mxu0 %v1747
        %2381 = vmatprep.subr.mxu0 %v1750
        %2382 = vmatpush1.msra.mxu0 %v1749
        %2383 = vmatprep.subr.mxu0 %v1752
        %2384 = vmatpush1.msra.mxu0 %v1751
        %2385 = vmatprep.subr.mxu0 %v1754
        %2386 = vmatpush1.msra.mxu0 %v1753
        %2387 = vmatprep.subr.mxu0 %v1756
        %2388 = vmatpush1.msra.mxu0 %v1755
        %2389 = vmatprep.subr.mxu0 %v1758
        %2390 = vmatpush1.msra.mxu0 %v1757
        %2391 = vmatprep.subr.mxu0 %v1760
        %2392 = vmatpush1.msra.mxu0 %v1759
        %2393 = vmatprep.subr.mxu0 %v1762
        %2394 = vmatpush1.msra.mxu0 %v1761
        %2395 = vmatprep.subr.mxu0 %v1764
        %2396 = vmatpush1.msra.mxu0 %v1763
        %2397 = vmatprep.subr.mxu0 %v1766
        %2398 = vmatpush1.msra.mxu0 %v1765
        %2399 = vmatprep.subr.mxu0 %v1768
        %2400 = vmatpush1.msra.mxu0 %v1767
        %2401 = vmatprep.subr.mxu0 %v1770
        %2402 = vmatpush1.msra.mxu0 %v1769
        %2403 = vmatprep.subr.mxu0 %v1772
        %2404 = vmatpush1.msra.mxu0 %v1771
        %2405 = vmatprep.subr.mxu0 0.0
        %2406 = vmatpush1.msra.mxu0 0.0
        %2407 = vmatprep.subr.mxu0 0.0
        %2408 = vmatpush1.msra.mxu0 0.0
        %2409 = vmatprep.subr.mxu0 0.0
        %2410 = vmatpush1.msra.mxu0 0.0
        %2411 = vmatprep.subr.mxu0 0.0
        %2412 = vmatpush1.msra.mxu0 0.0
        %2413 = vmatprep.subr.mxu0 0.0
        %2414 = vmatpush1.msra.mxu0 0.0
        %2415 = vmatprep.subr.mxu0 0.0
        %2416 = vmatpush1.msra.mxu0 0.0
        %2417 = vmatprep.mubr.f32.mxu0 %v2347
        %2418 = vmatmul.mubr.f32.gmra.mrb[0].mxu0 %v2222
        %v2419 = vpop.f32.mrb[0].mxu0
        %v2420 = vadd.f32 %v2330, %v2419
        %v2421 = vpop.f32.mrb[0].mxu0
        %v2422 = vadd.f32 %v2332, %v2421
        %2423 = vmatprep.mubr.f32.mxu0 %v2349
        %2424 = vmatmul.mubr.f32.gmra.mrb[0].mxu0 %v2224
        %v2425 = vpop.f32.mrb[0].mxu0
        %v2426 = vadd.f32 %v2336, %v2425
        %v2427 = vpop.f32.mrb[0].mxu0
        %v2428 = vadd.f32 %v2338, %v2427
        %2429 = vmatprep.mubr.f32.mxu0 %v2351
        %2430 = vmatmul.mubr.f32.gmra.mrb[0].mxu0 %v2226
        %v2431 = vpop.f32.mrb[0].mxu0
        %v2432 = vadd.f32 %v2342, %v2431
        %v2433 = vpop.f32.mrb[0].mxu0
        %v2434 = vadd.f32 %v2344, %v2433
        %2435 = vdwg.mxu0
        %v2436 = vld [vmem:[%s1070] sm:$0xfc]
        %v2437 = vld [vmem:[%s1070 + $0x8] sm:$0xfc]
        %v2438 = vld [vmem:[%s1070 + $0x30] sm:$0x3]
        %v2439 = vld [vmem:[%s1070 + $0x38] sm:$0x3]
        %v2444 = vrot.slane %v2436, 2
        %v2445 = vrot.slane %v2224, 2
        %v2446 = vsel %vm2102, %v2444, %v2445
        %v2447 = vrot.slane %v2437, 2
        %v2448 = vrot.slane %v2225, 2
        %v2449 = vsel %vm2102, %v2447, %v2448
        %v2450 = vrot.slane %v2226, 2
        %v2451 = vsel %vm2102, %v2445, %v2450
        %v2452 = vrot.slane %v2227, 2
        %v2453 = vsel %vm2102, %v2448, %v2452
        %v2454 = vrot.slane %v2438, 2
        %v2455 = vsel %vm2102, %v2450, %v2454
        %v2456 = vrot.slane %v2439, 2
        %v2457 = vsel %vm2102, %v2452, %v2456
        %v2461 = vsel %vm737, %v2449, 0
        %v2463 = vsel %vm737, %v2453, 0
        %v2465 = vsel %vm737, %v2457, 0
        %2467 = vmatprep.subr.mxu0 %v1828
        %2468 = vmatpush1.msra.mxu0 %v1827
        %2469 = vmatprep.subr.mxu0 %v1830
        %2470 = vmatpush1.msra.mxu0 %v1829
        %2471 = vmatprep.subr.mxu0 %v1832
        %2472 = vmatpush1.msra.mxu0 %v1831
        %2473 = vmatprep.subr.mxu0 %v1834
        %2474 = vmatpush1.msra.mxu0 %v1833
        %2475 = vmatprep.subr.mxu0 %v1836
        %2476 = vmatpush1.msra.mxu0 %v1835
        %2477 = vmatprep.subr.mxu0 %v1838
        %2478 = vmatpush1.msra.mxu0 %v1837
        %2479 = vmatprep.subr.mxu0 %v1840
        %2480 = vmatpush1.msra.mxu0 %v1839
        %2481 = vmatprep.subr.mxu0 %v1842
        %2482 = vmatpush1.msra.mxu0 %v1841
        %2483 = vmatprep.subr.mxu0 %v1844
        %2484 = vmatpush1.msra.mxu0 %v1843
        %2485 = vmatprep.subr.mxu0 %v1846
        %2486 = vmatpush1.msra.mxu0 %v1845
        %2487 = vmatprep.subr.mxu0 %v1848
        %2488 = vmatpush1.msra.mxu0 %v1847
        %2489 = vmatprep.subr.mxu0 %v1850
        %2490 = vmatpush1.msra.mxu0 %v1849
        %2491 = vmatprep.subr.mxu0 %v1852
        %2492 = vmatpush1.msra.mxu0 %v1851
        %2493 = vmatprep.subr.mxu0 %v1854
        %2494 = vmatpush1.msra.mxu0 %v1853
        %2495 = vmatprep.subr.mxu0 %v1856
        %2496 = vmatpush1.msra.mxu0 %v1855
        %2497 = vmatprep.subr.mxu0 %v1858
        %2498 = vmatpush1.msra.mxu0 %v1857
        %2499 = vmatprep.subr.mxu0 %v1860
        %2500 = vmatpush1.msra.mxu0 %v1859
        %2501 = vmatprep.subr.mxu0 %v1862
        %2502 = vmatpush1.msra.mxu0 %v1861
        %2503 = vmatprep.subr.mxu0 %v1864
        %2504 = vmatpush1.msra.mxu0 %v1863
        %2505 = vmatprep.subr.mxu0 %v1866
        %2506 = vmatpush1.msra.mxu0 %v1865
        %2507 = vmatprep.subr.mxu0 %v1868
        %2508 = vmatpush1.msra.mxu0 %v1867
        %2509 = vmatprep.subr.mxu0 %v1870
        %2510 = vmatpush1.msra.mxu0 %v1869
        %2511 = vmatprep.subr.mxu0 %v1872
        %2512 = vmatpush1.msra.mxu0 %v1871
        %2513 = vmatprep.subr.mxu0 %v1874
        %2514 = vmatpush1.msra.mxu0 %v1873
        %2515 = vmatprep.subr.mxu0 %v1876
        %2516 = vmatpush1.msra.mxu0 %v1875
        %2517 = vmatprep.subr.mxu0 %v1878
        %2518 = vmatpush1.msra.mxu0 %v1877
        %2519 = vmatprep.subr.mxu0 0.0
        %2520 = vmatpush1.msra.mxu0 0.0
        %2521 = vmatprep.subr.mxu0 0.0
        %2522 = vmatpush1.msra.mxu0 0.0
        %2523 = vmatprep.subr.mxu0 0.0
        %2524 = vmatpush1.msra.mxu0 0.0
        %2525 = vmatprep.subr.mxu0 0.0
        %2526 = vmatpush1.msra.mxu0 0.0
        %2527 = vmatprep.subr.mxu0 0.0
        %2528 = vmatpush1.msra.mxu0 0.0
        %2529 = vmatprep.subr.mxu0 0.0
        %2530 = vmatpush1.msra.mxu0 0.0
        %2531 = vmatprep.mubr.f32.mxu0 %v2461
        %2532 = vmatmul.mubr.f32.gmra.mrb[0].mxu0 %v2446
        %v2533 = vpop.f32.mrb[0].mxu0
        %v2534 = vadd.f32 0.0, %v2533
        %v2535 = vpop.f32.mrb[0].mxu0
        %v2536 = vadd.f32 0.0, %v2535
        %2537 = vmatprep.mubr.f32.mxu0 %v2463
        %2538 = vmatmul.mubr.f32.gmra.mrb[0].mxu0 %v2451
        %v2539 = vpop.f32.mrb[0].mxu0
        %v2540 = vadd.f32 0.0, %v2539
        %v2541 = vpop.f32.mrb[0].mxu0
        %v2542 = vadd.f32 0.0, %v2541
        %2543 = vmatprep.mubr.f32.mxu0 %v2465
        %2544 = vmatmul.mubr.f32.gmra.mrb[0].mxu0 %v2455
        %v2545 = vpop.f32.mrb[0].mxu0
        %v2546 = vadd.f32 0.0, %v2545
        %v2547 = vpop.f32.mrb[0].mxu0
        %v2548 = vadd.f32 0.0, %v2547
        %2549 = vdwg.mxu0
        %v2550 = vadd.f32 %v2420, %v2534
        %v2551 = vadd.f32 %v2422, %v2536
        %v2552 = vadd.f32 %v2426, %v2540
        %v2553 = vadd.f32 %v2428, %v2542
        %v2554 = vadd.f32 %v2432, %v2546
        %v2555 = vadd.f32 %v2434, %v2548
        %s2556 = scalar_lea.vmem [#allocation3], 48
        %2557 = vst [vmem:[%s2556] sm:$0xff] %v2550
        %2558 = vst.msk [vmem:[%s2556 + $0x8] sm:$0xff] %vm2216, %v2551
        %2559 = vst [vmem:[%s2556 + $0x10] sm:$0xff] %v2552
        %2560 = vst.msk [vmem:[%s2556 + $0x18] sm:$0xff] %vm2216, %v2553
        %2561 = vst [vmem:[%s2556 + $0x20] sm:$0xff] %v2554
        %2562 = vst.msk [vmem:[%s2556 + $0x28] sm:$0xff] %vm2216, %v2555
        %v2563 = vld [vmem:[#allocation3] sm:$0xff]
        %v2564 = vld [vmem:[#allocation3 + $0x8] sm:$0xff]
        %v2565 = vld [vmem:[#allocation3 + $0x10] sm:$0xff]
        %v2566 = vld [vmem:[#allocation3 + $0x18] sm:$0xff]
        %v2567 = vld [vmem:[#allocation3 + $0x20] sm:$0xff]
        %v2568 = vld [vmem:[#allocation3 + $0x28] sm:$0xff]
        %v2569 = vadd.f32 %v2563, %v2565
        %v2570 = vadd.f32 %v2569, %v2567
        %v2571 = vrot.slane %v2570, 4
        %v2572 = vadd.f32 %v2570, %v2571
        %v2573 = vrot.slane %v2572, 2
        %v2574 = vadd.f32 %v2572, %v2573
        %v2575 = vrot.slane %v2574, 1
        %v2576 = vadd.f32 %v2574, %v2575
        %v2577 = vsel %vm2216, %v2564, 0.0
        %v2578 = vsel %vm2216, %v2566, 0.0
        %v2579 = vadd.f32 %v2577, %v2578
        %v2580 = vsel %vm2216, %v2568, 0.0
        %v2581 = vadd.f32 %v2579, %v2580
        %v2582 = vrot.slane %v2581, 4
        %v2583 = vadd.f32 %v2581, %v2582
        %v2584 = vrot.slane %v2583, 2
        %v2585 = vadd.f32 %v2583, %v2584
        %v2586 = vrot.slane %v2585, 1
        %v2587 = vadd.f32 %v2585, %v2586
        %v2588 = vadd.f32 %v2576, 0.0
        %v2589 = vadd.f32 %v2587, 0.0
        %v2590 = vld [vmem:[%s2556] sm:$0xff]
        %v2591 = vld [vmem:[%s2556 + $0x8] sm:$0xff]
        %v2592 = vld [vmem:[%s2556 + $0x10] sm:$0xff]
        %v2593 = vld [vmem:[%s2556 + $0x18] sm:$0xff]
        %v2594 = vld [vmem:[%s2556 + $0x20] sm:$0xff]
        %v2595 = vld [vmem:[%s2556 + $0x28] sm:$0xff]
        %v2596 = vadd.f32 %v2590, %v2592
        %v2597 = vadd.f32 %v2596, %v2594
        %v2598 = vrot.slane %v2597, 4
        %v2599 = vadd.f32 %v2597, %v2598
        %v2600 = vrot.slane %v2599, 2
        %v2601 = vadd.f32 %v2599, %v2600
        %v2602 = vrot.slane %v2601, 1
        %v2603 = vadd.f32 %v2601, %v2602
        %v2604 = vsel %vm2216, %v2591, 0.0
        %v2605 = vsel %vm2216, %v2593, 0.0
        %v2606 = vadd.f32 %v2604, %v2605
        %v2607 = vsel %vm2216, %v2595, 0.0
        %v2608 = vadd.f32 %v2606, %v2607
        %v2609 = vrot.slane %v2608, 4
        %v2610 = vadd.f32 %v2608, %v2609
        %v2611 = vrot.slane %v2610, 2
        %v2612 = vadd.f32 %v2610, %v2611
        %v2613 = vrot.slane %v2612, 1
        %v2614 = vadd.f32 %v2612, %v2613
        %v2615 = vadd.f32 %v2588, %v2603
        %v2616 = vadd.f32 %v2589, %v2614
        %v2618 = vsel %vm2216, %v2616, 0
        %2620 = vmatprep.subr.mxu0 0.0
        %2621 = vmatpush1.msra.mxu0 %v1160
        %2622 = vmatprep.subr.mxu0 0.0
        %2623 = vmatpush1.msra.mxu0 %v1161
        %2624 = vmatprep.subr.mxu0 0.0
        %2625 = vmatpush1.msra.mxu0 %v1162
        %2626 = vmatprep.subr.mxu0 0.0
        %2627 = vmatpush1.msra.mxu0 %v1163
        %2628 = vmatprep.subr.mxu0 0.0
        %2629 = vmatpush1.msra.mxu0 %v1164
        %2630 = vmatprep.subr.mxu0 0.0
        %2631 = vmatpush1.msra.mxu0 %v1165
        %2632 = vmatprep.subr.mxu0 0.0
        %2633 = vmatpush1.msra.mxu0 %v1166
        %2634 = vmatprep.subr.mxu0 0.0
        %2635 = vmatpush1.msra.mxu0 %v1167
        %2636 = vmatprep.subr.mxu0 0.0
        %2637 = vmatpush1.msra.mxu0 %v1168
        %2638 = vmatprep.subr.mxu0 0.0
        %2639 = vmatpush1.msra.mxu0 %v1169
        %2640 = vmatprep.subr.mxu0 0.0
        %2641 = vmatpush1.msra.mxu0 %v1170
        %2642 = vmatprep.subr.mxu0 0.0
        %2643 = vmatpush1.msra.mxu0 %v1171
        %2644 = vmatprep.subr.mxu0 0.0
        %2645 = vmatpush1.msra.mxu0 %v1172
        %2646 = vmatprep.subr.mxu0 0.0
        %2647 = vmatpush1.msra.mxu0 %v1173
        %2648 = vmatprep.subr.mxu0 0.0
        %2649 = vmatpush1.msra.mxu0 %v1174
        %2650 = vmatprep.subr.mxu0 0.0
        %2651 = vmatpush1.msra.mxu0 %v1175
        %2652 = vmatprep.subr.mxu0 0.0
        %2653 = vmatpush1.msra.mxu0 %v1176
        %2654 = vmatprep.subr.mxu0 0.0
        %2655 = vmatpush1.msra.mxu0 %v1177
        %2656 = vmatprep.subr.mxu0 0.0
        %2657 = vmatpush1.msra.mxu0 %v1178
        %2658 = vmatprep.subr.mxu0 0.0
        %2659 = vmatpush1.msra.mxu0 %v1179
        %2660 = vmatprep.subr.mxu0 0.0
        %2661 = vmatpush1.msra.mxu0 %v1180
        %2662 = vmatprep.subr.mxu0 0.0
        %2663 = vmatpush1.msra.mxu0 %v1181
        %2664 = vmatprep.subr.mxu0 0.0
        %2665 = vmatpush1.msra.mxu0 %v1182
        %2666 = vmatprep.subr.mxu0 0.0
        %2667 = vmatpush1.msra.mxu0 %v1183
        %2668 = vmatprep.subr.mxu0 0.0
        %2669 = vmatpush1.msra.mxu0 0.0
        %2670 = vmatprep.subr.mxu0 0.0
        %2671 = vmatpush1.msra.mxu0 0.0
        %2672 = vmatprep.subr.mxu0 0.0
        %2673 = vmatpush1.msra.mxu0 0.0
        %2674 = vmatprep.subr.mxu0 0.0
        %2675 = vmatpush1.msra.mxu0 0.0
        %2676 = vmatprep.subr.mxu0 0.0
        %2677 = vmatpush1.msra.mxu0 0.0
        %2678 = vmatprep.subr.mxu0 0.0
        %2679 = vmatpush1.msra.mxu0 0.0
        %2680 = vmatprep.subr.mxu0 0.0
        %2681 = vmatpush1.msra.mxu0 0.0
        %2682 = vmatprep.subr.mxu0 0.0
        %2683 = vmatpush1.msra.mxu0 0.0
        %2684 = vmatprep.mubr.f32.mxu0 %v2618
        %2685 = vmatmul.mubr.f32.gmra.mrb[0].mxu0 %v2615
        %v2686 = vpop.f32.mrb[0].mxu0
        %v2687 = vadd.f32 0.0, %v2686
        %v2688 = vpop.f32.mrb[0].mxu0
        %2689 = vdwg.mxu0
        %v2690 = vmul.f32 %v2687, 0.00086805556
        %v2692 = vsel %vm1334, %v2690, 0
        %2694 = vmatprep.subr.mxu0 %v1192
        %2695 = vmatpush1.msra.mxu0 %v1191
        %2696 = vmatprep.subr.mxu0 0.0
        %2697 = vmatpush1.msra.mxu0 0.0
        %2698 = vmatprep.subr.mxu0 0.0
        %2699 = vmatpush1.msra.mxu0 0.0
        %2700 = vmatprep.subr.mxu0 0.0
        %2701 = vmatpush1.msra.mxu0 0.0
        %2702 = vmatprep.subr.mxu0 0.0
        %2703 = vmatpush1.msra.mxu0 0.0
        %2704 = vmatprep.subr.mxu0 0.0
        %2705 = vmatpush1.msra.mxu0 0.0
        %2706 = vmatprep.subr.mxu0 0.0
        %2707 = vmatpush1.msra.mxu0 0.0
        %2708 = vmatprep.subr.mxu0 0.0
        %2709 = vmatpush1.msra.mxu0 0.0
        %2710 = vmatprep.subr.mxu0 0.0
        %2711 = vmatpush1.msra.mxu0 0.0
        %2712 = vmatprep.subr.mxu0 0.0
        %2713 = vmatpush1.msra.mxu0 0.0
        %2714 = vmatprep.subr.mxu0 0.0
        %2715 = vmatpush1.msra.mxu0 0.0
        %2716 = vmatprep.subr.mxu0 0.0
        %2717 = vmatpush1.msra.mxu0 0.0
        %2718 = vmatprep.subr.mxu0 0.0
        %2719 = vmatpush1.msra.mxu0 0.0
        %2720 = vmatprep.subr.mxu0 0.0
        %2721 = vmatpush1.msra.mxu0 0.0
        %2722 = vmatprep.subr.mxu0 0.0
        %2723 = vmatpush1.msra.mxu0 0.0
        %2724 = vmatprep.subr.mxu0 0.0
        %2725 = vmatpush1.msra.mxu0 0.0
        %2726 = vmatprep.subr.mxu0 0.0
        %2727 = vmatpush1.msra.mxu0 0.0
        %2728 = vmatprep.subr.mxu0 0.0
        %2729 = vmatpush1.msra.mxu0 0.0
        %2730 = vmatprep.subr.mxu0 0.0
        %2731 = vmatpush1.msra.mxu0 0.0
        %2732 = vmatprep.subr.mxu0 0.0
        %2733 = vmatpush1.msra.mxu0 0.0
        %2734 = vmatprep.subr.mxu0 0.0
        %2735 = vmatpush1.msra.mxu0 0.0
        %2736 = vmatprep.subr.mxu0 0.0
        %2737 = vmatpush1.msra.mxu0 0.0
        %2738 = vmatprep.subr.mxu0 0.0
        %2739 = vmatpush1.msra.mxu0 0.0
        %2740 = vmatprep.subr.mxu0 0.0
        %2741 = vmatpush1.msra.mxu0 0.0
        %2742 = vmatprep.subr.mxu0 0.0
        %2743 = vmatpush1.msra.mxu0 0.0
        %2744 = vmatprep.subr.mxu0 0.0
        %2745 = vmatpush1.msra.mxu0 0.0
        %2746 = vmatprep.subr.mxu0 0.0
        %2747 = vmatpush1.msra.mxu0 0.0
        %2748 = vmatprep.subr.mxu0 0.0
        %2749 = vmatpush1.msra.mxu0 0.0
        %2750 = vmatprep.subr.mxu0 0.0
        %2751 = vmatpush1.msra.mxu0 0.0
        %2752 = vmatprep.subr.mxu0 0.0
        %2753 = vmatpush1.msra.mxu0 0.0
        %2754 = vmatprep.subr.mxu0 0.0
        %2755 = vmatpush1.msra.mxu0 0.0
        %2756 = vmatprep.subr.mxu0 0.0
        %2757 = vmatpush1.msra.mxu0 0.0
        %2758 = vmatprep.mubr.f32.mxu0 0.0
        %2759 = vmatmul.mubr.f32.gmra.mrb[0].mxu0 %v2692
        %v2760 = vpop.f32.mrb[0].mxu0
        %v2761 = vadd.f32 0.0, %v2760
        %v2762 = vpop.f32.mrb[0].mxu0
        %v2763 = vadd.f32 0.0, %v2762
        %2764 = vdwg.mxu0
        %v2765 = vlaneseq
        %v2766 = vshrl.u32 %v2765, 7
        %v2767 = vsub.s32 0, %v2766
        %v2768 = vrot.slane %v2761, %v2767
        %v2769 = vlaneseq
        %v2770 = vshrl.u32 %v2769, 7
        %v2771 = vsub.s32 0, %v2770
        %v2772 = vrot.slane %v2763, %v2771
        %v2773 = vsub.f32 %v2563, %v2768
        %v2774 = vsub.f32 %v2564, %v2772
        %v2775 = vsub.f32 %v2565, %v2768
        %v2776 = vsub.f32 %v2566, %v2772
        %v2777 = vsub.f32 %v2567, %v2768
        %v2778 = vsub.f32 %v2568, %v2772
        %v2779 = vmul.f32 %v2773, %v2773
        %v2780 = vmul.f32 %v2774, %v2774
        %v2781 = vmul.f32 %v2775, %v2775
        %v2782 = vmul.f32 %v2776, %v2776
        %v2783 = vmul.f32 %v2777, %v2777
        %v2784 = vmul.f32 %v2778, %v2778
        %v2785 = vadd.f32 %v2779, %v2781
        %v2786 = vadd.f32 %v2785, %v2783
        %v2787 = vrot.slane %v2786, 4
        %v2788 = vadd.f32 %v2786, %v2787
        %v2789 = vrot.slane %v2788, 2
        %v2790 = vadd.f32 %v2788, %v2789
        %v2791 = vrot.slane %v2790, 1
        %v2792 = vadd.f32 %v2790, %v2791
        %v2793 = vsel %vm2216, %v2780, 0.0
        %v2794 = vsel %vm2216, %v2782, 0.0
        %v2795 = vadd.f32 %v2793, %v2794
        %v2796 = vsel %vm2216, %v2784, 0.0
        %v2797 = vadd.f32 %v2795, %v2796
        %v2798 = vrot.slane %v2797, 4
        %v2799 = vadd.f32 %v2797, %v2798
        %v2800 = vrot.slane %v2799, 2
        %v2801 = vadd.f32 %v2799, %v2800
        %v2802 = vrot.slane %v2801, 1
        %v2803 = vadd.f32 %v2801, %v2802
        %v2804 = vadd.f32 %v2792, 0.0
        %v2805 = vadd.f32 %v2803, 0.0
        %v2806 = vsub.f32 %v2590, %v2768
        %v2807 = vsub.f32 %v2591, %v2772
        %v2808 = vsub.f32 %v2592, %v2768
        %v2809 = vsub.f32 %v2593, %v2772
        %v2810 = vsub.f32 %v2594, %v2768
        %v2811 = vsub.f32 %v2595, %v2772
        %v2812 = vmul.f32 %v2806, %v2806
        %v2813 = vmul.f32 %v2807, %v2807
        %v2814 = vmul.f32 %v2808, %v2808
        %v2815 = vmul.f32 %v2809, %v2809
        %v2816 = vmul.f32 %v2810, %v2810
        %v2817 = vmul.f32 %v2811, %v2811
        %v2818 = vadd.f32 %v2812, %v2814
        %v2819 = vadd.f32 %v2818, %v2816
        %v2820 = vrot.slane %v2819, 4
        %v2821 = vadd.f32 %v2819, %v2820
        %v2822 = vrot.slane %v2821, 2
        %v2823 = vadd.f32 %v2821, %v2822
        %v2824 = vrot.slane %v2823, 1
        %v2825 = vadd.f32 %v2823, %v2824
        %v2826 = vsel %vm2216, %v2813, 0.0
        %v2827 = vsel %vm2216, %v2815, 0.0
        %v2828 = vadd.f32 %v2826, %v2827
        %v2829 = vsel %vm2216, %v2817, 0.0
        %v2830 = vadd.f32 %v2828, %v2829
        %v2831 = vrot.slane %v2830, 4
        %v2832 = vadd.f32 %v2830, %v2831
        %v2833 = vrot.slane %v2832, 2
        %v2834 = vadd.f32 %v2832, %v2833
        %v2835 = vrot.slane %v2834, 1
        %v2836 = vadd.f32 %v2834, %v2835
        %v2837 = vadd.f32 %v2804, %v2825
        %v2838 = vadd.f32 %v2805, %v2836
        %v2840 = vsel %vm2216, %v2838, 0
        %2842 = vmatprep.subr.mxu0 0.0
        %2843 = vmatpush1.msra.mxu0 %v1160
        %2844 = vmatprep.subr.mxu0 0.0
        %2845 = vmatpush1.msra.mxu0 %v1161
        %2846 = vmatprep.subr.mxu0 0.0
        %2847 = vmatpush1.msra.mxu0 %v1162
        %2848 = vmatprep.subr.mxu0 0.0
        %2849 = vmatpush1.msra.mxu0 %v1163
        %2850 = vmatprep.subr.mxu0 0.0
        %2851 = vmatpush1.msra.mxu0 %v1164
        %2852 = vmatprep.subr.mxu0 0.0
        %2853 = vmatpush1.msra.mxu0 %v1165
        %2854 = vmatprep.subr.mxu0 0.0
        %2855 = vmatpush1.msra.mxu0 %v1166
        %2856 = vmatprep.subr.mxu0 0.0
        %2857 = vmatpush1.msra.mxu0 %v1167
        %2858 = vmatprep.subr.mxu0 0.0
        %2859 = vmatpush1.msra.mxu0 %v1168
        %2860 = vmatprep.subr.mxu0 0.0
        %2861 = vmatpush1.msra.mxu0 %v1169
        %2862 = vmatprep.subr.mxu0 0.0
        %2863 = vmatpush1.msra.mxu0 %v1170
        %2864 = vmatprep.subr.mxu0 0.0
        %2865 = vmatpush1.msra.mxu0 %v1171
        %2866 = vmatprep.subr.mxu0 0.0
        %2867 = vmatpush1.msra.mxu0 %v1172
        %2868 = vmatprep.subr.mxu0 0.0
        %2869 = vmatpush1.msra.mxu0 %v1173
        %2870 = vmatprep.subr.mxu0 0.0
        %2871 = vmatpush1.msra.mxu0 %v1174
        %2872 = vmatprep.subr.mxu0 0.0
        %2873 = vmatpush1.msra.mxu0 %v1175
        %2874 = vmatprep.subr.mxu0 0.0
        %2875 = vmatpush1.msra.mxu0 %v1176
        %2876 = vmatprep.subr.mxu0 0.0
        %2877 = vmatpush1.msra.mxu0 %v1177
        %2878 = vmatprep.subr.mxu0 0.0
        %2879 = vmatpush1.msra.mxu0 %v1178
        %2880 = vmatprep.subr.mxu0 0.0
        %2881 = vmatpush1.msra.mxu0 %v1179
        %2882 = vmatprep.subr.mxu0 0.0
        %2883 = vmatpush1.msra.mxu0 %v1180
        %2884 = vmatprep.subr.mxu0 0.0
        %2885 = vmatpush1.msra.mxu0 %v1181
        %2886 = vmatprep.subr.mxu0 0.0
        %2887 = vmatpush1.msra.mxu0 %v1182
        %2888 = vmatprep.subr.mxu0 0.0
        %2889 = vmatpush1.msra.mxu0 %v1183
        %2890 = vmatprep.subr.mxu0 0.0
        %2891 = vmatpush1.msra.mxu0 0.0
        %2892 = vmatprep.subr.mxu0 0.0
        %2893 = vmatpush1.msra.mxu0 0.0
        %2894 = vmatprep.subr.mxu0 0.0
        %2895 = vmatpush1.msra.mxu0 0.0
        %2896 = vmatprep.subr.mxu0 0.0
        %2897 = vmatpush1.msra.mxu0 0.0
        %2898 = vmatprep.subr.mxu0 0.0
        %2899 = vmatpush1.msra.mxu0 0.0
        %2900 = vmatprep.subr.mxu0 0.0
        %2901 = vmatpush1.msra.mxu0 0.0
        %2902 = vmatprep.subr.mxu0 0.0
        %2903 = vmatpush1.msra.mxu0 0.0
        %2904 = vmatprep.subr.mxu0 0.0
        %2905 = vmatpush1.msra.mxu0 0.0
        %2906 = vmatprep.mubr.f32.mxu0 %v2840
        %2907 = vmatmul.mubr.f32.gmra.mrb[0].mxu0 %v2837
        %v2908 = vpop.f32.mrb[0].mxu0
        %v2909 = vadd.f32 0.0, %v2908
        %v2910 = vpop.f32.mrb[0].mxu0
        %2911 = vdwg.mxu0
        %v2912 = vmul.f32 %v2909, 0.00086805556
        %v2913 = vadd.f32 %v2912, 1e-05
        %v2914 = vrsqrt.pop %v2913
        %v2916 = vsel %vm1334, %v2914, 0
        %2918 = vmatprep.subr.mxu0 %v1192
        %2919 = vmatpush1.msra.mxu0 %v1191
        %2920 = vmatprep.subr.mxu0 0.0
        %2921 = vmatpush1.msra.mxu0 0.0
        %2922 = vmatprep.subr.mxu0 0.0
        %2923 = vmatpush1.msra.mxu0 0.0
        %2924 = vmatprep.subr.mxu0 0.0
        %2925 = vmatpush1.msra.mxu0 0.0
        %2926 = vmatprep.subr.mxu0 0.0
        %2927 = vmatpush1.msra.mxu0 0.0
        %2928 = vmatprep.subr.mxu0 0.0
        %2929 = vmatpush1.msra.mxu0 0.0
        %2930 = vmatprep.subr.mxu0 0.0
        %2931 = vmatpush1.msra.mxu0 0.0
        %2932 = vmatprep.subr.mxu0 0.0
        %2933 = vmatpush1.msra.mxu0 0.0
        %2934 = vmatprep.subr.mxu0 0.0
        %2935 = vmatpush1.msra.mxu0 0.0
        %2936 = vmatprep.subr.mxu0 0.0
        %2937 = vmatpush1.msra.mxu0 0.0
        %2938 = vmatprep.subr.mxu0 0.0
        %2939 = vmatpush1.msra.mxu0 0.0
        %2940 = vmatprep.subr.mxu0 0.0
        %2941 = vmatpush1.msra.mxu0 0.0
        %2942 = vmatprep.subr.mxu0 0.0
        %2943 = vmatpush1.msra.mxu0 0.0
        %2944 = vmatprep.subr.mxu0 0.0
        %2945 = vmatpush1.msra.mxu0 0.0
        %2946 = vmatprep.subr.mxu0 0.0
        %2947 = vmatpush1.msra.mxu0 0.0
        %2948 = vmatprep.subr.mxu0 0.0
        %2949 = vmatpush1.msra.mxu0 0.0
        %2950 = vmatprep.subr.mxu0 0.0
        %2951 = vmatpush1.msra.mxu0 0.0
        %2952 = vmatprep.subr.mxu0 0.0
        %2953 = vmatpush1.msra.mxu0 0.0
        %2954 = vmatprep.subr.mxu0 0.0
        %2955 = vmatpush1.msra.mxu0 0.0
        %2956 = vmatprep.subr.mxu0 0.0
        %2957 = vmatpush1.msra.mxu0 0.0
        %2958 = vmatprep.subr.mxu0 0.0
        %2959 = vmatpush1.msra.mxu0 0.0
        %2960 = vmatprep.subr.mxu0 0.0
        %2961 = vmatpush1.msra.mxu0 0.0
        %2962 = vmatprep.subr.mxu0 0.0
        %2963 = vmatpush1.msra.mxu0 0.0
        %2964 = vmatprep.subr.mxu0 0.0
        %2965 = vmatpush1.msra.mxu0 0.0
        %2966 = vmatprep.subr.mxu0 0.0
        %2967 = vmatpush1.msra.mxu0 0.0
        %2968 = vmatprep.subr.mxu0 0.0
        %2969 = vmatpush1.msra.mxu0 0.0
        %2970 = vmatprep.subr.mxu0 0.0
        %2971 = vmatpush1.msra.mxu0 0.0
        %2972 = vmatprep.subr.mxu0 0.0
        %2973 = vmatpush1.msra.mxu0 0.0
        %2974 = vmatprep.subr.mxu0 0.0
        %2975 = vmatpush1.msra.mxu0 0.0
        %2976 = vmatprep.subr.mxu0 0.0
        %2977 = vmatpush1.msra.mxu0 0.0
        %2978 = vmatprep.subr.mxu0 0.0
        %2979 = vmatpush1.msra.mxu0 0.0
        %2980 = vmatprep.subr.mxu0 0.0
        %2981 = vmatpush1.msra.mxu0 0.0
        %2982 = vmatprep.mubr.f32.mxu0 0.0
        %2983 = vmatmul.mubr.f32.gmra.mrb[0].mxu0 %v2916
        %v2984 = vpop.f32.mrb[0].mxu0
        %v2985 = vadd.f32 0.0, %v2984
        %v2986 = vpop.f32.mrb[0].mxu0
        %v2987 = vadd.f32 0.0, %v2986
        %2988 = vdwg.mxu0
        %v2989 = vlaneseq
        %v2990 = vshrl.u32 %v2989, 7
        %v2991 = vsub.s32 0, %v2990
        %v2992 = vrot.slane %v2985, %v2991
        %v2993 = vlaneseq
        %v2994 = vshrl.u32 %v2993, 7
        %v2995 = vsub.s32 0, %v2994
        %v2996 = vrot.slane %v2987, %v2995
        %v2997 = vmul.f32 %v2773, %v2992
        %v2998 = vmul.f32 %v2774, %v2996
        %v2999 = vmul.f32 %v2775, %v2992
        %v3000 = vmul.f32 %v2776, %v2996
        %v3001 = vmul.f32 %v2777, %v2992
        %v3002 = vmul.f32 %v2778, %v2996
        %v3003 = vmax.f32 %v2997, 0.0
        %v3004 = vmax.f32 %v2998, 0.0
        %v3005 = vmax.f32 %v2999, 0.0
        %v3006 = vmax.f32 %v3000, 0.0
        %v3007 = vmax.f32 %v3001, 0.0
        %v3008 = vmax.f32 %v3002, 0.0
        %3009 = vst [vmem:[#allocation3] sm:$0xff] %v3003
        %3010 = vst.msk [vmem:[#allocation3 + $0x8] sm:$0xff] %vm2216, %v3004
        %3011 = vst [vmem:[#allocation3 + $0x10] sm:$0xff] %v3005
        %3012 = vst.msk [vmem:[#allocation3 + $0x18] sm:$0xff] %vm2216, %v3006
        %3013 = vst [vmem:[#allocation3 + $0x20] sm:$0xff] %v3007
        %3014 = vst.msk [vmem:[#allocation3 + $0x28] sm:$0xff] %vm2216, %v3008
        %v3015 = vld [vmem:[%s2556] sm:$0xff]
        %v3016 = vld [vmem:[%s2556 + $0x8] sm:$0xff]
        %v3017 = vld [vmem:[%s2556 + $0x10] sm:$0xff]
        %v3018 = vld [vmem:[%s2556 + $0x18] sm:$0xff]
        %v3019 = vld [vmem:[%s2556 + $0x20] sm:$0xff]
        %v3020 = vld [vmem:[%s2556 + $0x28] sm:$0xff]
        %v3021 = vsub.f32 %v3015, %v2768
        %v3022 = vsub.f32 %v3016, %v2772
        %v3023 = vsub.f32 %v3017, %v2768
        %v3024 = vsub.f32 %v3018, %v2772
        %v3025 = vsub.f32 %v3019, %v2768
        %v3026 = vsub.f32 %v3020, %v2772
        %v3027 = vmul.f32 %v3021, %v2992
        %v3028 = vmul.f32 %v3022, %v2996
        %v3029 = vmul.f32 %v3023, %v2992
        %v3030 = vmul.f32 %v3024, %v2996
        %v3031 = vmul.f32 %v3025, %v2992
        %v3032 = vmul.f32 %v3026, %v2996
        %v3033 = vmax.f32 %v3027, 0.0
        %v3034 = vmax.f32 %v3028, 0.0
        %v3035 = vmax.f32 %v3029, 0.0
        %v3036 = vmax.f32 %v3030, 0.0
        %v3037 = vmax.f32 %v3031, 0.0
        %v3038 = vmax.f32 %v3032, 0.0
        %3039 = vst [vmem:[%s2556] sm:$0xff] %v3033
        %3040 = vst.msk [vmem:[%s2556 + $0x8] sm:$0xff] %vm2216, %v3034
        %3041 = vst [vmem:[%s2556 + $0x10] sm:$0xff] %v3035
        %3042 = vst.msk [vmem:[%s2556 + $0x18] sm:$0xff] %vm2216, %v3036
        %3043 = vst [vmem:[%s2556 + $0x20] sm:$0xff] %v3037
        %3044 = vst.msk [vmem:[%s2556 + $0x28] sm:$0xff] %vm2216, %v3038
        %v3045 = vld [vmem:[%s3] sm:$0xff]
        %v3046 = vld [vmem:[%s3 + $0x8] sm:$0xff]
        %v3047 = vld [vmem:[%s3 + $0x10] sm:$0xff]
        %v3048 = vld [vmem:[%s3 + $0x18] sm:$0xff]
        %v3049 = vld [vmem:[%s3 + $0x20] sm:$0xff]
        %v3050 = vld [vmem:[%s3 + $0x28] sm:$0xff]
        %v3051 = vld [vmem:[%s3 + $0x30] sm:$0xff]
        %v3052 = vld [vmem:[%s3 + $0x38] sm:$0xff]
        %v3053 = vld [vmem:[%s3 + $0x40] sm:$0xff]
        %v3054 = vld [vmem:[%s3 + $0x48] sm:$0xff]
        %v3055 = vld [vmem:[%s3 + $0x50] sm:$0xff]
        %v3056 = vld [vmem:[%s3 + $0x58] sm:$0xff]
        %v3057 = vld [vmem:[%s3 + $0x60] sm:$0xff]
        %v3058 = vld [vmem:[%s3 + $0x68] sm:$0xff]
        %v3059 = vld [vmem:[%s3 + $0x70] sm:$0xff]
        %v3060 = vld [vmem:[%s3 + $0x78] sm:$0xff]
        %v3061 = vld [vmem:[%s3 + $0x80] sm:$0xff]
        %v3062 = vld [vmem:[%s3 + $0x88] sm:$0xff]
        %v3063 = vld [vmem:[%s3 + $0x90] sm:$0xff]
        %v3064 = vld [vmem:[%s3 + $0x98] sm:$0xff]
        %v3065 = vld [vmem:[%s3 + $0xa0] sm:$0xff]
        %v3066 = vld [vmem:[%s3 + $0xa8] sm:$0xff]
        %v3067 = vld [vmem:[%s3 + $0xb0] sm:$0xff]
        %v3068 = vld [vmem:[%s3 + $0xb8] sm:$0xff]
        %v3069 = vld [vmem:[%s3 + $0xc0] sm:$0xff]
        %v3070 = vld [vmem:[%s3 + $0xc8] sm:$0xff]
        %v3071 = vld [vmem:[%s3 + $0xd0] sm:$0xff]
        %v3072 = vld [vmem:[%s3 + $0xd8] sm:$0xff]
        %v3073 = vld [vmem:[%s3 + $0xe0] sm:$0xff]
        %v3074 = vld [vmem:[%s3 + $0xe8] sm:$0xff]
        %v3075 = vld [vmem:[%s3 + $0xf0] sm:$0xff]
        %v3076 = vld [vmem:[%s3 + $0xf8] sm:$0xff]
        %v3077 = vld [vmem:[%s3 + $0x100] sm:$0xff]
        %v3078 = vld [vmem:[%s3 + $0x108] sm:$0xff]
        %v3079 = vld [vmem:[%s3 + $0x110] sm:$0xff]
        %v3080 = vld [vmem:[%s3 + $0x118] sm:$0xff]
        %v3081 = vld [vmem:[%s3 + $0x120] sm:$0xff]
        %v3082 = vld [vmem:[%s3 + $0x128] sm:$0xff]
        %v3083 = vld [vmem:[%s3 + $0x130] sm:$0xff]
        %v3084 = vld [vmem:[%s3 + $0x138] sm:$0xff]
        %v3085 = vld [vmem:[%s3 + $0x140] sm:$0xff]
        %v3086 = vld [vmem:[%s3 + $0x148] sm:$0xff]
        %v3087 = vld [vmem:[%s3 + $0x150] sm:$0xff]
        %v3088 = vld [vmem:[%s3 + $0x158] sm:$0xff]
        %v3089 = vld [vmem:[%s3 + $0x160] sm:$0xff]
        %v3090 = vld [vmem:[%s3 + $0x168] sm:$0xff]
        %v3091 = vld [vmem:[%s3 + $0x170] sm:$0xff]
        %v3092 = vld [vmem:[%s3 + $0x178] sm:$0xff]
        %s3093 = scalar_lea.vmem %s3, 384
        %v3094 = vld [vmem:[%s3093] sm:$0xff]
        %v3095 = vld [vmem:[%s3093 + $0x8] sm:$0xff]
        %v3096 = vld [vmem:[%s3093 + $0x10] sm:$0xff]
        %v3097 = vld [vmem:[%s3093 + $0x18] sm:$0xff]
        %v3098 = vld [vmem:[%s3093 + $0x20] sm:$0xff]
        %v3099 = vld [vmem:[%s3093 + $0x28] sm:$0xff]
        %v3100 = vld [vmem:[%s3093 + $0x30] sm:$0xff]
        %v3101 = vld [vmem:[%s3093 + $0x38] sm:$0xff]
        %v3102 = vld [vmem:[%s3093 + $0x40] sm:$0xff]
        %v3103 = vld [vmem:[%s3093 + $0x48] sm:$0xff]
        %v3104 = vld [vmem:[%s3093 + $0x50] sm:$0xff]
        %v3105 = vld [vmem:[%s3093 + $0x58] sm:$0xff]
        %v3106 = vld [vmem:[%s3093 + $0x60] sm:$0xff]
        %v3107 = vld [vmem:[%s3093 + $0x68] sm:$0xff]
        %v3108 = vld [vmem:[%s3093 + $0x70] sm:$0xff]
        %v3109 = vld [vmem:[%s3093 + $0x78] sm:$0xff]
        %v3110 = vld [vmem:[%s3093 + $0x80] sm:$0xff]
        %v3111 = vld [vmem:[%s3093 + $0x88] sm:$0xff]
        %v3112 = vld [vmem:[%s3093 + $0x90] sm:$0xff]
        %v3113 = vld [vmem:[%s3093 + $0x98] sm:$0xff]
        %v3114 = vld [vmem:[%s3093 + $0xa0] sm:$0xff]
        %v3115 = vld [vmem:[%s3093 + $0xa8] sm:$0xff]
        %v3116 = vld [vmem:[%s3093 + $0xb0] sm:$0xff]
        %v3117 = vld [vmem:[%s3093 + $0xb8] sm:$0xff]
        %v3118 = vld [vmem:[%s3093 + $0xc0] sm:$0xff]
        %v3119 = vld [vmem:[%s3093 + $0xc8] sm:$0xff]
        %v3120 = vld [vmem:[%s3093 + $0xd0] sm:$0xff]
        %v3121 = vld [vmem:[%s3093 + $0xd8] sm:$0xff]
        %v3122 = vld [vmem:[%s3093 + $0xe0] sm:$0xff]
        %v3123 = vld [vmem:[%s3093 + $0xe8] sm:$0xff]
        %v3124 = vld [vmem:[%s3093 + $0xf0] sm:$0xff]
        %v3125 = vld [vmem:[%s3093 + $0xf8] sm:$0xff]
        %v3126 = vld [vmem:[%s3093 + $0x100] sm:$0xff]
        %v3127 = vld [vmem:[%s3093 + $0x108] sm:$0xff]
        %v3128 = vld [vmem:[%s3093 + $0x110] sm:$0xff]
        %v3129 = vld [vmem:[%s3093 + $0x118] sm:$0xff]
        %v3130 = vld [vmem:[%s3093 + $0x120] sm:$0xff]
        %v3131 = vld [vmem:[%s3093 + $0x128] sm:$0xff]
        %v3132 = vld [vmem:[%s3093 + $0x130] sm:$0xff]
        %v3133 = vld [vmem:[%s3093 + $0x138] sm:$0xff]
        %v3134 = vld [vmem:[%s3093 + $0x140] sm:$0xff]
        %v3135 = vld [vmem:[%s3093 + $0x148] sm:$0xff]
        %v3136 = vld [vmem:[%s3093 + $0x150] sm:$0xff]
        %v3137 = vld [vmem:[%s3093 + $0x158] sm:$0xff]
        %v3138 = vld [vmem:[%s3093 + $0x160] sm:$0xff]
        %v3139 = vld [vmem:[%s3093 + $0x168] sm:$0xff]
        %v3140 = vld [vmem:[%s3093 + $0x170] sm:$0xff]
        %v3141 = vld [vmem:[%s3093 + $0x178] sm:$0xff]
        %s3142 = scalar_lea.vmem %s3, 768
        %v3143 = vld [vmem:[%s3142] sm:$0xff]
        %v3144 = vld [vmem:[%s3142 + $0x8] sm:$0xff]
        %v3145 = vld [vmem:[%s3142 + $0x10] sm:$0xff]
        %v3146 = vld [vmem:[%s3142 + $0x18] sm:$0xff]
        %v3147 = vld [vmem:[%s3142 + $0x20] sm:$0xff]
        %v3148 = vld [vmem:[%s3142 + $0x28] sm:$0xff]
        %v3149 = vld [vmem:[%s3142 + $0x30] sm:$0xff]
        %v3150 = vld [vmem:[%s3142 + $0x38] sm:$0xff]
        %v3151 = vld [vmem:[%s3142 + $0x40] sm:$0xff]
        %v3152 = vld [vmem:[%s3142 + $0x48] sm:$0xff]
        %v3153 = vld [vmem:[%s3142 + $0x50] sm:$0xff]
        %v3154 = vld [vmem:[%s3142 + $0x58] sm:$0xff]
        %v3155 = vld [vmem:[%s3142 + $0x60] sm:$0xff]
        %v3156 = vld [vmem:[%s3142 + $0x68] sm:$0xff]
        %v3157 = vld [vmem:[%s3142 + $0x70] sm:$0xff]
        %v3158 = vld [vmem:[%s3142 + $0x78] sm:$0xff]
        %v3159 = vld [vmem:[%s3142 + $0x80] sm:$0xff]
        %v3160 = vld [vmem:[%s3142 + $0x88] sm:$0xff]
        %v3161 = vld [vmem:[%s3142 + $0x90] sm:$0xff]
        %v3162 = vld [vmem:[%s3142 + $0x98] sm:$0xff]
        %v3163 = vld [vmem:[%s3142 + $0xa0] sm:$0xff]
        %v3164 = vld [vmem:[%s3142 + $0xa8] sm:$0xff]
        %v3165 = vld [vmem:[%s3142 + $0xb0] sm:$0xff]
        %v3166 = vld [vmem:[%s3142 + $0xb8] sm:$0xff]
        %v3167 = vld [vmem:[%s3142 + $0xc0] sm:$0xff]
        %v3168 = vld [vmem:[%s3142 + $0xc8] sm:$0xff]
        %v3169 = vld [vmem:[%s3142 + $0xd0] sm:$0xff]
        %v3170 = vld [vmem:[%s3142 + $0xd8] sm:$0xff]
        %v3171 = vld [vmem:[%s3142 + $0xe0] sm:$0xff]
        %v3172 = vld [vmem:[%s3142 + $0xe8] sm:$0xff]
        %v3173 = vld [vmem:[%s3142 + $0xf0] sm:$0xff]
        %v3174 = vld [vmem:[%s3142 + $0xf8] sm:$0xff]
        %v3175 = vld [vmem:[%s3142 + $0x100] sm:$0xff]
        %v3176 = vld [vmem:[%s3142 + $0x108] sm:$0xff]
        %v3177 = vld [vmem:[%s3142 + $0x110] sm:$0xff]
        %v3178 = vld [vmem:[%s3142 + $0x118] sm:$0xff]
        %v3179 = vld [vmem:[%s3142 + $0x120] sm:$0xff]
        %v3180 = vld [vmem:[%s3142 + $0x128] sm:$0xff]
        %v3181 = vld [vmem:[%s3142 + $0x130] sm:$0xff]
        %v3182 = vld [vmem:[%s3142 + $0x138] sm:$0xff]
        %v3183 = vld [vmem:[%s3142 + $0x140] sm:$0xff]
        %v3184 = vld [vmem:[%s3142 + $0x148] sm:$0xff]
        %v3185 = vld [vmem:[%s3142 + $0x150] sm:$0xff]
        %v3186 = vld [vmem:[%s3142 + $0x158] sm:$0xff]
        %v3187 = vld [vmem:[%s3142 + $0x160] sm:$0xff]
        %v3188 = vld [vmem:[%s3142 + $0x168] sm:$0xff]
        %v3189 = vld [vmem:[%s3142 + $0x170] sm:$0xff]
        %v3190 = vld [vmem:[%s3142 + $0x178] sm:$0xff]
        %v3191 = vld [vmem:[#allocation3] sm:$0xff]
        %v3192 = vld [vmem:[#allocation3 + $0x8] sm:$0xff]
        %v3193 = vld [vmem:[#allocation3 + $0x10] sm:$0xff]
        %v3194 = vld [vmem:[#allocation3 + $0x18] sm:$0xff]
        %v3195 = vld [vmem:[#allocation3 + $0x20] sm:$0x3f]
        %v3196 = vld [vmem:[#allocation3 + $0x28] sm:$0x3f]
        %v3197 = vld [vmem:[#allocation3] sm:$0xfe]
        %v3198 = vld [vmem:[#allocation3 + $0x8] sm:$0xfe]
        %v3199 = vld [vmem:[#allocation3 + $0x20] sm:$0x7f]
        %v3200 = vld [vmem:[#allocation3 + $0x28] sm:$0x7f]
        %v3207 = vrot.slane %v3197, 1
        %v3208 = vrot.slane %v3193, 1
        %v3209 = vsel %vm1897, %v3207, %v3208
        %v3210 = vrot.slane %v3198, 1
        %v3211 = vrot.slane %v3194, 1
        %v3212 = vsel %vm1897, %v3210, %v3211
        %v3213 = vrot.slane %v3199, 1
        %v3214 = vsel %vm1897, %v3208, %v3213
        %v3215 = vrot.slane %v3200, 1
        %v3216 = vsel %vm1897, %v3211, %v3215
        %v3220 = vsel %vm2216, %v3212, 0
        %v3222 = vsel %vm2216, %v3216, 0
        %v3224 = vsel %vm2216, %v3215, 0
        %3226 = vmatprep.subr.mxu0 %v3095
        %3227 = vmatpush1.msra.mxu0 %v3094
        %3228 = vmatprep.subr.mxu0 %v3097
        %3229 = vmatpush1.msra.mxu0 %v3096
        %3230 = vmatprep.subr.mxu0 %v3099
        %3231 = vmatpush1.msra.mxu0 %v3098
        %3232 = vmatprep.subr.mxu0 %v3101
        %3233 = vmatpush1.msra.mxu0 %v3100
        %3234 = vmatprep.subr.mxu0 %v3103
        %3235 = vmatpush1.msra.mxu0 %v3102
        %3236 = vmatprep.subr.mxu0 %v3105
        %3237 = vmatpush1.msra.mxu0 %v3104
        %3238 = vmatprep.subr.mxu0 %v3107
        %3239 = vmatpush1.msra.mxu0 %v3106
        %3240 = vmatprep.subr.mxu0 %v3109
        %3241 = vmatpush1.msra.mxu0 %v3108
        %3242 = vmatprep.subr.mxu0 %v3111
        %3243 = vmatpush1.msra.mxu0 %v3110
        %3244 = vmatprep.subr.mxu0 %v3113
        %3245 = vmatpush1.msra.mxu0 %v3112
        %3246 = vmatprep.subr.mxu0 %v3115
        %3247 = vmatpush1.msra.mxu0 %v3114
        %3248 = vmatprep.subr.mxu0 %v3117
        %3249 = vmatpush1.msra.mxu0 %v3116
        %3250 = vmatprep.subr.mxu0 %v3119
        %3251 = vmatpush1.msra.mxu0 %v3118
        %3252 = vmatprep.subr.mxu0 %v3121
        %3253 = vmatpush1.msra.mxu0 %v3120
        %3254 = vmatprep.subr.mxu0 %v3123
        %3255 = vmatpush1.msra.mxu0 %v3122
        %3256 = vmatprep.subr.mxu0 %v3125
        %3257 = vmatpush1.msra.mxu0 %v3124
        %3258 = vmatprep.subr.mxu0 %v3127
        %3259 = vmatpush1.msra.mxu0 %v3126
        %3260 = vmatprep.subr.mxu0 %v3129
        %3261 = vmatpush1.msra.mxu0 %v3128
        %3262 = vmatprep.subr.mxu0 %v3131
        %3263 = vmatpush1.msra.mxu0 %v3130
        %3264 = vmatprep.subr.mxu0 %v3133
        %3265 = vmatpush1.msra.mxu0 %v3132
        %3266 = vmatprep.subr.mxu0 %v3135
        %3267 = vmatpush1.msra.mxu0 %v3134
        %3268 = vmatprep.subr.mxu0 %v3137
        %3269 = vmatpush1.msra.mxu0 %v3136
        %3270 = vmatprep.subr.mxu0 %v3139
        %3271 = vmatpush1.msra.mxu0 %v3138
        %3272 = vmatprep.subr.mxu0 %v3141
        %3273 = vmatpush1.msra.mxu0 %v3140
        %3274 = vmatprep.subr.mxu0 0.0
        %3275 = vmatpush1.msra.mxu0 0.0
        %3276 = vmatprep.subr.mxu0 0.0
        %3277 = vmatpush1.msra.mxu0 0.0
        %3278 = vmatprep.subr.mxu0 0.0
        %3279 = vmatpush1.msra.mxu0 0.0
        %3280 = vmatprep.subr.mxu0 0.0
        %3281 = vmatpush1.msra.mxu0 0.0
        %3282 = vmatprep.subr.mxu0 0.0
        %3283 = vmatpush1.msra.mxu0 0.0
        %3284 = vmatprep.subr.mxu0 0.0
        %3285 = vmatpush1.msra.mxu0 0.0
        %3286 = vmatprep.subr.mxu0 0.0
        %3287 = vmatpush1.msra.mxu0 0.0
        %3288 = vmatprep.subr.mxu0 0.0
        %3289 = vmatpush1.msra.mxu0 0.0
        %3290 = vmatprep.mubr.f32.mxu0 %v3220
        %3291 = vmatmul.mubr.f32.gmra.mrb[0].mxu0 %v3209
        %v3292 = vpop.f32.mrb[0].mxu0
        %v3293 = vadd.f32 0.0, %v3292
        %v3294 = vpop.f32.mrb[0].mxu0
        %v3295 = vadd.f32 0.0, %v3294
        %3296 = vmatprep.mubr.f32.mxu0 %v3222
        %3297 = vmatmul.mubr.f32.gmra.mrb[0].mxu0 %v3214
        %v3298 = vpop.f32.mrb[0].mxu0
        %v3299 = vadd.f32 0.0, %v3298
        %v3300 = vpop.f32.mrb[0].mxu0
        %v3301 = vadd.f32 0.0, %v3300
        %3302 = vmatprep.mubr.f32.mxu0 %v3224
        %3303 = vmatmul.mubr.f32.gmra.mrb[0].mxu0 %v3213
        %v3304 = vpop.f32.mrb[0].mxu0
        %v3305 = vadd.f32 0.0, %v3304
        %v3306 = vpop.f32.mrb[0].mxu0
        %v3307 = vadd.f32 0.0, %v3306
        %3308 = vdwg.mxu0
        %v3310 = vsel %vm2216, %v3192, 0
        %v3312 = vsel %vm2216, %v3194, 0
        %v3315 = vsel %vm2216, %v3196, 0
        %3317 = vmatprep.subr.mxu0 %v3046
        %3318 = vmatpush1.msra.mxu0 %v3045
        %3319 = vmatprep.subr.mxu0 %v3048
        %3320 = vmatpush1.msra.mxu0 %v3047
        %3321 = vmatprep.subr.mxu0 %v3050
        %3322 = vmatpush1.msra.mxu0 %v3049
        %3323 = vmatprep.subr.mxu0 %v3052
        %3324 = vmatpush1.msra.mxu0 %v3051
        %3325 = vmatprep.subr.mxu0 %v3054
        %3326 = vmatpush1.msra.mxu0 %v3053
        %3327 = vmatprep.subr.mxu0 %v3056
        %3328 = vmatpush1.msra.mxu0 %v3055
        %3329 = vmatprep.subr.mxu0 %v3058
        %3330 = vmatpush1.msra.mxu0 %v3057
        %3331 = vmatprep.subr.mxu0 %v3060
        %3332 = vmatpush1.msra.mxu0 %v3059
        %3333 = vmatprep.subr.mxu0 %v3062
        %3334 = vmatpush1.msra.mxu0 %v3061
        %3335 = vmatprep.subr.mxu0 %v3064
        %3336 = vmatpush1.msra.mxu0 %v3063
        %3337 = vmatprep.subr.mxu0 %v3066
        %3338 = vmatpush1.msra.mxu0 %v3065
        %3339 = vmatprep.subr.mxu0 %v3068
        %3340 = vmatpush1.msra.mxu0 %v3067
        %3341 = vmatprep.subr.mxu0 %v3070
        %3342 = vmatpush1.msra.mxu0 %v3069
        %3343 = vmatprep.subr.mxu0 %v3072
        %3344 = vmatpush1.msra.mxu0 %v3071
        %3345 = vmatprep.subr.mxu0 %v3074
        %3346 = vmatpush1.msra.mxu0 %v3073
        %3347 = vmatprep.subr.mxu0 %v3076
        %3348 = vmatpush1.msra.mxu0 %v3075
        %3349 = vmatprep.subr.mxu0 %v3078
        %3350 = vmatpush1.msra.mxu0 %v3077
        %3351 = vmatprep.subr.mxu0 %v3080
        %3352 = vmatpush1.msra.mxu0 %v3079
        %3353 = vmatprep.subr.mxu0 %v3082
        %3354 = vmatpush1.msra.mxu0 %v3081
        %3355 = vmatprep.subr.mxu0 %v3084
        %3356 = vmatpush1.msra.mxu0 %v3083
        %3357 = vmatprep.subr.mxu0 %v3086
        %3358 = vmatpush1.msra.mxu0 %v3085
        %3359 = vmatprep.subr.mxu0 %v3088
        %3360 = vmatpush1.msra.mxu0 %v3087
        %3361 = vmatprep.subr.mxu0 %v3090
        %3362 = vmatpush1.msra.mxu0 %v3089
        %3363 = vmatprep.subr.mxu0 %v3092
        %3364 = vmatpush1.msra.mxu0 %v3091
        %3365 = vmatprep.subr.mxu0 0.0
        %3366 = vmatpush1.msra.mxu0 0.0
        %3367 = vmatprep.subr.mxu0 0.0
        %3368 = vmatpush1.msra.mxu0 0.0
        %3369 = vmatprep.subr.mxu0 0.0
        %3370 = vmatpush1.msra.mxu0 0.0
        %3371 = vmatprep.subr.mxu0 0.0
        %3372 = vmatpush1.msra.mxu0 0.0
        %3373 = vmatprep.subr.mxu0 0.0
        %3374 = vmatpush1.msra.mxu0 0.0
        %3375 = vmatprep.subr.mxu0 0.0
        %3376 = vmatpush1.msra.mxu0 0.0
        %3377 = vmatprep.subr.mxu0 0.0
        %3378 = vmatpush1.msra.mxu0 0.0
        %3379 = vmatprep.subr.mxu0 0.0
        %3380 = vmatpush1.msra.mxu0 0.0
        %3381 = vmatprep.mubr.f32.mxu0 %v3310
        %3382 = vmatmul.mubr.f32.gmra.mrb[0].mxu0 %v3191
        %v3383 = vpop.f32.mrb[0].mxu0
        %v3384 = vadd.f32 %v3293, %v3383
        %v3385 = vpop.f32.mrb[0].mxu0
        %v3386 = vadd.f32 %v3295, %v3385
        %3387 = vmatprep.mubr.f32.mxu0 %v3312
        %3388 = vmatmul.mubr.f32.gmra.mrb[0].mxu0 %v3193
        %v3389 = vpop.f32.mrb[0].mxu0
        %v3390 = vadd.f32 %v3299, %v3389
        %v3391 = vpop.f32.mrb[0].mxu0
        %v3392 = vadd.f32 %v3301, %v3391
        %3393 = vmatprep.mubr.f32.mxu0 %v3315
        %3394 = vmatmul.mubr.f32.gmra.mrb[0].mxu0 %v3195
        %v3395 = vpop.f32.mrb[0].mxu0
        %v3396 = vadd.f32 %v3305, %v3395
        %v3397 = vpop.f32.mrb[0].mxu0
        %v3398 = vadd.f32 %v3307, %v3397
        %3399 = vdwg.mxu0
        %v3400 = vld [vmem:[#allocation3] sm:$0xfc]
        %v3401 = vld [vmem:[#allocation3 + $0x8] sm:$0xfc]
        %v3402 = vld [vmem:[#allocation3 + $0x20] sm:$0xff]
        %v3403 = vld [vmem:[#allocation3 + $0x28] sm:$0xff]
        %v3408 = vrot.slane %v3400, 2
        %v3409 = vrot.slane %v3193, 2
        %v3410 = vsel %vm2102, %v3408, %v3409
        %v3411 = vrot.slane %v3401, 2
        %v3412 = vrot.slane %v3194, 2
        %v3413 = vsel %vm2102, %v3411, %v3412
        %v3414 = vrot.slane %v3402, 2
        %v3415 = vsel %vm2102, %v3409, %v3414
        %v3416 = vrot.slane %v3403, 2
        %v3417 = vsel %vm2102, %v3412, %v3416
        %v3421 = vsel %vm2216, %v3413, 0
        %v3423 = vsel %vm2216, %v3417, 0
        %v3425 = vsel %vm2216, %v3416, 0
        %3427 = vmatprep.subr.mxu0 %v3144
        %3428 = vmatpush1.msra.mxu0 %v3143
        %3429 = vmatprep.subr.mxu0 %v3146
        %3430 = vmatpush1.msra.mxu0 %v3145
        %3431 = vmatprep.subr.mxu0 %v3148
        %3432 = vmatpush1.msra.mxu0 %v3147
        %3433 = vmatprep.subr.mxu0 %v3150
        %3434 = vmatpush1.msra.mxu0 %v3149
        %3435 = vmatprep.subr.mxu0 %v3152
        %3436 = vmatpush1.msra.mxu0 %v3151
        %3437 = vmatprep.subr.mxu0 %v3154
        %3438 = vmatpush1.msra.mxu0 %v3153
        %3439 = vmatprep.subr.mxu0 %v3156
        %3440 = vmatpush1.msra.mxu0 %v3155
        %3441 = vmatprep.subr.mxu0 %v3158
        %3442 = vmatpush1.msra.mxu0 %v3157
        %3443 = vmatprep.subr.mxu0 %v3160
        %3444 = vmatpush1.msra.mxu0 %v3159
        %3445 = vmatprep.subr.mxu0 %v3162
        %3446 = vmatpush1.msra.mxu0 %v3161
        %3447 = vmatprep.subr.mxu0 %v3164
        %3448 = vmatpush1.msra.mxu0 %v3163
        %3449 = vmatprep.subr.mxu0 %v3166
        %3450 = vmatpush1.msra.mxu0 %v3165
        %3451 = vmatprep.subr.mxu0 %v3168
        %3452 = vmatpush1.msra.mxu0 %v3167
        %3453 = vmatprep.subr.mxu0 %v3170
        %3454 = vmatpush1.msra.mxu0 %v3169
        %3455 = vmatprep.subr.mxu0 %v3172
        %3456 = vmatpush1.msra.mxu0 %v3171
        %3457 = vmatprep.subr.mxu0 %v3174
        %3458 = vmatpush1.msra.mxu0 %v3173
        %3459 = vmatprep.subr.mxu0 %v3176
        %3460 = vmatpush1.msra.mxu0 %v3175
        %3461 = vmatprep.subr.mxu0 %v3178
        %3462 = vmatpush1.msra.mxu0 %v3177
        %3463 = vmatprep.subr.mxu0 %v3180
        %3464 = vmatpush1.msra.mxu0 %v3179
        %3465 = vmatprep.subr.mxu0 %v3182
        %3466 = vmatpush1.msra.mxu0 %v3181
        %3467 = vmatprep.subr.mxu0 %v3184
        %3468 = vmatpush1.msra.mxu0 %v3183
        %3469 = vmatprep.subr.mxu0 %v3186
        %3470 = vmatpush1.msra.mxu0 %v3185
        %3471 = vmatprep.subr.mxu0 %v3188
        %3472 = vmatpush1.msra.mxu0 %v3187
        %3473 = vmatprep.subr.mxu0 %v3190
        %3474 = vmatpush1.msra.mxu0 %v3189
        %3475 = vmatprep.subr.mxu0 0.0
        %3476 = vmatpush1.msra.mxu0 0.0
        %3477 = vmatprep.subr.mxu0 0.0
        %3478 = vmatpush1.msra.mxu0 0.0
        %3479 = vmatprep.subr.mxu0 0.0
        %3480 = vmatpush1.msra.mxu0 0.0
        %3481 = vmatprep.subr.mxu0 0.0
        %3482 = vmatpush1.msra.mxu0 0.0
        %3483 = vmatprep.subr.mxu0 0.0
        %3484 = vmatpush1.msra.mxu0 0.0
        %3485 = vmatprep.subr.mxu0 0.0
        %3486 = vmatpush1.msra.mxu0 0.0
        %3487 = vmatprep.subr.mxu0 0.0
        %3488 = vmatpush1.msra.mxu0 0.0
        %3489 = vmatprep.subr.mxu0 0.0
        %3490 = vmatpush1.msra.mxu0 0.0
        %3491 = vmatprep.mubr.f32.mxu0 %v3421
        %3492 = vmatmul.mubr.f32.gmra.mrb[0].mxu0 %v3410
        %v3493 = vpop.f32.mrb[0].mxu0
        %v3494 = vadd.f32 0.0, %v3493
        %v3495 = vpop.f32.mrb[0].mxu0
        %v3496 = vadd.f32 0.0, %v3495
        %3497 = vmatprep.mubr.f32.mxu0 %v3423
        %3498 = vmatmul.mubr.f32.gmra.mrb[0].mxu0 %v3415
        %v3499 = vpop.f32.mrb[0].mxu0
        %v3500 = vadd.f32 0.0, %v3499
        %v3501 = vpop.f32.mrb[0].mxu0
        %v3502 = vadd.f32 0.0, %v3501
        %3503 = vmatprep.mubr.f32.mxu0 %v3425
        %3504 = vmatmul.mubr.f32.gmra.mrb[0].mxu0 %v3414
        %v3505 = vpop.f32.mrb[0].mxu0
        %v3506 = vadd.f32 0.0, %v3505
        %v3507 = vpop.f32.mrb[0].mxu0
        %v3508 = vadd.f32 0.0, %v3507
        %3509 = vdwg.mxu0
        %v3510 = vadd.f32 %v3384, %v3494
        %v3511 = vadd.f32 %v3386, %v3496
        %v3512 = vadd.f32 %v3390, %v3500
        %v3513 = vadd.f32 %v3392, %v3502
        %v3514 = vadd.f32 %v3396, %v3506
        %v3515 = vadd.f32 %v3398, %v3508
        %3516 = vst [vmem:[#allocation4] sm:$0xff] %v3510
        %vm3517 = vcmask 392192
        %3518 = vst.msk [vmem:[#allocation4 + $0x8] sm:$0xff] %vm3517, %v3511
        %3519 = vst [vmem:[#allocation4 + $0x10] sm:$0xff] %v3512
        %3520 = vst.msk [vmem:[#allocation4 + $0x18] sm:$0xff] %vm3517, %v3513
        %3521 = vst [vmem:[#allocation4 + $0x20] sm:$0x3f] %v3514
        %vm3522 = vcmask 390144
        %3523 = vst.msk [vmem:[#allocation4 + $0x28] sm:$0x3f] %vm3522, %v3515
        %v3524 = vld [vmem:[%s2556] sm:$0xff]
        %v3525 = vld [vmem:[%s2556 + $0x8] sm:$0xff]
        %v3526 = vld [vmem:[%s2556 + $0x10] sm:$0xff]
        %v3527 = vld [vmem:[%s2556 + $0x18] sm:$0xff]
        %v3528 = vld [vmem:[%s2556 + $0x20] sm:$0x3f]
        %v3529 = vld [vmem:[%s2556 + $0x28] sm:$0x3f]
        %v3530 = vld [vmem:[%s2556] sm:$0xfe]
        %v3531 = vld [vmem:[%s2556 + $0x8] sm:$0xfe]
        %v3532 = vld [vmem:[%s2556 + $0x20] sm:$0x7f]
        %v3533 = vld [vmem:[%s2556 + $0x28] sm:$0x7f]
        %v3540 = vrot.slane %v3530, 1
        %v3541 = vrot.slane %v3526, 1
        %v3542 = vsel %vm1897, %v3540, %v3541
        %v3543 = vrot.slane %v3531, 1
        %v3544 = vrot.slane %v3527, 1
        %v3545 = vsel %vm1897, %v3543, %v3544
        %v3546 = vrot.slane %v3532, 1
        %v3547 = vsel %vm1897, %v3541, %v3546
        %v3548 = vrot.slane %v3533, 1
        %v3549 = vsel %vm1897, %v3544, %v3548
        %v3553 = vsel %vm2216, %v3545, 0
        %v3555 = vsel %vm2216, %v3549, 0
        %v3557 = vsel %vm2216, %v3548, 0
        %3559 = vmatprep.subr.mxu0 %v3095
        %3560 = vmatpush1.msra.mxu0 %v3094
        %3561 = vmatprep.subr.mxu0 %v3097
        %3562 = vmatpush1.msra.mxu0 %v3096
        %3563 = vmatprep.subr.mxu0 %v3099
        %3564 = vmatpush1.msra.mxu0 %v3098
        %3565 = vmatprep.subr.mxu0 %v3101
        %3566 = vmatpush1.msra.mxu0 %v3100
        %3567 = vmatprep.subr.mxu0 %v3103
        %3568 = vmatpush1.msra.mxu0 %v3102
        %3569 = vmatprep.subr.mxu0 %v3105
        %3570 = vmatpush1.msra.mxu0 %v3104
        %3571 = vmatprep.subr.mxu0 %v3107
        %3572 = vmatpush1.msra.mxu0 %v3106
        %3573 = vmatprep.subr.mxu0 %v3109
        %3574 = vmatpush1.msra.mxu0 %v3108
        %3575 = vmatprep.subr.mxu0 %v3111
        %3576 = vmatpush1.msra.mxu0 %v3110
        %3577 = vmatprep.subr.mxu0 %v3113
        %3578 = vmatpush1.msra.mxu0 %v3112
        %3579 = vmatprep.subr.mxu0 %v3115
        %3580 = vmatpush1.msra.mxu0 %v3114
        %3581 = vmatprep.subr.mxu0 %v3117
        %3582 = vmatpush1.msra.mxu0 %v3116
        %3583 = vmatprep.subr.mxu0 %v3119
        %3584 = vmatpush1.msra.mxu0 %v3118
        %3585 = vmatprep.subr.mxu0 %v3121
        %3586 = vmatpush1.msra.mxu0 %v3120
        %3587 = vmatprep.subr.mxu0 %v3123
        %3588 = vmatpush1.msra.mxu0 %v3122
        %3589 = vmatprep.subr.mxu0 %v3125
        %3590 = vmatpush1.msra.mxu0 %v3124
        %3591 = vmatprep.subr.mxu0 %v3127
        %3592 = vmatpush1.msra.mxu0 %v3126
        %3593 = vmatprep.subr.mxu0 %v3129
        %3594 = vmatpush1.msra.mxu0 %v3128
        %3595 = vmatprep.subr.mxu0 %v3131
        %3596 = vmatpush1.msra.mxu0 %v3130
        %3597 = vmatprep.subr.mxu0 %v3133
        %3598 = vmatpush1.msra.mxu0 %v3132
        %3599 = vmatprep.subr.mxu0 %v3135
        %3600 = vmatpush1.msra.mxu0 %v3134
        %3601 = vmatprep.subr.mxu0 %v3137
        %3602 = vmatpush1.msra.mxu0 %v3136
        %3603 = vmatprep.subr.mxu0 %v3139
        %3604 = vmatpush1.msra.mxu0 %v3138
        %3605 = vmatprep.subr.mxu0 %v3141
        %3606 = vmatpush1.msra.mxu0 %v3140
        %3607 = vmatprep.subr.mxu0 0.0
        %3608 = vmatpush1.msra.mxu0 0.0
        %3609 = vmatprep.subr.mxu0 0.0
        %3610 = vmatpush1.msra.mxu0 0.0
        %3611 = vmatprep.subr.mxu0 0.0
        %3612 = vmatpush1.msra.mxu0 0.0
        %3613 = vmatprep.subr.mxu0 0.0
        %3614 = vmatpush1.msra.mxu0 0.0
        %3615 = vmatprep.subr.mxu0 0.0
        %3616 = vmatpush1.msra.mxu0 0.0
        %3617 = vmatprep.subr.mxu0 0.0
        %3618 = vmatpush1.msra.mxu0 0.0
        %3619 = vmatprep.subr.mxu0 0.0
        %3620 = vmatpush1.msra.mxu0 0.0
        %3621 = vmatprep.subr.mxu0 0.0
        %3622 = vmatpush1.msra.mxu0 0.0
        %3623 = vmatprep.mubr.f32.mxu0 %v3553
        %3624 = vmatmul.mubr.f32.gmra.mrb[0].mxu0 %v3542
        %v3625 = vpop.f32.mrb[0].mxu0
        %v3626 = vadd.f32 0.0, %v3625
        %v3627 = vpop.f32.mrb[0].mxu0
        %v3628 = vadd.f32 0.0, %v3627
        %3629 = vmatprep.mubr.f32.mxu0 %v3555
        %3630 = vmatmul.mubr.f32.gmra.mrb[0].mxu0 %v3547
        %v3631 = vpop.f32.mrb[0].mxu0
        %v3632 = vadd.f32 0.0, %v3631
        %v3633 = vpop.f32.mrb[0].mxu0
        %v3634 = vadd.f32 0.0, %v3633
        %3635 = vmatprep.mubr.f32.mxu0 %v3557
        %3636 = vmatmul.mubr.f32.gmra.mrb[0].mxu0 %v3546
        %v3637 = vpop.f32.mrb[0].mxu0
        %v3638 = vadd.f32 0.0, %v3637
        %v3639 = vpop.f32.mrb[0].mxu0
        %v3640 = vadd.f32 0.0, %v3639
        %3641 = vdwg.mxu0
        %v3643 = vsel %vm2216, %v3525, 0
        %v3645 = vsel %vm2216, %v3527, 0
        %v3648 = vsel %vm2216, %v3529, 0
        %3650 = vmatprep.subr.mxu0 %v3046
        %3651 = vmatpush1.msra.mxu0 %v3045
        %3652 = vmatprep.subr.mxu0 %v3048
        %3653 = vmatpush1.msra.mxu0 %v3047
        %3654 = vmatprep.subr.mxu0 %v3050
        %3655 = vmatpush1.msra.mxu0 %v3049
        %3656 = vmatprep.subr.mxu0 %v3052
        %3657 = vmatpush1.msra.mxu0 %v3051
        %3658 = vmatprep.subr.mxu0 %v3054
        %3659 = vmatpush1.msra.mxu0 %v3053
        %3660 = vmatprep.subr.mxu0 %v3056
        %3661 = vmatpush1.msra.mxu0 %v3055
        %3662 = vmatprep.subr.mxu0 %v3058
        %3663 = vmatpush1.msra.mxu0 %v3057
        %3664 = vmatprep.subr.mxu0 %v3060
        %3665 = vmatpush1.msra.mxu0 %v3059
        %3666 = vmatprep.subr.mxu0 %v3062
        %3667 = vmatpush1.msra.mxu0 %v3061
        %3668 = vmatprep.subr.mxu0 %v3064
        %3669 = vmatpush1.msra.mxu0 %v3063
        %3670 = vmatprep.subr.mxu0 %v3066
        %3671 = vmatpush1.msra.mxu0 %v3065
        %3672 = vmatprep.subr.mxu0 %v3068
        %3673 = vmatpush1.msra.mxu0 %v3067
        %3674 = vmatprep.subr.mxu0 %v3070
        %3675 = vmatpush1.msra.mxu0 %v3069
        %3676 = vmatprep.subr.mxu0 %v3072
        %3677 = vmatpush1.msra.mxu0 %v3071
        %3678 = vmatprep.subr.mxu0 %v3074
        %3679 = vmatpush1.msra.mxu0 %v3073
        %3680 = vmatprep.subr.mxu0 %v3076
        %3681 = vmatpush1.msra.mxu0 %v3075
        %3682 = vmatprep.subr.mxu0 %v3078
        %3683 = vmatpush1.msra.mxu0 %v3077
        %3684 = vmatprep.subr.mxu0 %v3080
        %3685 = vmatpush1.msra.mxu0 %v3079
        %3686 = vmatprep.subr.mxu0 %v3082
        %3687 = vmatpush1.msra.mxu0 %v3081
        %3688 = vmatprep.subr.mxu0 %v3084
        %3689 = vmatpush1.msra.mxu0 %v3083
        %3690 = vmatprep.subr.mxu0 %v3086
        %3691 = vmatpush1.msra.mxu0 %v3085
        %3692 = vmatprep.subr.mxu0 %v3088
        %3693 = vmatpush1.msra.mxu0 %v3087
        %3694 = vmatprep.subr.mxu0 %v3090
        %3695 = vmatpush1.msra.mxu0 %v3089
        %3696 = vmatprep.subr.mxu0 %v3092
        %3697 = vmatpush1.msra.mxu0 %v3091
        %3698 = vmatprep.subr.mxu0 0.0
        %3699 = vmatpush1.msra.mxu0 0.0
        %3700 = vmatprep.subr.mxu0 0.0
        %3701 = vmatpush1.msra.mxu0 0.0
        %3702 = vmatprep.subr.mxu0 0.0
        %3703 = vmatpush1.msra.mxu0 0.0
        %3704 = vmatprep.subr.mxu0 0.0
        %3705 = vmatpush1.msra.mxu0 0.0
        %3706 = vmatprep.subr.mxu0 0.0
        %3707 = vmatpush1.msra.mxu0 0.0
        %3708 = vmatprep.subr.mxu0 0.0
        %3709 = vmatpush1.msra.mxu0 0.0
        %3710 = vmatprep.subr.mxu0 0.0
        %3711 = vmatpush1.msra.mxu0 0.0
        %3712 = vmatprep.subr.mxu0 0.0
        %3713 = vmatpush1.msra.mxu0 0.0
        %3714 = vmatprep.mubr.f32.mxu0 %v3643
        %3715 = vmatmul.mubr.f32.gmra.mrb[0].mxu0 %v3524
        %v3716 = vpop.f32.mrb[0].mxu0
        %v3717 = vadd.f32 %v3626, %v3716
        %v3718 = vpop.f32.mrb[0].mxu0
        %v3719 = vadd.f32 %v3628, %v3718
        %3720 = vmatprep.mubr.f32.mxu0 %v3645
        %3721 = vmatmul.mubr.f32.gmra.mrb[0].mxu0 %v3526
        %v3722 = vpop.f32.mrb[0].mxu0
        %v3723 = vadd.f32 %v3632, %v3722
        %v3724 = vpop.f32.mrb[0].mxu0
        %v3725 = vadd.f32 %v3634, %v3724
        %3726 = vmatprep.mubr.f32.mxu0 %v3648
        %3727 = vmatmul.mubr.f32.gmra.mrb[0].mxu0 %v3528
        %v3728 = vpop.f32.mrb[0].mxu0
        %v3729 = vadd.f32 %v3638, %v3728
        %v3730 = vpop.f32.mrb[0].mxu0
        %v3731 = vadd.f32 %v3640, %v3730
        %3732 = vdwg.mxu0
        %v3733 = vld [vmem:[%s2556] sm:$0xfc]
        %v3734 = vld [vmem:[%s2556 + $0x8] sm:$0xfc]
        %v3735 = vld [vmem:[%s2556 + $0x20] sm:$0xff]
        %v3736 = vld [vmem:[%s2556 + $0x28] sm:$0xff]
        %v3741 = vrot.slane %v3733, 2
        %v3742 = vrot.slane %v3526, 2
        %v3743 = vsel %vm2102, %v3741, %v3742
        %v3744 = vrot.slane %v3734, 2
        %v3745 = vrot.slane %v3527, 2
        %v3746 = vsel %vm2102, %v3744, %v3745
        %v3747 = vrot.slane %v3735, 2
        %v3748 = vsel %vm2102, %v3742, %v3747
        %v3749 = vrot.slane %v3736, 2
        %v3750 = vsel %vm2102, %v3745, %v3749
        %v3754 = vsel %vm2216, %v3746, 0
        %v3756 = vsel %vm2216, %v3750, 0
        %v3758 = vsel %vm2216, %v3749, 0
        %3760 = vmatprep.subr.mxu0 %v3144
        %3761 = vmatpush1.msra.mxu0 %v3143
        %3762 = vmatprep.subr.mxu0 %v3146
        %3763 = vmatpush1.msra.mxu0 %v3145
        %3764 = vmatprep.subr.mxu0 %v3148
        %3765 = vmatpush1.msra.mxu0 %v3147
        %3766 = vmatprep.subr.mxu0 %v3150
        %3767 = vmatpush1.msra.mxu0 %v3149
        %3768 = vmatprep.subr.mxu0 %v3152
        %3769 = vmatpush1.msra.mxu0 %v3151
        %3770 = vmatprep.subr.mxu0 %v3154
        %3771 = vmatpush1.msra.mxu0 %v3153
        %3772 = vmatprep.subr.mxu0 %v3156
        %3773 = vmatpush1.msra.mxu0 %v3155
        %3774 = vmatprep.subr.mxu0 %v3158
        %3775 = vmatpush1.msra.mxu0 %v3157
        %3776 = vmatprep.subr.mxu0 %v3160
        %3777 = vmatpush1.msra.mxu0 %v3159
        %3778 = vmatprep.subr.mxu0 %v3162
        %3779 = vmatpush1.msra.mxu0 %v3161
        %3780 = vmatprep.subr.mxu0 %v3164
        %3781 = vmatpush1.msra.mxu0 %v3163
        %3782 = vmatprep.subr.mxu0 %v3166
        %3783 = vmatpush1.msra.mxu0 %v3165
        %3784 = vmatprep.subr.mxu0 %v3168
        %3785 = vmatpush1.msra.mxu0 %v3167
        %3786 = vmatprep.subr.mxu0 %v3170
        %3787 = vmatpush1.msra.mxu0 %v3169
        %3788 = vmatprep.subr.mxu0 %v3172
        %3789 = vmatpush1.msra.mxu0 %v3171
        %3790 = vmatprep.subr.mxu0 %v3174
        %3791 = vmatpush1.msra.mxu0 %v3173
        %3792 = vmatprep.subr.mxu0 %v3176
        %3793 = vmatpush1.msra.mxu0 %v3175
        %3794 = vmatprep.subr.mxu0 %v3178
        %3795 = vmatpush1.msra.mxu0 %v3177
        %3796 = vmatprep.subr.mxu0 %v3180
        %3797 = vmatpush1.msra.mxu0 %v3179
        %3798 = vmatprep.subr.mxu0 %v3182
        %3799 = vmatpush1.msra.mxu0 %v3181
        %3800 = vmatprep.subr.mxu0 %v3184
        %3801 = vmatpush1.msra.mxu0 %v3183
        %3802 = vmatprep.subr.mxu0 %v3186
        %3803 = vmatpush1.msra.mxu0 %v3185
        %3804 = vmatprep.subr.mxu0 %v3188
        %3805 = vmatpush1.msra.mxu0 %v3187
        %3806 = vmatprep.subr.mxu0 %v3190
        %3807 = vmatpush1.msra.mxu0 %v3189
        %3808 = vmatprep.subr.mxu0 0.0
        %3809 = vmatpush1.msra.mxu0 0.0
        %3810 = vmatprep.subr.mxu0 0.0
        %3811 = vmatpush1.msra.mxu0 0.0
        %3812 = vmatprep.subr.mxu0 0.0
        %3813 = vmatpush1.msra.mxu0 0.0
        %3814 = vmatprep.subr.mxu0 0.0
        %3815 = vmatpush1.msra.mxu0 0.0
        %3816 = vmatprep.subr.mxu0 0.0
        %3817 = vmatpush1.msra.mxu0 0.0
        %3818 = vmatprep.subr.mxu0 0.0
        %3819 = vmatpush1.msra.mxu0 0.0
        %3820 = vmatprep.subr.mxu0 0.0
        %3821 = vmatpush1.msra.mxu0 0.0
        %3822 = vmatprep.subr.mxu0 0.0
        %3823 = vmatpush1.msra.mxu0 0.0
        %3824 = vmatprep.mubr.f32.mxu0 %v3754
        %3825 = vmatmul.mubr.f32.gmra.mrb[0].mxu0 %v3743
        %v3826 = vpop.f32.mrb[0].mxu0
        %v3827 = vadd.f32 0.0, %v3826
        %v3828 = vpop.f32.mrb[0].mxu0
        %v3829 = vadd.f32 0.0, %v3828
        %3830 = vmatprep.mubr.f32.mxu0 %v3756
        %3831 = vmatmul.mubr.f32.gmra.mrb[0].mxu0 %v3748
        %v3832 = vpop.f32.mrb[0].mxu0
        %v3833 = vadd.f32 0.0, %v3832
        %v3834 = vpop.f32.mrb[0].mxu0
        %v3835 = vadd.f32 0.0, %v3834
        %3836 = vmatprep.mubr.f32.mxu0 %v3758
        %3837 = vmatmul.mubr.f32.gmra.mrb[0].mxu0 %v3747
        %v3838 = vpop.f32.mrb[0].mxu0
        %v3839 = vadd.f32 0.0, %v3838
        %v3840 = vpop.f32.mrb[0].mxu0
        %v3841 = vadd.f32 0.0, %v3840
        %3842 = vdwg.mxu0
        %v3843 = vadd.f32 %v3717, %v3827
        %v3844 = vadd.f32 %v3719, %v3829
        %v3845 = vadd.f32 %v3723, %v3833
        %v3846 = vadd.f32 %v3725, %v3835
        %v3847 = vadd.f32 %v3729, %v3839
        %v3848 = vadd.f32 %v3731, %v3841
        %s3849 = scalar_lea.vmem [#allocation4], 48
        %3850 = vst [vmem:[%s3849] sm:$0xff] %v3843
        %3851 = vst.msk [vmem:[%s3849 + $0x8] sm:$0xff] %vm3517, %v3844
        %3852 = vst [vmem:[%s3849 + $0x10] sm:$0xff] %v3845
        %3853 = vst.msk [vmem:[%s3849 + $0x18] sm:$0xff] %vm3517, %v3846
        %3854 = vst [vmem:[%s3849 + $0x20] sm:$0x3f] %v3847
        %3855 = vst.msk [vmem:[%s3849 + $0x28] sm:$0x3f] %vm3522, %v3848
        %v3856 = vld [vmem:[#allocation4] sm:$0xff]
        %v3857 = vld [vmem:[#allocation4 + $0x8] sm:$0xff]
        %v3858 = vld [vmem:[#allocation4 + $0x10] sm:$0xff]
        %v3859 = vld [vmem:[#allocation4 + $0x18] sm:$0xff]
        %v3860 = vld [vmem:[#allocation4 + $0x20] sm:$0x3f]
        %v3861 = vld [vmem:[#allocation4 + $0x28] sm:$0x3f]
        %v3862 = vadd.f32 %v3856, %v3858
        %v3863 = vsel %vm2102, %v3860, 0.0
        %v3864 = vadd.f32 %v3862, %v3863
        %v3865 = vrot.slane %v3864, 4
        %v3866 = vadd.f32 %v3864, %v3865
        %v3867 = vrot.slane %v3866, 2
        %v3868 = vadd.f32 %v3866, %v3867
        %v3869 = vrot.slane %v3868, 1
        %v3870 = vadd.f32 %v3868, %v3869
        %v3871 = vsel %vm3517, %v3857, 0.0
        %v3872 = vsel %vm3517, %v3859, 0.0
        %v3873 = vadd.f32 %v3871, %v3872
        %v3874 = vsel %vm3522, %v3861, 0.0
        %v3875 = vadd.f32 %v3873, %v3874
        %v3876 = vrot.slane %v3875, 4
        %v3877 = vadd.f32 %v3875, %v3876
        %v3878 = vrot.slane %v3877, 2
        %v3879 = vadd.f32 %v3877, %v3878
        %v3880 = vrot.slane %v3879, 1
        %v3881 = vadd.f32 %v3879, %v3880
        %v3882 = vadd.f32 %v3870, 0.0
        %v3883 = vadd.f32 %v3881, 0.0
        %v3884 = vld [vmem:[%s3849] sm:$0xff]
        %v3885 = vld [vmem:[%s3849 + $0x8] sm:$0xff]
        %v3886 = vld [vmem:[%s3849 + $0x10] sm:$0xff]
        %v3887 = vld [vmem:[%s3849 + $0x18] sm:$0xff]
        %v3888 = vld [vmem:[%s3849 + $0x20] sm:$0x3f]
        %v3889 = vld [vmem:[%s3849 + $0x28] sm:$0x3f]
        %v3890 = vadd.f32 %v3884, %v3886
        %v3891 = vsel %vm2102, %v3888, 0.0
        %v3892 = vadd.f32 %v3890, %v3891
        %v3893 = vrot.slane %v3892, 4
        %v3894 = vadd.f32 %v3892, %v3893
        %v3895 = vrot.slane %v3894, 2
        %v3896 = vadd.f32 %v3894, %v3895
        %v3897 = vrot.slane %v3896, 1
        %v3898 = vadd.f32 %v3896, %v3897
        %v3899 = vsel %vm3517, %v3885, 0.0
        %v3900 = vsel %vm3517, %v3887, 0.0
        %v3901 = vadd.f32 %v3899, %v3900
        %v3902 = vsel %vm3522, %v3889, 0.0
        %v3903 = vadd.f32 %v3901, %v3902
        %v3904 = vrot.slane %v3903, 4
        %v3905 = vadd.f32 %v3903, %v3904
        %v3906 = vrot.slane %v3905, 2
        %v3907 = vadd.f32 %v3905, %v3906
        %v3908 = vrot.slane %v3907, 1
        %v3909 = vadd.f32 %v3907, %v3908
        %v3910 = vadd.f32 %v3882, %v3898
        %v3911 = vadd.f32 %v3883, %v3909
        %v3913 = vsel %vm3517, %v3911, 0
        %3915 = vmatprep.subr.mxu0 0.0
        %3916 = vmatpush1.msra.mxu0 %v1160
        %3917 = vmatprep.subr.mxu0 0.0
        %3918 = vmatpush1.msra.mxu0 %v1161
        %3919 = vmatprep.subr.mxu0 0.0
        %3920 = vmatpush1.msra.mxu0 %v1162
        %3921 = vmatprep.subr.mxu0 0.0
        %3922 = vmatpush1.msra.mxu0 %v1163
        %3923 = vmatprep.subr.mxu0 0.0
        %3924 = vmatpush1.msra.mxu0 %v1164
        %3925 = vmatprep.subr.mxu0 0.0
        %3926 = vmatpush1.msra.mxu0 %v1165
        %3927 = vmatprep.subr.mxu0 0.0
        %3928 = vmatpush1.msra.mxu0 %v1166
        %3929 = vmatprep.subr.mxu0 0.0
        %3930 = vmatpush1.msra.mxu0 %v1167
        %3931 = vmatprep.subr.mxu0 0.0
        %3932 = vmatpush1.msra.mxu0 %v1168
        %3933 = vmatprep.subr.mxu0 0.0
        %3934 = vmatpush1.msra.mxu0 %v1169
        %3935 = vmatprep.subr.mxu0 0.0
        %3936 = vmatpush1.msra.mxu0 %v1170
        %3937 = vmatprep.subr.mxu0 0.0
        %3938 = vmatpush1.msra.mxu0 %v1171
        %3939 = vmatprep.subr.mxu0 0.0
        %3940 = vmatpush1.msra.mxu0 %v1172
        %3941 = vmatprep.subr.mxu0 0.0
        %3942 = vmatpush1.msra.mxu0 %v1173
        %3943 = vmatprep.subr.mxu0 0.0
        %3944 = vmatpush1.msra.mxu0 %v1174
        %3945 = vmatprep.subr.mxu0 0.0
        %3946 = vmatpush1.msra.mxu0 %v1175
        %3947 = vmatprep.subr.mxu0 0.0
        %3948 = vmatpush1.msra.mxu0 %v1176
        %3949 = vmatprep.subr.mxu0 0.0
        %3950 = vmatpush1.msra.mxu0 %v1177
        %3951 = vmatprep.subr.mxu0 0.0
        %3952 = vmatpush1.msra.mxu0 %v1178
        %3953 = vmatprep.subr.mxu0 0.0
        %3954 = vmatpush1.msra.mxu0 %v1179
        %3955 = vmatprep.subr.mxu0 0.0
        %3956 = vmatpush1.msra.mxu0 %v1180
        %3957 = vmatprep.subr.mxu0 0.0
        %3958 = vmatpush1.msra.mxu0 %v1181
        %3959 = vmatprep.subr.mxu0 0.0
        %3960 = vmatpush1.msra.mxu0 0.0
        %3961 = vmatprep.subr.mxu0 0.0
        %3962 = vmatpush1.msra.mxu0 0.0
        %3963 = vmatprep.subr.mxu0 0.0
        %3964 = vmatpush1.msra.mxu0 0.0
        %3965 = vmatprep.subr.mxu0 0.0
        %3966 = vmatpush1.msra.mxu0 0.0
        %3967 = vmatprep.subr.mxu0 0.0
        %3968 = vmatpush1.msra.mxu0 0.0
        %3969 = vmatprep.subr.mxu0 0.0
        %3970 = vmatpush1.msra.mxu0 0.0
        %3971 = vmatprep.subr.mxu0 0.0
        %3972 = vmatpush1.msra.mxu0 0.0
        %3973 = vmatprep.subr.mxu0 0.0
        %3974 = vmatpush1.msra.mxu0 0.0
        %3975 = vmatprep.subr.mxu0 0.0
        %3976 = vmatpush1.msra.mxu0 0.0
        %3977 = vmatprep.subr.mxu0 0.0
        %3978 = vmatpush1.msra.mxu0 0.0
        %3979 = vmatprep.mubr.f32.mxu0 %v3913
        %3980 = vmatmul.mubr.f32.gmra.mrb[0].mxu0 %v3910
        %v3981 = vpop.f32.mrb[0].mxu0
        %v3982 = vadd.f32 0.0, %v3981
        %v3983 = vpop.f32.mrb[0].mxu0
        %3984 = vdwg.mxu0
        %v3985 = vmul.f32 %v3982, 0.0010330578
        %v3987 = vsel %vm1334, %v3985, 0
        %3989 = vmatprep.subr.mxu0 %v1192
        %3990 = vmatpush1.msra.mxu0 %v1191
        %3991 = vmatprep.subr.mxu0 0.0
        %3992 = vmatpush1.msra.mxu0 0.0
        %3993 = vmatprep.subr.mxu0 0.0
        %3994 = vmatpush1.msra.mxu0 0.0
        %3995 = vmatprep.subr.mxu0 0.0
        %3996 = vmatpush1.msra.mxu0 0.0
        %3997 = vmatprep.subr.mxu0 0.0
        %3998 = vmatpush1.msra.mxu0 0.0
        %3999 = vmatprep.subr.mxu0 0.0
        %4000 = vmatpush1.msra.mxu0 0.0
        %4001 = vmatprep.subr.mxu0 0.0
        %4002 = vmatpush1.msra.mxu0 0.0
        %4003 = vmatprep.subr.mxu0 0.0
        %4004 = vmatpush1.msra.mxu0 0.0
        %4005 = vmatprep.subr.mxu0 0.0
        %4006 = vmatpush1.msra.mxu0 0.0
        %4007 = vmatprep.subr.mxu0 0.0
        %4008 = vmatpush1.msra.mxu0 0.0
        %4009 = vmatprep.subr.mxu0 0.0
        %4010 = vmatpush1.msra.mxu0 0.0
        %4011 = vmatprep.subr.mxu0 0.0
        %4012 = vmatpush1.msra.mxu0 0.0
        %4013 = vmatprep.subr.mxu0 0.0
        %4014 = vmatpush1.msra.mxu0 0.0
        %4015 = vmatprep.subr.mxu0 0.0
        %4016 = vmatpush1.msra.mxu0 0.0
        %4017 = vmatprep.subr.mxu0 0.0
        %4018 = vmatpush1.msra.mxu0 0.0
        %4019 = vmatprep.subr.mxu0 0.0
        %4020 = vmatpush1.msra.mxu0 0.0
        %4021 = vmatprep.subr.mxu0 0.0
        %4022 = vmatpush1.msra.mxu0 0.0
        %4023 = vmatprep.subr.mxu0 0.0
        %4024 = vmatpush1.msra.mxu0 0.0
        %4025 = vmatprep.subr.mxu0 0.0
        %4026 = vmatpush1.msra.mxu0 0.0
        %4027 = vmatprep.subr.mxu0 0.0
        %4028 = vmatpush1.msra.mxu0 0.0
        %4029 = vmatprep.subr.mxu0 0.0
        %4030 = vmatpush1.msra.mxu0 0.0
        %4031 = vmatprep.subr.mxu0 0.0
        %4032 = vmatpush1.msra.mxu0 0.0
        %4033 = vmatprep.subr.mxu0 0.0
        %4034 = vmatpush1.msra.mxu0 0.0
        %4035 = vmatprep.subr.mxu0 0.0
        %4036 = vmatpush1.msra.mxu0 0.0
        %4037 = vmatprep.subr.mxu0 0.0
        %4038 = vmatpush1.msra.mxu0 0.0
        %4039 = vmatprep.subr.mxu0 0.0
        %4040 = vmatpush1.msra.mxu0 0.0
        %4041 = vmatprep.subr.mxu0 0.0
        %4042 = vmatpush1.msra.mxu0 0.0
        %4043 = vmatprep.subr.mxu0 0.0
        %4044 = vmatpush1.msra.mxu0 0.0
        %4045 = vmatprep.subr.mxu0 0.0
        %4046 = vmatpush1.msra.mxu0 0.0
        %4047 = vmatprep.subr.mxu0 0.0
        %4048 = vmatpush1.msra.mxu0 0.0
        %4049 = vmatprep.subr.mxu0 0.0
        %4050 = vmatpush1.msra.mxu0 0.0
        %4051 = vmatprep.subr.mxu0 0.0
        %4052 = vmatpush1.msra.mxu0 0.0
        %4053 = vmatprep.mubr.f32.mxu0 0.0
        %4054 = vmatmul.mubr.f32.gmra.mrb[0].mxu0 %v3987
        %v4055 = vpop.f32.mrb[0].mxu0
        %v4056 = vadd.f32 0.0, %v4055
        %v4057 = vpop.f32.mrb[0].mxu0
        %v4058 = vadd.f32 0.0, %v4057
        %4059 = vdwg.mxu0
        %v4060 = vlaneseq
        %v4061 = vshrl.u32 %v4060, 7
        %v4062 = vsub.s32 0, %v4061
        %v4063 = vrot.slane %v4056, %v4062
        %v4064 = vlaneseq
        %v4065 = vshrl.u32 %v4064, 7
        %v4066 = vsub.s32 0, %v4065
        %v4067 = vrot.slane %v4058, %v4066
        %v4068 = vsub.f32 %v3856, %v4063
        %v4069 = vsub.f32 %v3857, %v4067
        %v4070 = vsub.f32 %v3858, %v4063
        %v4071 = vsub.f32 %v3859, %v4067
        %v4072 = vsub.f32 %v3860, %v4063
        %v4073 = vsub.f32 %v3861, %v4067
        %v4074 = vmul.f32 %v4068, %v4068
        %v4075 = vmul.f32 %v4069, %v4069
        %v4076 = vmul.f32 %v4070, %v4070
        %v4077 = vmul.f32 %v4071, %v4071
        %v4078 = vmul.f32 %v4072, %v4072
        %v4079 = vmul.f32 %v4073, %v4073
        %v4080 = vadd.f32 %v4074, %v4076
        %v4081 = vsel %vm2102, %v4078, 0.0
        %v4082 = vadd.f32 %v4080, %v4081
        %v4083 = vrot.slane %v4082, 4
        %v4084 = vadd.f32 %v4082, %v4083
        %v4085 = vrot.slane %v4084, 2
        %v4086 = vadd.f32 %v4084, %v4085
        %v4087 = vrot.slane %v4086, 1
        %v4088 = vadd.f32 %v4086, %v4087
        %v4089 = vsel %vm3517, %v4075, 0.0
        %v4090 = vsel %vm3517, %v4077, 0.0
        %v4091 = vadd.f32 %v4089, %v4090
        %v4092 = vsel %vm3522, %v4079, 0.0
        %v4093 = vadd.f32 %v4091, %v4092
        %v4094 = vrot.slane %v4093, 4
        %v4095 = vadd.f32 %v4093, %v4094
        %v4096 = vrot.slane %v4095, 2
        %v4097 = vadd.f32 %v4095, %v4096
        %v4098 = vrot.slane %v4097, 1
        %v4099 = vadd.f32 %v4097, %v4098
        %v4100 = vadd.f32 %v4088, 0.0
        %v4101 = vadd.f32 %v4099, 0.0
        %v4102 = vsub.f32 %v3884, %v4063
        %v4103 = vsub.f32 %v3885, %v4067
        %v4104 = vsub.f32 %v3886, %v4063
        %v4105 = vsub.f32 %v3887, %v4067
        %v4106 = vsub.f32 %v3888, %v4063
        %v4107 = vsub.f32 %v3889, %v4067
        %v4108 = vmul.f32 %v4102, %v4102
        %v4109 = vmul.f32 %v4103, %v4103
        %v4110 = vmul.f32 %v4104, %v4104
        %v4111 = vmul.f32 %v4105, %v4105
        %v4112 = vmul.f32 %v4106, %v4106
        %v4113 = vmul.f32 %v4107, %v4107
        %v4114 = vadd.f32 %v4108, %v4110
        %v4115 = vsel %vm2102, %v4112, 0.0
        %v4116 = vadd.f32 %v4114, %v4115
        %v4117 = vrot.slane %v4116, 4
        %v4118 = vadd.f32 %v4116, %v4117
        %v4119 = vrot.slane %v4118, 2
        %v4120 = vadd.f32 %v4118, %v4119
        %v4121 = vrot.slane %v4120, 1
        %v4122 = vadd.f32 %v4120, %v4121
        %v4123 = vsel %vm3517, %v4109, 0.0
        %v4124 = vsel %vm3517, %v4111, 0.0
        %v4125 = vadd.f32 %v4123, %v4124
        %v4126 = vsel %vm3522, %v4113, 0.0
        %v4127 = vadd.f32 %v4125, %v4126
        %v4128 = vrot.slane %v4127, 4
        %v4129 = vadd.f32 %v4127, %v4128
        %v4130 = vrot.slane %v4129, 2
        %v4131 = vadd.f32 %v4129, %v4130
        %v4132 = vrot.slane %v4131, 1
        %v4133 = vadd.f32 %v4131, %v4132
        %v4134 = vadd.f32 %v4100, %v4122
        %v4135 = vadd.f32 %v4101, %v4133
        %v4137 = vsel %vm3517, %v4135, 0
        %4139 = vmatprep.subr.mxu0 0.0
        %4140 = vmatpush1.msra.mxu0 %v1160
        %4141 = vmatprep.subr.mxu0 0.0
        %4142 = vmatpush1.msra.mxu0 %v1161
        %4143 = vmatprep.subr.mxu0 0.0
        %4144 = vmatpush1.msra.mxu0 %v1162
        %4145 = vmatprep.subr.mxu0 0.0
        %4146 = vmatpush1.msra.mxu0 %v1163
        %4147 = vmatprep.subr.mxu0 0.0
        %4148 = vmatpush1.msra.mxu0 %v1164
        %4149 = vmatprep.subr.mxu0 0.0
        %4150 = vmatpush1.msra.mxu0 %v1165
        %4151 = vmatprep.subr.mxu0 0.0
        %4152 = vmatpush1.msra.mxu0 %v1166
        %4153 = vmatprep.subr.mxu0 0.0
        %4154 = vmatpush1.msra.mxu0 %v1167
        %4155 = vmatprep.subr.mxu0 0.0
        %4156 = vmatpush1.msra.mxu0 %v1168
        %4157 = vmatprep.subr.mxu0 0.0
        %4158 = vmatpush1.msra.mxu0 %v1169
        %4159 = vmatprep.subr.mxu0 0.0
        %4160 = vmatpush1.msra.mxu0 %v1170
        %4161 = vmatprep.subr.mxu0 0.0
        %4162 = vmatpush1.msra.mxu0 %v1171
        %4163 = vmatprep.subr.mxu0 0.0
        %4164 = vmatpush1.msra.mxu0 %v1172
        %4165 = vmatprep.subr.mxu0 0.0
        %4166 = vmatpush1.msra.mxu0 %v1173
        %4167 = vmatprep.subr.mxu0 0.0
        %4168 = vmatpush1.msra.mxu0 %v1174
        %4169 = vmatprep.subr.mxu0 0.0
        %4170 = vmatpush1.msra.mxu0 %v1175
        %4171 = vmatprep.subr.mxu0 0.0
        %4172 = vmatpush1.msra.mxu0 %v1176
        %4173 = vmatprep.subr.mxu0 0.0
        %4174 = vmatpush1.msra.mxu0 %v1177
        %4175 = vmatprep.subr.mxu0 0.0
        %4176 = vmatpush1.msra.mxu0 %v1178
        %4177 = vmatprep.subr.mxu0 0.0
        %4178 = vmatpush1.msra.mxu0 %v1179
        %4179 = vmatprep.subr.mxu0 0.0
        %4180 = vmatpush1.msra.mxu0 %v1180
        %4181 = vmatprep.subr.mxu0 0.0
        %4182 = vmatpush1.msra.mxu0 %v1181
        %4183 = vmatprep.subr.mxu0 0.0
        %4184 = vmatpush1.msra.mxu0 0.0
        %4185 = vmatprep.subr.mxu0 0.0
        %4186 = vmatpush1.msra.mxu0 0.0
        %4187 = vmatprep.subr.mxu0 0.0
        %4188 = vmatpush1.msra.mxu0 0.0
        %4189 = vmatprep.subr.mxu0 0.0
        %4190 = vmatpush1.msra.mxu0 0.0
        %4191 = vmatprep.subr.mxu0 0.0
        %4192 = vmatpush1.msra.mxu0 0.0
        %4193 = vmatprep.subr.mxu0 0.0
        %4194 = vmatpush1.msra.mxu0 0.0
        %4195 = vmatprep.subr.mxu0 0.0
        %4196 = vmatpush1.msra.mxu0 0.0
        %4197 = vmatprep.subr.mxu0 0.0
        %4198 = vmatpush1.msra.mxu0 0.0
        %4199 = vmatprep.subr.mxu0 0.0
        %4200 = vmatpush1.msra.mxu0 0.0
        %4201 = vmatprep.subr.mxu0 0.0
        %4202 = vmatpush1.msra.mxu0 0.0
        %4203 = vmatprep.mubr.f32.mxu0 %v4137
        %4204 = vmatmul.mubr.f32.gmra.mrb[0].mxu0 %v4134
        %v4205 = vpop.f32.mrb[0].mxu0
        %v4206 = vadd.f32 0.0, %v4205
        %v4207 = vpop.f32.mrb[0].mxu0
        %4208 = vdwg.mxu0
        %v4209 = vmul.f32 %v4206, 0.0010330578
        %v4210 = vadd.f32 %v4209, 1e-05
        %v4211 = vrsqrt.pop %v4210
        %v4213 = vsel %vm1334, %v4211, 0
        %4215 = vmatprep.subr.mxu0 %v1192
        %4216 = vmatpush1.msra.mxu0 %v1191
        %4217 = vmatprep.subr.mxu0 0.0
        %4218 = vmatpush1.msra.mxu0 0.0
        %4219 = vmatprep.subr.mxu0 0.0
        %4220 = vmatpush1.msra.mxu0 0.0
        %4221 = vmatprep.subr.mxu0 0.0
        %4222 = vmatpush1.msra.mxu0 0.0
        %4223 = vmatprep.subr.mxu0 0.0
        %4224 = vmatpush1.msra.mxu0 0.0
        %4225 = vmatprep.subr.mxu0 0.0
        %4226 = vmatpush1.msra.mxu0 0.0
        %4227 = vmatprep.subr.mxu0 0.0
        %4228 = vmatpush1.msra.mxu0 0.0
        %4229 = vmatprep.subr.mxu0 0.0
        %4230 = vmatpush1.msra.mxu0 0.0
        %4231 = vmatprep.subr.mxu0 0.0
        %4232 = vmatpush1.msra.mxu0 0.0
        %4233 = vmatprep.subr.mxu0 0.0
        %4234 = vmatpush1.msra.mxu0 0.0
        %4235 = vmatprep.subr.mxu0 0.0
        %4236 = vmatpush1.msra.mxu0 0.0
        %4237 = vmatprep.subr.mxu0 0.0
        %4238 = vmatpush1.msra.mxu0 0.0
        %4239 = vmatprep.subr.mxu0 0.0
        %4240 = vmatpush1.msra.mxu0 0.0
        %4241 = vmatprep.subr.mxu0 0.0
        %4242 = vmatpush1.msra.mxu0 0.0
        %4243 = vmatprep.subr.mxu0 0.0
        %4244 = vmatpush1.msra.mxu0 0.0
        %4245 = vmatprep.subr.mxu0 0.0
        %4246 = vmatpush1.msra.mxu0 0.0
        %4247 = vmatprep.subr.mxu0 0.0
        %4248 = vmatpush1.msra.mxu0 0.0
        %4249 = vmatprep.subr.mxu0 0.0
        %4250 = vmatpush1.msra.mxu0 0.0
        %4251 = vmatprep.subr.mxu0 0.0
        %4252 = vmatpush1.msra.mxu0 0.0
        %4253 = vmatprep.subr.mxu0 0.0
        %4254 = vmatpush1.msra.mxu0 0.0
        %4255 = vmatprep.subr.mxu0 0.0
        %4256 = vmatpush1.msra.mxu0 0.0
        %4257 = vmatprep.subr.mxu0 0.0
        %4258 = vmatpush1.msra.mxu0 0.0
        %4259 = vmatprep.subr.mxu0 0.0
        %4260 = vmatpush1.msra.mxu0 0.0
        %4261 = vmatprep.subr.mxu0 0.0
        %4262 = vmatpush1.msra.mxu0 0.0
        %4263 = vmatprep.subr.mxu0 0.0
        %4264 = vmatpush1.msra.mxu0 0.0
        %4265 = vmatprep.subr.mxu0 0.0
        %4266 = vmatpush1.msra.mxu0 0.0
        %4267 = vmatprep.subr.mxu0 0.0
        %4268 = vmatpush1.msra.mxu0 0.0
        %4269 = vmatprep.subr.mxu0 0.0
        %4270 = vmatpush1.msra.mxu0 0.0
        %4271 = vmatprep.subr.mxu0 0.0
        %4272 = vmatpush1.msra.mxu0 0.0
        %4273 = vmatprep.subr.mxu0 0.0
        %4274 = vmatpush1.msra.mxu0 0.0
        %4275 = vmatprep.subr.mxu0 0.0
        %4276 = vmatpush1.msra.mxu0 0.0
        %4277 = vmatprep.subr.mxu0 0.0
        %4278 = vmatpush1.msra.mxu0 0.0
        %4279 = vmatprep.mubr.f32.mxu0 0.0
        %4280 = vmatmul.mubr.f32.gmra.mrb[0].mxu0 %v4213
        %v4281 = vpop.f32.mrb[0].mxu0
        %v4282 = vadd.f32 0.0, %v4281
        %v4283 = vpop.f32.mrb[0].mxu0
        %v4284 = vadd.f32 0.0, %v4283
        %4285 = vdwg.mxu0
        %v4286 = vlaneseq
        %v4287 = vshrl.u32 %v4286, 7
        %v4288 = vsub.s32 0, %v4287
        %v4289 = vrot.slane %v4282, %v4288
        %v4290 = vlaneseq
        %v4291 = vshrl.u32 %v4290, 7
        %v4292 = vsub.s32 0, %v4291
        %v4293 = vrot.slane %v4284, %v4292
        %v4294 = vmul.f32 %v4068, %v4289
        %v4295 = vmul.f32 %v4069, %v4293
        %v4296 = vmul.f32 %v4070, %v4289
        %v4297 = vmul.f32 %v4071, %v4293
        %v4298 = vmul.f32 %v4072, %v4289
        %v4299 = vmul.f32 %v4073, %v4293
        %v4300 = vmax.f32 %v4294, 0.0
        %v4301 = vmax.f32 %v4295, 0.0
        %v4302 = vmax.f32 %v4296, 0.0
        %v4303 = vmax.f32 %v4297, 0.0
        %v4304 = vmax.f32 %v4298, 0.0
        %v4305 = vmax.f32 %v4299, 0.0
        %4306 = vst [vmem:[#allocation4] sm:$0xff] %v4300
        %4307 = vst.msk [vmem:[#allocation4 + $0x8] sm:$0xff] %vm3517, %v4301
        %4308 = vst [vmem:[#allocation4 + $0x10] sm:$0xff] %v4302
        %4309 = vst.msk [vmem:[#allocation4 + $0x18] sm:$0xff] %vm3517, %v4303
        %4310 = vst [vmem:[#allocation4 + $0x20] sm:$0x3f] %v4304
        %4311 = vst.msk [vmem:[#allocation4 + $0x28] sm:$0x3f] %vm3522, %v4305
        %v4312 = vld [vmem:[%s3849] sm:$0xff]
        %v4313 = vld [vmem:[%s3849 + $0x8] sm:$0xff]
        %v4314 = vld [vmem:[%s3849 + $0x10] sm:$0xff]
        %v4315 = vld [vmem:[%s3849 + $0x18] sm:$0xff]
        %v4316 = vld [vmem:[%s3849 + $0x20] sm:$0x3f]
        %v4317 = vld [vmem:[%s3849 + $0x28] sm:$0x3f]
        %v4318 = vsub.f32 %v4312, %v4063
        %v4319 = vsub.f32 %v4313, %v4067
        %v4320 = vsub.f32 %v4314, %v4063
        %v4321 = vsub.f32 %v4315, %v4067
        %v4322 = vsub.f32 %v4316, %v4063
        %v4323 = vsub.f32 %v4317, %v4067
        %v4324 = vmul.f32 %v4318, %v4289
        %v4325 = vmul.f32 %v4319, %v4293
        %v4326 = vmul.f32 %v4320, %v4289
        %v4327 = vmul.f32 %v4321, %v4293
        %v4328 = vmul.f32 %v4322, %v4289
        %v4329 = vmul.f32 %v4323, %v4293
        %v4330 = vmax.f32 %v4324, 0.0
        %v4331 = vmax.f32 %v4325, 0.0
        %v4332 = vmax.f32 %v4326, 0.0
        %v4333 = vmax.f32 %v4327, 0.0
        %v4334 = vmax.f32 %v4328, 0.0
        %v4335 = vmax.f32 %v4329, 0.0
        %4336 = vst [vmem:[%s3849] sm:$0xff] %v4330
        %4337 = vst.msk [vmem:[%s3849 + $0x8] sm:$0xff] %vm3517, %v4331
        %4338 = vst [vmem:[%s3849 + $0x10] sm:$0xff] %v4332
        %4339 = vst.msk [vmem:[%s3849 + $0x18] sm:$0xff] %vm3517, %v4333
        %4340 = vst [vmem:[%s3849 + $0x20] sm:$0x3f] %v4334
        %4341 = vst.msk [vmem:[%s3849 + $0x28] sm:$0x3f] %vm3522, %v4335
        %v4342 = vmul.u32 %v1080, 2
        %v4343 = vmul.u32 %v1081, 2
        %vm4344 = vcmp.eq.s32.totalorder %v1107, %v4342
        %vm4345 = vcmp.eq.s32.totalorder %v1107, %v4343
        %v4346 = vsel %vm4344, 1.0, 0.0
        %v4347 = vsel %vm4345, 1.0, 0.0
        %v4348 = vadd.s32 %v4342, 1
        %v4349 = vadd.s32 %v4343, 1
        %vm4350 = vcmp.eq.s32.totalorder %v1107, %v4348
        %vm4351 = vcmp.eq.s32.totalorder %v1107, %v4349
        %v4352 = vsel %vm4350, 1.0, 0.0
        %v4353 = vsel %vm4351, 1.0, 0.0
        %v4354 = vshra.s32 %v1080, 3
        %v4355 = vshra.s32 %v1081, 3
        %v4356 = vshra.s32 %v1082, 3
        %v4357 = vshra.s32 %v1083, 3
        %v4358 = vshra.s32 %v1084, 3
        %v4359 = vshra.s32 %v1085, 3
        %v4360 = vshra.s32 %v1086, 3
        %v4361 = vshra.s32 %v1087, 3
        %v4362 = vshra.s32 %v1088, 3
        %v4363 = vshra.s32 %v1089, 3
        %v4364 = vshra.s32 %v1090, 3
        %v4365 = vshra.s32 %v1091, 3
        %v4366 = vshra.s32 %v1092, 3
        %v4367 = vshra.s32 %v1093, 3
        %v4368 = vshra.s32 %v1094, 3
        %v4369 = vshra.s32 %v1095, 3
        %v4370 = vshra.s32 %v1096, 3
        %v4371 = vshra.s32 %v1097, 3
        %v4372 = vshra.s32 %v1098, 3
        %v4373 = vshra.s32 %v1099, 3
        %v4374 = vshra.s32 %v1100, 3
        %v4375 = vshra.s32 %v1101, 3
        %v4376 = vshra.s32 %v1107, 3
        %v4377 = vmul.u32 %v4376, 2
        %vm4378 = vcmp.eq.s32.totalorder %v4354, %v4377
        %vm4379 = vcmp.eq.s32.totalorder %v4355, %v4377
        %vm4380 = vcmp.eq.s32.totalorder %v4356, %v4377
        %vm4381 = vcmp.eq.s32.totalorder %v4357, %v4377
        %vm4382 = vcmp.eq.s32.totalorder %v4358, %v4377
        %vm4383 = vcmp.eq.s32.totalorder %v4359, %v4377
        %vm4384 = vcmp.eq.s32.totalorder %v4360, %v4377
        %vm4385 = vcmp.eq.s32.totalorder %v4361, %v4377
        %vm4386 = vcmp.eq.s32.totalorder %v4362, %v4377
        %vm4387 = vcmp.eq.s32.totalorder %v4363, %v4377
        %vm4388 = vcmp.eq.s32.totalorder %v4364, %v4377
        %vm4389 = vcmp.eq.s32.totalorder %v4365, %v4377
        %vm4390 = vcmp.eq.s32.totalorder %v4366, %v4377
        %vm4391 = vcmp.eq.s32.totalorder %v4367, %v4377
        %vm4392 = vcmp.eq.s32.totalorder %v4368, %v4377
        %vm4393 = vcmp.eq.s32.totalorder %v4369, %v4377
        %vm4394 = vcmp.eq.s32.totalorder %v4370, %v4377
        %vm4395 = vcmp.eq.s32.totalorder %v4371, %v4377
        %vm4396 = vcmp.eq.s32.totalorder %v4372, %v4377
        %vm4397 = vcmp.eq.s32.totalorder %v4373, %v4377
        %vm4398 = vcmp.eq.s32.totalorder %v4374, %v4377
        %vm4399 = vcmp.eq.s32.totalorder %v4375, %v4377
        %vm4400 = vcmp.eq.s32.totalorder %v1108, %v1187
        %vm4401 = vcmp.eq.s32.totalorder %v1109, %v1187
        %vm4402 = vcmp.eq.s32.totalorder %v1110, %v1187
        %vm4403 = vcmp.eq.s32.totalorder %v1111, %v1187
        %vm4404 = vcmp.eq.s32.totalorder %v1112, %v1187
        %vm4405 = vcmp.eq.s32.totalorder %v1113, %v1187
        %vm4406 = vcmp.eq.s32.totalorder %v1114, %v1187
        %vm4407 = vcmp.eq.s32.totalorder %v1115, %v1187
        %vm4408 = vcmp.eq.s32.totalorder %v1116, %v1187
        %vm4409 = vcmp.eq.s32.totalorder %v1117, %v1187
        %vm4410 = vcmp.eq.s32.totalorder %v1118, %v1187
        %vm4411 = vcmp.eq.s32.totalorder %v1119, %v1187
        %vm4412 = vcmp.eq.s32.totalorder %v1120, %v1187
        %vm4413 = vcmp.eq.s32.totalorder %v1121, %v1187
        %vm4414 = vcmp.eq.s32.totalorder %v1122, %v1187
        %vm4415 = vcmp.eq.s32.totalorder %v1123, %v1187
        %vm4416 = vcmp.eq.s32.totalorder %v1124, %v1187
        %vm4417 = vcmp.eq.s32.totalorder %v1125, %v1187
        %vm4418 = vcmp.eq.s32.totalorder %v1126, %v1187
        %vm4419 = vcmp.eq.s32.totalorder %v1127, %v1187
        %vm4420 = vcmp.eq.s32.totalorder %v1128, %v1187
        %vm4421 = vcmp.eq.s32.totalorder %v1129, %v1187
        %vm4422 = vmand %vm4378, %vm4400
        %vm4423 = vmand %vm4379, %vm4401
        %vm4424 = vmand %vm4380, %vm4402
        %vm4425 = vmand %vm4381, %vm4403
        %vm4426 = vmand %vm4382, %vm4404
        %vm4427 = vmand %vm4383, %vm4405
        %vm4428 = vmand %vm4384, %vm4406
        %vm4429 = vmand %vm4385, %vm4407
        %vm4430 = vmand %vm4386, %vm4408
        %vm4431 = vmand %vm4387, %vm4409
        %vm4432 = vmand %vm4388, %vm4410
        %vm4433 = vmand %vm4389, %vm4411
        %vm4434 = vmand %vm4390, %vm4412
        %vm4435 = vmand %vm4391, %vm4413
        %vm4436 = vmand %vm4392, %vm4414
        %vm4437 = vmand %vm4393, %vm4415
        %vm4438 = vmand %vm4394, %vm4416
        %vm4439 = vmand %vm4395, %vm4417
        %vm4440 = vmand %vm4396, %vm4418
        %vm4441 = vmand %vm4397, %vm4419
        %vm4442 = vmand %vm4398, %vm4420
        %vm4443 = vmand %vm4399, %vm4421
        %v4444 = vsel %vm4422, 1.0, 0.0
        %v4445 = vsel %vm4423, 1.0, 0.0
        %v4446 = vsel %vm4424, 1.0, 0.0
        %v4447 = vsel %vm4425, 1.0, 0.0
        %v4448 = vsel %vm4426, 1.0, 0.0
        %v4449 = vsel %vm4427, 1.0, 0.0
        %v4450 = vsel %vm4428, 1.0, 0.0
        %v4451 = vsel %vm4429, 1.0, 0.0
        %v4452 = vsel %vm4430, 1.0, 0.0
        %v4453 = vsel %vm4431, 1.0, 0.0
        %v4454 = vsel %vm4432, 1.0, 0.0
        %v4455 = vsel %vm4433, 1.0, 0.0
        %v4456 = vsel %vm4434, 1.0, 0.0
        %v4457 = vsel %vm4435, 1.0, 0.0
        %v4458 = vsel %vm4436, 1.0, 0.0
        %v4459 = vsel %vm4437, 1.0, 0.0
        %v4460 = vsel %vm4438, 1.0, 0.0
        %v4461 = vsel %vm4439, 1.0, 0.0
        %v4462 = vsel %vm4440, 1.0, 0.0
        %v4463 = vsel %vm4441, 1.0, 0.0
        %v4464 = vsel %vm4442, 1.0, 0.0
        %v4465 = vsel %vm4443, 1.0, 0.0
        %v4466 = vadd.s32 %v4377, 1
        %vm4467 = vcmp.eq.s32.totalorder %v4354, %v4466
        %vm4468 = vcmp.eq.s32.totalorder %v4355, %v4466
        %vm4469 = vcmp.eq.s32.totalorder %v4356, %v4466
        %vm4470 = vcmp.eq.s32.totalorder %v4357, %v4466
        %vm4471 = vcmp.eq.s32.totalorder %v4358, %v4466
        %vm4472 = vcmp.eq.s32.totalorder %v4359, %v4466
        %vm4473 = vcmp.eq.s32.totalorder %v4360, %v4466
        %vm4474 = vcmp.eq.s32.totalorder %v4361, %v4466
        %vm4475 = vcmp.eq.s32.totalorder %v4362, %v4466
        %vm4476 = vcmp.eq.s32.totalorder %v4363, %v4466
        %vm4477 = vcmp.eq.s32.totalorder %v4364, %v4466
        %vm4478 = vcmp.eq.s32.totalorder %v4365, %v4466
        %vm4479 = vcmp.eq.s32.totalorder %v4366, %v4466
        %vm4480 = vcmp.eq.s32.totalorder %v4367, %v4466
        %vm4481 = vcmp.eq.s32.totalorder %v4368, %v4466
        %vm4482 = vcmp.eq.s32.totalorder %v4369, %v4466
        %vm4483 = vcmp.eq.s32.totalorder %v4370, %v4466
        %vm4484 = vcmp.eq.s32.totalorder %v4371, %v4466
        %vm4485 = vcmp.eq.s32.totalorder %v4372, %v4466
        %vm4486 = vcmp.eq.s32.totalorder %v4373, %v4466
        %vm4487 = vcmp.eq.s32.totalorder %v4374, %v4466
        %vm4488 = vcmp.eq.s32.totalorder %v4375, %v4466
        %vm4489 = vmand %vm4467, %vm4400
        %vm4490 = vmand %vm4468, %vm4401
        %vm4491 = vmand %vm4469, %vm4402
        %vm4492 = vmand %vm4470, %vm4403
        %vm4493 = vmand %vm4471, %vm4404
        %vm4494 = vmand %vm4472, %vm4405
        %vm4495 = vmand %vm4473, %vm4406
        %vm4496 = vmand %vm4474, %vm4407
        %vm4497 = vmand %vm4475, %vm4408
        %vm4498 = vmand %vm4476, %vm4409
        %vm4499 = vmand %vm4477, %vm4410
        %vm4500 = vmand %vm4478, %vm4411
        %vm4501 = vmand %vm4479, %vm4412
        %vm4502 = vmand %vm4480, %vm4413
        %vm4503 = vmand %vm4481, %vm4414
        %vm4504 = vmand %vm4482, %vm4415
        %vm4505 = vmand %vm4483, %vm4416
        %vm4506 = vmand %vm4484, %vm4417
        %vm4507 = vmand %vm4485, %vm4418
        %vm4508 = vmand %vm4486, %vm4419
        %vm4509 = vmand %vm4487, %vm4420
        %vm4510 = vmand %vm4488, %vm4421
        %v4511 = vsel %vm4489, 1.0, 0.0
        %v4512 = vsel %vm4490, 1.0, 0.0
        %v4513 = vsel %vm4491, 1.0, 0.0
        %v4514 = vsel %vm4492, 1.0, 0.0
        %v4515 = vsel %vm4493, 1.0, 0.0
        %v4516 = vsel %vm4494, 1.0, 0.0
        %v4517 = vsel %vm4495, 1.0, 0.0
        %v4518 = vsel %vm4496, 1.0, 0.0
        %v4519 = vsel %vm4497, 1.0, 0.0
        %v4520 = vsel %vm4498, 1.0, 0.0
        %v4521 = vsel %vm4499, 1.0, 0.0
        %v4522 = vsel %vm4500, 1.0, 0.0
        %v4523 = vsel %vm4501, 1.0, 0.0
        %v4524 = vsel %vm4502, 1.0, 0.0
        %v4525 = vsel %vm4503, 1.0, 0.0
        %v4526 = vsel %vm4504, 1.0, 0.0
        %v4527 = vsel %vm4505, 1.0, 0.0
        %v4528 = vsel %vm4506, 1.0, 0.0
        %v4529 = vsel %vm4507, 1.0, 0.0
        %v4530 = vsel %vm4508, 1.0, 0.0
        %v4531 = vsel %vm4509, 1.0, 0.0
        %v4532 = vsel %vm4510, 1.0, 0.0
        %v4533 = vld [vmem:[#allocation4] sm:$0xff]
        %v4534 = vld [vmem:[#allocation4 + $0x8] sm:$0xff]
        %v4535 = vld [vmem:[#allocation4 + $0x10] sm:$0xff]
        %v4536 = vld [vmem:[#allocation4 + $0x18] sm:$0xff]
        %v4537 = vld [vmem:[#allocation4 + $0x20] sm:$0x3f]
        %v4538 = vld [vmem:[#allocation4 + $0x28] sm:$0x3f]
        %vm4539 = vcmask 179200
        %v4541 = vsel %vm4539, %v4346, 0
        %v4544 = vsel %vm4539, %v4347, 0
        %v4547 = vsel %vm2102, %v4537, 0
        %v4550 = vsel %vm2102, %v4538, 0
        %4552 = vmatprep.subr.mxu0 %v4534
        %4553 = vmatpush1.msra.mxu0 %v4533
        %4554 = vmatprep.subr.mxu0 %v4536
        %4555 = vmatpush1.msra.mxu0 %v4535
        %4556 = vmatprep.subr.mxu0 %v4550
        %4557 = vmatpush1.msra.mxu0 %v4547
        %4558 = vmatprep.subr.mxu0 0.0
        %4559 = vmatpush1.msra.mxu0 0.0
        %4560 = vmatprep.subr.mxu0 0.0
        %4561 = vmatpush1.msra.mxu0 0.0
        %4562 = vmatprep.subr.mxu0 0.0
        %4563 = vmatpush1.msra.mxu0 0.0
        %4564 = vmatprep.subr.mxu0 0.0
        %4565 = vmatpush1.msra.mxu0 0.0
        %4566 = vmatprep.subr.mxu0 0.0
        %4567 = vmatpush1.msra.mxu0 0.0
        %4568 = vmatprep.subr.mxu0 0.0
        %4569 = vmatpush1.msra.mxu0 0.0
        %4570 = vmatprep.subr.mxu0 0.0
        %4571 = vmatpush1.msra.mxu0 0.0
        %4572 = vmatprep.subr.mxu0 0.0
        %4573 = vmatpush1.msra.mxu0 0.0
        %4574 = vmatprep.subr.mxu0 0.0
        %4575 = vmatpush1.msra.mxu0 0.0
        %4576 = vmatprep.subr.mxu0 0.0
        %4577 = vmatpush1.msra.mxu0 0.0
        %4578 = vmatprep.subr.mxu0 0.0
        %4579 = vmatpush1.msra.mxu0 0.0
        %4580 = vmatprep.subr.mxu0 0.0
        %4581 = vmatpush1.msra.mxu0 0.0
        %4582 = vmatprep.subr.mxu0 0.0
        %4583 = vmatpush1.msra.mxu0 0.0
        %4584 = vmatprep.subr.mxu0 0.0
        %4585 = vmatpush1.msra.mxu0 0.0
        %4586 = vmatprep.subr.mxu0 0.0
        %4587 = vmatpush1.msra.mxu0 0.0
        %4588 = vmatprep.subr.mxu0 0.0
        %4589 = vmatpush1.msra.mxu0 0.0
        %4590 = vmatprep.subr.mxu0 0.0
        %4591 = vmatpush1.msra.mxu0 0.0
        %4592 = vmatprep.subr.mxu0 0.0
        %4593 = vmatpush1.msra.mxu0 0.0
        %4594 = vmatprep.subr.mxu0 0.0
        %4595 = vmatpush1.msra.mxu0 0.0
        %4596 = vmatprep.subr.mxu0 0.0
        %4597 = vmatpush1.msra.mxu0 0.0
        %4598 = vmatprep.subr.mxu0 0.0
        %4599 = vmatpush1.msra.mxu0 0.0
        %4600 = vmatprep.subr.mxu0 0.0
        %4601 = vmatpush1.msra.mxu0 0.0
        %4602 = vmatprep.subr.mxu0 0.0
        %4603 = vmatpush1.msra.mxu0 0.0
        %4604 = vmatprep.subr.mxu0 0.0
        %4605 = vmatpush1.msra.mxu0 0.0
        %4606 = vmatprep.subr.mxu0 0.0
        %4607 = vmatpush1.msra.mxu0 0.0
        %4608 = vmatprep.subr.mxu0 0.0
        %4609 = vmatpush1.msra.mxu0 0.0
        %4610 = vmatprep.subr.mxu0 0.0
        %4611 = vmatpush1.msra.mxu0 0.0
        %4612 = vmatprep.subr.mxu0 0.0
        %4613 = vmatpush1.msra.mxu0 0.0
        %4614 = vmatprep.subr.mxu0 0.0
        %4615 = vmatpush1.msra.mxu0 0.0
        %4616 = vmatprep.mubr.f32.mxu0 0.0
        %4617 = vmatmul.mubr.f32.gmra.mrb[0].mxu0 %v4541
        %v4618 = vpop.f32.mrb[0].mxu0
        %v4619 = vadd.f32 0.0, %v4618
        %v4620 = vpop.f32.mrb[0].mxu0
        %v4621 = vadd.f32 0.0, %v4620
        %4622 = vmatprep.mubr.f32.mxu0 0.0
        %4623 = vmatmul.mubr.f32.gmra.mrb[0].mxu0 %v4544
        %v4624 = vpop.f32.mrb[0].mxu0
        %v4625 = vadd.f32 0.0, %v4624
        %v4626 = vpop.f32.mrb[0].mxu0
        %v4627 = vadd.f32 0.0, %v4626
        %4628 = vdwg.mxu0
        %v4630 = vsel %vm4539, %v4352, 0
        %v4633 = vsel %vm4539, %v4353, 0
        %4635 = vmatprep.subr.mxu0 %v4534
        %4636 = vmatpush1.msra.mxu0 %v4533
        %4637 = vmatprep.subr.mxu0 %v4536
        %4638 = vmatpush1.msra.mxu0 %v4535
        %4639 = vmatprep.subr.mxu0 %v4550
        %4640 = vmatpush1.msra.mxu0 %v4547
        %4641 = vmatprep.subr.mxu0 0.0
        %4642 = vmatpush1.msra.mxu0 0.0
        %4643 = vmatprep.subr.mxu0 0.0
        %4644 = vmatpush1.msra.mxu0 0.0
        %4645 = vmatprep.subr.mxu0 0.0
        %4646 = vmatpush1.msra.mxu0 0.0
        %4647 = vmatprep.subr.mxu0 0.0
        %4648 = vmatpush1.msra.mxu0 0.0
        %4649 = vmatprep.subr.mxu0 0.0
        %4650 = vmatpush1.msra.mxu0 0.0
        %4651 = vmatprep.subr.mxu0 0.0
        %4652 = vmatpush1.msra.mxu0 0.0
        %4653 = vmatprep.subr.mxu0 0.0
        %4654 = vmatpush1.msra.mxu0 0.0
        %4655 = vmatprep.subr.mxu0 0.0
        %4656 = vmatpush1.msra.mxu0 0.0
        %4657 = vmatprep.subr.mxu0 0.0
        %4658 = vmatpush1.msra.mxu0 0.0
        %4659 = vmatprep.subr.mxu0 0.0
        %4660 = vmatpush1.msra.mxu0 0.0
        %4661 = vmatprep.subr.mxu0 0.0
        %4662 = vmatpush1.msra.mxu0 0.0
        %4663 = vmatprep.subr.mxu0 0.0
        %4664 = vmatpush1.msra.mxu0 0.0
        %4665 = vmatprep.subr.mxu0 0.0
        %4666 = vmatpush1.msra.mxu0 0.0
        %4667 = vmatprep.subr.mxu0 0.0
        %4668 = vmatpush1.msra.mxu0 0.0
        %4669 = vmatprep.subr.mxu0 0.0
        %4670 = vmatpush1.msra.mxu0 0.0
        %4671 = vmatprep.subr.mxu0 0.0
        %4672 = vmatpush1.msra.mxu0 0.0
        %4673 = vmatprep.subr.mxu0 0.0
        %4674 = vmatpush1.msra.mxu0 0.0
        %4675 = vmatprep.subr.mxu0 0.0
        %4676 = vmatpush1.msra.mxu0 0.0
        %4677 = vmatprep.subr.mxu0 0.0
        %4678 = vmatpush1.msra.mxu0 0.0
        %4679 = vmatprep.subr.mxu0 0.0
        %4680 = vmatpush1.msra.mxu0 0.0
        %4681 = vmatprep.subr.mxu0 0.0
        %4682 = vmatpush1.msra.mxu0 0.0
        %4683 = vmatprep.subr.mxu0 0.0
        %4684 = vmatpush1.msra.mxu0 0.0
        %4685 = vmatprep.subr.mxu0 0.0
        %4686 = vmatpush1.msra.mxu0 0.0
        %4687 = vmatprep.subr.mxu0 0.0
        %4688 = vmatpush1.msra.mxu0 0.0
        %4689 = vmatprep.subr.mxu0 0.0
        %4690 = vmatpush1.msra.mxu0 0.0
        %4691 = vmatprep.subr.mxu0 0.0
        %4692 = vmatpush1.msra.mxu0 0.0
        %4693 = vmatprep.subr.mxu0 0.0
        %4694 = vmatpush1.msra.mxu0 0.0
        %4695 = vmatprep.subr.mxu0 0.0
        %4696 = vmatpush1.msra.mxu0 0.0
        %4697 = vmatprep.subr.mxu0 0.0
        %4698 = vmatpush1.msra.mxu0 0.0
        %4699 = vmatprep.mubr.f32.mxu0 0.0
        %4700 = vmatmul.mubr.f32.gmra.mrb[0].mxu0 %v4630
        %v4701 = vpop.f32.mrb[0].mxu0
        %v4702 = vadd.f32 0.0, %v4701
        %v4703 = vpop.f32.mrb[0].mxu0
        %v4704 = vadd.f32 0.0, %v4703
        %4705 = vmatprep.mubr.f32.mxu0 0.0
        %4706 = vmatmul.mubr.f32.gmra.mrb[0].mxu0 %v4633
        %v4707 = vpop.f32.mrb[0].mxu0
        %v4708 = vadd.f32 0.0, %v4707
        %v4709 = vpop.f32.mrb[0].mxu0
        %v4710 = vadd.f32 0.0, %v4709
        %4711 = vdwg.mxu0
        %v4712 = vmax.f32 %v4619, %v4702
        %v4713 = vmax.f32 %v4621, %v4704
        %v4714 = vmax.f32 %v4625, %v4708
        %v4715 = vmax.f32 %v4627, %v4710
        %v4717 = vsel %vm3517, %v4713, 0
        %v4720 = vsel %vm3517, %v4715, 0
        %4722 = vmatprep.subr.mxu0 0.0
        %4723 = vmatpush1.msra.mxu0 %v4444
        %4724 = vmatprep.subr.mxu0 0.0
        %4725 = vmatpush1.msra.mxu0 %v4445
        %4726 = vmatprep.subr.mxu0 0.0
        %4727 = vmatpush1.msra.mxu0 %v4446
        %4728 = vmatprep.subr.mxu0 0.0
        %4729 = vmatpush1.msra.mxu0 %v4447
        %4730 = vmatprep.subr.mxu0 0.0
        %4731 = vmatpush1.msra.mxu0 %v4448
        %4732 = vmatprep.subr.mxu0 0.0
        %4733 = vmatpush1.msra.mxu0 %v4449
        %4734 = vmatprep.subr.mxu0 0.0
        %4735 = vmatpush1.msra.mxu0 %v4450
        %4736 = vmatprep.subr.mxu0 0.0
        %4737 = vmatpush1.msra.mxu0 %v4451
        %4738 = vmatprep.subr.mxu0 0.0
        %4739 = vmatpush1.msra.mxu0 %v4452
        %4740 = vmatprep.subr.mxu0 0.0
        %4741 = vmatpush1.msra.mxu0 %v4453
        %4742 = vmatprep.subr.mxu0 0.0
        %4743 = vmatpush1.msra.mxu0 %v4454
        %4744 = vmatprep.subr.mxu0 0.0
        %4745 = vmatpush1.msra.mxu0 %v4455
        %4746 = vmatprep.subr.mxu0 0.0
        %4747 = vmatpush1.msra.mxu0 %v4456
        %4748 = vmatprep.subr.mxu0 0.0
        %4749 = vmatpush1.msra.mxu0 %v4457
        %4750 = vmatprep.subr.mxu0 0.0
        %4751 = vmatpush1.msra.mxu0 %v4458
        %4752 = vmatprep.subr.mxu0 0.0
        %4753 = vmatpush1.msra.mxu0 %v4459
        %4754 = vmatprep.subr.mxu0 0.0
        %4755 = vmatpush1.msra.mxu0 %v4460
        %4756 = vmatprep.subr.mxu0 0.0
        %4757 = vmatpush1.msra.mxu0 %v4461
        %4758 = vmatprep.subr.mxu0 0.0
        %4759 = vmatpush1.msra.mxu0 %v4462
        %4760 = vmatprep.subr.mxu0 0.0
        %4761 = vmatpush1.msra.mxu0 %v4463
        %4762 = vmatprep.subr.mxu0 0.0
        %4763 = vmatpush1.msra.mxu0 %v4464
        %4764 = vmatprep.subr.mxu0 0.0
        %4765 = vmatpush1.msra.mxu0 %v4465
        %4766 = vmatprep.subr.mxu0 0.0
        %4767 = vmatpush1.msra.mxu0 0.0
        %4768 = vmatprep.subr.mxu0 0.0
        %4769 = vmatpush1.msra.mxu0 0.0
        %4770 = vmatprep.subr.mxu0 0.0
        %4771 = vmatpush1.msra.mxu0 0.0
        %4772 = vmatprep.subr.mxu0 0.0
        %4773 = vmatpush1.msra.mxu0 0.0
        %4774 = vmatprep.subr.mxu0 0.0
        %4775 = vmatpush1.msra.mxu0 0.0
        %4776 = vmatprep.subr.mxu0 0.0
        %4777 = vmatpush1.msra.mxu0 0.0
        %4778 = vmatprep.subr.mxu0 0.0
        %4779 = vmatpush1.msra.mxu0 0.0
        %4780 = vmatprep.subr.mxu0 0.0
        %4781 = vmatpush1.msra.mxu0 0.0
        %4782 = vmatprep.subr.mxu0 0.0
        %4783 = vmatpush1.msra.mxu0 0.0
        %4784 = vmatprep.subr.mxu0 0.0
        %4785 = vmatpush1.msra.mxu0 0.0
        %4786 = vmatprep.mubr.f32.mxu0 %v4717
        %4787 = vmatmul.mubr.f32.gmra.mrb[0].mxu0 %v4712
        %v4788 = vpop.f32.mrb[0].mxu0
        %v4789 = vadd.f32 0.0, %v4788
        %v4790 = vpop.f32.mrb[0].mxu0
        %4791 = vmatprep.mubr.f32.mxu0 %v4720
        %4792 = vmatmul.mubr.f32.gmra.mrb[0].mxu0 %v4714
        %v4793 = vpop.f32.mrb[0].mxu0
        %v4794 = vadd.f32 0.0, %v4793
        %v4795 = vpop.f32.mrb[0].mxu0
        %4796 = vdwg.mxu0
        %4797 = vmatprep.subr.mxu0 0.0
        %4798 = vmatpush1.msra.mxu0 %v4511
        %4799 = vmatprep.subr.mxu0 0.0
        %4800 = vmatpush1.msra.mxu0 %v4512
        %4801 = vmatprep.subr.mxu0 0.0
        %4802 = vmatpush1.msra.mxu0 %v4513
        %4803 = vmatprep.subr.mxu0 0.0
        %4804 = vmatpush1.msra.mxu0 %v4514
        %4805 = vmatprep.subr.mxu0 0.0
        %4806 = vmatpush1.msra.mxu0 %v4515
        %4807 = vmatprep.subr.mxu0 0.0
        %4808 = vmatpush1.msra.mxu0 %v4516
        %4809 = vmatprep.subr.mxu0 0.0
        %4810 = vmatpush1.msra.mxu0 %v4517
        %4811 = vmatprep.subr.mxu0 0.0
        %4812 = vmatpush1.msra.mxu0 %v4518
        %4813 = vmatprep.subr.mxu0 0.0
        %4814 = vmatpush1.msra.mxu0 %v4519
        %4815 = vmatprep.subr.mxu0 0.0
        %4816 = vmatpush1.msra.mxu0 %v4520
        %4817 = vmatprep.subr.mxu0 0.0
        %4818 = vmatpush1.msra.mxu0 %v4521
        %4819 = vmatprep.subr.mxu0 0.0
        %4820 = vmatpush1.msra.mxu0 %v4522
        %4821 = vmatprep.subr.mxu0 0.0
        %4822 = vmatpush1.msra.mxu0 %v4523
        %4823 = vmatprep.subr.mxu0 0.0
        %4824 = vmatpush1.msra.mxu0 %v4524
        %4825 = vmatprep.subr.mxu0 0.0
        %4826 = vmatpush1.msra.mxu0 %v4525
        %4827 = vmatprep.subr.mxu0 0.0
        %4828 = vmatpush1.msra.mxu0 %v4526
        %4829 = vmatprep.subr.mxu0 0.0
        %4830 = vmatpush1.msra.mxu0 %v4527
        %4831 = vmatprep.subr.mxu0 0.0
        %4832 = vmatpush1.msra.mxu0 %v4528
        %4833 = vmatprep.subr.mxu0 0.0
        %4834 = vmatpush1.msra.mxu0 %v4529
        %4835 = vmatprep.subr.mxu0 0.0
        %4836 = vmatpush1.msra.mxu0 %v4530
        %4837 = vmatprep.subr.mxu0 0.0
        %4838 = vmatpush1.msra.mxu0 %v4531
        %4839 = vmatprep.subr.mxu0 0.0
        %4840 = vmatpush1.msra.mxu0 %v4532
        %4841 = vmatprep.subr.mxu0 0.0
        %4842 = vmatpush1.msra.mxu0 0.0
        %4843 = vmatprep.subr.mxu0 0.0
        %4844 = vmatpush1.msra.mxu0 0.0
        %4845 = vmatprep.subr.mxu0 0.0
        %4846 = vmatpush1.msra.mxu0 0.0
        %4847 = vmatprep.subr.mxu0 0.0
        %4848 = vmatpush1.msra.mxu0 0.0
        %4849 = vmatprep.subr.mxu0 0.0
        %4850 = vmatpush1.msra.mxu0 0.0
        %4851 = vmatprep.subr.mxu0 0.0
        %4852 = vmatpush1.msra.mxu0 0.0
        %4853 = vmatprep.subr.mxu0 0.0
        %4854 = vmatpush1.msra.mxu0 0.0
        %4855 = vmatprep.subr.mxu0 0.0
        %4856 = vmatpush1.msra.mxu0 0.0
        %4857 = vmatprep.subr.mxu0 0.0
        %4858 = vmatpush1.msra.mxu0 0.0
        %4859 = vmatprep.subr.mxu0 0.0
        %4860 = vmatpush1.msra.mxu0 0.0
        %4861 = vmatprep.mubr.f32.mxu0 %v4717
        %4862 = vmatmul.mubr.f32.gmra.mrb[0].mxu0 %v4712
        %v4863 = vpop.f32.mrb[0].mxu0
        %v4864 = vadd.f32 0.0, %v4863
        %v4865 = vpop.f32.mrb[0].mxu0
        %4866 = vmatprep.mubr.f32.mxu0 %v4720
        %4867 = vmatmul.mubr.f32.gmra.mrb[0].mxu0 %v4714
        %v4868 = vpop.f32.mrb[0].mxu0
        %v4869 = vadd.f32 0.0, %v4868
        %v4870 = vpop.f32.mrb[0].mxu0
        %4871 = vdwg.mxu0
        %v4872 = vmax.f32 %v4789, %v4864
        %v4873 = vmax.f32 %v4794, %v4869
        %vm4874 = vcmask 719872
        %4875 = vst.msk [vmem:[#allocation5] sm:$0xff] %vm4874, %v4872
        %vm4876 = vcmask 714752
        %4877 = vst.msk [vmem:[#allocation5 + $0x8] sm:$0x7] %vm4876, %v4873
        %v4878 = vld [vmem:[%s3849] sm:$0xff]
        %v4879 = vld [vmem:[%s3849 + $0x8] sm:$0xff]
        %v4880 = vld [vmem:[%s3849 + $0x10] sm:$0xff]
        %v4881 = vld [vmem:[%s3849 + $0x18] sm:$0xff]
        %v4882 = vld [vmem:[%s3849 + $0x20] sm:$0x3f]
        %v4883 = vld [vmem:[%s3849 + $0x28] sm:$0x3f]
        %v4885 = vsel %vm2102, %v4882, 0
        %v4888 = vsel %vm2102, %v4883, 0
        %4890 = vmatprep.subr.mxu0 %v4879
        %4891 = vmatpush1.msra.mxu0 %v4878
        %4892 = vmatprep.subr.mxu0 %v4881
        %4893 = vmatpush1.msra.mxu0 %v4880
        %4894 = vmatprep.subr.mxu0 %v4888
        %4895 = vmatpush1.msra.mxu0 %v4885
        %4896 = vmatprep.subr.mxu0 0.0
        %4897 = vmatpush1.msra.mxu0 0.0
        %4898 = vmatprep.subr.mxu0 0.0
        %4899 = vmatpush1.msra.mxu0 0.0
        %4900 = vmatprep.subr.mxu0 0.0
        %4901 = vmatpush1.msra.mxu0 0.0
        %4902 = vmatprep.subr.mxu0 0.0
        %4903 = vmatpush1.msra.mxu0 0.0
        %4904 = vmatprep.subr.mxu0 0.0
        %4905 = vmatpush1.msra.mxu0 0.0
        %4906 = vmatprep.subr.mxu0 0.0
        %4907 = vmatpush1.msra.mxu0 0.0
        %4908 = vmatprep.subr.mxu0 0.0
        %4909 = vmatpush1.msra.mxu0 0.0
        %4910 = vmatprep.subr.mxu0 0.0
        %4911 = vmatpush1.msra.mxu0 0.0
        %4912 = vmatprep.subr.mxu0 0.0
        %4913 = vmatpush1.msra.mxu0 0.0
        %4914 = vmatprep.subr.mxu0 0.0
        %4915 = vmatpush1.msra.mxu0 0.0
        %4916 = vmatprep.subr.mxu0 0.0
        %4917 = vmatpush1.msra.mxu0 0.0
        %4918 = vmatprep.subr.mxu0 0.0
        %4919 = vmatpush1.msra.mxu0 0.0
        %4920 = vmatprep.subr.mxu0 0.0
        %4921 = vmatpush1.msra.mxu0 0.0
        %4922 = vmatprep.subr.mxu0 0.0
        %4923 = vmatpush1.msra.mxu0 0.0
        %4924 = vmatprep.subr.mxu0 0.0
        %4925 = vmatpush1.msra.mxu0 0.0
        %4926 = vmatprep.subr.mxu0 0.0
        %4927 = vmatpush1.msra.mxu0 0.0
        %4928 = vmatprep.subr.mxu0 0.0
        %4929 = vmatpush1.msra.mxu0 0.0
        %4930 = vmatprep.subr.mxu0 0.0
        %4931 = vmatpush1.msra.mxu0 0.0
        %4932 = vmatprep.subr.mxu0 0.0
        %4933 = vmatpush1.msra.mxu0 0.0
        %4934 = vmatprep.subr.mxu0 0.0
        %4935 = vmatpush1.msra.mxu0 0.0
        %4936 = vmatprep.subr.mxu0 0.0
        %4937 = vmatpush1.msra.mxu0 0.0
        %4938 = vmatprep.subr.mxu0 0.0
        %4939 = vmatpush1.msra.mxu0 0.0
        %4940 = vmatprep.subr.mxu0 0.0
        %4941 = vmatpush1.msra.mxu0 0.0
        %4942 = vmatprep.subr.mxu0 0.0
        %4943 = vmatpush1.msra.mxu0 0.0
        %4944 = vmatprep.subr.mxu0 0.0
        %4945 = vmatpush1.msra.mxu0 0.0
        %4946 = vmatprep.subr.mxu0 0.0
        %4947 = vmatpush1.msra.mxu0 0.0
        %4948 = vmatprep.subr.mxu0 0.0
        %4949 = vmatpush1.msra.mxu0 0.0
        %4950 = vmatprep.subr.mxu0 0.0
        %4951 = vmatpush1.msra.mxu0 0.0
        %4952 = vmatprep.subr.mxu0 0.0
        %4953 = vmatpush1.msra.mxu0 0.0
        %4954 = vmatprep.mubr.f32.mxu0 0.0
        %4955 = vmatmul.mubr.f32.gmra.mrb[0].mxu0 %v4541
        %v4956 = vpop.f32.mrb[0].mxu0
        %v4957 = vadd.f32 0.0, %v4956
        %v4958 = vpop.f32.mrb[0].mxu0
        %v4959 = vadd.f32 0.0, %v4958
        %4960 = vmatprep.mubr.f32.mxu0 0.0
        %4961 = vmatmul.mubr.f32.gmra.mrb[0].mxu0 %v4544
        %v4962 = vpop.f32.mrb[0].mxu0
        %v4963 = vadd.f32 0.0, %v4962
        %v4964 = vpop.f32.mrb[0].mxu0
        %v4965 = vadd.f32 0.0, %v4964
        %4966 = vdwg.mxu0
        %4967 = vmatprep.subr.mxu0 %v4879
        %4968 = vmatpush1.msra.mxu0 %v4878
        %4969 = vmatprep.subr.mxu0 %v4881
        %4970 = vmatpush1.msra.mxu0 %v4880
        %4971 = vmatprep.subr.mxu0 %v4888
        %4972 = vmatpush1.msra.mxu0 %v4885
        %4973 = vmatprep.subr.mxu0 0.0
        %4974 = vmatpush1.msra.mxu0 0.0
        %4975 = vmatprep.subr.mxu0 0.0
        %4976 = vmatpush1.msra.mxu0 0.0
        %4977 = vmatprep.subr.mxu0 0.0
        %4978 = vmatpush1.msra.mxu0 0.0
        %4979 = vmatprep.subr.mxu0 0.0
        %4980 = vmatpush1.msra.mxu0 0.0
        %4981 = vmatprep.subr.mxu0 0.0
        %4982 = vmatpush1.msra.mxu0 0.0
        %4983 = vmatprep.subr.mxu0 0.0
        %4984 = vmatpush1.msra.mxu0 0.0
        %4985 = vmatprep.subr.mxu0 0.0
        %4986 = vmatpush1.msra.mxu0 0.0
        %4987 = vmatprep.subr.mxu0 0.0
        %4988 = vmatpush1.msra.mxu0 0.0
        %4989 = vmatprep.subr.mxu0 0.0
        %4990 = vmatpush1.msra.mxu0 0.0
        %4991 = vmatprep.subr.mxu0 0.0
        %4992 = vmatpush1.msra.mxu0 0.0
        %4993 = vmatprep.subr.mxu0 0.0
        %4994 = vmatpush1.msra.mxu0 0.0
        %4995 = vmatprep.subr.mxu0 0.0
        %4996 = vmatpush1.msra.mxu0 0.0
        %4997 = vmatprep.subr.mxu0 0.0
        %4998 = vmatpush1.msra.mxu0 0.0
        %4999 = vmatprep.subr.mxu0 0.0
        %5000 = vmatpush1.msra.mxu0 0.0
        %5001 = vmatprep.subr.mxu0 0.0
        %5002 = vmatpush1.msra.mxu0 0.0
        %5003 = vmatprep.subr.mxu0 0.0
        %5004 = vmatpush1.msra.mxu0 0.0
        %5005 = vmatprep.subr.mxu0 0.0
        %5006 = vmatpush1.msra.mxu0 0.0
        %5007 = vmatprep.subr.mxu0 0.0
        %5008 = vmatpush1.msra.mxu0 0.0
        %5009 = vmatprep.subr.mxu0 0.0
        %5010 = vmatpush1.msra.mxu0 0.0
        %5011 = vmatprep.subr.mxu0 0.0
        %5012 = vmatpush1.msra.mxu0 0.0
        %5013 = vmatprep.subr.mxu0 0.0
        %5014 = vmatpush1.msra.mxu0 0.0
        %5015 = vmatprep.subr.mxu0 0.0
        %5016 = vmatpush1.msra.mxu0 0.0
        %5017 = vmatprep.subr.mxu0 0.0
        %5018 = vmatpush1.msra.mxu0 0.0
        %5019 = vmatprep.subr.mxu0 0.0
        %5020 = vmatpush1.msra.mxu0 0.0
        %5021 = vmatprep.subr.mxu0 0.0
        %5022 = vmatpush1.msra.mxu0 0.0
        %5023 = vmatprep.subr.mxu0 0.0
        %5024 = vmatpush1.msra.mxu0 0.0
        %5025 = vmatprep.subr.mxu0 0.0
        %5026 = vmatpush1.msra.mxu0 0.0
        %5027 = vmatprep.subr.mxu0 0.0
        %5028 = vmatpush1.msra.mxu0 0.0
        %5029 = vmatprep.subr.mxu0 0.0
        %5030 = vmatpush1.msra.mxu0 0.0
        %5031 = vmatprep.mubr.f32.mxu0 0.0
        %5032 = vmatmul.mubr.f32.gmra.mrb[0].mxu0 %v4630
        %v5033 = vpop.f32.mrb[0].mxu0
        %v5034 = vadd.f32 0.0, %v5033
        %v5035 = vpop.f32.mrb[0].mxu0
        %v5036 = vadd.f32 0.0, %v5035
        %5037 = vmatprep.mubr.f32.mxu0 0.0
        %5038 = vmatmul.mubr.f32.gmra.mrb[0].mxu0 %v4633
        %v5039 = vpop.f32.mrb[0].mxu0
        %v5040 = vadd.f32 0.0, %v5039
        %v5041 = vpop.f32.mrb[0].mxu0
        %v5042 = vadd.f32 0.0, %v5041
        %5043 = vdwg.mxu0
        %v5044 = vmax.f32 %v4957, %v5034
        %v5045 = vmax.f32 %v4959, %v5036
        %v5046 = vmax.f32 %v4963, %v5040
        %v5047 = vmax.f32 %v4965, %v5042
        %v5049 = vsel %vm3517, %v5045, 0
        %v5052 = vsel %vm3517, %v5047, 0
        %5054 = vmatprep.subr.mxu0 0.0
        %5055 = vmatpush1.msra.mxu0 %v4444
        %5056 = vmatprep.subr.mxu0 0.0
        %5057 = vmatpush1.msra.mxu0 %v4445
        %5058 = vmatprep.subr.mxu0 0.0
        %5059 = vmatpush1.msra.mxu0 %v4446
        %5060 = vmatprep.subr.mxu0 0.0
        %5061 = vmatpush1.msra.mxu0 %v4447
        %5062 = vmatprep.subr.mxu0 0.0
        %5063 = vmatpush1.msra.mxu0 %v4448
        %5064 = vmatprep.subr.mxu0 0.0
        %5065 = vmatpush1.msra.mxu0 %v4449
        %5066 = vmatprep.subr.mxu0 0.0
        %5067 = vmatpush1.msra.mxu0 %v4450
        %5068 = vmatprep.subr.mxu0 0.0
        %5069 = vmatpush1.msra.mxu0 %v4451
        %5070 = vmatprep.subr.mxu0 0.0
        %5071 = vmatpush1.msra.mxu0 %v4452
        %5072 = vmatprep.subr.mxu0 0.0
        %5073 = vmatpush1.msra.mxu0 %v4453
        %5074 = vmatprep.subr.mxu0 0.0
        %5075 = vmatpush1.msra.mxu0 %v4454
        %5076 = vmatprep.subr.mxu0 0.0
        %5077 = vmatpush1.msra.mxu0 %v4455
        %5078 = vmatprep.subr.mxu0 0.0
        %5079 = vmatpush1.msra.mxu0 %v4456
        %5080 = vmatprep.subr.mxu0 0.0
        %5081 = vmatpush1.msra.mxu0 %v4457
        %5082 = vmatprep.subr.mxu0 0.0
        %5083 = vmatpush1.msra.mxu0 %v4458
        %5084 = vmatprep.subr.mxu0 0.0
        %5085 = vmatpush1.msra.mxu0 %v4459
        %5086 = vmatprep.subr.mxu0 0.0
        %5087 = vmatpush1.msra.mxu0 %v4460
        %5088 = vmatprep.subr.mxu0 0.0
        %5089 = vmatpush1.msra.mxu0 %v4461
        %5090 = vmatprep.subr.mxu0 0.0
        %5091 = vmatpush1.msra.mxu0 %v4462
        %5092 = vmatprep.subr.mxu0 0.0
        %5093 = vmatpush1.msra.mxu0 %v4463
        %5094 = vmatprep.subr.mxu0 0.0
        %5095 = vmatpush1.msra.mxu0 %v4464
        %5096 = vmatprep.subr.mxu0 0.0
        %5097 = vmatpush1.msra.mxu0 %v4465
        %5098 = vmatprep.subr.mxu0 0.0
        %5099 = vmatpush1.msra.mxu0 0.0
        %5100 = vmatprep.subr.mxu0 0.0
        %5101 = vmatpush1.msra.mxu0 0.0
        %5102 = vmatprep.subr.mxu0 0.0
        %5103 = vmatpush1.msra.mxu0 0.0
        %5104 = vmatprep.subr.mxu0 0.0
        %5105 = vmatpush1.msra.mxu0 0.0
        %5106 = vmatprep.subr.mxu0 0.0
        %5107 = vmatpush1.msra.mxu0 0.0
        %5108 = vmatprep.subr.mxu0 0.0
        %5109 = vmatpush1.msra.mxu0 0.0
        %5110 = vmatprep.subr.mxu0 0.0
        %5111 = vmatpush1.msra.mxu0 0.0
        %5112 = vmatprep.subr.mxu0 0.0
        %5113 = vmatpush1.msra.mxu0 0.0
        %5114 = vmatprep.subr.mxu0 0.0
        %5115 = vmatpush1.msra.mxu0 0.0
        %5116 = vmatprep.subr.mxu0 0.0
        %5117 = vmatpush1.msra.mxu0 0.0
        %5118 = vmatprep.mubr.f32.mxu0 %v5049
        %5119 = vmatmul.mubr.f32.gmra.mrb[0].mxu0 %v5044
        %v5120 = vpop.f32.mrb[0].mxu0
        %v5121 = vadd.f32 0.0, %v5120
        %v5122 = vpop.f32.mrb[0].mxu0
        %5123 = vmatprep.mubr.f32.mxu0 %v5052
        %5124 = vmatmul.mubr.f32.gmra.mrb[0].mxu0 %v5046
        %v5125 = vpop.f32.mrb[0].mxu0
        %v5126 = vadd.f32 0.0, %v5125
        %v5127 = vpop.f32.mrb[0].mxu0
        %5128 = vdwg.mxu0
        %5129 = vmatprep.subr.mxu0 0.0
        %5130 = vmatpush1.msra.mxu0 %v4511
        %5131 = vmatprep.subr.mxu0 0.0
        %5132 = vmatpush1.msra.mxu0 %v4512
        %5133 = vmatprep.subr.mxu0 0.0
        %5134 = vmatpush1.msra.mxu0 %v4513
        %5135 = vmatprep.subr.mxu0 0.0
        %5136 = vmatpush1.msra.mxu0 %v4514
        %5137 = vmatprep.subr.mxu0 0.0
        %5138 = vmatpush1.msra.mxu0 %v4515
        %5139 = vmatprep.subr.mxu0 0.0
        %5140 = vmatpush1.msra.mxu0 %v4516
        %5141 = vmatprep.subr.mxu0 0.0
        %5142 = vmatpush1.msra.mxu0 %v4517
        %5143 = vmatprep.subr.mxu0 0.0
        %5144 = vmatpush1.msra.mxu0 %v4518
        %5145 = vmatprep.subr.mxu0 0.0
        %5146 = vmatpush1.msra.mxu0 %v4519
        %5147 = vmatprep.subr.mxu0 0.0
        %5148 = vmatpush1.msra.mxu0 %v4520
        %5149 = vmatprep.subr.mxu0 0.0
        %5150 = vmatpush1.msra.mxu0 %v4521
        %5151 = vmatprep.subr.mxu0 0.0
        %5152 = vmatpush1.msra.mxu0 %v4522
        %5153 = vmatprep.subr.mxu0 0.0
        %5154 = vmatpush1.msra.mxu0 %v4523
        %5155 = vmatprep.subr.mxu0 0.0
        %5156 = vmatpush1.msra.mxu0 %v4524
        %5157 = vmatprep.subr.mxu0 0.0
        %5158 = vmatpush1.msra.mxu0 %v4525
        %5159 = vmatprep.subr.mxu0 0.0
        %5160 = vmatpush1.msra.mxu0 %v4526
        %5161 = vmatprep.subr.mxu0 0.0
        %5162 = vmatpush1.msra.mxu0 %v4527
        %5163 = vmatprep.subr.mxu0 0.0
        %5164 = vmatpush1.msra.mxu0 %v4528
        %5165 = vmatprep.subr.mxu0 0.0
        %5166 = vmatpush1.msra.mxu0 %v4529
        %5167 = vmatprep.subr.mxu0 0.0
        %5168 = vmatpush1.msra.mxu0 %v4530
        %5169 = vmatprep.subr.mxu0 0.0
        %5170 = vmatpush1.msra.mxu0 %v4531
        %5171 = vmatprep.subr.mxu0 0.0
        %5172 = vmatpush1.msra.mxu0 %v4532
        %5173 = vmatprep.subr.mxu0 0.0
        %5174 = vmatpush1.msra.mxu0 0.0
        %5175 = vmatprep.subr.mxu0 0.0
        %5176 = vmatpush1.msra.mxu0 0.0
        %5177 = vmatprep.subr.mxu0 0.0
        %5178 = vmatpush1.msra.mxu0 0.0
        %5179 = vmatprep.subr.mxu0 0.0
        %5180 = vmatpush1.msra.mxu0 0.0
        %5181 = vmatprep.subr.mxu0 0.0
        %5182 = vmatpush1.msra.mxu0 0.0
        %5183 = vmatprep.subr.mxu0 0.0
        %5184 = vmatpush1.msra.mxu0 0.0
        %5185 = vmatprep.subr.mxu0 0.0
        %5186 = vmatpush1.msra.mxu0 0.0
        %5187 = vmatprep.subr.mxu0 0.0
        %5188 = vmatpush1.msra.mxu0 0.0
        %5189 = vmatprep.subr.mxu0 0.0
        %5190 = vmatpush1.msra.mxu0 0.0
        %5191 = vmatprep.subr.mxu0 0.0
        %5192 = vmatpush1.msra.mxu0 0.0
        %5193 = vmatprep.mubr.f32.mxu0 %v5049
        %5194 = vmatmul.mubr.f32.gmra.mrb[0].mxu0 %v5044
        %v5195 = vpop.f32.mrb[0].mxu0
        %v5196 = vadd.f32 0.0, %v5195
        %v5197 = vpop.f32.mrb[0].mxu0
        %5198 = vmatprep.mubr.f32.mxu0 %v5052
        %5199 = vmatmul.mubr.f32.gmra.mrb[0].mxu0 %v5046
        %v5200 = vpop.f32.mrb[0].mxu0
        %v5201 = vadd.f32 0.0, %v5200
        %v5202 = vpop.f32.mrb[0].mxu0
        %5203 = vdwg.mxu0
        %v5204 = vmax.f32 %v5121, %v5196
        %v5205 = vmax.f32 %v5126, %v5201
        %s5206 = scalar_lea.vmem [#allocation5], 16
        %5207 = vst.msk [vmem:[%s5206] sm:$0xff] %vm4874, %v5204
        %5208 = vst.msk [vmem:[%s5206 + $0x8] sm:$0x7] %vm4876, %v5205
        %v5209 = vld [vmem:[%s4] sm:$0xff]
        %v5210 = vld [vmem:[%s4 + $0x8] sm:$0xff]
        %v5211 = vld [vmem:[%s4 + $0x10] sm:$0xff]
        %v5212 = vld [vmem:[%s4 + $0x18] sm:$0xff]
        %v5213 = vld [vmem:[%s4 + $0x20] sm:$0xff]
        %v5214 = vld [vmem:[%s4 + $0x28] sm:$0xff]
        %v5215 = vld [vmem:[%s4 + $0x30] sm:$0xff]
        %v5216 = vld [vmem:[%s4 + $0x38] sm:$0xff]
        %v5217 = vld [vmem:[%s4 + $0x40] sm:$0xff]
        %v5218 = vld [vmem:[%s4 + $0x48] sm:$0xff]
        %v5219 = vld [vmem:[%s4 + $0x50] sm:$0xff]
        %v5220 = vld [vmem:[%s4 + $0x58] sm:$0xff]
        %v5221 = vld [vmem:[%s4 + $0x60] sm:$0xff]
        %v5222 = vld [vmem:[%s4 + $0x68] sm:$0xff]
        %v5223 = vld [vmem:[%s4 + $0x70] sm:$0xff]
        %v5224 = vld [vmem:[%s4 + $0x78] sm:$0xff]
        %v5225 = vld [vmem:[%s4 + $0x80] sm:$0xff]
        %v5226 = vld [vmem:[%s4 + $0x88] sm:$0xff]
        %v5227 = vld [vmem:[%s4 + $0x90] sm:$0xff]
        %v5228 = vld [vmem:[%s4 + $0x98] sm:$0xff]
        %v5229 = vld [vmem:[%s4 + $0xa0] sm:$0xff]
        %v5230 = vld [vmem:[%s4 + $0xa8] sm:$0xff]
        %s5231 = scalar_lea.vmem %s4, 176
        %v5232 = vld [vmem:[%s5231] sm:$0xff]
        %v5233 = vld [vmem:[%s5231 + $0x8] sm:$0xff]
        %v5234 = vld [vmem:[%s5231 + $0x10] sm:$0xff]
        %v5235 = vld [vmem:[%s5231 + $0x18] sm:$0xff]
        %v5236 = vld [vmem:[%s5231 + $0x20] sm:$0xff]
        %v5237 = vld [vmem:[%s5231 + $0x28] sm:$0xff]
        %v5238 = vld [vmem:[%s5231 + $0x30] sm:$0xff]
        %v5239 = vld [vmem:[%s5231 + $0x38] sm:$0xff]
        %v5240 = vld [vmem:[%s5231 + $0x40] sm:$0xff]
        %v5241 = vld [vmem:[%s5231 + $0x48] sm:$0xff]
        %v5242 = vld [vmem:[%s5231 + $0x50] sm:$0xff]
        %v5243 = vld [vmem:[%s5231 + $0x58] sm:$0xff]
        %v5244 = vld [vmem:[%s5231 + $0x60] sm:$0xff]
        %v5245 = vld [vmem:[%s5231 + $0x68] sm:$0xff]
        %v5246 = vld [vmem:[%s5231 + $0x70] sm:$0xff]
        %v5247 = vld [vmem:[%s5231 + $0x78] sm:$0xff]
        %v5248 = vld [vmem:[%s5231 + $0x80] sm:$0xff]
        %v5249 = vld [vmem:[%s5231 + $0x88] sm:$0xff]
        %v5250 = vld [vmem:[%s5231 + $0x90] sm:$0xff]
        %v5251 = vld [vmem:[%s5231 + $0x98] sm:$0xff]
        %v5252 = vld [vmem:[%s5231 + $0xa0] sm:$0xff]
        %v5253 = vld [vmem:[%s5231 + $0xa8] sm:$0xff]
        %s5254 = scalar_lea.vmem %s4, 352
        %v5255 = vld [vmem:[%s5254] sm:$0xff]
        %v5256 = vld [vmem:[%s5254 + $0x8] sm:$0xff]
        %v5257 = vld [vmem:[%s5254 + $0x10] sm:$0xff]
        %v5258 = vld [vmem:[%s5254 + $0x18] sm:$0xff]
        %v5259 = vld [vmem:[%s5254 + $0x20] sm:$0xff]
        %v5260 = vld [vmem:[%s5254 + $0x28] sm:$0xff]
        %v5261 = vld [vmem:[%s5254 + $0x30] sm:$0xff]
        %v5262 = vld [vmem:[%s5254 + $0x38] sm:$0xff]
        %v5263 = vld [vmem:[%s5254 + $0x40] sm:$0xff]
        %v5264 = vld [vmem:[%s5254 + $0x48] sm:$0xff]
        %v5265 = vld [vmem:[%s5254 + $0x50] sm:$0xff]
        %v5266 = vld [vmem:[%s5254 + $0x58] sm:$0xff]
        %v5267 = vld [vmem:[%s5254 + $0x60] sm:$0xff]
        %v5268 = vld [vmem:[%s5254 + $0x68] sm:$0xff]
        %v5269 = vld [vmem:[%s5254 + $0x70] sm:$0xff]
        %v5270 = vld [vmem:[%s5254 + $0x78] sm:$0xff]
        %v5271 = vld [vmem:[%s5254 + $0x80] sm:$0xff]
        %v5272 = vld [vmem:[%s5254 + $0x88] sm:$0xff]
        %v5273 = vld [vmem:[%s5254 + $0x90] sm:$0xff]
        %v5274 = vld [vmem:[%s5254 + $0x98] sm:$0xff]
        %v5275 = vld [vmem:[%s5254 + $0xa0] sm:$0xff]
        %v5276 = vld [vmem:[%s5254 + $0xa8] sm:$0xff]
        %v5277 = vld [vmem:[#allocation5] sm:$0xff]
        %v5278 = vld [vmem:[#allocation5 + $0x8] sm:$0x1]
        %v5279 = vld [vmem:[#allocation5 + $0x1] sm:$0xff]
        %v5280 = vld [vmem:[#allocation5 + $0x9] sm:$0x1]
        %v5282 = vsel %vm4874, %v5279, 0
        %v5285 = vsel %vm4874, %v5280, 0
        %5287 = vmatprep.subr.mxu0 %v5233
        %5288 = vmatpush1.msra.mxu0 %v5232
        %5289 = vmatprep.subr.mxu0 %v5235
        %5290 = vmatpush1.msra.mxu0 %v5234
        %5291 = vmatprep.subr.mxu0 %v5237
        %5292 = vmatpush1.msra.mxu0 %v5236
        %5293 = vmatprep.subr.mxu0 %v5239
        %5294 = vmatpush1.msra.mxu0 %v5238
        %5295 = vmatprep.subr.mxu0 %v5241
        %5296 = vmatpush1.msra.mxu0 %v5240
        %5297 = vmatprep.subr.mxu0 %v5243
        %5298 = vmatpush1.msra.mxu0 %v5242
        %5299 = vmatprep.subr.mxu0 %v5245
        %5300 = vmatpush1.msra.mxu0 %v5244
        %5301 = vmatprep.subr.mxu0 %v5247
        %5302 = vmatpush1.msra.mxu0 %v5246
        %5303 = vmatprep.subr.mxu0 %v5249
        %5304 = vmatpush1.msra.mxu0 %v5248
        %5305 = vmatprep.subr.mxu0 %v5251
        %5306 = vmatpush1.msra.mxu0 %v5250
        %5307 = vmatprep.subr.mxu0 %v5253
        %5308 = vmatpush1.msra.mxu0 %v5252
        %5309 = vmatprep.subr.mxu0 0.0
        %5310 = vmatpush1.msra.mxu0 0.0
        %5311 = vmatprep.subr.mxu0 0.0
        %5312 = vmatpush1.msra.mxu0 0.0
        %5313 = vmatprep.subr.mxu0 0.0
        %5314 = vmatpush1.msra.mxu0 0.0
        %5315 = vmatprep.subr.mxu0 0.0
        %5316 = vmatpush1.msra.mxu0 0.0
        %5317 = vmatprep.subr.mxu0 0.0
        %5318 = vmatpush1.msra.mxu0 0.0
        %5319 = vmatprep.subr.mxu0 0.0
        %5320 = vmatpush1.msra.mxu0 0.0
        %5321 = vmatprep.subr.mxu0 0.0
        %5322 = vmatpush1.msra.mxu0 0.0
        %5323 = vmatprep.subr.mxu0 0.0
        %5324 = vmatpush1.msra.mxu0 0.0
        %5325 = vmatprep.subr.mxu0 0.0
        %5326 = vmatpush1.msra.mxu0 0.0
        %5327 = vmatprep.subr.mxu0 0.0
        %5328 = vmatpush1.msra.mxu0 0.0
        %5329 = vmatprep.subr.mxu0 0.0
        %5330 = vmatpush1.msra.mxu0 0.0
        %5331 = vmatprep.subr.mxu0 0.0
        %5332 = vmatpush1.msra.mxu0 0.0
        %5333 = vmatprep.subr.mxu0 0.0
        %5334 = vmatpush1.msra.mxu0 0.0
        %5335 = vmatprep.subr.mxu0 0.0
        %5336 = vmatpush1.msra.mxu0 0.0
        %5337 = vmatprep.subr.mxu0 0.0
        %5338 = vmatpush1.msra.mxu0 0.0
        %5339 = vmatprep.subr.mxu0 0.0
        %5340 = vmatpush1.msra.mxu0 0.0
        %5341 = vmatprep.subr.mxu0 0.0
        %5342 = vmatpush1.msra.mxu0 0.0
        %5343 = vmatprep.subr.mxu0 0.0
        %5344 = vmatpush1.msra.mxu0 0.0
        %5345 = vmatprep.subr.mxu0 0.0
        %5346 = vmatpush1.msra.mxu0 0.0
        %5347 = vmatprep.subr.mxu0 0.0
        %5348 = vmatpush1.msra.mxu0 0.0
        %5349 = vmatprep.subr.mxu0 0.0
        %5350 = vmatpush1.msra.mxu0 0.0
        %5351 = vmatprep.mubr.f32.mxu0 0.0
        %5352 = vmatmul.mubr.f32.gmra.mrb[0].mxu0 %v5282
        %v5353 = vpop.f32.mrb[0].mxu0
        %v5354 = vadd.f32 0.0, %v5353
        %v5355 = vpop.f32.mrb[0].mxu0
        %v5356 = vadd.f32 0.0, %v5355
        %5357 = vmatprep.mubr.f32.mxu0 0.0
        %5358 = vmatmul.mubr.f32.gmra.mrb[0].mxu0 %v5285
        %v5359 = vpop.f32.mrb[0].mxu0
        %v5360 = vadd.f32 0.0, %v5359
        %v5361 = vpop.f32.mrb[0].mxu0
        %v5362 = vadd.f32 0.0, %v5361
        %5363 = vdwg.mxu0
        %v5365 = vsel %vm4874, %v5277, 0
        %v5368 = vsel %vm4874, %v5278, 0
        %5370 = vmatprep.subr.mxu0 %v5210
        %5371 = vmatpush1.msra.mxu0 %v5209
        %5372 = vmatprep.subr.mxu0 %v5212
        %5373 = vmatpush1.msra.mxu0 %v5211
        %5374 = vmatprep.subr.mxu0 %v5214
        %5375 = vmatpush1.msra.mxu0 %v5213
        %5376 = vmatprep.subr.mxu0 %v5216
        %5377 = vmatpush1.msra.mxu0 %v5215
        %5378 = vmatprep.subr.mxu0 %v5218
        %5379 = vmatpush1.msra.mxu0 %v5217
        %5380 = vmatprep.subr.mxu0 %v5220
        %5381 = vmatpush1.msra.mxu0 %v5219
        %5382 = vmatprep.subr.mxu0 %v5222
        %5383 = vmatpush1.msra.mxu0 %v5221
        %5384 = vmatprep.subr.mxu0 %v5224
        %5385 = vmatpush1.msra.mxu0 %v5223
        %5386 = vmatprep.subr.mxu0 %v5226
        %5387 = vmatpush1.msra.mxu0 %v5225
        %5388 = vmatprep.subr.mxu0 %v5228
        %5389 = vmatpush1.msra.mxu0 %v5227
        %5390 = vmatprep.subr.mxu0 %v5230
        %5391 = vmatpush1.msra.mxu0 %v5229
        %5392 = vmatprep.subr.mxu0 0.0
        %5393 = vmatpush1.msra.mxu0 0.0
        %5394 = vmatprep.subr.mxu0 0.0
        %5395 = vmatpush1.msra.mxu0 0.0
        %5396 = vmatprep.subr.mxu0 0.0
        %5397 = vmatpush1.msra.mxu0 0.0
        %5398 = vmatprep.subr.mxu0 0.0
        %5399 = vmatpush1.msra.mxu0 0.0
        %5400 = vmatprep.subr.mxu0 0.0
        %5401 = vmatpush1.msra.mxu0 0.0
        %5402 = vmatprep.subr.mxu0 0.0
        %5403 = vmatpush1.msra.mxu0 0.0
        %5404 = vmatprep.subr.mxu0 0.0
        %5405 = vmatpush1.msra.mxu0 0.0
        %5406 = vmatprep.subr.mxu0 0.0
        %5407 = vmatpush1.msra.mxu0 0.0
        %5408 = vmatprep.subr.mxu0 0.0
        %5409 = vmatpush1.msra.mxu0 0.0
        %5410 = vmatprep.subr.mxu0 0.0
        %5411 = vmatpush1.msra.mxu0 0.0
        %5412 = vmatprep.subr.mxu0 0.0
        %5413 = vmatpush1.msra.mxu0 0.0
        %5414 = vmatprep.subr.mxu0 0.0
        %5415 = vmatpush1.msra.mxu0 0.0
        %5416 = vmatprep.subr.mxu0 0.0
        %5417 = vmatpush1.msra.mxu0 0.0
        %5418 = vmatprep.subr.mxu0 0.0
        %5419 = vmatpush1.msra.mxu0 0.0
        %5420 = vmatprep.subr.mxu0 0.0
        %5421 = vmatpush1.msra.mxu0 0.0
        %5422 = vmatprep.subr.mxu0 0.0
        %5423 = vmatpush1.msra.mxu0 0.0
        %5424 = vmatprep.subr.mxu0 0.0
        %5425 = vmatpush1.msra.mxu0 0.0
        %5426 = vmatprep.subr.mxu0 0.0
        %5427 = vmatpush1.msra.mxu0 0.0
        %5428 = vmatprep.subr.mxu0 0.0
        %5429 = vmatpush1.msra.mxu0 0.0
        %5430 = vmatprep.subr.mxu0 0.0
        %5431 = vmatpush1.msra.mxu0 0.0
        %5432 = vmatprep.subr.mxu0 0.0
        %5433 = vmatpush1.msra.mxu0 0.0
        %5434 = vmatprep.mubr.f32.mxu0 0.0
        %5435 = vmatmul.mubr.f32.gmra.mrb[0].mxu0 %v5365
        %v5436 = vpop.f32.mrb[0].mxu0
        %v5437 = vadd.f32 %v5354, %v5436
        %v5438 = vpop.f32.mrb[0].mxu0
        %v5439 = vadd.f32 %v5356, %v5438
        %5440 = vmatprep.mubr.f32.mxu0 0.0
        %5441 = vmatmul.mubr.f32.gmra.mrb[0].mxu0 %v5368
        %v5442 = vpop.f32.mrb[0].mxu0
        %v5443 = vadd.f32 %v5360, %v5442
        %v5444 = vpop.f32.mrb[0].mxu0
        %v5445 = vadd.f32 %v5362, %v5444
        %5446 = vdwg.mxu0
        %v5447 = vld [vmem:[#allocation5 + $0x2] sm:$0xff]
        %v5448 = vld [vmem:[#allocation5 + $0xa] sm:$0x1]
        %v5450 = vsel %vm4874, %v5447, 0
        %v5453 = vsel %vm4874, %v5448, 0
        %5455 = vmatprep.subr.mxu0 %v5256
        %5456 = vmatpush1.msra.mxu0 %v5255
        %5457 = vmatprep.subr.mxu0 %v5258
        %5458 = vmatpush1.msra.mxu0 %v5257
        %5459 = vmatprep.subr.mxu0 %v5260
        %5460 = vmatpush1.msra.mxu0 %v5259
        %5461 = vmatprep.subr.mxu0 %v5262
        %5462 = vmatpush1.msra.mxu0 %v5261
        %5463 = vmatprep.subr.mxu0 %v5264
        %5464 = vmatpush1.msra.mxu0 %v5263
        %5465 = vmatprep.subr.mxu0 %v5266
        %5466 = vmatpush1.msra.mxu0 %v5265
        %5467 = vmatprep.subr.mxu0 %v5268
        %5468 = vmatpush1.msra.mxu0 %v5267
        %5469 = vmatprep.subr.mxu0 %v5270
        %5470 = vmatpush1.msra.mxu0 %v5269
        %5471 = vmatprep.subr.mxu0 %v5272
        %5472 = vmatpush1.msra.mxu0 %v5271
        %5473 = vmatprep.subr.mxu0 %v5274
        %5474 = vmatpush1.msra.mxu0 %v5273
        %5475 = vmatprep.subr.mxu0 %v5276
        %5476 = vmatpush1.msra.mxu0 %v5275
        %5477 = vmatprep.subr.mxu0 0.0
        %5478 = vmatpush1.msra.mxu0 0.0
        %5479 = vmatprep.subr.mxu0 0.0
        %5480 = vmatpush1.msra.mxu0 0.0
        %5481 = vmatprep.subr.mxu0 0.0
        %5482 = vmatpush1.msra.mxu0 0.0
        %5483 = vmatprep.subr.mxu0 0.0
        %5484 = vmatpush1.msra.mxu0 0.0
        %5485 = vmatprep.subr.mxu0 0.0
        %5486 = vmatpush1.msra.mxu0 0.0
        %5487 = vmatprep.subr.mxu0 0.0
        %5488 = vmatpush1.msra.mxu0 0.0
        %5489 = vmatprep.subr.mxu0 0.0
        %5490 = vmatpush1.msra.mxu0 0.0
        %5491 = vmatprep.subr.mxu0 0.0
        %5492 = vmatpush1.msra.mxu0 0.0
        %5493 = vmatprep.subr.mxu0 0.0
        %5494 = vmatpush1.msra.mxu0 0.0
        %5495 = vmatprep.subr.mxu0 0.0
        %5496 = vmatpush1.msra.mxu0 0.0
        %5497 = vmatprep.subr.mxu0 0.0
        %5498 = vmatpush1.msra.mxu0 0.0
        %5499 = vmatprep.subr.mxu0 0.0
        %5500 = vmatpush1.msra.mxu0 0.0
        %5501 = vmatprep.subr.mxu0 0.0
        %5502 = vmatpush1.msra.mxu0 0.0
        %5503 = vmatprep.subr.mxu0 0.0
        %5504 = vmatpush1.msra.mxu0 0.0
        %5505 = vmatprep.subr.mxu0 0.0
        %5506 = vmatpush1.msra.mxu0 0.0
        %5507 = vmatprep.subr.mxu0 0.0
        %5508 = vmatpush1.msra.mxu0 0.0
        %5509 = vmatprep.subr.mxu0 0.0
        %5510 = vmatpush1.msra.mxu0 0.0
        %5511 = vmatprep.subr.mxu0 0.0
        %5512 = vmatpush1.msra.mxu0 0.0
        %5513 = vmatprep.subr.mxu0 0.0
        %5514 = vmatpush1.msra.mxu0 0.0
        %5515 = vmatprep.subr.mxu0 0.0
        %5516 = vmatpush1.msra.mxu0 0.0
        %5517 = vmatprep.subr.mxu0 0.0
        %5518 = vmatpush1.msra.mxu0 0.0
        %5519 = vmatprep.mubr.f32.mxu0 0.0
        %5520 = vmatmul.mubr.f32.gmra.mrb[0].mxu0 %v5450
        %v5521 = vpop.f32.mrb[0].mxu0
        %v5522 = vadd.f32 0.0, %v5521
        %v5523 = vpop.f32.mrb[0].mxu0
        %v5524 = vadd.f32 0.0, %v5523
        %5525 = vmatprep.mubr.f32.mxu0 0.0
        %5526 = vmatmul.mubr.f32.gmra.mrb[0].mxu0 %v5453
        %v5527 = vpop.f32.mrb[0].mxu0
        %v5528 = vadd.f32 0.0, %v5527
        %v5529 = vpop.f32.mrb[0].mxu0
        %v5530 = vadd.f32 0.0, %v5529
        %5531 = vdwg.mxu0
        %v5532 = vadd.f32 %v5437, %v5522
        %v5533 = vadd.f32 %v5439, %v5524
        %v5534 = vadd.f32 %v5443, %v5528
        %v5535 = vadd.f32 %v5445, %v5530
        %5536 = vst [vmem:[#allocation6] sm:$0xff] %v5532
        %vm5537 = vcmask 130048
        %5538 = vst.msk [vmem:[#allocation6 + $0x8] sm:$0xff] %vm5537, %v5533
        %5539 = vst [vmem:[#allocation6 + $0x10] sm:$0x1] %v5534
        %vm5540 = vcmask 122880
        %5541 = vst.msk [vmem:[#allocation6 + $0x18] sm:$0x1] %vm5540, %v5535
        %v5542 = vld [vmem:[%s5206] sm:$0xff]
        %v5543 = vld [vmem:[%s5206 + $0x8] sm:$0x1]
        %v5544 = vld [vmem:[%s5206 + $0x1] sm:$0xff]
        %v5545 = vld [vmem:[%s5206 + $0x9] sm:$0x1]
        %v5547 = vsel %vm4874, %v5544, 0
        %v5550 = vsel %vm4874, %v5545, 0
        %5552 = vmatprep.subr.mxu0 %v5233
        %5553 = vmatpush1.msra.mxu0 %v5232
        %5554 = vmatprep.subr.mxu0 %v5235
        %5555 = vmatpush1.msra.mxu0 %v5234
        %5556 = vmatprep.subr.mxu0 %v5237
        %5557 = vmatpush1.msra.mxu0 %v5236
        %5558 = vmatprep.subr.mxu0 %v5239
        %5559 = vmatpush1.msra.mxu0 %v5238
        %5560 = vmatprep.subr.mxu0 %v5241
        %5561 = vmatpush1.msra.mxu0 %v5240
        %5562 = vmatprep.subr.mxu0 %v5243
        %5563 = vmatpush1.msra.mxu0 %v5242
        %5564 = vmatprep.subr.mxu0 %v5245
        %5565 = vmatpush1.msra.mxu0 %v5244
        %5566 = vmatprep.subr.mxu0 %v5247
        %5567 = vmatpush1.msra.mxu0 %v5246
        %5568 = vmatprep.subr.mxu0 %v5249
        %5569 = vmatpush1.msra.mxu0 %v5248
        %5570 = vmatprep.subr.mxu0 %v5251
        %5571 = vmatpush1.msra.mxu0 %v5250
        %5572 = vmatprep.subr.mxu0 %v5253
        %5573 = vmatpush1.msra.mxu0 %v5252
        %5574 = vmatprep.subr.mxu0 0.0
        %5575 = vmatpush1.msra.mxu0 0.0
        %5576 = vmatprep.subr.mxu0 0.0
        %5577 = vmatpush1.msra.mxu0 0.0
        %5578 = vmatprep.subr.mxu0 0.0
        %5579 = vmatpush1.msra.mxu0 0.0
        %5580 = vmatprep.subr.mxu0 0.0
        %5581 = vmatpush1.msra.mxu0 0.0
        %5582 = vmatprep.subr.mxu0 0.0
        %5583 = vmatpush1.msra.mxu0 0.0
        %5584 = vmatprep.subr.mxu0 0.0
        %5585 = vmatpush1.msra.mxu0 0.0
        %5586 = vmatprep.subr.mxu0 0.0
        %5587 = vmatpush1.msra.mxu0 0.0
        %5588 = vmatprep.subr.mxu0 0.0
        %5589 = vmatpush1.msra.mxu0 0.0
        %5590 = vmatprep.subr.mxu0 0.0
        %5591 = vmatpush1.msra.mxu0 0.0
        %5592 = vmatprep.subr.mxu0 0.0
        %5593 = vmatpush1.msra.mxu0 0.0
        %5594 = vmatprep.subr.mxu0 0.0
        %5595 = vmatpush1.msra.mxu0 0.0
        %5596 = vmatprep.subr.mxu0 0.0
        %5597 = vmatpush1.msra.mxu0 0.0
        %5598 = vmatprep.subr.mxu0 0.0
        %5599 = vmatpush1.msra.mxu0 0.0
        %5600 = vmatprep.subr.mxu0 0.0
        %5601 = vmatpush1.msra.mxu0 0.0
        %5602 = vmatprep.subr.mxu0 0.0
        %5603 = vmatpush1.msra.mxu0 0.0
        %5604 = vmatprep.subr.mxu0 0.0
        %5605 = vmatpush1.msra.mxu0 0.0
        %5606 = vmatprep.subr.mxu0 0.0
        %5607 = vmatpush1.msra.mxu0 0.0
        %5608 = vmatprep.subr.mxu0 0.0
        %5609 = vmatpush1.msra.mxu0 0.0
        %5610 = vmatprep.subr.mxu0 0.0
        %5611 = vmatpush1.msra.mxu0 0.0
        %5612 = vmatprep.subr.mxu0 0.0
        %5613 = vmatpush1.msra.mxu0 0.0
        %5614 = vmatprep.subr.mxu0 0.0
        %5615 = vmatpush1.msra.mxu0 0.0
        %5616 = vmatprep.mubr.f32.mxu0 0.0
        %5617 = vmatmul.mubr.f32.gmra.mrb[0].mxu0 %v5547
        %v5618 = vpop.f32.mrb[0].mxu0
        %v5619 = vadd.f32 0.0, %v5618
        %v5620 = vpop.f32.mrb[0].mxu0
        %v5621 = vadd.f32 0.0, %v5620
        %5622 = vmatprep.mubr.f32.mxu0 0.0
        %5623 = vmatmul.mubr.f32.gmra.mrb[0].mxu0 %v5550
        %v5624 = vpop.f32.mrb[0].mxu0
        %v5625 = vadd.f32 0.0, %v5624
        %v5626 = vpop.f32.mrb[0].mxu0
        %v5627 = vadd.f32 0.0, %v5626
        %5628 = vdwg.mxu0
        %v5630 = vsel %vm4874, %v5542, 0
        %v5633 = vsel %vm4874, %v5543, 0
        %5635 = vmatprep.subr.mxu0 %v5210
        %5636 = vmatpush1.msra.mxu0 %v5209
        %5637 = vmatprep.subr.mxu0 %v5212
        %5638 = vmatpush1.msra.mxu0 %v5211
        %5639 = vmatprep.subr.mxu0 %v5214
        %5640 = vmatpush1.msra.mxu0 %v5213
        %5641 = vmatprep.subr.mxu0 %v5216
        %5642 = vmatpush1.msra.mxu0 %v5215
        %5643 = vmatprep.subr.mxu0 %v5218
        %5644 = vmatpush1.msra.mxu0 %v5217
        %5645 = vmatprep.subr.mxu0 %v5220
        %5646 = vmatpush1.msra.mxu0 %v5219
        %5647 = vmatprep.subr.mxu0 %v5222
        %5648 = vmatpush1.msra.mxu0 %v5221
        %5649 = vmatprep.subr.mxu0 %v5224
        %5650 = vmatpush1.msra.mxu0 %v5223
        %5651 = vmatprep.subr.mxu0 %v5226
        %5652 = vmatpush1.msra.mxu0 %v5225
        %5653 = vmatprep.subr.mxu0 %v5228
        %5654 = vmatpush1.msra.mxu0 %v5227
        %5655 = vmatprep.subr.mxu0 %v5230
        %5656 = vmatpush1.msra.mxu0 %v5229
        %5657 = vmatprep.subr.mxu0 0.0
        %5658 = vmatpush1.msra.mxu0 0.0
        %5659 = vmatprep.subr.mxu0 0.0
        %5660 = vmatpush1.msra.mxu0 0.0
        %5661 = vmatprep.subr.mxu0 0.0
        %5662 = vmatpush1.msra.mxu0 0.0
        %5663 = vmatprep.subr.mxu0 0.0
        %5664 = vmatpush1.msra.mxu0 0.0
        %5665 = vmatprep.subr.mxu0 0.0
        %5666 = vmatpush1.msra.mxu0 0.0
        %5667 = vmatprep.subr.mxu0 0.0
        %5668 = vmatpush1.msra.mxu0 0.0
        %5669 = vmatprep.subr.mxu0 0.0
        %5670 = vmatpush1.msra.mxu0 0.0
        %5671 = vmatprep.subr.mxu0 0.0
        %5672 = vmatpush1.msra.mxu0 0.0
        %5673 = vmatprep.subr.mxu0 0.0
        %5674 = vmatpush1.msra.mxu0 0.0
        %5675 = vmatprep.subr.mxu0 0.0
        %5676 = vmatpush1.msra.mxu0 0.0
        %5677 = vmatprep.subr.mxu0 0.0
        %5678 = vmatpush1.msra.mxu0 0.0
        %5679 = vmatprep.subr.mxu0 0.0
        %5680 = vmatpush1.msra.mxu0 0.0
        %5681 = vmatprep.subr.mxu0 0.0
        %5682 = vmatpush1.msra.mxu0 0.0
        %5683 = vmatprep.subr.mxu0 0.0
        %5684 = vmatpush1.msra.mxu0 0.0
        %5685 = vmatprep.subr.mxu0 0.0
        %5686 = vmatpush1.msra.mxu0 0.0
        %5687 = vmatprep.subr.mxu0 0.0
        %5688 = vmatpush1.msra.mxu0 0.0
        %5689 = vmatprep.subr.mxu0 0.0
        %5690 = vmatpush1.msra.mxu0 0.0
        %5691 = vmatprep.subr.mxu0 0.0
        %5692 = vmatpush1.msra.mxu0 0.0
        %5693 = vmatprep.subr.mxu0 0.0
        %5694 = vmatpush1.msra.mxu0 0.0
        %5695 = vmatprep.subr.mxu0 0.0
        %5696 = vmatpush1.msra.mxu0 0.0
        %5697 = vmatprep.subr.mxu0 0.0
        %5698 = vmatpush1.msra.mxu0 0.0
        %5699 = vmatprep.mubr.f32.mxu0 0.0
        %5700 = vmatmul.mubr.f32.gmra.mrb[0].mxu0 %v5630
        %v5701 = vpop.f32.mrb[0].mxu0
        %v5702 = vadd.f32 %v5619, %v5701
        %v5703 = vpop.f32.mrb[0].mxu0
        %v5704 = vadd.f32 %v5621, %v5703
        %5705 = vmatprep.mubr.f32.mxu0 0.0
        %5706 = vmatmul.mubr.f32.gmra.mrb[0].mxu0 %v5633
        %v5707 = vpop.f32.mrb[0].mxu0
        %v5708 = vadd.f32 %v5625, %v5707
        %v5709 = vpop.f32.mrb[0].mxu0
        %v5710 = vadd.f32 %v5627, %v5709
        %5711 = vdwg.mxu0
        %v5712 = vld [vmem:[%s5206 + $0x2] sm:$0xff]
        %v5713 = vld [vmem:[%s5206 + $0xa] sm:$0x1]
        %v5715 = vsel %vm4874, %v5712, 0
        %v5718 = vsel %vm4874, %v5713, 0
        %5720 = vmatprep.subr.mxu0 %v5256
        %5721 = vmatpush1.msra.mxu0 %v5255
        %5722 = vmatprep.subr.mxu0 %v5258
        %5723 = vmatpush1.msra.mxu0 %v5257
        %5724 = vmatprep.subr.mxu0 %v5260
        %5725 = vmatpush1.msra.mxu0 %v5259
        %5726 = vmatprep.subr.mxu0 %v5262
        %5727 = vmatpush1.msra.mxu0 %v5261
        %5728 = vmatprep.subr.mxu0 %v5264
        %5729 = vmatpush1.msra.mxu0 %v5263
        %5730 = vmatprep.subr.mxu0 %v5266
        %5731 = vmatpush1.msra.mxu0 %v5265
        %5732 = vmatprep.subr.mxu0 %v5268
        %5733 = vmatpush1.msra.mxu0 %v5267
        %5734 = vmatprep.subr.mxu0 %v5270
        %5735 = vmatpush1.msra.mxu0 %v5269
        %5736 = vmatprep.subr.mxu0 %v5272
        %5737 = vmatpush1.msra.mxu0 %v5271
        %5738 = vmatprep.subr.mxu0 %v5274
        %5739 = vmatpush1.msra.mxu0 %v5273
        %5740 = vmatprep.subr.mxu0 %v5276
        %5741 = vmatpush1.msra.mxu0 %v5275
        %5742 = vmatprep.subr.mxu0 0.0
        %5743 = vmatpush1.msra.mxu0 0.0
        %5744 = vmatprep.subr.mxu0 0.0
        %5745 = vmatpush1.msra.mxu0 0.0
        %5746 = vmatprep.subr.mxu0 0.0
        %5747 = vmatpush1.msra.mxu0 0.0
        %5748 = vmatprep.subr.mxu0 0.0
        %5749 = vmatpush1.msra.mxu0 0.0
        %5750 = vmatprep.subr.mxu0 0.0
        %5751 = vmatpush1.msra.mxu0 0.0
        %5752 = vmatprep.subr.mxu0 0.0
        %5753 = vmatpush1.msra.mxu0 0.0
        %5754 = vmatprep.subr.mxu0 0.0
        %5755 = vmatpush1.msra.mxu0 0.0
        %5756 = vmatprep.subr.mxu0 0.0
        %5757 = vmatpush1.msra.mxu0 0.0
        %5758 = vmatprep.subr.mxu0 0.0
        %5759 = vmatpush1.msra.mxu0 0.0
        %5760 = vmatprep.subr.mxu0 0.0
        %5761 = vmatpush1.msra.mxu0 0.0
        %5762 = vmatprep.subr.mxu0 0.0
        %5763 = vmatpush1.msra.mxu0 0.0
        %5764 = vmatprep.subr.mxu0 0.0
        %5765 = vmatpush1.msra.mxu0 0.0
        %5766 = vmatprep.subr.mxu0 0.0
        %5767 = vmatpush1.msra.mxu0 0.0
        %5768 = vmatprep.subr.mxu0 0.0
        %5769 = vmatpush1.msra.mxu0 0.0
        %5770 = vmatprep.subr.mxu0 0.0
        %5771 = vmatpush1.msra.mxu0 0.0
        %5772 = vmatprep.subr.mxu0 0.0
        %5773 = vmatpush1.msra.mxu0 0.0
        %5774 = vmatprep.subr.mxu0 0.0
        %5775 = vmatpush1.msra.mxu0 0.0
        %5776 = vmatprep.subr.mxu0 0.0
        %5777 = vmatpush1.msra.mxu0 0.0
        %5778 = vmatprep.subr.mxu0 0.0
        %5779 = vmatpush1.msra.mxu0 0.0
        %5780 = vmatprep.subr.mxu0 0.0
        %5781 = vmatpush1.msra.mxu0 0.0
        %5782 = vmatprep.subr.mxu0 0.0
        %5783 = vmatpush1.msra.mxu0 0.0
        %5784 = vmatprep.mubr.f32.mxu0 0.0
        %5785 = vmatmul.mubr.f32.gmra.mrb[0].mxu0 %v5715
        %v5786 = vpop.f32.mrb[0].mxu0
        %v5787 = vadd.f32 0.0, %v5786
        %v5788 = vpop.f32.mrb[0].mxu0
        %v5789 = vadd.f32 0.0, %v5788
        %5790 = vmatprep.mubr.f32.mxu0 0.0
        %5791 = vmatmul.mubr.f32.gmra.mrb[0].mxu0 %v5718
        %v5792 = vpop.f32.mrb[0].mxu0
        %v5793 = vadd.f32 0.0, %v5792
        %v5794 = vpop.f32.mrb[0].mxu0
        %v5795 = vadd.f32 0.0, %v5794
        %5796 = vdwg.mxu0
        %v5797 = vadd.f32 %v5702, %v5787
        %v5798 = vadd.f32 %v5704, %v5789
        %v5799 = vadd.f32 %v5708, %v5793
        %v5800 = vadd.f32 %v5710, %v5795
        %s5801 = scalar_lea.vmem [#allocation6], 32
        %5802 = vst [vmem:[%s5801] sm:$0xff] %v5797
        %5803 = vst.msk [vmem:[%s5801 + $0x8] sm:$0xff] %vm5537, %v5798
        %5804 = vst [vmem:[%s5801 + $0x10] sm:$0x1] %v5799
        %5805 = vst.msk [vmem:[%s5801 + $0x18] sm:$0x1] %vm5540, %v5800
        %v5806 = vand.u32 %v1080, 15
        %v5807 = vand.u32 %v1081, 15
        %v5808 = vand.u32 %v1082, 15
        %v5809 = vand.u32 %v1083, 15
        %v5810 = vand.u32 %v1084, 15
        %v5811 = vand.u32 %v1085, 15
        %v5812 = vand.u32 %v1086, 15
        %v5813 = vand.u32 %v1087, 15
        %v5814 = vand.u32 %v1088, 15
        %v5815 = vand.u32 %v1089, 15
        %v5816 = vand.u32 %v1090, 15
        %v5817 = vand.u32 %v1091, 15
        %v5818 = vand.u32 %v1092, 15
        %v5819 = vand.u32 %v1093, 15
        %v5820 = vand.u32 %v1094, 15
        %v5821 = vand.u32 %v1095, 15
        %v5822 = vand.u32 %v1096, 15
        %v5823 = vand.u32 %v1097, 15
        %vm5824 = vcmp.eq.s32.totalorder %v5806, %v1107
        %vm5825 = vcmp.eq.s32.totalorder %v5807, %v1107
        %vm5826 = vcmp.eq.s32.totalorder %v5808, %v1107
        %vm5827 = vcmp.eq.s32.totalorder %v5809, %v1107
        %vm5828 = vcmp.eq.s32.totalorder %v5810, %v1107
        %vm5829 = vcmp.eq.s32.totalorder %v5811, %v1107
        %vm5830 = vcmp.eq.s32.totalorder %v5812, %v1107
        %vm5831 = vcmp.eq.s32.totalorder %v5813, %v1107
        %vm5832 = vcmp.eq.s32.totalorder %v5814, %v1107
        %vm5833 = vcmp.eq.s32.totalorder %v5815, %v1107
        %vm5834 = vcmp.eq.s32.totalorder %v5816, %v1107
        %vm5835 = vcmp.eq.s32.totalorder %v5817, %v1107
        %vm5836 = vcmp.eq.s32.totalorder %v5818, %v1107
        %vm5837 = vcmp.eq.s32.totalorder %v5819, %v1107
        %vm5838 = vcmp.eq.s32.totalorder %v5820, %v1107
        %vm5839 = vcmp.eq.s32.totalorder %v5821, %v1107
        %vm5840 = vcmp.eq.s32.totalorder %v5822, %v1107
        %vm5841 = vcmp.eq.s32.totalorder %v5823, %v1107
        %v5842 = vsel %vm5824, 1.0, 0.0
        %v5843 = vsel %vm5825, 1.0, 0.0
        %v5844 = vsel %vm5826, 1.0, 0.0
        %v5845 = vsel %vm5827, 1.0, 0.0
        %v5846 = vsel %vm5828, 1.0, 0.0
        %v5847 = vsel %vm5829, 1.0, 0.0
        %v5848 = vsel %vm5830, 1.0, 0.0
        %v5849 = vsel %vm5831, 1.0, 0.0
        %v5850 = vsel %vm5832, 1.0, 0.0
        %v5851 = vsel %vm5833, 1.0, 0.0
        %v5852 = vsel %vm5834, 1.0, 0.0
        %v5853 = vsel %vm5835, 1.0, 0.0
        %v5854 = vsel %vm5836, 1.0, 0.0
        %v5855 = vsel %vm5837, 1.0, 0.0
        %v5856 = vsel %vm5838, 1.0, 0.0
        %v5857 = vsel %vm5839, 1.0, 0.0
        %v5858 = vsel %vm5840, 1.0, 0.0
        %v5859 = vsel %vm5841, 1.0, 0.0
        %v5860 = vand.u32 %v1107, 15
        %v5861 = vand.u32 %v1186, 15
        %vm5862 = vcmp.eq.s32.totalorder %v5860, %v1080
        %vm5863 = vcmp.eq.s32.totalorder %v5861, %v1080
        %vm5864 = vcmp.eq.s32.totalorder %v5860, %v1081
        %vm5865 = vcmp.eq.s32.totalorder %v5861, %v1081
        %v5866 = vsel %vm5862, 1.0, 0.0
        %v5867 = vsel %vm5863, 1.0, 0.0
        %v5868 = vsel %vm5864, 1.0, 0.0
        %v5869 = vsel %vm5865, 1.0, 0.0
        %v5870 = vld [vmem:[#allocation6] sm:$0xff]
        %v5871 = vld [vmem:[#allocation6 + $0x8] sm:$0xff]
        %v5872 = vld [vmem:[#allocation6 + $0x10] sm:$0x1]
        %v5873 = vld [vmem:[#allocation6 + $0x18] sm:$0x1]
        %vm5874 = vcmask 1040384
        %v5875 = vsel %vm5874, %v5872, 0.0
        %v5876 = vadd.f32 %v5870, %v5875
        %v5877 = vrot.slane %v5876, 4
        %v5878 = vadd.f32 %v5876, %v5877
        %v5879 = vrot.slane %v5878, 2
        %v5880 = vadd.f32 %v5878, %v5879
        %v5881 = vrot.slane %v5880, 1
        %v5882 = vadd.f32 %v5880, %v5881
        %v5883 = vsel %vm5537, %v5871, 0.0
        %v5884 = vsel %vm5540, %v5873, 0.0
        %v5885 = vadd.f32 %v5883, %v5884
        %v5886 = vrot.slane %v5885, 4
        %v5887 = vadd.f32 %v5885, %v5886
        %v5888 = vrot.slane %v5887, 2
        %v5889 = vadd.f32 %v5887, %v5888
        %v5890 = vrot.slane %v5889, 1
        %v5891 = vadd.f32 %v5889, %v5890
        %v5892 = vadd.f32 %v5882, 0.0
        %v5893 = vadd.f32 %v5891, 0.0
        %v5894 = vld [vmem:[%s5801] sm:$0xff]
        %v5895 = vld [vmem:[%s5801 + $0x8] sm:$0xff]
        %v5896 = vld [vmem:[%s5801 + $0x10] sm:$0x1]
        %v5897 = vld [vmem:[%s5801 + $0x18] sm:$0x1]
        %v5898 = vsel %vm5874, %v5896, 0.0
        %v5899 = vadd.f32 %v5894, %v5898
        %v5900 = vrot.slane %v5899, 4
        %v5901 = vadd.f32 %v5899, %v5900
        %v5902 = vrot.slane %v5901, 2
        %v5903 = vadd.f32 %v5901, %v5902
        %v5904 = vrot.slane %v5903, 1
        %v5905 = vadd.f32 %v5903, %v5904
        %v5906 = vsel %vm5537, %v5895, 0.0
        %v5907 = vsel %vm5540, %v5897, 0.0
        %v5908 = vadd.f32 %v5906, %v5907
        %v5909 = vrot.slane %v5908, 4
        %v5910 = vadd.f32 %v5908, %v5909
        %v5911 = vrot.slane %v5910, 2
        %v5912 = vadd.f32 %v5910, %v5911
        %v5913 = vrot.slane %v5912, 1
        %v5914 = vadd.f32 %v5912, %v5913
        %v5915 = vadd.f32 %v5892, %v5905
        %v5916 = vadd.f32 %v5893, %v5914
        %v5918 = vsel %vm5537, %v5916, 0
        %5920 = vmatprep.subr.mxu0 0.0
        %5921 = vmatpush1.msra.mxu0 %v5842
        %5922 = vmatprep.subr.mxu0 0.0
        %5923 = vmatpush1.msra.mxu0 %v5843
        %5924 = vmatprep.subr.mxu0 0.0
        %5925 = vmatpush1.msra.mxu0 %v5844
        %5926 = vmatprep.subr.mxu0 0.0
        %5927 = vmatpush1.msra.mxu0 %v5845
        %5928 = vmatprep.subr.mxu0 0.0
        %5929 = vmatpush1.msra.mxu0 %v5846
        %5930 = vmatprep.subr.mxu0 0.0
        %5931 = vmatpush1.msra.mxu0 %v5847
        %5932 = vmatprep.subr.mxu0 0.0
        %5933 = vmatpush1.msra.mxu0 %v5848
        %5934 = vmatprep.subr.mxu0 0.0
        %5935 = vmatpush1.msra.mxu0 %v5849
        %5936 = vmatprep.subr.mxu0 0.0
        %5937 = vmatpush1.msra.mxu0 %v5850
        %5938 = vmatprep.subr.mxu0 0.0
        %5939 = vmatpush1.msra.mxu0 %v5851
        %5940 = vmatprep.subr.mxu0 0.0
        %5941 = vmatpush1.msra.mxu0 %v5852
        %5942 = vmatprep.subr.mxu0 0.0
        %5943 = vmatpush1.msra.mxu0 %v5853
        %5944 = vmatprep.subr.mxu0 0.0
        %5945 = vmatpush1.msra.mxu0 %v5854
        %5946 = vmatprep.subr.mxu0 0.0
        %5947 = vmatpush1.msra.mxu0 %v5855
        %5948 = vmatprep.subr.mxu0 0.0
        %5949 = vmatpush1.msra.mxu0 %v5856
        %5950 = vmatprep.subr.mxu0 0.0
        %5951 = vmatpush1.msra.mxu0 %v5857
        %5952 = vmatprep.subr.mxu0 0.0
        %5953 = vmatpush1.msra.mxu0 %v5858
        %5954 = vmatprep.subr.mxu0 0.0
        %5955 = vmatpush1.msra.mxu0 %v5859
        %5956 = vmatprep.subr.mxu0 0.0
        %5957 = vmatpush1.msra.mxu0 0.0
        %5958 = vmatprep.subr.mxu0 0.0
        %5959 = vmatpush1.msra.mxu0 0.0
        %5960 = vmatprep.subr.mxu0 0.0
        %5961 = vmatpush1.msra.mxu0 0.0
        %5962 = vmatprep.subr.mxu0 0.0
        %5963 = vmatpush1.msra.mxu0 0.0
        %5964 = vmatprep.subr.mxu0 0.0
        %5965 = vmatpush1.msra.mxu0 0.0
        %5966 = vmatprep.subr.mxu0 0.0
        %5967 = vmatpush1.msra.mxu0 0.0
        %5968 = vmatprep.subr.mxu0 0.0
        %5969 = vmatpush1.msra.mxu0 0.0
        %5970 = vmatprep.subr.mxu0 0.0
        %5971 = vmatpush1.msra.mxu0 0.0
        %5972 = vmatprep.subr.mxu0 0.0
        %5973 = vmatpush1.msra.mxu0 0.0
        %5974 = vmatprep.subr.mxu0 0.0
        %5975 = vmatpush1.msra.mxu0 0.0
        %5976 = vmatprep.subr.mxu0 0.0
        %5977 = vmatpush1.msra.mxu0 0.0
        %5978 = vmatprep.subr.mxu0 0.0
        %5979 = vmatpush1.msra.mxu0 0.0
        %5980 = vmatprep.subr.mxu0 0.0
        %5981 = vmatpush1.msra.mxu0 0.0
        %5982 = vmatprep.subr.mxu0 0.0
        %5983 = vmatpush1.msra.mxu0 0.0
        %5984 = vmatprep.mubr.f32.mxu0 %v5918
        %5985 = vmatmul.mubr.f32.gmra.mrb[0].mxu0 %v5915
        %v5986 = vpop.f32.mrb[0].mxu0
        %v5987 = vadd.f32 0.0, %v5986
        %v5988 = vpop.f32.mrb[0].mxu0
        %5989 = vdwg.mxu0
        %v5990 = vmul.f32 %v5987, 0.0061728396
        %v5992 = vsel %vm5537, %v5990, 0
        %5994 = vmatprep.subr.mxu0 %v5867
        %5995 = vmatpush1.msra.mxu0 %v5866
        %5996 = vmatprep.subr.mxu0 %v5869
        %5997 = vmatpush1.msra.mxu0 %v5868
        %5998 = vmatprep.subr.mxu0 0.0
        %5999 = vmatpush1.msra.mxu0 0.0
        %6000 = vmatprep.subr.mxu0 0.0
        %6001 = vmatpush1.msra.mxu0 0.0
        %6002 = vmatprep.subr.mxu0 0.0
        %6003 = vmatpush1.msra.mxu0 0.0
        %6004 = vmatprep.subr.mxu0 0.0
        %6005 = vmatpush1.msra.mxu0 0.0
        %6006 = vmatprep.subr.mxu0 0.0
        %6007 = vmatpush1.msra.mxu0 0.0
        %6008 = vmatprep.subr.mxu0 0.0
        %6009 = vmatpush1.msra.mxu0 0.0
        %6010 = vmatprep.subr.mxu0 0.0
        %6011 = vmatpush1.msra.mxu0 0.0
        %6012 = vmatprep.subr.mxu0 0.0
        %6013 = vmatpush1.msra.mxu0 0.0
        %6014 = vmatprep.subr.mxu0 0.0
        %6015 = vmatpush1.msra.mxu0 0.0
        %6016 = vmatprep.subr.mxu0 0.0
        %6017 = vmatpush1.msra.mxu0 0.0
        %6018 = vmatprep.subr.mxu0 0.0
        %6019 = vmatpush1.msra.mxu0 0.0
        %6020 = vmatprep.subr.mxu0 0.0
        %6021 = vmatpush1.msra.mxu0 0.0
        %6022 = vmatprep.subr.mxu0 0.0
        %6023 = vmatpush1.msra.mxu0 0.0
        %6024 = vmatprep.subr.mxu0 0.0
        %6025 = vmatpush1.msra.mxu0 0.0
        %6026 = vmatprep.subr.mxu0 0.0
        %6027 = vmatpush1.msra.mxu0 0.0
        %6028 = vmatprep.subr.mxu0 0.0
        %6029 = vmatpush1.msra.mxu0 0.0
        %6030 = vmatprep.subr.mxu0 0.0
        %6031 = vmatpush1.msra.mxu0 0.0
        %6032 = vmatprep.subr.mxu0 0.0
        %6033 = vmatpush1.msra.mxu0 0.0
        %6034 = vmatprep.subr.mxu0 0.0
        %6035 = vmatpush1.msra.mxu0 0.0
        %6036 = vmatprep.subr.mxu0 0.0
        %6037 = vmatpush1.msra.mxu0 0.0
        %6038 = vmatprep.subr.mxu0 0.0
        %6039 = vmatpush1.msra.mxu0 0.0
        %6040 = vmatprep.subr.mxu0 0.0
        %6041 = vmatpush1.msra.mxu0 0.0
        %6042 = vmatprep.subr.mxu0 0.0
        %6043 = vmatpush1.msra.mxu0 0.0
        %6044 = vmatprep.subr.mxu0 0.0
        %6045 = vmatpush1.msra.mxu0 0.0
        %6046 = vmatprep.subr.mxu0 0.0
        %6047 = vmatpush1.msra.mxu0 0.0
        %6048 = vmatprep.subr.mxu0 0.0
        %6049 = vmatpush1.msra.mxu0 0.0
        %6050 = vmatprep.subr.mxu0 0.0
        %6051 = vmatpush1.msra.mxu0 0.0
        %6052 = vmatprep.subr.mxu0 0.0
        %6053 = vmatpush1.msra.mxu0 0.0
        %6054 = vmatprep.subr.mxu0 0.0
        %6055 = vmatpush1.msra.mxu0 0.0
        %6056 = vmatprep.subr.mxu0 0.0
        %6057 = vmatpush1.msra.mxu0 0.0
        %6058 = vmatprep.mubr.f32.mxu0 0.0
        %6059 = vmatmul.mubr.f32.gmra.mrb[0].mxu0 %v5992
        %v6060 = vpop.f32.mrb[0].mxu0
        %v6061 = vadd.f32 0.0, %v6060
        %v6062 = vpop.f32.mrb[0].mxu0
        %v6063 = vadd.f32 0.0, %v6062
        %6064 = vdwg.mxu0
        %v6065 = vlaneseq
        %v6066 = vshrl.u32 %v6065, 7
        %v6067 = vsub.s32 0, %v6066
        %v6068 = vrot.slane %v6061, %v6067
        %v6069 = vlaneseq
        %v6070 = vshrl.u32 %v6069, 7
        %v6071 = vsub.s32 0, %v6070
        %v6072 = vrot.slane %v6063, %v6071
        %v6073 = vsub.f32 %v5870, %v6068
        %v6074 = vsub.f32 %v5871, %v6072
        %v6075 = vsub.f32 %v5872, %v6068
        %v6076 = vsub.f32 %v5873, %v6072
        %v6077 = vmul.f32 %v6073, %v6073
        %v6078 = vmul.f32 %v6074, %v6074
        %v6079 = vmul.f32 %v6075, %v6075
        %v6080 = vmul.f32 %v6076, %v6076
        %v6081 = vsel %vm5874, %v6079, 0.0
        %v6082 = vadd.f32 %v6077, %v6081
        %v6083 = vrot.slane %v6082, 4
        %v6084 = vadd.f32 %v6082, %v6083
        %v6085 = vrot.slane %v6084, 2
        %v6086 = vadd.f32 %v6084, %v6085
        %v6087 = vrot.slane %v6086, 1
        %v6088 = vadd.f32 %v6086, %v6087
        %v6089 = vsel %vm5537, %v6078, 0.0
        %v6090 = vsel %vm5540, %v6080, 0.0
        %v6091 = vadd.f32 %v6089, %v6090
        %v6092 = vrot.slane %v6091, 4
        %v6093 = vadd.f32 %v6091, %v6092
        %v6094 = vrot.slane %v6093, 2
        %v6095 = vadd.f32 %v6093, %v6094
        %v6096 = vrot.slane %v6095, 1
        %v6097 = vadd.f32 %v6095, %v6096
        %v6098 = vadd.f32 %v6088, 0.0
        %v6099 = vadd.f32 %v6097, 0.0
        %v6100 = vsub.f32 %v5894, %v6068
        %v6101 = vsub.f32 %v5895, %v6072
        %v6102 = vsub.f32 %v5896, %v6068
        %v6103 = vsub.f32 %v5897, %v6072
        %v6104 = vmul.f32 %v6100, %v6100
        %v6105 = vmul.f32 %v6101, %v6101
        %v6106 = vmul.f32 %v6102, %v6102
        %v6107 = vmul.f32 %v6103, %v6103
        %v6108 = vsel %vm5874, %v6106, 0.0
        %v6109 = vadd.f32 %v6104, %v6108
        %v6110 = vrot.slane %v6109, 4
        %v6111 = vadd.f32 %v6109, %v6110
        %v6112 = vrot.slane %v6111, 2
        %v6113 = vadd.f32 %v6111, %v6112
        %v6114 = vrot.slane %v6113, 1
        %v6115 = vadd.f32 %v6113, %v6114
        %v6116 = vsel %vm5537, %v6105, 0.0
        %v6117 = vsel %vm5540, %v6107, 0.0
        %v6118 = vadd.f32 %v6116, %v6117
        %v6119 = vrot.slane %v6118, 4
        %v6120 = vadd.f32 %v6118, %v6119
        %v6121 = vrot.slane %v6120, 2
        %v6122 = vadd.f32 %v6120, %v6121
        %v6123 = vrot.slane %v6122, 1
        %v6124 = vadd.f32 %v6122, %v6123
        %v6125 = vadd.f32 %v6098, %v6115
        %v6126 = vadd.f32 %v6099, %v6124
        %v6128 = vsel %vm5537, %v6126, 0
        %6130 = vmatprep.subr.mxu0 0.0
        %6131 = vmatpush1.msra.mxu0 %v5842
        %6132 = vmatprep.subr.mxu0 0.0
        %6133 = vmatpush1.msra.mxu0 %v5843
        %6134 = vmatprep.subr.mxu0 0.0
        %6135 = vmatpush1.msra.mxu0 %v5844
        %6136 = vmatprep.subr.mxu0 0.0
        %6137 = vmatpush1.msra.mxu0 %v5845
        %6138 = vmatprep.subr.mxu0 0.0
        %6139 = vmatpush1.msra.mxu0 %v5846
        %6140 = vmatprep.subr.mxu0 0.0
        %6141 = vmatpush1.msra.mxu0 %v5847
        %6142 = vmatprep.subr.mxu0 0.0
        %6143 = vmatpush1.msra.mxu0 %v5848
        %6144 = vmatprep.subr.mxu0 0.0
        %6145 = vmatpush1.msra.mxu0 %v5849
        %6146 = vmatprep.subr.mxu0 0.0
        %6147 = vmatpush1.msra.mxu0 %v5850
        %6148 = vmatprep.subr.mxu0 0.0
        %6149 = vmatpush1.msra.mxu0 %v5851
        %6150 = vmatprep.subr.mxu0 0.0
        %6151 = vmatpush1.msra.mxu0 %v5852
        %6152 = vmatprep.subr.mxu0 0.0
        %6153 = vmatpush1.msra.mxu0 %v5853
        %6154 = vmatprep.subr.mxu0 0.0
        %6155 = vmatpush1.msra.mxu0 %v5854
        %6156 = vmatprep.subr.mxu0 0.0
        %6157 = vmatpush1.msra.mxu0 %v5855
        %6158 = vmatprep.subr.mxu0 0.0
        %6159 = vmatpush1.msra.mxu0 %v5856
        %6160 = vmatprep.subr.mxu0 0.0
        %6161 = vmatpush1.msra.mxu0 %v5857
        %6162 = vmatprep.subr.mxu0 0.0
        %6163 = vmatpush1.msra.mxu0 %v5858
        %6164 = vmatprep.subr.mxu0 0.0
        %6165 = vmatpush1.msra.mxu0 %v5859
        %6166 = vmatprep.subr.mxu0 0.0
        %6167 = vmatpush1.msra.mxu0 0.0
        %6168 = vmatprep.subr.mxu0 0.0
        %6169 = vmatpush1.msra.mxu0 0.0
        %6170 = vmatprep.subr.mxu0 0.0
        %6171 = vmatpush1.msra.mxu0 0.0
        %6172 = vmatprep.subr.mxu0 0.0
        %6173 = vmatpush1.msra.mxu0 0.0
        %6174 = vmatprep.subr.mxu0 0.0
        %6175 = vmatpush1.msra.mxu0 0.0
        %6176 = vmatprep.subr.mxu0 0.0
        %6177 = vmatpush1.msra.mxu0 0.0
        %6178 = vmatprep.subr.mxu0 0.0
        %6179 = vmatpush1.msra.mxu0 0.0
        %6180 = vmatprep.subr.mxu0 0.0
        %6181 = vmatpush1.msra.mxu0 0.0
        %6182 = vmatprep.subr.mxu0 0.0
        %6183 = vmatpush1.msra.mxu0 0.0
        %6184 = vmatprep.subr.mxu0 0.0
        %6185 = vmatpush1.msra.mxu0 0.0
        %6186 = vmatprep.subr.mxu0 0.0
        %6187 = vmatpush1.msra.mxu0 0.0
        %6188 = vmatprep.subr.mxu0 0.0
        %6189 = vmatpush1.msra.mxu0 0.0
        %6190 = vmatprep.subr.mxu0 0.0
        %6191 = vmatpush1.msra.mxu0 0.0
        %6192 = vmatprep.subr.mxu0 0.0
        %6193 = vmatpush1.msra.mxu0 0.0
        %6194 = vmatprep.mubr.f32.mxu0 %v6128
        %6195 = vmatmul.mubr.f32.gmra.mrb[0].mxu0 %v6125
        %v6196 = vpop.f32.mrb[0].mxu0
        %v6197 = vadd.f32 0.0, %v6196
        %v6198 = vpop.f32.mrb[0].mxu0
        %6199 = vdwg.mxu0
        %v6200 = vmul.f32 %v6197, 0.0061728396
        %v6201 = vadd.f32 %v6200, 1e-05
        %v6202 = vrsqrt.pop %v6201
        %v6204 = vsel %vm5537, %v6202, 0
        %6206 = vmatprep.subr.mxu0 %v5867
        %6207 = vmatpush1.msra.mxu0 %v5866
        %6208 = vmatprep.subr.mxu0 %v5869
        %6209 = vmatpush1.msra.mxu0 %v5868
        %6210 = vmatprep.subr.mxu0 0.0
        %6211 = vmatpush1.msra.mxu0 0.0
        %6212 = vmatprep.subr.mxu0 0.0
        %6213 = vmatpush1.msra.mxu0 0.0
        %6214 = vmatprep.subr.mxu0 0.0
        %6215 = vmatpush1.msra.mxu0 0.0
        %6216 = vmatprep.subr.mxu0 0.0
        %6217 = vmatpush1.msra.mxu0 0.0
        %6218 = vmatprep.subr.mxu0 0.0
        %6219 = vmatpush1.msra.mxu0 0.0
        %6220 = vmatprep.subr.mxu0 0.0
        %6221 = vmatpush1.msra.mxu0 0.0
        %6222 = vmatprep.subr.mxu0 0.0
        %6223 = vmatpush1.msra.mxu0 0.0
        %6224 = vmatprep.subr.mxu0 0.0
        %6225 = vmatpush1.msra.mxu0 0.0
        %6226 = vmatprep.subr.mxu0 0.0
        %6227 = vmatpush1.msra.mxu0 0.0
        %6228 = vmatprep.subr.mxu0 0.0
        %6229 = vmatpush1.msra.mxu0 0.0
        %6230 = vmatprep.subr.mxu0 0.0
        %6231 = vmatpush1.msra.mxu0 0.0
        %6232 = vmatprep.subr.mxu0 0.0
        %6233 = vmatpush1.msra.mxu0 0.0
        %6234 = vmatprep.subr.mxu0 0.0
        %6235 = vmatpush1.msra.mxu0 0.0
        %6236 = vmatprep.subr.mxu0 0.0
        %6237 = vmatpush1.msra.mxu0 0.0
        %6238 = vmatprep.subr.mxu0 0.0
        %6239 = vmatpush1.msra.mxu0 0.0
        %6240 = vmatprep.subr.mxu0 0.0
        %6241 = vmatpush1.msra.mxu0 0.0
        %6242 = vmatprep.subr.mxu0 0.0
        %6243 = vmatpush1.msra.mxu0 0.0
        %6244 = vmatprep.subr.mxu0 0.0
        %6245 = vmatpush1.msra.mxu0 0.0
        %6246 = vmatprep.subr.mxu0 0.0
        %6247 = vmatpush1.msra.mxu0 0.0
        %6248 = vmatprep.subr.mxu0 0.0
        %6249 = vmatpush1.msra.mxu0 0.0
        %6250 = vmatprep.subr.mxu0 0.0
        %6251 = vmatpush1.msra.mxu0 0.0
        %6252 = vmatprep.subr.mxu0 0.0
        %6253 = vmatpush1.msra.mxu0 0.0
        %6254 = vmatprep.subr.mxu0 0.0
        %6255 = vmatpush1.msra.mxu0 0.0
        %6256 = vmatprep.subr.mxu0 0.0
        %6257 = vmatpush1.msra.mxu0 0.0
        %6258 = vmatprep.subr.mxu0 0.0
        %6259 = vmatpush1.msra.mxu0 0.0
        %6260 = vmatprep.subr.mxu0 0.0
        %6261 = vmatpush1.msra.mxu0 0.0
        %6262 = vmatprep.subr.mxu0 0.0
        %6263 = vmatpush1.msra.mxu0 0.0
        %6264 = vmatprep.subr.mxu0 0.0
        %6265 = vmatpush1.msra.mxu0 0.0
        %6266 = vmatprep.subr.mxu0 0.0
        %6267 = vmatpush1.msra.mxu0 0.0
        %6268 = vmatprep.subr.mxu0 0.0
        %6269 = vmatpush1.msra.mxu0 0.0
        %6270 = vmatprep.mubr.f32.mxu0 0.0
        %6271 = vmatmul.mubr.f32.gmra.mrb[0].mxu0 %v6204
        %v6272 = vpop.f32.mrb[0].mxu0
        %v6273 = vadd.f32 0.0, %v6272
        %v6274 = vpop.f32.mrb[0].mxu0
        %v6275 = vadd.f32 0.0, %v6274
        %6276 = vdwg.mxu0
        %v6277 = vlaneseq
        %v6278 = vshrl.u32 %v6277, 7
        %v6279 = vsub.s32 0, %v6278
        %v6280 = vrot.slane %v6273, %v6279
        %v6281 = vlaneseq
        %v6282 = vshrl.u32 %v6281, 7
        %v6283 = vsub.s32 0, %v6282
        %v6284 = vrot.slane %v6275, %v6283
        %v6285 = vmul.f32 %v6073, %v6280
        %v6286 = vmul.f32 %v6074, %v6284
        %v6287 = vmul.f32 %v6075, %v6280
        %v6288 = vmul.f32 %v6076, %v6284
        %v6289 = vmax.f32 %v6285, 0.0
        %v6290 = vmax.f32 %v6286, 0.0
        %v6291 = vmax.f32 %v6287, 0.0
        %v6292 = vmax.f32 %v6288, 0.0
        %6293 = vst [vmem:[#allocation6] sm:$0xff] %v6289
        %6294 = vst.msk [vmem:[#allocation6 + $0x8] sm:$0xff] %vm5537, %v6290
        %6295 = vst [vmem:[#allocation6 + $0x10] sm:$0x1] %v6291
        %6296 = vst.msk [vmem:[#allocation6 + $0x18] sm:$0x1] %vm5540, %v6292
        %v6297 = vld [vmem:[%s5801] sm:$0xff]
        %v6298 = vld [vmem:[%s5801 + $0x8] sm:$0xff]
        %v6299 = vld [vmem:[%s5801 + $0x10] sm:$0x1]
        %v6300 = vld [vmem:[%s5801 + $0x18] sm:$0x1]
        %v6301 = vsub.f32 %v6297, %v6068
        %v6302 = vsub.f32 %v6298, %v6072
        %v6303 = vsub.f32 %v6299, %v6068
        %v6304 = vsub.f32 %v6300, %v6072
        %v6305 = vmul.f32 %v6301, %v6280
        %v6306 = vmul.f32 %v6302, %v6284
        %v6307 = vmul.f32 %v6303, %v6280
        %v6308 = vmul.f32 %v6304, %v6284
        %v6309 = vmax.f32 %v6305, 0.0
        %v6310 = vmax.f32 %v6306, 0.0
        %v6311 = vmax.f32 %v6307, 0.0
        %v6312 = vmax.f32 %v6308, 0.0
        %6313 = vst [vmem:[%s5801] sm:$0xff] %v6309
        %6314 = vst.msk [vmem:[%s5801 + $0x8] sm:$0xff] %vm5537, %v6310
        %6315 = vst [vmem:[%s5801 + $0x10] sm:$0x1] %v6311
        %6316 = vst.msk [vmem:[%s5801 + $0x18] sm:$0x1] %vm5540, %v6312
        %v6317 = vld [vmem:[%s5] sm:$0xff]
        %v6318 = vld [vmem:[%s5 + $0x8] sm:$0xff]
        %v6319 = vld [vmem:[%s5 + $0x10] sm:$0xff]
        %v6320 = vld [vmem:[%s5 + $0x18] sm:$0xff]
        %v6321 = vld [vmem:[%s5 + $0x20] sm:$0xff]
        %v6322 = vld [vmem:[%s5 + $0x28] sm:$0xff]
        %v6323 = vld [vmem:[%s5 + $0x30] sm:$0xff]
        %v6324 = vld [vmem:[%s5 + $0x38] sm:$0xff]
        %v6325 = vld [vmem:[%s5 + $0x40] sm:$0xff]
        %v6326 = vld [vmem:[%s5 + $0x48] sm:$0xff]
        %v6327 = vld [vmem:[%s5 + $0x50] sm:$0xff]
        %v6328 = vld [vmem:[%s5 + $0x58] sm:$0xff]
        %v6329 = vld [vmem:[%s5 + $0x60] sm:$0xff]
        %v6330 = vld [vmem:[%s5 + $0x68] sm:$0xff]
        %v6331 = vld [vmem:[%s5 + $0x70] sm:$0xff]
        %v6332 = vld [vmem:[%s5 + $0x78] sm:$0xff]
        %v6333 = vld [vmem:[%s5 + $0x80] sm:$0xff]
        %v6334 = vld [vmem:[%s5 + $0x88] sm:$0xff]
        %s6335 = scalar_lea.vmem %s5, 144
        %v6336 = vld [vmem:[%s6335] sm:$0xff]
        %v6337 = vld [vmem:[%s6335 + $0x8] sm:$0xff]
        %v6338 = vld [vmem:[%s6335 + $0x10] sm:$0xff]
        %v6339 = vld [vmem:[%s6335 + $0x18] sm:$0xff]
        %v6340 = vld [vmem:[%s6335 + $0x20] sm:$0xff]
        %v6341 = vld [vmem:[%s6335 + $0x28] sm:$0xff]
        %v6342 = vld [vmem:[%s6335 + $0x30] sm:$0xff]
        %v6343 = vld [vmem:[%s6335 + $0x38] sm:$0xff]
        %v6344 = vld [vmem:[%s6335 + $0x40] sm:$0xff]
        %v6345 = vld [vmem:[%s6335 + $0x48] sm:$0xff]
        %v6346 = vld [vmem:[%s6335 + $0x50] sm:$0xff]
        %v6347 = vld [vmem:[%s6335 + $0x58] sm:$0xff]
        %v6348 = vld [vmem:[%s6335 + $0x60] sm:$0xff]
        %v6349 = vld [vmem:[%s6335 + $0x68] sm:$0xff]
        %v6350 = vld [vmem:[%s6335 + $0x70] sm:$0xff]
        %v6351 = vld [vmem:[%s6335 + $0x78] sm:$0xff]
        %v6352 = vld [vmem:[%s6335 + $0x80] sm:$0xff]
        %v6353 = vld [vmem:[%s6335 + $0x88] sm:$0xff]
        %s6354 = scalar_lea.vmem %s5, 288
        %v6355 = vld [vmem:[%s6354] sm:$0xff]
        %v6356 = vld [vmem:[%s6354 + $0x8] sm:$0xff]
        %v6357 = vld [vmem:[%s6354 + $0x10] sm:$0xff]
        %v6358 = vld [vmem:[%s6354 + $0x18] sm:$0xff]
        %v6359 = vld [vmem:[%s6354 + $0x20] sm:$0xff]
        %v6360 = vld [vmem:[%s6354 + $0x28] sm:$0xff]
        %v6361 = vld [vmem:[%s6354 + $0x30] sm:$0xff]
        %v6362 = vld [vmem:[%s6354 + $0x38] sm:$0xff]
        %v6363 = vld [vmem:[%s6354 + $0x40] sm:$0xff]
        %v6364 = vld [vmem:[%s6354 + $0x48] sm:$0xff]
        %v6365 = vld [vmem:[%s6354 + $0x50] sm:$0xff]
        %v6366 = vld [vmem:[%s6354 + $0x58] sm:$0xff]
        %v6367 = vld [vmem:[%s6354 + $0x60] sm:$0xff]
        %v6368 = vld [vmem:[%s6354 + $0x68] sm:$0xff]
        %v6369 = vld [vmem:[%s6354 + $0x70] sm:$0xff]
        %v6370 = vld [vmem:[%s6354 + $0x78] sm:$0xff]
        %v6371 = vld [vmem:[%s6354 + $0x80] sm:$0xff]
        %v6372 = vld [vmem:[%s6354 + $0x88] sm:$0xff]
        %v6373 = vld [vmem:[#allocation6] sm:$0x7f]
        %v6374 = vld [vmem:[#allocation6 + $0x8] sm:$0x7f]
        %v6375 = vld [vmem:[#allocation6] sm:$0xfe]
        %v6376 = vld [vmem:[#allocation6 + $0x8] sm:$0xfe]
        %v6379 = vrot.slane %v6375, 1
        %v6380 = vrot.slane %v6376, 1
        %v6382 = vsel %vm5537, %v6380, 0
        %6384 = vmatprep.subr.mxu0 0.0
        %6385 = vmatpush1.msra.mxu0 %v6336
        %6386 = vmatprep.subr.mxu0 0.0
        %6387 = vmatpush1.msra.mxu0 %v6337
        %6388 = vmatprep.subr.mxu0 0.0
        %6389 = vmatpush1.msra.mxu0 %v6338
        %6390 = vmatprep.subr.mxu0 0.0
        %6391 = vmatpush1.msra.mxu0 %v6339
        %6392 = vmatprep.subr.mxu0 0.0
        %6393 = vmatpush1.msra.mxu0 %v6340
        %6394 = vmatprep.subr.mxu0 0.0
        %6395 = vmatpush1.msra.mxu0 %v6341
        %6396 = vmatprep.subr.mxu0 0.0
        %6397 = vmatpush1.msra.mxu0 %v6342
        %6398 = vmatprep.subr.mxu0 0.0
        %6399 = vmatpush1.msra.mxu0 %v6343
        %6400 = vmatprep.subr.mxu0 0.0
        %6401 = vmatpush1.msra.mxu0 %v6344
        %6402 = vmatprep.subr.mxu0 0.0
        %6403 = vmatpush1.msra.mxu0 %v6345
        %6404 = vmatprep.subr.mxu0 0.0
        %6405 = vmatpush1.msra.mxu0 %v6346
        %6406 = vmatprep.subr.mxu0 0.0
        %6407 = vmatpush1.msra.mxu0 %v6347
        %6408 = vmatprep.subr.mxu0 0.0
        %6409 = vmatpush1.msra.mxu0 %v6348
        %6410 = vmatprep.subr.mxu0 0.0
        %6411 = vmatpush1.msra.mxu0 %v6349
        %6412 = vmatprep.subr.mxu0 0.0
        %6413 = vmatpush1.msra.mxu0 %v6350
        %6414 = vmatprep.subr.mxu0 0.0
        %6415 = vmatpush1.msra.mxu0 %v6351
        %6416 = vmatprep.subr.mxu0 0.0
        %6417 = vmatpush1.msra.mxu0 %v6352
        %6418 = vmatprep.subr.mxu0 0.0
        %6419 = vmatpush1.msra.mxu0 %v6353
        %6420 = vmatprep.subr.mxu0 0.0
        %6421 = vmatpush1.msra.mxu0 0.0
        %6422 = vmatprep.subr.mxu0 0.0
        %6423 = vmatpush1.msra.mxu0 0.0
        %6424 = vmatprep.subr.mxu0 0.0
        %6425 = vmatpush1.msra.mxu0 0.0
        %6426 = vmatprep.subr.mxu0 0.0
        %6427 = vmatpush1.msra.mxu0 0.0
        %6428 = vmatprep.subr.mxu0 0.0
        %6429 = vmatpush1.msra.mxu0 0.0
        %6430 = vmatprep.subr.mxu0 0.0
        %6431 = vmatpush1.msra.mxu0 0.0
        %6432 = vmatprep.subr.mxu0 0.0
        %6433 = vmatpush1.msra.mxu0 0.0
        %6434 = vmatprep.subr.mxu0 0.0
        %6435 = vmatpush1.msra.mxu0 0.0
        %6436 = vmatprep.subr.mxu0 0.0
        %6437 = vmatpush1.msra.mxu0 0.0
        %6438 = vmatprep.subr.mxu0 0.0
        %6439 = vmatpush1.msra.mxu0 0.0
        %6440 = vmatprep.subr.mxu0 0.0
        %6441 = vmatpush1.msra.mxu0 0.0
        %6442 = vmatprep.subr.mxu0 0.0
        %6443 = vmatpush1.msra.mxu0 0.0
        %6444 = vmatprep.subr.mxu0 0.0
        %6445 = vmatpush1.msra.mxu0 0.0
        %6446 = vmatprep.subr.mxu0 0.0
        %6447 = vmatpush1.msra.mxu0 0.0
        %6448 = vmatprep.mubr.f32.mxu0 %v6382
        %6449 = vmatmul.mubr.f32.gmra.mrb[0].mxu0 %v6379
        %v6450 = vpop.f32.mrb[0].mxu0
        %v6451 = vadd.f32 0.0, %v6450
        %v6452 = vpop.f32.mrb[0].mxu0
        %6453 = vdwg.mxu0
        %v6455 = vsel %vm5537, %v6374, 0
        %6457 = vmatprep.subr.mxu0 0.0
        %6458 = vmatpush1.msra.mxu0 %v6317
        %6459 = vmatprep.subr.mxu0 0.0
        %6460 = vmatpush1.msra.mxu0 %v6318
        %6461 = vmatprep.subr.mxu0 0.0
        %6462 = vmatpush1.msra.mxu0 %v6319
        %6463 = vmatprep.subr.mxu0 0.0
        %6464 = vmatpush1.msra.mxu0 %v6320
        %6465 = vmatprep.subr.mxu0 0.0
        %6466 = vmatpush1.msra.mxu0 %v6321
        %6467 = vmatprep.subr.mxu0 0.0
        %6468 = vmatpush1.msra.mxu0 %v6322
        %6469 = vmatprep.subr.mxu0 0.0
        %6470 = vmatpush1.msra.mxu0 %v6323
        %6471 = vmatprep.subr.mxu0 0.0
        %6472 = vmatpush1.msra.mxu0 %v6324
        %6473 = vmatprep.subr.mxu0 0.0
        %6474 = vmatpush1.msra.mxu0 %v6325
        %6475 = vmatprep.subr.mxu0 0.0
        %6476 = vmatpush1.msra.mxu0 %v6326
        %6477 = vmatprep.subr.mxu0 0.0
        %6478 = vmatpush1.msra.mxu0 %v6327
        %6479 = vmatprep.subr.mxu0 0.0
        %6480 = vmatpush1.msra.mxu0 %v6328
        %6481 = vmatprep.subr.mxu0 0.0
        %6482 = vmatpush1.msra.mxu0 %v6329
        %6483 = vmatprep.subr.mxu0 0.0
        %6484 = vmatpush1.msra.mxu0 %v6330
        %6485 = vmatprep.subr.mxu0 0.0
        %6486 = vmatpush1.msra.mxu0 %v6331
        %6487 = vmatprep.subr.mxu0 0.0
        %6488 = vmatpush1.msra.mxu0 %v6332
        %6489 = vmatprep.subr.mxu0 0.0
        %6490 = vmatpush1.msra.mxu0 %v6333
        %6491 = vmatprep.subr.mxu0 0.0
        %6492 = vmatpush1.msra.mxu0 %v6334
        %6493 = vmatprep.subr.mxu0 0.0
        %6494 = vmatpush1.msra.mxu0 0.0
        %6495 = vmatprep.subr.mxu0 0.0
        %6496 = vmatpush1.msra.mxu0 0.0
        %6497 = vmatprep.subr.mxu0 0.0
        %6498 = vmatpush1.msra.mxu0 0.0
        %6499 = vmatprep.subr.mxu0 0.0
        %6500 = vmatpush1.msra.mxu0 0.0
        %6501 = vmatprep.subr.mxu0 0.0
        %6502 = vmatpush1.msra.mxu0 0.0
        %6503 = vmatprep.subr.mxu0 0.0
        %6504 = vmatpush1.msra.mxu0 0.0
        %6505 = vmatprep.subr.mxu0 0.0
        %6506 = vmatpush1.msra.mxu0 0.0
        %6507 = vmatprep.subr.mxu0 0.0
        %6508 = vmatpush1.msra.mxu0 0.0
        %6509 = vmatprep.subr.mxu0 0.0
        %6510 = vmatpush1.msra.mxu0 0.0
        %6511 = vmatprep.subr.mxu0 0.0
        %6512 = vmatpush1.msra.mxu0 0.0
        %6513 = vmatprep.subr.mxu0 0.0
        %6514 = vmatpush1.msra.mxu0 0.0
        %6515 = vmatprep.subr.mxu0 0.0
        %6516 = vmatpush1.msra.mxu0 0.0
        %6517 = vmatprep.subr.mxu0 0.0
        %6518 = vmatpush1.msra.mxu0 0.0
        %6519 = vmatprep.subr.mxu0 0.0
        %6520 = vmatpush1.msra.mxu0 0.0
        %6521 = vmatprep.mubr.f32.mxu0 %v6455
        %6522 = vmatmul.mubr.f32.gmra.mrb[0].mxu0 %v6373
        %v6523 = vpop.f32.mrb[0].mxu0
        %v6524 = vadd.f32 %v6451, %v6523
        %v6525 = vpop.f32.mrb[0].mxu0
        %6526 = vdwg.mxu0
        %v6527 = vld [vmem:[#allocation6] sm:$0xfc]
        %v6528 = vld [vmem:[#allocation6 + $0x8] sm:$0xfc]
        %v6529 = vld [vmem:[#allocation6 + $0x10] sm:$0x1]
        %v6530 = vld [vmem:[#allocation6 + $0x18] sm:$0x1]
        %v6535 = vrot.slane %v6527, 2
        %v6536 = vrot.slane %v6529, 2
        %v6537 = vsel %vm2102, %v6535, %v6536
        %v6538 = vrot.slane %v6528, 2
        %v6539 = vrot.slane %v6530, 2
        %v6540 = vsel %vm2102, %v6538, %v6539
        %v6542 = vsel %vm5537, %v6540, 0
        %6544 = vmatprep.subr.mxu0 0.0
        %6545 = vmatpush1.msra.mxu0 %v6355
        %6546 = vmatprep.subr.mxu0 0.0
        %6547 = vmatpush1.msra.mxu0 %v6356
        %6548 = vmatprep.subr.mxu0 0.0
        %6549 = vmatpush1.msra.mxu0 %v6357
        %6550 = vmatprep.subr.mxu0 0.0
        %6551 = vmatpush1.msra.mxu0 %v6358
        %6552 = vmatprep.subr.mxu0 0.0
        %6553 = vmatpush1.msra.mxu0 %v6359
        %6554 = vmatprep.subr.mxu0 0.0
        %6555 = vmatpush1.msra.mxu0 %v6360
        %6556 = vmatprep.subr.mxu0 0.0
        %6557 = vmatpush1.msra.mxu0 %v6361
        %6558 = vmatprep.subr.mxu0 0.0
        %6559 = vmatpush1.msra.mxu0 %v6362
        %6560 = vmatprep.subr.mxu0 0.0
        %6561 = vmatpush1.msra.mxu0 %v6363
        %6562 = vmatprep.subr.mxu0 0.0
        %6563 = vmatpush1.msra.mxu0 %v6364
        %6564 = vmatprep.subr.mxu0 0.0
        %6565 = vmatpush1.msra.mxu0 %v6365
        %6566 = vmatprep.subr.mxu0 0.0
        %6567 = vmatpush1.msra.mxu0 %v6366
        %6568 = vmatprep.subr.mxu0 0.0
        %6569 = vmatpush1.msra.mxu0 %v6367
        %6570 = vmatprep.subr.mxu0 0.0
        %6571 = vmatpush1.msra.mxu0 %v6368
        %6572 = vmatprep.subr.mxu0 0.0
        %6573 = vmatpush1.msra.mxu0 %v6369
        %6574 = vmatprep.subr.mxu0 0.0
        %6575 = vmatpush1.msra.mxu0 %v6370
        %6576 = vmatprep.subr.mxu0 0.0
        %6577 = vmatpush1.msra.mxu0 %v6371
        %6578 = vmatprep.subr.mxu0 0.0
        %6579 = vmatpush1.msra.mxu0 %v6372
        %6580 = vmatprep.subr.mxu0 0.0
        %6581 = vmatpush1.msra.mxu0 0.0
        %6582 = vmatprep.subr.mxu0 0.0
        %6583 = vmatpush1.msra.mxu0 0.0
        %6584 = vmatprep.subr.mxu0 0.0
        %6585 = vmatpush1.msra.mxu0 0.0
        %6586 = vmatprep.subr.mxu0 0.0
        %6587 = vmatpush1.msra.mxu0 0.0
        %6588 = vmatprep.subr.mxu0 0.0
        %6589 = vmatpush1.msra.mxu0 0.0
        %6590 = vmatprep.subr.mxu0 0.0
        %6591 = vmatpush1.msra.mxu0 0.0
        %6592 = vmatprep.subr.mxu0 0.0
        %6593 = vmatpush1.msra.mxu0 0.0
        %6594 = vmatprep.subr.mxu0 0.0
        %6595 = vmatpush1.msra.mxu0 0.0
        %6596 = vmatprep.subr.mxu0 0.0
        %6597 = vmatpush1.msra.mxu0 0.0
        %6598 = vmatprep.subr.mxu0 0.0
        %6599 = vmatpush1.msra.mxu0 0.0
        %6600 = vmatprep.subr.mxu0 0.0
        %6601 = vmatpush1.msra.mxu0 0.0
        %6602 = vmatprep.subr.mxu0 0.0
        %6603 = vmatpush1.msra.mxu0 0.0
        %6604 = vmatprep.subr.mxu0 0.0
        %6605 = vmatpush1.msra.mxu0 0.0
        %6606 = vmatprep.subr.mxu0 0.0
        %6607 = vmatpush1.msra.mxu0 0.0
        %6608 = vmatprep.mubr.f32.mxu0 %v6542
        %6609 = vmatmul.mubr.f32.gmra.mrb[0].mxu0 %v6537
        %v6610 = vpop.f32.mrb[0].mxu0
        %v6611 = vadd.f32 0.0, %v6610
        %v6612 = vpop.f32.mrb[0].mxu0
        %6613 = vdwg.mxu0
        %v6614 = vadd.f32 %v6524, %v6611
        %vm6615 = vcmask 915456
        %6616 = vst.msk [vmem:[#allocation7] sm:$0x7f] %vm6615, %v6614
        %v6617 = vld [vmem:[%s5801] sm:$0x7f]
        %v6618 = vld [vmem:[%s5801 + $0x8] sm:$0x7f]
        %v6619 = vld [vmem:[%s5801] sm:$0xfe]
        %v6620 = vld [vmem:[%s5801 + $0x8] sm:$0xfe]
        %v6623 = vrot.slane %v6619, 1
        %v6624 = vrot.slane %v6620, 1
        %v6626 = vsel %vm5537, %v6624, 0
        %6628 = vmatprep.subr.mxu0 0.0
        %6629 = vmatpush1.msra.mxu0 %v6336
        %6630 = vmatprep.subr.mxu0 0.0
        %6631 = vmatpush1.msra.mxu0 %v6337
        %6632 = vmatprep.subr.mxu0 0.0
        %6633 = vmatpush1.msra.mxu0 %v6338
        %6634 = vmatprep.subr.mxu0 0.0
        %6635 = vmatpush1.msra.mxu0 %v6339
        %6636 = vmatprep.subr.mxu0 0.0
        %6637 = vmatpush1.msra.mxu0 %v6340
        %6638 = vmatprep.subr.mxu0 0.0
        %6639 = vmatpush1.msra.mxu0 %v6341
        %6640 = vmatprep.subr.mxu0 0.0
        %6641 = vmatpush1.msra.mxu0 %v6342
        %6642 = vmatprep.subr.mxu0 0.0
        %6643 = vmatpush1.msra.mxu0 %v6343
        %6644 = vmatprep.subr.mxu0 0.0
        %6645 = vmatpush1.msra.mxu0 %v6344
        %6646 = vmatprep.subr.mxu0 0.0
        %6647 = vmatpush1.msra.mxu0 %v6345
        %6648 = vmatprep.subr.mxu0 0.0
        %6649 = vmatpush1.msra.mxu0 %v6346
        %6650 = vmatprep.subr.mxu0 0.0
        %6651 = vmatpush1.msra.mxu0 %v6347
        %6652 = vmatprep.subr.mxu0 0.0
        %6653 = vmatpush1.msra.mxu0 %v6348
        %6654 = vmatprep.subr.mxu0 0.0
        %6655 = vmatpush1.msra.mxu0 %v6349
        %6656 = vmatprep.subr.mxu0 0.0
        %6657 = vmatpush1.msra.mxu0 %v6350
        %6658 = vmatprep.subr.mxu0 0.0
        %6659 = vmatpush1.msra.mxu0 %v6351
        %6660 = vmatprep.subr.mxu0 0.0
        %6661 = vmatpush1.msra.mxu0 %v6352
        %6662 = vmatprep.subr.mxu0 0.0
        %6663 = vmatpush1.msra.mxu0 %v6353
        %6664 = vmatprep.subr.mxu0 0.0
        %6665 = vmatpush1.msra.mxu0 0.0
        %6666 = vmatprep.subr.mxu0 0.0
        %6667 = vmatpush1.msra.mxu0 0.0
        %6668 = vmatprep.subr.mxu0 0.0
        %6669 = vmatpush1.msra.mxu0 0.0
        %6670 = vmatprep.subr.mxu0 0.0
        %6671 = vmatpush1.msra.mxu0 0.0
        %6672 = vmatprep.subr.mxu0 0.0
        %6673 = vmatpush1.msra.mxu0 0.0
        %6674 = vmatprep.subr.mxu0 0.0
        %6675 = vmatpush1.msra.mxu0 0.0
        %6676 = vmatprep.subr.mxu0 0.0
        %6677 = vmatpush1.msra.mxu0 0.0
        %6678 = vmatprep.subr.mxu0 0.0
        %6679 = vmatpush1.msra.mxu0 0.0
        %6680 = vmatprep.subr.mxu0 0.0
        %6681 = vmatpush1.msra.mxu0 0.0
        %6682 = vmatprep.subr.mxu0 0.0
        %6683 = vmatpush1.msra.mxu0 0.0
        %6684 = vmatprep.subr.mxu0 0.0
        %6685 = vmatpush1.msra.mxu0 0.0
        %6686 = vmatprep.subr.mxu0 0.0
        %6687 = vmatpush1.msra.mxu0 0.0
        %6688 = vmatprep.subr.mxu0 0.0
        %6689 = vmatpush1.msra.mxu0 0.0
        %6690 = vmatprep.subr.mxu0 0.0
        %6691 = vmatpush1.msra.mxu0 0.0
        %6692 = vmatprep.mubr.f32.mxu0 %v6626
        %6693 = vmatmul.mubr.f32.gmra.mrb[0].mxu0 %v6623
        %v6694 = vpop.f32.mrb[0].mxu0
        %v6695 = vadd.f32 0.0, %v6694
        %v6696 = vpop.f32.mrb[0].mxu0
        %6697 = vdwg.mxu0
        %v6699 = vsel %vm5537, %v6618, 0
        %6701 = vmatprep.subr.mxu0 0.0
        %6702 = vmatpush1.msra.mxu0 %v6317
        %6703 = vmatprep.subr.mxu0 0.0
        %6704 = vmatpush1.msra.mxu0 %v6318
        %6705 = vmatprep.subr.mxu0 0.0
        %6706 = vmatpush1.msra.mxu0 %v6319
        %6707 = vmatprep.subr.mxu0 0.0
        %6708 = vmatpush1.msra.mxu0 %v6320
        %6709 = vmatprep.subr.mxu0 0.0
        %6710 = vmatpush1.msra.mxu0 %v6321
        %6711 = vmatprep.subr.mxu0 0.0
        %6712 = vmatpush1.msra.mxu0 %v6322
        %6713 = vmatprep.subr.mxu0 0.0
        %6714 = vmatpush1.msra.mxu0 %v6323
        %6715 = vmatprep.subr.mxu0 0.0
        %6716 = vmatpush1.msra.mxu0 %v6324
        %6717 = vmatprep.subr.mxu0 0.0
        %6718 = vmatpush1.msra.mxu0 %v6325
        %6719 = vmatprep.subr.mxu0 0.0
        %6720 = vmatpush1.msra.mxu0 %v6326
        %6721 = vmatprep.subr.mxu0 0.0
        %6722 = vmatpush1.msra.mxu0 %v6327
        %6723 = vmatprep.subr.mxu0 0.0
        %6724 = vmatpush1.msra.mxu0 %v6328
        %6725 = vmatprep.subr.mxu0 0.0
        %6726 = vmatpush1.msra.mxu0 %v6329
        %6727 = vmatprep.subr.mxu0 0.0
        %6728 = vmatpush1.msra.mxu0 %v6330
        %6729 = vmatprep.subr.mxu0 0.0
        %6730 = vmatpush1.msra.mxu0 %v6331
        %6731 = vmatprep.subr.mxu0 0.0
        %6732 = vmatpush1.msra.mxu0 %v6332
        %6733 = vmatprep.subr.mxu0 0.0
        %6734 = vmatpush1.msra.mxu0 %v6333
        %6735 = vmatprep.subr.mxu0 0.0
        %6736 = vmatpush1.msra.mxu0 %v6334
        %6737 = vmatprep.subr.mxu0 0.0
        %6738 = vmatpush1.msra.mxu0 0.0
        %6739 = vmatprep.subr.mxu0 0.0
        %6740 = vmatpush1.msra.mxu0 0.0
        %6741 = vmatprep.subr.mxu0 0.0
        %6742 = vmatpush1.msra.mxu0 0.0
        %6743 = vmatprep.subr.mxu0 0.0
        %6744 = vmatpush1.msra.mxu0 0.0
        %6745 = vmatprep.subr.mxu0 0.0
        %6746 = vmatpush1.msra.mxu0 0.0
        %6747 = vmatprep.subr.mxu0 0.0
        %6748 = vmatpush1.msra.mxu0 0.0
        %6749 = vmatprep.subr.mxu0 0.0
        %6750 = vmatpush1.msra.mxu0 0.0
        %6751 = vmatprep.subr.mxu0 0.0
        %6752 = vmatpush1.msra.mxu0 0.0
        %6753 = vmatprep.subr.mxu0 0.0
        %6754 = vmatpush1.msra.mxu0 0.0
        %6755 = vmatprep.subr.mxu0 0.0
        %6756 = vmatpush1.msra.mxu0 0.0
        %6757 = vmatprep.subr.mxu0 0.0
        %6758 = vmatpush1.msra.mxu0 0.0
        %6759 = vmatprep.subr.mxu0 0.0
        %6760 = vmatpush1.msra.mxu0 0.0
        %6761 = vmatprep.subr.mxu0 0.0
        %6762 = vmatpush1.msra.mxu0 0.0
        %6763 = vmatprep.subr.mxu0 0.0
        %6764 = vmatpush1.msra.mxu0 0.0
        %6765 = vmatprep.mubr.f32.mxu0 %v6699
        %6766 = vmatmul.mubr.f32.gmra.mrb[0].mxu0 %v6617
        %v6767 = vpop.f32.mrb[0].mxu0
        %v6768 = vadd.f32 %v6695, %v6767
        %v6769 = vpop.f32.mrb[0].mxu0
        %6770 = vdwg.mxu0
        %v6771 = vld [vmem:[%s5801] sm:$0xfc]
        %v6772 = vld [vmem:[%s5801 + $0x8] sm:$0xfc]
        %v6773 = vld [vmem:[%s5801 + $0x10] sm:$0x1]
        %v6774 = vld [vmem:[%s5801 + $0x18] sm:$0x1]
        %v6779 = vrot.slane %v6771, 2
        %v6780 = vrot.slane %v6773, 2
        %v6781 = vsel %vm2102, %v6779, %v6780
        %v6782 = vrot.slane %v6772, 2
        %v6783 = vrot.slane %v6774, 2
        %v6784 = vsel %vm2102, %v6782, %v6783
        %v6786 = vsel %vm5537, %v6784, 0
        %6788 = vmatprep.subr.mxu0 0.0
        %6789 = vmatpush1.msra.mxu0 %v6355
        %6790 = vmatprep.subr.mxu0 0.0
        %6791 = vmatpush1.msra.mxu0 %v6356
        %6792 = vmatprep.subr.mxu0 0.0
        %6793 = vmatpush1.msra.mxu0 %v6357
        %6794 = vmatprep.subr.mxu0 0.0
        %6795 = vmatpush1.msra.mxu0 %v6358
        %6796 = vmatprep.subr.mxu0 0.0
        %6797 = vmatpush1.msra.mxu0 %v6359
        %6798 = vmatprep.subr.mxu0 0.0
        %6799 = vmatpush1.msra.mxu0 %v6360
        %6800 = vmatprep.subr.mxu0 0.0
        %6801 = vmatpush1.msra.mxu0 %v6361
        %6802 = vmatprep.subr.mxu0 0.0
        %6803 = vmatpush1.msra.mxu0 %v6362
        %6804 = vmatprep.subr.mxu0 0.0
        %6805 = vmatpush1.msra.mxu0 %v6363
        %6806 = vmatprep.subr.mxu0 0.0
        %6807 = vmatpush1.msra.mxu0 %v6364
        %6808 = vmatprep.subr.mxu0 0.0
        %6809 = vmatpush1.msra.mxu0 %v6365
        %6810 = vmatprep.subr.mxu0 0.0
        %6811 = vmatpush1.msra.mxu0 %v6366
        %6812 = vmatprep.subr.mxu0 0.0
        %6813 = vmatpush1.msra.mxu0 %v6367
        %6814 = vmatprep.subr.mxu0 0.0
        %6815 = vmatpush1.msra.mxu0 %v6368
        %6816 = vmatprep.subr.mxu0 0.0
        %6817 = vmatpush1.msra.mxu0 %v6369
        %6818 = vmatprep.subr.mxu0 0.0
        %6819 = vmatpush1.msra.mxu0 %v6370
        %6820 = vmatprep.subr.mxu0 0.0
        %6821 = vmatpush1.msra.mxu0 %v6371
        %6822 = vmatprep.subr.mxu0 0.0
        %6823 = vmatpush1.msra.mxu0 %v6372
        %6824 = vmatprep.subr.mxu0 0.0
        %6825 = vmatpush1.msra.mxu0 0.0
        %6826 = vmatprep.subr.mxu0 0.0
        %6827 = vmatpush1.msra.mxu0 0.0
        %6828 = vmatprep.subr.mxu0 0.0
        %6829 = vmatpush1.msra.mxu0 0.0
        %6830 = vmatprep.subr.mxu0 0.0
        %6831 = vmatpush1.msra.mxu0 0.0
        %6832 = vmatprep.subr.mxu0 0.0
        %6833 = vmatpush1.msra.mxu0 0.0
        %6834 = vmatprep.subr.mxu0 0.0
        %6835 = vmatpush1.msra.mxu0 0.0
        %6836 = vmatprep.subr.mxu0 0.0
        %6837 = vmatpush1.msra.mxu0 0.0
        %6838 = vmatprep.subr.mxu0 0.0
        %6839 = vmatpush1.msra.mxu0 0.0
        %6840 = vmatprep.subr.mxu0 0.0
        %6841 = vmatpush1.msra.mxu0 0.0
        %6842 = vmatprep.subr.mxu0 0.0
        %6843 = vmatpush1.msra.mxu0 0.0
        %6844 = vmatprep.subr.mxu0 0.0
        %6845 = vmatpush1.msra.mxu0 0.0
        %6846 = vmatprep.subr.mxu0 0.0
        %6847 = vmatpush1.msra.mxu0 0.0
        %6848 = vmatprep.subr.mxu0 0.0
        %6849 = vmatpush1.msra.mxu0 0.0
        %6850 = vmatprep.subr.mxu0 0.0
        %6851 = vmatpush1.msra.mxu0 0.0
        %6852 = vmatprep.mubr.f32.mxu0 %v6786
        %6853 = vmatmul.mubr.f32.gmra.mrb[0].mxu0 %v6781
        %v6854 = vpop.f32.mrb[0].mxu0
        %v6855 = vadd.f32 0.0, %v6854
        %v6856 = vpop.f32.mrb[0].mxu0
        %6857 = vdwg.mxu0
        %v6858 = vadd.f32 %v6768, %v6855
        %s6859 = scalar_lea.vmem [#allocation7], 8
        %6860 = vst.msk [vmem:[%s6859] sm:$0x7f] %vm6615, %v6858
        %v6861 = vld [vmem:[#allocation7] sm:$0x7f]
        %v6862 = vsel %vm6615, %v6861, 0.0
        %v6863 = vrot.slane %v6862, 4
        %v6864 = vadd.f32 %v6862, %v6863
        %v6865 = vrot.slane %v6864, 2
        %v6866 = vadd.f32 %v6864, %v6865
        %v6867 = vrot.slane %v6866, 1
        %v6868 = vadd.f32 %v6866, %v6867
        %v6869 = vadd.f32 %v6868, 0.0
        %v6870 = vld [vmem:[%s6859] sm:$0x7f]
        %v6871 = vsel %vm6615, %v6870, 0.0
        %v6872 = vrot.slane %v6871, 4
        %v6873 = vadd.f32 %v6871, %v6872
        %v6874 = vrot.slane %v6873, 2
        %v6875 = vadd.f32 %v6873, %v6874
        %v6876 = vrot.slane %v6875, 1
        %v6877 = vadd.f32 %v6875, %v6876
        %v6878 = vadd.f32 %v6869, %v6877
        %vm6879 = vcmask 916480
        %v6881 = vsel %vm6879, %v6878, 0
        %6883 = vmatprep.subr.mxu0 0.0
        %6884 = vmatpush1.msra.mxu0 %v5842
        %6885 = vmatprep.subr.mxu0 0.0
        %6886 = vmatpush1.msra.mxu0 %v5843
        %6887 = vmatprep.subr.mxu0 0.0
        %6888 = vmatpush1.msra.mxu0 %v5844
        %6889 = vmatprep.subr.mxu0 0.0
        %6890 = vmatpush1.msra.mxu0 %v5845
        %6891 = vmatprep.subr.mxu0 0.0
        %6892 = vmatpush1.msra.mxu0 %v5846
        %6893 = vmatprep.subr.mxu0 0.0
        %6894 = vmatpush1.msra.mxu0 %v5847
        %6895 = vmatprep.subr.mxu0 0.0
        %6896 = vmatpush1.msra.mxu0 %v5848
        %6897 = vmatprep.subr.mxu0 0.0
        %6898 = vmatpush1.msra.mxu0 %v5849
        %6899 = vmatprep.subr.mxu0 0.0
        %6900 = vmatpush1.msra.mxu0 %v5850
        %6901 = vmatprep.subr.mxu0 0.0
        %6902 = vmatpush1.msra.mxu0 %v5851
        %6903 = vmatprep.subr.mxu0 0.0
        %6904 = vmatpush1.msra.mxu0 %v5852
        %6905 = vmatprep.subr.mxu0 0.0
        %6906 = vmatpush1.msra.mxu0 %v5853
        %6907 = vmatprep.subr.mxu0 0.0
        %6908 = vmatpush1.msra.mxu0 %v5854
        %6909 = vmatprep.subr.mxu0 0.0
        %6910 = vmatpush1.msra.mxu0 %v5855
        %6911 = vmatprep.subr.mxu0 0.0
        %6912 = vmatpush1.msra.mxu0 0.0
        %6913 = vmatprep.subr.mxu0 0.0
        %6914 = vmatpush1.msra.mxu0 0.0
        %6915 = vmatprep.subr.mxu0 0.0
        %6916 = vmatpush1.msra.mxu0 0.0
        %6917 = vmatprep.subr.mxu0 0.0
        %6918 = vmatpush1.msra.mxu0 0.0
        %6919 = vmatprep.subr.mxu0 0.0
        %6920 = vmatpush1.msra.mxu0 0.0
        %6921 = vmatprep.subr.mxu0 0.0
        %6922 = vmatpush1.msra.mxu0 0.0
        %6923 = vmatprep.subr.mxu0 0.0
        %6924 = vmatpush1.msra.mxu0 0.0
        %6925 = vmatprep.subr.mxu0 0.0
        %6926 = vmatpush1.msra.mxu0 0.0
        %6927 = vmatprep.subr.mxu0 0.0
        %6928 = vmatpush1.msra.mxu0 0.0
        %6929 = vmatprep.subr.mxu0 0.0
        %6930 = vmatpush1.msra.mxu0 0.0
        %6931 = vmatprep.subr.mxu0 0.0
        %6932 = vmatpush1.msra.mxu0 0.0
        %6933 = vmatprep.subr.mxu0 0.0
        %6934 = vmatpush1.msra.mxu0 0.0
        %6935 = vmatprep.subr.mxu0 0.0
        %6936 = vmatpush1.msra.mxu0 0.0
        %6937 = vmatprep.subr.mxu0 0.0
        %6938 = vmatpush1.msra.mxu0 0.0
        %6939 = vmatprep.subr.mxu0 0.0
        %6940 = vmatpush1.msra.mxu0 0.0
        %6941 = vmatprep.subr.mxu0 0.0
        %6942 = vmatpush1.msra.mxu0 0.0
        %6943 = vmatprep.subr.mxu0 0.0
        %6944 = vmatpush1.msra.mxu0 0.0
        %6945 = vmatprep.subr.mxu0 0.0
        %6946 = vmatpush1.msra.mxu0 0.0
        %6947 = vmatprep.mubr.f32.mxu0 0.0
        %6948 = vmatmul.mubr.f32.gmra.mrb[0].mxu0 %v6881
        %v6949 = vpop.f32.mrb[0].mxu0
        %v6950 = vadd.f32 0.0, %v6949
        %v6951 = vpop.f32.mrb[0].mxu0
        %6952 = vdwg.mxu0
        %v6953 = vmul.f32 %v6950, 0.010204081
        %v6955 = vsel %vm5537, %v6953, 0
        %6957 = vmatprep.subr.mxu0 0.0
        %6958 = vmatpush1.msra.mxu0 %v5866
        %6959 = vmatprep.subr.mxu0 0.0
        %6960 = vmatpush1.msra.mxu0 %v5868
        %6961 = vmatprep.subr.mxu0 0.0
        %6962 = vmatpush1.msra.mxu0 0.0
        %6963 = vmatprep.subr.mxu0 0.0
        %6964 = vmatpush1.msra.mxu0 0.0
        %6965 = vmatprep.subr.mxu0 0.0
        %6966 = vmatpush1.msra.mxu0 0.0
        %6967 = vmatprep.subr.mxu0 0.0
        %6968 = vmatpush1.msra.mxu0 0.0
        %6969 = vmatprep.subr.mxu0 0.0
        %6970 = vmatpush1.msra.mxu0 0.0
        %6971 = vmatprep.subr.mxu0 0.0
        %6972 = vmatpush1.msra.mxu0 0.0
        %6973 = vmatprep.subr.mxu0 0.0
        %6974 = vmatpush1.msra.mxu0 0.0
        %6975 = vmatprep.subr.mxu0 0.0
        %6976 = vmatpush1.msra.mxu0 0.0
        %6977 = vmatprep.subr.mxu0 0.0
        %6978 = vmatpush1.msra.mxu0 0.0
        %6979 = vmatprep.subr.mxu0 0.0
        %6980 = vmatpush1.msra.mxu0 0.0
        %6981 = vmatprep.subr.mxu0 0.0
        %6982 = vmatpush1.msra.mxu0 0.0
        %6983 = vmatprep.subr.mxu0 0.0
        %6984 = vmatpush1.msra.mxu0 0.0
        %6985 = vmatprep.subr.mxu0 0.0
        %6986 = vmatpush1.msra.mxu0 0.0
        %6987 = vmatprep.subr.mxu0 0.0
        %6988 = vmatpush1.msra.mxu0 0.0
        %6989 = vmatprep.subr.mxu0 0.0
        %6990 = vmatpush1.msra.mxu0 0.0
        %6991 = vmatprep.subr.mxu0 0.0
        %6992 = vmatpush1.msra.mxu0 0.0
        %6993 = vmatprep.subr.mxu0 0.0
        %6994 = vmatpush1.msra.mxu0 0.0
        %6995 = vmatprep.subr.mxu0 0.0
        %6996 = vmatpush1.msra.mxu0 0.0
        %6997 = vmatprep.subr.mxu0 0.0
        %6998 = vmatpush1.msra.mxu0 0.0
        %6999 = vmatprep.subr.mxu0 0.0
        %7000 = vmatpush1.msra.mxu0 0.0
        %7001 = vmatprep.subr.mxu0 0.0
        %7002 = vmatpush1.msra.mxu0 0.0
        %7003 = vmatprep.subr.mxu0 0.0
        %7004 = vmatpush1.msra.mxu0 0.0
        %7005 = vmatprep.subr.mxu0 0.0
        %7006 = vmatpush1.msra.mxu0 0.0
        %7007 = vmatprep.subr.mxu0 0.0
        %7008 = vmatpush1.msra.mxu0 0.0
        %7009 = vmatprep.subr.mxu0 0.0
        %7010 = vmatpush1.msra.mxu0 0.0
        %7011 = vmatprep.subr.mxu0 0.0
        %7012 = vmatpush1.msra.mxu0 0.0
        %7013 = vmatprep.subr.mxu0 0.0
        %7014 = vmatpush1.msra.mxu0 0.0
        %7015 = vmatprep.subr.mxu0 0.0
        %7016 = vmatpush1.msra.mxu0 0.0
        %7017 = vmatprep.subr.mxu0 0.0
        %7018 = vmatpush1.msra.mxu0 0.0
        %7019 = vmatprep.subr.mxu0 0.0
        %7020 = vmatpush1.msra.mxu0 0.0
        %7021 = vmatprep.mubr.f32.mxu0 0.0
        %7022 = vmatmul.mubr.f32.gmra.mrb[0].mxu0 %v6955
        %v7023 = vpop.f32.mrb[0].mxu0
        %v7024 = vadd.f32 0.0, %v7023
        %v7025 = vpop.f32.mrb[0].mxu0
        %7026 = vdwg.mxu0
        %v7027 = vlaneseq
        %v7028 = vshrl.u32 %v7027, 7
        %v7029 = vsub.s32 0, %v7028
        %v7030 = vrot.slane %v7024, %v7029
        %v7031 = vsub.f32 %v6861, %v7030
        %v7032 = vmul.f32 %v7031, %v7031
        %v7033 = vsel %vm6615, %v7032, 0.0
        %v7034 = vrot.slane %v7033, 4
        %v7035 = vadd.f32 %v7033, %v7034
        %v7036 = vrot.slane %v7035, 2
        %v7037 = vadd.f32 %v7035, %v7036
        %v7038 = vrot.slane %v7037, 1
        %v7039 = vadd.f32 %v7037, %v7038
        %v7040 = vadd.f32 %v7039, 0.0
        %v7041 = vsub.f32 %v6870, %v7030
        %v7042 = vmul.f32 %v7041, %v7041
        %v7043 = vsel %vm6615, %v7042, 0.0
        %v7044 = vrot.slane %v7043, 4
        %v7045 = vadd.f32 %v7043, %v7044
        %v7046 = vrot.slane %v7045, 2
        %v7047 = vadd.f32 %v7045, %v7046
        %v7048 = vrot.slane %v7047, 1
        %v7049 = vadd.f32 %v7047, %v7048
        %v7050 = vadd.f32 %v7040, %v7049
        %v7052 = vsel %vm6879, %v7050, 0
        %7054 = vmatprep.subr.mxu0 0.0
        %7055 = vmatpush1.msra.mxu0 %v5842
        %7056 = vmatprep.subr.mxu0 0.0
        %7057 = vmatpush1.msra.mxu0 %v5843
        %7058 = vmatprep.subr.mxu0 0.0
        %7059 = vmatpush1.msra.mxu0 %v5844
        %7060 = vmatprep.subr.mxu0 0.0
        %7061 = vmatpush1.msra.mxu0 %v5845
        %7062 = vmatprep.subr.mxu0 0.0
        %7063 = vmatpush1.msra.mxu0 %v5846
        %7064 = vmatprep.subr.mxu0 0.0
        %7065 = vmatpush1.msra.mxu0 %v5847
        %7066 = vmatprep.subr.mxu0 0.0
        %7067 = vmatpush1.msra.mxu0 %v5848
        %7068 = vmatprep.subr.mxu0 0.0
        %7069 = vmatpush1.msra.mxu0 %v5849
        %7070 = vmatprep.subr.mxu0 0.0
        %7071 = vmatpush1.msra.mxu0 %v5850
        %7072 = vmatprep.subr.mxu0 0.0
        %7073 = vmatpush1.msra.mxu0 %v5851
        %7074 = vmatprep.subr.mxu0 0.0
        %7075 = vmatpush1.msra.mxu0 %v5852
        %7076 = vmatprep.subr.mxu0 0.0
        %7077 = vmatpush1.msra.mxu0 %v5853
        %7078 = vmatprep.subr.mxu0 0.0
        %7079 = vmatpush1.msra.mxu0 %v5854
        %7080 = vmatprep.subr.mxu0 0.0
        %7081 = vmatpush1.msra.mxu0 %v5855
        %7082 = vmatprep.subr.mxu0 0.0
        %7083 = vmatpush1.msra.mxu0 0.0
        %7084 = vmatprep.subr.mxu0 0.0
        %7085 = vmatpush1.msra.mxu0 0.0
        %7086 = vmatprep.subr.mxu0 0.0
        %7087 = vmatpush1.msra.mxu0 0.0
        %7088 = vmatprep.subr.mxu0 0.0
        %7089 = vmatpush1.msra.mxu0 0.0
        %7090 = vmatprep.subr.mxu0 0.0
        %7091 = vmatpush1.msra.mxu0 0.0
        %7092 = vmatprep.subr.mxu0 0.0
        %7093 = vmatpush1.msra.mxu0 0.0
        %7094 = vmatprep.subr.mxu0 0.0
        %7095 = vmatpush1.msra.mxu0 0.0
        %7096 = vmatprep.subr.mxu0 0.0
        %7097 = vmatpush1.msra.mxu0 0.0
        %7098 = vmatprep.subr.mxu0 0.0
        %7099 = vmatpush1.msra.mxu0 0.0
        %7100 = vmatprep.subr.mxu0 0.0
        %7101 = vmatpush1.msra.mxu0 0.0
        %7102 = vmatprep.subr.mxu0 0.0
        %7103 = vmatpush1.msra.mxu0 0.0
        %7104 = vmatprep.subr.mxu0 0.0
        %7105 = vmatpush1.msra.mxu0 0.0
        %7106 = vmatprep.subr.mxu0 0.0
        %7107 = vmatpush1.msra.mxu0 0.0
        %7108 = vmatprep.subr.mxu0 0.0
        %7109 = vmatpush1.msra.mxu0 0.0
        %7110 = vmatprep.subr.mxu0 0.0
        %7111 = vmatpush1.msra.mxu0 0.0
        %7112 = vmatprep.subr.mxu0 0.0
        %7113 = vmatpush1.msra.mxu0 0.0
        %7114 = vmatprep.subr.mxu0 0.0
        %7115 = vmatpush1.msra.mxu0 0.0
        %7116 = vmatprep.subr.mxu0 0.0
        %7117 = vmatpush1.msra.mxu0 0.0
        %7118 = vmatprep.mubr.f32.mxu0 0.0
        %7119 = vmatmul.mubr.f32.gmra.mrb[0].mxu0 %v7052
        %v7120 = vpop.f32.mrb[0].mxu0
        %v7121 = vadd.f32 0.0, %v7120
        %v7122 = vpop.f32.mrb[0].mxu0
        %7123 = vdwg.mxu0
        %v7124 = vmul.f32 %v7121, 0.010204081
        %v7125 = vadd.f32 %v7124, 1e-05
        %v7126 = vrsqrt.pop %v7125
        %v7128 = vsel %vm5537, %v7126, 0
        %7130 = vmatprep.subr.mxu0 0.0
        %7131 = vmatpush1.msra.mxu0 %v5866
        %7132 = vmatprep.subr.mxu0 0.0
        %7133 = vmatpush1.msra.mxu0 %v5868
        %7134 = vmatprep.subr.mxu0 0.0
        %7135 = vmatpush1.msra.mxu0 0.0
        %7136 = vmatprep.subr.mxu0 0.0
        %7137 = vmatpush1.msra.mxu0 0.0
        %7138 = vmatprep.subr.mxu0 0.0
        %7139 = vmatpush1.msra.mxu0 0.0
        %7140 = vmatprep.subr.mxu0 0.0
        %7141 = vmatpush1.msra.mxu0 0.0
        %7142 = vmatprep.subr.mxu0 0.0
        %7143 = vmatpush1.msra.mxu0 0.0
        %7144 = vmatprep.subr.mxu0 0.0
        %7145 = vmatpush1.msra.mxu0 0.0
        %7146 = vmatprep.subr.mxu0 0.0
        %7147 = vmatpush1.msra.mxu0 0.0
        %7148 = vmatprep.subr.mxu0 0.0
        %7149 = vmatpush1.msra.mxu0 0.0
        %7150 = vmatprep.subr.mxu0 0.0
        %7151 = vmatpush1.msra.mxu0 0.0
        %7152 = vmatprep.subr.mxu0 0.0
        %7153 = vmatpush1.msra.mxu0 0.0
        %7154 = vmatprep.subr.mxu0 0.0
        %7155 = vmatpush1.msra.mxu0 0.0
        %7156 = vmatprep.subr.mxu0 0.0
        %7157 = vmatpush1.msra.mxu0 0.0
        %7158 = vmatprep.subr.mxu0 0.0
        %7159 = vmatpush1.msra.mxu0 0.0
        %7160 = vmatprep.subr.mxu0 0.0
        %7161 = vmatpush1.msra.mxu0 0.0
        %7162 = vmatprep.subr.mxu0 0.0
        %7163 = vmatpush1.msra.mxu0 0.0
        %7164 = vmatprep.subr.mxu0 0.0
        %7165 = vmatpush1.msra.mxu0 0.0
        %7166 = vmatprep.subr.mxu0 0.0
        %7167 = vmatpush1.msra.mxu0 0.0
        %7168 = vmatprep.subr.mxu0 0.0
        %7169 = vmatpush1.msra.mxu0 0.0
        %7170 = vmatprep.subr.mxu0 0.0
        %7171 = vmatpush1.msra.mxu0 0.0
        %7172 = vmatprep.subr.mxu0 0.0
        %7173 = vmatpush1.msra.mxu0 0.0
        %7174 = vmatprep.subr.mxu0 0.0
        %7175 = vmatpush1.msra.mxu0 0.0
        %7176 = vmatprep.subr.mxu0 0.0
        %7177 = vmatpush1.msra.mxu0 0.0
        %7178 = vmatprep.subr.mxu0 0.0
        %7179 = vmatpush1.msra.mxu0 0.0
        %7180 = vmatprep.subr.mxu0 0.0
        %7181 = vmatpush1.msra.mxu0 0.0
        %7182 = vmatprep.subr.mxu0 0.0
        %7183 = vmatpush1.msra.mxu0 0.0
        %7184 = vmatprep.subr.mxu0 0.0
        %7185 = vmatpush1.msra.mxu0 0.0
        %7186 = vmatprep.subr.mxu0 0.0
        %7187 = vmatpush1.msra.mxu0 0.0
        %7188 = vmatprep.subr.mxu0 0.0
        %7189 = vmatpush1.msra.mxu0 0.0
        %7190 = vmatprep.subr.mxu0 0.0
        %7191 = vmatpush1.msra.mxu0 0.0
        %7192 = vmatprep.subr.mxu0 0.0
        %7193 = vmatpush1.msra.mxu0 0.0
        %7194 = vmatprep.mubr.f32.mxu0 0.0
        %7195 = vmatmul.mubr.f32.gmra.mrb[0].mxu0 %v7128
        %v7196 = vpop.f32.mrb[0].mxu0
        %v7197 = vadd.f32 0.0, %v7196
        %v7198 = vpop.f32.mrb[0].mxu0
        %7199 = vdwg.mxu0
        %v7200 = vlaneseq
        %v7201 = vshrl.u32 %v7200, 7
        %v7202 = vsub.s32 0, %v7201
        %v7203 = vrot.slane %v7197, %v7202
        %v7204 = vmul.f32 %v7031, %v7203
        %v7205 = vmax.f32 %v7204, 0.0
        %7206 = vst.msk [vmem:[#allocation7] sm:$0x7f] %vm6615, %v7205
        %v7207 = vld [vmem:[%s6859] sm:$0x7f]
        %v7208 = vsub.f32 %v7207, %v7030
        %v7209 = vmul.f32 %v7208, %v7203
        %v7210 = vmax.f32 %v7209, 0.0
        %7211 = vst.msk [vmem:[%s6859] sm:$0x7f] %vm6615, %v7210
        %v7212 = vld [vmem:[%s6] sm:$0xff]
        %v7213 = vld [vmem:[%s6 + $0x8] sm:$0xff]
        %v7214 = vld [vmem:[%s6 + $0x10] sm:$0xff]
        %v7215 = vld [vmem:[%s6 + $0x18] sm:$0xff]
        %v7216 = vld [vmem:[%s6 + $0x20] sm:$0xff]
        %v7217 = vld [vmem:[%s6 + $0x28] sm:$0xff]
        %v7218 = vld [vmem:[%s6 + $0x30] sm:$0xff]
        %v7219 = vld [vmem:[%s6 + $0x38] sm:$0xff]
        %v7220 = vld [vmem:[%s6 + $0x40] sm:$0xff]
        %v7221 = vld [vmem:[%s6 + $0x48] sm:$0xff]
        %v7222 = vld [vmem:[%s6 + $0x50] sm:$0xff]
        %v7223 = vld [vmem:[%s6 + $0x58] sm:$0xff]
        %v7224 = vld [vmem:[%s6 + $0x60] sm:$0xff]
        %v7225 = vld [vmem:[%s6 + $0x68] sm:$0xff]
        %s7226 = scalar_lea.vmem %s6, 112
        %v7227 = vld [vmem:[%s7226] sm:$0xff]
        %v7228 = vld [vmem:[%s7226 + $0x8] sm:$0xff]
        %v7229 = vld [vmem:[%s7226 + $0x10] sm:$0xff]
        %v7230 = vld [vmem:[%s7226 + $0x18] sm:$0xff]
        %v7231 = vld [vmem:[%s7226 + $0x20] sm:$0xff]
        %v7232 = vld [vmem:[%s7226 + $0x28] sm:$0xff]
        %v7233 = vld [vmem:[%s7226 + $0x30] sm:$0xff]
        %v7234 = vld [vmem:[%s7226 + $0x38] sm:$0xff]
        %v7235 = vld [vmem:[%s7226 + $0x40] sm:$0xff]
        %v7236 = vld [vmem:[%s7226 + $0x48] sm:$0xff]
        %v7237 = vld [vmem:[%s7226 + $0x50] sm:$0xff]
        %v7238 = vld [vmem:[%s7226 + $0x58] sm:$0xff]
        %v7239 = vld [vmem:[%s7226 + $0x60] sm:$0xff]
        %v7240 = vld [vmem:[%s7226 + $0x68] sm:$0xff]
        %s7241 = scalar_lea.vmem %s6, 224
        %v7242 = vld [vmem:[%s7241] sm:$0xff]
        %v7243 = vld [vmem:[%s7241 + $0x8] sm:$0xff]
        %v7244 = vld [vmem:[%s7241 + $0x10] sm:$0xff]
        %v7245 = vld [vmem:[%s7241 + $0x18] sm:$0xff]
        %v7246 = vld [vmem:[%s7241 + $0x20] sm:$0xff]
        %v7247 = vld [vmem:[%s7241 + $0x28] sm:$0xff]
        %v7248 = vld [vmem:[%s7241 + $0x30] sm:$0xff]
        %v7249 = vld [vmem:[%s7241 + $0x38] sm:$0xff]
        %v7250 = vld [vmem:[%s7241 + $0x40] sm:$0xff]
        %v7251 = vld [vmem:[%s7241 + $0x48] sm:$0xff]
        %v7252 = vld [vmem:[%s7241 + $0x50] sm:$0xff]
        %v7253 = vld [vmem:[%s7241 + $0x58] sm:$0xff]
        %v7254 = vld [vmem:[%s7241 + $0x60] sm:$0xff]
        %v7255 = vld [vmem:[%s7241 + $0x68] sm:$0xff]
        %v7256 = vld [vmem:[#allocation7] sm:$0x1f]
        %v7257 = vld [vmem:[#allocation7 + $0x1] sm:$0x1f]
        %v7259 = vsel %vm6879, %v7257, 0
        %7261 = vmatprep.subr.mxu0 0.0
        %7262 = vmatpush1.msra.mxu0 %v7227
        %7263 = vmatprep.subr.mxu0 0.0
        %7264 = vmatpush1.msra.mxu0 %v7228
        %7265 = vmatprep.subr.mxu0 0.0
        %7266 = vmatpush1.msra.mxu0 %v7229
        %7267 = vmatprep.subr.mxu0 0.0
        %7268 = vmatpush1.msra.mxu0 %v7230
        %7269 = vmatprep.subr.mxu0 0.0
        %7270 = vmatpush1.msra.mxu0 %v7231
        %7271 = vmatprep.subr.mxu0 0.0
        %7272 = vmatpush1.msra.mxu0 %v7232
        %7273 = vmatprep.subr.mxu0 0.0
        %7274 = vmatpush1.msra.mxu0 %v7233
        %7275 = vmatprep.subr.mxu0 0.0
        %7276 = vmatpush1.msra.mxu0 %v7234
        %7277 = vmatprep.subr.mxu0 0.0
        %7278 = vmatpush1.msra.mxu0 %v7235
        %7279 = vmatprep.subr.mxu0 0.0
        %7280 = vmatpush1.msra.mxu0 %v7236
        %7281 = vmatprep.subr.mxu0 0.0
        %7282 = vmatpush1.msra.mxu0 %v7237
        %7283 = vmatprep.subr.mxu0 0.0
        %7284 = vmatpush1.msra.mxu0 %v7238
        %7285 = vmatprep.subr.mxu0 0.0
        %7286 = vmatpush1.msra.mxu0 %v7239
        %7287 = vmatprep.subr.mxu0 0.0
        %7288 = vmatpush1.msra.mxu0 %v7240
        %7289 = vmatprep.subr.mxu0 0.0
        %7290 = vmatpush1.msra.mxu0 0.0
        %7291 = vmatprep.subr.mxu0 0.0
        %7292 = vmatpush1.msra.mxu0 0.0
        %7293 = vmatprep.subr.mxu0 0.0
        %7294 = vmatpush1.msra.mxu0 0.0
        %7295 = vmatprep.subr.mxu0 0.0
        %7296 = vmatpush1.msra.mxu0 0.0
        %7297 = vmatprep.subr.mxu0 0.0
        %7298 = vmatpush1.msra.mxu0 0.0
        %7299 = vmatprep.subr.mxu0 0.0
        %7300 = vmatpush1.msra.mxu0 0.0
        %7301 = vmatprep.subr.mxu0 0.0
        %7302 = vmatpush1.msra.mxu0 0.0
        %7303 = vmatprep.subr.mxu0 0.0
        %7304 = vmatpush1.msra.mxu0 0.0
        %7305 = vmatprep.subr.mxu0 0.0
        %7306 = vmatpush1.msra.mxu0 0.0
        %7307 = vmatprep.subr.mxu0 0.0
        %7308 = vmatpush1.msra.mxu0 0.0
        %7309 = vmatprep.subr.mxu0 0.0
        %7310 = vmatpush1.msra.mxu0 0.0
        %7311 = vmatprep.subr.mxu0 0.0
        %7312 = vmatpush1.msra.mxu0 0.0
        %7313 = vmatprep.subr.mxu0 0.0
        %7314 = vmatpush1.msra.mxu0 0.0
        %7315 = vmatprep.subr.mxu0 0.0
        %7316 = vmatpush1.msra.mxu0 0.0
        %7317 = vmatprep.subr.mxu0 0.0
        %7318 = vmatpush1.msra.mxu0 0.0
        %7319 = vmatprep.subr.mxu0 0.0
        %7320 = vmatpush1.msra.mxu0 0.0
        %7321 = vmatprep.subr.mxu0 0.0
        %7322 = vmatpush1.msra.mxu0 0.0
        %7323 = vmatprep.subr.mxu0 0.0
        %7324 = vmatpush1.msra.mxu0 0.0
        %7325 = vmatprep.mubr.f32.mxu0 0.0
        %7326 = vmatmul.mubr.f32.gmra.mrb[0].mxu0 %v7259
        %v7327 = vpop.f32.mrb[0].mxu0
        %v7328 = vadd.f32 0.0, %v7327
        %v7329 = vpop.f32.mrb[0].mxu0
        %7330 = vdwg.mxu0
        %v7332 = vsel %vm6879, %v7256, 0
        %7334 = vmatprep.subr.mxu0 0.0
        %7335 = vmatpush1.msra.mxu0 %v7212
        %7336 = vmatprep.subr.mxu0 0.0
        %7337 = vmatpush1.msra.mxu0 %v7213
        %7338 = vmatprep.subr.mxu0 0.0
        %7339 = vmatpush1.msra.mxu0 %v7214
        %7340 = vmatprep.subr.mxu0 0.0
        %7341 = vmatpush1.msra.mxu0 %v7215
        %7342 = vmatprep.subr.mxu0 0.0
        %7343 = vmatpush1.msra.mxu0 %v7216
        %7344 = vmatprep.subr.mxu0 0.0
        %7345 = vmatpush1.msra.mxu0 %v7217
        %7346 = vmatprep.subr.mxu0 0.0
        %7347 = vmatpush1.msra.mxu0 %v7218
        %7348 = vmatprep.subr.mxu0 0.0
        %7349 = vmatpush1.msra.mxu0 %v7219
        %7350 = vmatprep.subr.mxu0 0.0
        %7351 = vmatpush1.msra.mxu0 %v7220
        %7352 = vmatprep.subr.mxu0 0.0
        %7353 = vmatpush1.msra.mxu0 %v7221
        %7354 = vmatprep.subr.mxu0 0.0
        %7355 = vmatpush1.msra.mxu0 %v7222
        %7356 = vmatprep.subr.mxu0 0.0
        %7357 = vmatpush1.msra.mxu0 %v7223
        %7358 = vmatprep.subr.mxu0 0.0
        %7359 = vmatpush1.msra.mxu0 %v7224
        %7360 = vmatprep.subr.mxu0 0.0
        %7361 = vmatpush1.msra.mxu0 %v7225
        %7362 = vmatprep.subr.mxu0 0.0
        %7363 = vmatpush1.msra.mxu0 0.0
        %7364 = vmatprep.subr.mxu0 0.0
        %7365 = vmatpush1.msra.mxu0 0.0
        %7366 = vmatprep.subr.mxu0 0.0
        %7367 = vmatpush1.msra.mxu0 0.0
        %7368 = vmatprep.subr.mxu0 0.0
        %7369 = vmatpush1.msra.mxu0 0.0
        %7370 = vmatprep.subr.mxu0 0.0
        %7371 = vmatpush1.msra.mxu0 0.0
        %7372 = vmatprep.subr.mxu0 0.0
        %7373 = vmatpush1.msra.mxu0 0.0
        %7374 = vmatprep.subr.mxu0 0.0
        %7375 = vmatpush1.msra.mxu0 0.0
        %7376 = vmatprep.subr.mxu0 0.0
        %7377 = vmatpush1.msra.mxu0 0.0
        %7378 = vmatprep.subr.mxu0 0.0
        %7379 = vmatpush1.msra.mxu0 0.0
        %7380 = vmatprep.subr.mxu0 0.0
        %7381 = vmatpush1.msra.mxu0 0.0
        %7382 = vmatprep.subr.mxu0 0.0
        %7383 = vmatpush1.msra.mxu0 0.0
        %7384 = vmatprep.subr.mxu0 0.0
        %7385 = vmatpush1.msra.mxu0 0.0
        %7386 = vmatprep.subr.mxu0 0.0
        %7387 = vmatpush1.msra.mxu0 0.0
        %7388 = vmatprep.subr.mxu0 0.0
        %7389 = vmatpush1.msra.mxu0 0.0
        %7390 = vmatprep.subr.mxu0 0.0
        %7391 = vmatpush1.msra.mxu0 0.0
        %7392 = vmatprep.subr.mxu0 0.0
        %7393 = vmatpush1.msra.mxu0 0.0
        %7394 = vmatprep.subr.mxu0 0.0
        %7395 = vmatpush1.msra.mxu0 0.0
        %7396 = vmatprep.subr.mxu0 0.0
        %7397 = vmatpush1.msra.mxu0 0.0
        %7398 = vmatprep.mubr.f32.mxu0 0.0
        %7399 = vmatmul.mubr.f32.gmra.mrb[0].mxu0 %v7332
        %v7400 = vpop.f32.mrb[0].mxu0
        %v7401 = vadd.f32 %v7328, %v7400
        %v7402 = vpop.f32.mrb[0].mxu0
        %7403 = vdwg.mxu0
        %v7404 = vld [vmem:[#allocation7 + $0x2] sm:$0x1f]
        %v7406 = vsel %vm6879, %v7404, 0
        %7408 = vmatprep.subr.mxu0 0.0
        %7409 = vmatpush1.msra.mxu0 %v7242
        %7410 = vmatprep.subr.mxu0 0.0
        %7411 = vmatpush1.msra.mxu0 %v7243
        %7412 = vmatprep.subr.mxu0 0.0
        %7413 = vmatpush1.msra.mxu0 %v7244
        %7414 = vmatprep.subr.mxu0 0.0
        %7415 = vmatpush1.msra.mxu0 %v7245
        %7416 = vmatprep.subr.mxu0 0.0
        %7417 = vmatpush1.msra.mxu0 %v7246
        %7418 = vmatprep.subr.mxu0 0.0
        %7419 = vmatpush1.msra.mxu0 %v7247
        %7420 = vmatprep.subr.mxu0 0.0
        %7421 = vmatpush1.msra.mxu0 %v7248
        %7422 = vmatprep.subr.mxu0 0.0
        %7423 = vmatpush1.msra.mxu0 %v7249
        %7424 = vmatprep.subr.mxu0 0.0
        %7425 = vmatpush1.msra.mxu0 %v7250
        %7426 = vmatprep.subr.mxu0 0.0
        %7427 = vmatpush1.msra.mxu0 %v7251
        %7428 = vmatprep.subr.mxu0 0.0
        %7429 = vmatpush1.msra.mxu0 %v7252
        %7430 = vmatprep.subr.mxu0 0.0
        %7431 = vmatpush1.msra.mxu0 %v7253
        %7432 = vmatprep.subr.mxu0 0.0
        %7433 = vmatpush1.msra.mxu0 %v7254
        %7434 = vmatprep.subr.mxu0 0.0
        %7435 = vmatpush1.msra.mxu0 %v7255
        %7436 = vmatprep.subr.mxu0 0.0
        %7437 = vmatpush1.msra.mxu0 0.0
        %7438 = vmatprep.subr.mxu0 0.0
        %7439 = vmatpush1.msra.mxu0 0.0
        %7440 = vmatprep.subr.mxu0 0.0
        %7441 = vmatpush1.msra.mxu0 0.0
        %7442 = vmatprep.subr.mxu0 0.0
        %7443 = vmatpush1.msra.mxu0 0.0
        %7444 = vmatprep.subr.mxu0 0.0
        %7445 = vmatpush1.msra.mxu0 0.0
        %7446 = vmatprep.subr.mxu0 0.0
        %7447 = vmatpush1.msra.mxu0 0.0
        %7448 = vmatprep.subr.mxu0 0.0
        %7449 = vmatpush1.msra.mxu0 0.0
        %7450 = vmatprep.subr.mxu0 0.0
        %7451 = vmatpush1.msra.mxu0 0.0
        %7452 = vmatprep.subr.mxu0 0.0
        %7453 = vmatpush1.msra.mxu0 0.0
        %7454 = vmatprep.subr.mxu0 0.0
        %7455 = vmatpush1.msra.mxu0 0.0
        %7456 = vmatprep.subr.mxu0 0.0
        %7457 = vmatpush1.msra.mxu0 0.0
        %7458 = vmatprep.subr.mxu0 0.0
        %7459 = vmatpush1.msra.mxu0 0.0
        %7460 = vmatprep.subr.mxu0 0.0
        %7461 = vmatpush1.msra.mxu0 0.0
        %7462 = vmatprep.subr.mxu0 0.0
        %7463 = vmatpush1.msra.mxu0 0.0
        %7464 = vmatprep.subr.mxu0 0.0
        %7465 = vmatpush1.msra.mxu0 0.0
        %7466 = vmatprep.subr.mxu0 0.0
        %7467 = vmatpush1.msra.mxu0 0.0
        %7468 = vmatprep.subr.mxu0 0.0
        %7469 = vmatpush1.msra.mxu0 0.0
        %7470 = vmatprep.subr.mxu0 0.0
        %7471 = vmatpush1.msra.mxu0 0.0
        %7472 = vmatprep.mubr.f32.mxu0 0.0
        %7473 = vmatmul.mubr.f32.gmra.mrb[0].mxu0 %v7406
        %v7474 = vpop.f32.mrb[0].mxu0
        %v7475 = vadd.f32 0.0, %v7474
        %v7476 = vpop.f32.mrb[0].mxu0
        %7477 = vdwg.mxu0
        %v7478 = vadd.f32 %v7401, %v7475
        %vm7479 = vcmask 651264
        %7480 = vst.msk [vmem:[#allocation8] sm:$0x1f] %vm7479, %v7478
        %v7481 = vld [vmem:[%s6859] sm:$0x1f]
        %v7482 = vld [vmem:[%s6859 + $0x1] sm:$0x1f]
        %v7484 = vsel %vm6879, %v7482, 0
        %7486 = vmatprep.subr.mxu0 0.0
        %7487 = vmatpush1.msra.mxu0 %v7227
        %7488 = vmatprep.subr.mxu0 0.0
        %7489 = vmatpush1.msra.mxu0 %v7228
        %7490 = vmatprep.subr.mxu0 0.0
        %7491 = vmatpush1.msra.mxu0 %v7229
        %7492 = vmatprep.subr.mxu0 0.0
        %7493 = vmatpush1.msra.mxu0 %v7230
        %7494 = vmatprep.subr.mxu0 0.0
        %7495 = vmatpush1.msra.mxu0 %v7231
        %7496 = vmatprep.subr.mxu0 0.0
        %7497 = vmatpush1.msra.mxu0 %v7232
        %7498 = vmatprep.subr.mxu0 0.0
        %7499 = vmatpush1.msra.mxu0 %v7233
        %7500 = vmatprep.subr.mxu0 0.0
        %7501 = vmatpush1.msra.mxu0 %v7234
        %7502 = vmatprep.subr.mxu0 0.0
        %7503 = vmatpush1.msra.mxu0 %v7235
        %7504 = vmatprep.subr.mxu0 0.0
        %7505 = vmatpush1.msra.mxu0 %v7236
        %7506 = vmatprep.subr.mxu0 0.0
        %7507 = vmatpush1.msra.mxu0 %v7237
        %7508 = vmatprep.subr.mxu0 0.0
        %7509 = vmatpush1.msra.mxu0 %v7238
        %7510 = vmatprep.subr.mxu0 0.0
        %7511 = vmatpush1.msra.mxu0 %v7239
        %7512 = vmatprep.subr.mxu0 0.0
        %7513 = vmatpush1.msra.mxu0 %v7240
        %7514 = vmatprep.subr.mxu0 0.0
        %7515 = vmatpush1.msra.mxu0 0.0
        %7516 = vmatprep.subr.mxu0 0.0
        %7517 = vmatpush1.msra.mxu0 0.0
        %7518 = vmatprep.subr.mxu0 0.0
        %7519 = vmatpush1.msra.mxu0 0.0
        %7520 = vmatprep.subr.mxu0 0.0
        %7521 = vmatpush1.msra.mxu0 0.0
        %7522 = vmatprep.subr.mxu0 0.0
        %7523 = vmatpush1.msra.mxu0 0.0
        %7524 = vmatprep.subr.mxu0 0.0
        %7525 = vmatpush1.msra.mxu0 0.0
        %7526 = vmatprep.subr.mxu0 0.0
        %7527 = vmatpush1.msra.mxu0 0.0
        %7528 = vmatprep.subr.mxu0 0.0
        %7529 = vmatpush1.msra.mxu0 0.0
        %7530 = vmatprep.subr.mxu0 0.0
        %7531 = vmatpush1.msra.mxu0 0.0
        %7532 = vmatprep.subr.mxu0 0.0
        %7533 = vmatpush1.msra.mxu0 0.0
        %7534 = vmatprep.subr.mxu0 0.0
        %7535 = vmatpush1.msra.mxu0 0.0
        %7536 = vmatprep.subr.mxu0 0.0
        %7537 = vmatpush1.msra.mxu0 0.0
        %7538 = vmatprep.subr.mxu0 0.0
        %7539 = vmatpush1.msra.mxu0 0.0
        %7540 = vmatprep.subr.mxu0 0.0
        %7541 = vmatpush1.msra.mxu0 0.0
        %7542 = vmatprep.subr.mxu0 0.0
        %7543 = vmatpush1.msra.mxu0 0.0
        %7544 = vmatprep.subr.mxu0 0.0
        %7545 = vmatpush1.msra.mxu0 0.0
        %7546 = vmatprep.subr.mxu0 0.0
        %7547 = vmatpush1.msra.mxu0 0.0
        %7548 = vmatprep.subr.mxu0 0.0
        %7549 = vmatpush1.msra.mxu0 0.0
        %7550 = vmatprep.mubr.f32.mxu0 0.0
        %7551 = vmatmul.mubr.f32.gmra.mrb[0].mxu0 %v7484
        %v7552 = vpop.f32.mrb[0].mxu0
        %v7553 = vadd.f32 0.0, %v7552
        %v7554 = vpop.f32.mrb[0].mxu0
        %7555 = vdwg.mxu0
        %v7557 = vsel %vm6879, %v7481, 0
        %7559 = vmatprep.subr.mxu0 0.0
        %7560 = vmatpush1.msra.mxu0 %v7212
        %7561 = vmatprep.subr.mxu0 0.0
        %7562 = vmatpush1.msra.mxu0 %v7213
        %7563 = vmatprep.subr.mxu0 0.0
        %7564 = vmatpush1.msra.mxu0 %v7214
        %7565 = vmatprep.subr.mxu0 0.0
        %7566 = vmatpush1.msra.mxu0 %v7215
        %7567 = vmatprep.subr.mxu0 0.0
        %7568 = vmatpush1.msra.mxu0 %v7216
        %7569 = vmatprep.subr.mxu0 0.0
        %7570 = vmatpush1.msra.mxu0 %v7217
        %7571 = vmatprep.subr.mxu0 0.0
        %7572 = vmatpush1.msra.mxu0 %v7218
        %7573 = vmatprep.subr.mxu0 0.0
        %7574 = vmatpush1.msra.mxu0 %v7219
        %7575 = vmatprep.subr.mxu0 0.0
        %7576 = vmatpush1.msra.mxu0 %v7220
        %7577 = vmatprep.subr.mxu0 0.0
        %7578 = vmatpush1.msra.mxu0 %v7221
        %7579 = vmatprep.subr.mxu0 0.0
        %7580 = vmatpush1.msra.mxu0 %v7222
        %7581 = vmatprep.subr.mxu0 0.0
        %7582 = vmatpush1.msra.mxu0 %v7223
        %7583 = vmatprep.subr.mxu0 0.0
        %7584 = vmatpush1.msra.mxu0 %v7224
        %7585 = vmatprep.subr.mxu0 0.0
        %7586 = vmatpush1.msra.mxu0 %v7225
        %7587 = vmatprep.subr.mxu0 0.0
        %7588 = vmatpush1.msra.mxu0 0.0
        %7589 = vmatprep.subr.mxu0 0.0
        %7590 = vmatpush1.msra.mxu0 0.0
        %7591 = vmatprep.subr.mxu0 0.0
        %7592 = vmatpush1.msra.mxu0 0.0
        %7593 = vmatprep.subr.mxu0 0.0
        %7594 = vmatpush1.msra.mxu0 0.0
        %7595 = vmatprep.subr.mxu0 0.0
        %7596 = vmatpush1.msra.mxu0 0.0
        %7597 = vmatprep.subr.mxu0 0.0
        %7598 = vmatpush1.msra.mxu0 0.0
        %7599 = vmatprep.subr.mxu0 0.0
        %7600 = vmatpush1.msra.mxu0 0.0
        %7601 = vmatprep.subr.mxu0 0.0
        %7602 = vmatpush1.msra.mxu0 0.0
        %7603 = vmatprep.subr.mxu0 0.0
        %7604 = vmatpush1.msra.mxu0 0.0
        %7605 = vmatprep.subr.mxu0 0.0
        %7606 = vmatpush1.msra.mxu0 0.0
        %7607 = vmatprep.subr.mxu0 0.0
        %7608 = vmatpush1.msra.mxu0 0.0
        %7609 = vmatprep.subr.mxu0 0.0
        %7610 = vmatpush1.msra.mxu0 0.0
        %7611 = vmatprep.subr.mxu0 0.0
        %7612 = vmatpush1.msra.mxu0 0.0
        %7613 = vmatprep.subr.mxu0 0.0
        %7614 = vmatpush1.msra.mxu0 0.0
        %7615 = vmatprep.subr.mxu0 0.0
        %7616 = vmatpush1.msra.mxu0 0.0
        %7617 = vmatprep.subr.mxu0 0.0
        %7618 = vmatpush1.msra.mxu0 0.0
        %7619 = vmatprep.subr.mxu0 0.0
        %7620 = vmatpush1.msra.mxu0 0.0
        %7621 = vmatprep.subr.mxu0 0.0
        %7622 = vmatpush1.msra.mxu0 0.0
        %7623 = vmatprep.mubr.f32.mxu0 0.0
        %7624 = vmatmul.mubr.f32.gmra.mrb[0].mxu0 %v7557
        %v7625 = vpop.f32.mrb[0].mxu0
        %v7626 = vadd.f32 %v7553, %v7625
        %v7627 = vpop.f32.mrb[0].mxu0
        %7628 = vdwg.mxu0
        %v7629 = vld [vmem:[%s6859 + $0x2] sm:$0x1f]
        %v7631 = vsel %vm6879, %v7629, 0
        %7633 = vmatprep.subr.mxu0 0.0
        %7634 = vmatpush1.msra.mxu0 %v7242
        %7635 = vmatprep.subr.mxu0 0.0
        %7636 = vmatpush1.msra.mxu0 %v7243
        %7637 = vmatprep.subr.mxu0 0.0
        %7638 = vmatpush1.msra.mxu0 %v7244
        %7639 = vmatprep.subr.mxu0 0.0
        %7640 = vmatpush1.msra.mxu0 %v7245
        %7641 = vmatprep.subr.mxu0 0.0
        %7642 = vmatpush1.msra.mxu0 %v7246
        %7643 = vmatprep.subr.mxu0 0.0
        %7644 = vmatpush1.msra.mxu0 %v7247
        %7645 = vmatprep.subr.mxu0 0.0
        %7646 = vmatpush1.msra.mxu0 %v7248
        %7647 = vmatprep.subr.mxu0 0.0
        %7648 = vmatpush1.msra.mxu0 %v7249
        %7649 = vmatprep.subr.mxu0 0.0
        %7650 = vmatpush1.msra.mxu0 %v7250
        %7651 = vmatprep.subr.mxu0 0.0
        %7652 = vmatpush1.msra.mxu0 %v7251
        %7653 = vmatprep.subr.mxu0 0.0
        %7654 = vmatpush1.msra.mxu0 %v7252
        %7655 = vmatprep.subr.mxu0 0.0
        %7656 = vmatpush1.msra.mxu0 %v7253
        %7657 = vmatprep.subr.mxu0 0.0
        %7658 = vmatpush1.msra.mxu0 %v7254
        %7659 = vmatprep.subr.mxu0 0.0
        %7660 = vmatpush1.msra.mxu0 %v7255
        %7661 = vmatprep.subr.mxu0 0.0
        %7662 = vmatpush1.msra.mxu0 0.0
        %7663 = vmatprep.subr.mxu0 0.0
        %7664 = vmatpush1.msra.mxu0 0.0
        %7665 = vmatprep.subr.mxu0 0.0
        %7666 = vmatpush1.msra.mxu0 0.0
        %7667 = vmatprep.subr.mxu0 0.0
        %7668 = vmatpush1.msra.mxu0 0.0
        %7669 = vmatprep.subr.mxu0 0.0
        %7670 = vmatpush1.msra.mxu0 0.0
        %7671 = vmatprep.subr.mxu0 0.0
        %7672 = vmatpush1.msra.mxu0 0.0
        %7673 = vmatprep.subr.mxu0 0.0
        %7674 = vmatpush1.msra.mxu0 0.0
        %7675 = vmatprep.subr.mxu0 0.0
        %7676 = vmatpush1.msra.mxu0 0.0
        %7677 = vmatprep.subr.mxu0 0.0
        %7678 = vmatpush1.msra.mxu0 0.0
        %7679 = vmatprep.subr.mxu0 0.0
        %7680 = vmatpush1.msra.mxu0 0.0
        %7681 = vmatprep.subr.mxu0 0.0
        %7682 = vmatpush1.msra.mxu0 0.0
        %7683 = vmatprep.subr.mxu0 0.0
        %7684 = vmatpush1.msra.mxu0 0.0
        %7685 = vmatprep.subr.mxu0 0.0
        %7686 = vmatpush1.msra.mxu0 0.0
        %7687 = vmatprep.subr.mxu0 0.0
        %7688 = vmatpush1.msra.mxu0 0.0
        %7689 = vmatprep.subr.mxu0 0.0
        %7690 = vmatpush1.msra.mxu0 0.0
        %7691 = vmatprep.subr.mxu0 0.0
        %7692 = vmatpush1.msra.mxu0 0.0
        %7693 = vmatprep.subr.mxu0 0.0
        %7694 = vmatpush1.msra.mxu0 0.0
        %7695 = vmatprep.subr.mxu0 0.0
        %7696 = vmatpush1.msra.mxu0 0.0
        %7697 = vmatprep.mubr.f32.mxu0 0.0
        %7698 = vmatmul.mubr.f32.gmra.mrb[0].mxu0 %v7631
        %v7699 = vpop.f32.mrb[0].mxu0
        %v7700 = vadd.f32 0.0, %v7699
        %v7701 = vpop.f32.mrb[0].mxu0
        %7702 = vdwg.mxu0
        %v7703 = vadd.f32 %v7626, %v7700
        %s7704 = scalar_lea.vmem [#allocation8], 8
        %7705 = vst.msk [vmem:[%s7704] sm:$0x1f] %vm7479, %v7703
        %v7706 = vld [vmem:[#allocation8] sm:$0x1f]
        %v7707 = vsel %vm7479, %v7706, 0.0
        %v7708 = vrot.slane %v7707, 4
        %v7709 = vadd.f32 %v7707, %v7708
        %v7710 = vrot.slane %v7709, 2
        %v7711 = vadd.f32 %v7709, %v7710
        %v7712 = vrot.slane %v7711, 1
        %v7713 = vadd.f32 %v7711, %v7712
        %v7714 = vadd.f32 %v7713, 0.0
        %v7715 = vld [vmem:[%s7704] sm:$0x1f]
        %v7716 = vsel %vm7479, %v7715, 0.0
        %v7717 = vrot.slane %v7716, 4
        %v7718 = vadd.f32 %v7716, %v7717
        %v7719 = vrot.slane %v7718, 2
        %v7720 = vadd.f32 %v7718, %v7719
        %v7721 = vrot.slane %v7720, 1
        %v7722 = vadd.f32 %v7720, %v7721
        %v7723 = vadd.f32 %v7714, %v7722
        %v7725 = vsel %vm737, %v7723, 0
        %7727 = vmatprep.subr.mxu0 0.0
        %7728 = vmatpush1.msra.mxu0 %v5842
        %7729 = vmatprep.subr.mxu0 0.0
        %7730 = vmatpush1.msra.mxu0 %v5843
        %7731 = vmatprep.subr.mxu0 0.0
        %7732 = vmatpush1.msra.mxu0 %v5844
        %7733 = vmatprep.subr.mxu0 0.0
        %7734 = vmatpush1.msra.mxu0 %v5845
        %7735 = vmatprep.subr.mxu0 0.0
        %7736 = vmatpush1.msra.mxu0 %v5846
        %7737 = vmatprep.subr.mxu0 0.0
        %7738 = vmatpush1.msra.mxu0 %v5847
        %7739 = vmatprep.subr.mxu0 0.0
        %7740 = vmatpush1.msra.mxu0 %v5848
        %7741 = vmatprep.subr.mxu0 0.0
        %7742 = vmatpush1.msra.mxu0 %v5849
        %7743 = vmatprep.subr.mxu0 0.0
        %7744 = vmatpush1.msra.mxu0 %v5850
        %7745 = vmatprep.subr.mxu0 0.0
        %7746 = vmatpush1.msra.mxu0 %v5851
        %7747 = vmatprep.subr.mxu0 0.0
        %7748 = vmatpush1.msra.mxu0 0.0
        %7749 = vmatprep.subr.mxu0 0.0
        %7750 = vmatpush1.msra.mxu0 0.0
        %7751 = vmatprep.subr.mxu0 0.0
        %7752 = vmatpush1.msra.mxu0 0.0
        %7753 = vmatprep.subr.mxu0 0.0
        %7754 = vmatpush1.msra.mxu0 0.0
        %7755 = vmatprep.subr.mxu0 0.0
        %7756 = vmatpush1.msra.mxu0 0.0
        %7757 = vmatprep.subr.mxu0 0.0
        %7758 = vmatpush1.msra.mxu0 0.0
        %7759 = vmatprep.subr.mxu0 0.0
        %7760 = vmatpush1.msra.mxu0 0.0
        %7761 = vmatprep.subr.mxu0 0.0
        %7762 = vmatpush1.msra.mxu0 0.0
        %7763 = vmatprep.subr.mxu0 0.0
        %7764 = vmatpush1.msra.mxu0 0.0
        %7765 = vmatprep.subr.mxu0 0.0
        %7766 = vmatpush1.msra.mxu0 0.0
        %7767 = vmatprep.subr.mxu0 0.0
        %7768 = vmatpush1.msra.mxu0 0.0
        %7769 = vmatprep.subr.mxu0 0.0
        %7770 = vmatpush1.msra.mxu0 0.0
        %7771 = vmatprep.subr.mxu0 0.0
        %7772 = vmatpush1.msra.mxu0 0.0
        %7773 = vmatprep.subr.mxu0 0.0
        %7774 = vmatpush1.msra.mxu0 0.0
        %7775 = vmatprep.subr.mxu0 0.0
        %7776 = vmatpush1.msra.mxu0 0.0
        %7777 = vmatprep.subr.mxu0 0.0
        %7778 = vmatpush1.msra.mxu0 0.0
        %7779 = vmatprep.subr.mxu0 0.0
        %7780 = vmatpush1.msra.mxu0 0.0
        %7781 = vmatprep.subr.mxu0 0.0
        %7782 = vmatpush1.msra.mxu0 0.0
        %7783 = vmatprep.subr.mxu0 0.0
        %7784 = vmatpush1.msra.mxu0 0.0
        %7785 = vmatprep.subr.mxu0 0.0
        %7786 = vmatpush1.msra.mxu0 0.0
        %7787 = vmatprep.subr.mxu0 0.0
        %7788 = vmatpush1.msra.mxu0 0.0
        %7789 = vmatprep.subr.mxu0 0.0
        %7790 = vmatpush1.msra.mxu0 0.0
        %7791 = vmatprep.mubr.f32.mxu0 0.0
        %7792 = vmatmul.mubr.f32.gmra.mrb[0].mxu0 %v7725
        %v7793 = vpop.f32.mrb[0].mxu0
        %v7794 = vadd.f32 0.0, %v7793
        %v7795 = vpop.f32.mrb[0].mxu0
        %7796 = vdwg.mxu0
        %v7797 = vmul.f32 %v7794, 0.02
        %v7799 = vsel %vm5537, %v7797, 0
        %7801 = vmatprep.subr.mxu0 0.0
        %7802 = vmatpush1.msra.mxu0 %v5866
        %7803 = vmatprep.subr.mxu0 0.0
        %7804 = vmatpush1.msra.mxu0 %v5868
        %7805 = vmatprep.subr.mxu0 0.0
        %7806 = vmatpush1.msra.mxu0 0.0
        %7807 = vmatprep.subr.mxu0 0.0
        %7808 = vmatpush1.msra.mxu0 0.0
        %7809 = vmatprep.subr.mxu0 0.0
        %7810 = vmatpush1.msra.mxu0 0.0
        %7811 = vmatprep.subr.mxu0 0.0
        %7812 = vmatpush1.msra.mxu0 0.0
        %7813 = vmatprep.subr.mxu0 0.0
        %7814 = vmatpush1.msra.mxu0 0.0
        %7815 = vmatprep.subr.mxu0 0.0
        %7816 = vmatpush1.msra.mxu0 0.0
        %7817 = vmatprep.subr.mxu0 0.0
        %7818 = vmatpush1.msra.mxu0 0.0
        %7819 = vmatprep.subr.mxu0 0.0
        %7820 = vmatpush1.msra.mxu0 0.0
        %7821 = vmatprep.subr.mxu0 0.0
        %7822 = vmatpush1.msra.mxu0 0.0
        %7823 = vmatprep.subr.mxu0 0.0
        %7824 = vmatpush1.msra.mxu0 0.0
        %7825 = vmatprep.subr.mxu0 0.0
        %7826 = vmatpush1.msra.mxu0 0.0
        %7827 = vmatprep.subr.mxu0 0.0
        %7828 = vmatpush1.msra.mxu0 0.0
        %7829 = vmatprep.subr.mxu0 0.0
        %7830 = vmatpush1.msra.mxu0 0.0
        %7831 = vmatprep.subr.mxu0 0.0
        %7832 = vmatpush1.msra.mxu0 0.0
        %7833 = vmatprep.subr.mxu0 0.0
        %7834 = vmatpush1.msra.mxu0 0.0
        %7835 = vmatprep.subr.mxu0 0.0
        %7836 = vmatpush1.msra.mxu0 0.0
        %7837 = vmatprep.subr.mxu0 0.0
        %7838 = vmatpush1.msra.mxu0 0.0
        %7839 = vmatprep.subr.mxu0 0.0
        %7840 = vmatpush1.msra.mxu0 0.0
        %7841 = vmatprep.subr.mxu0 0.0
        %7842 = vmatpush1.msra.mxu0 0.0
        %7843 = vmatprep.subr.mxu0 0.0
        %7844 = vmatpush1.msra.mxu0 0.0
        %7845 = vmatprep.subr.mxu0 0.0
        %7846 = vmatpush1.msra.mxu0 0.0
        %7847 = vmatprep.subr.mxu0 0.0
        %7848 = vmatpush1.msra.mxu0 0.0
        %7849 = vmatprep.subr.mxu0 0.0
        %7850 = vmatpush1.msra.mxu0 0.0
        %7851 = vmatprep.subr.mxu0 0.0
        %7852 = vmatpush1.msra.mxu0 0.0
        %7853 = vmatprep.subr.mxu0 0.0
        %7854 = vmatpush1.msra.mxu0 0.0
        %7855 = vmatprep.subr.mxu0 0.0
        %7856 = vmatpush1.msra.mxu0 0.0
        %7857 = vmatprep.subr.mxu0 0.0
        %7858 = vmatpush1.msra.mxu0 0.0
        %7859 = vmatprep.subr.mxu0 0.0
        %7860 = vmatpush1.msra.mxu0 0.0
        %7861 = vmatprep.subr.mxu0 0.0
        %7862 = vmatpush1.msra.mxu0 0.0
        %7863 = vmatprep.subr.mxu0 0.0
        %7864 = vmatpush1.msra.mxu0 0.0
        %7865 = vmatprep.mubr.f32.mxu0 0.0
        %7866 = vmatmul.mubr.f32.gmra.mrb[0].mxu0 %v7799
        %v7867 = vpop.f32.mrb[0].mxu0
        %v7868 = vadd.f32 0.0, %v7867
        %v7869 = vpop.f32.mrb[0].mxu0
        %7870 = vdwg.mxu0
        %v7871 = vlaneseq
        %v7872 = vshrl.u32 %v7871, 7
        %v7873 = vsub.s32 0, %v7872
        %v7874 = vrot.slane %v7868, %v7873
        %v7875 = vsub.f32 %v7706, %v7874
        %v7876 = vmul.f32 %v7875, %v7875
        %v7877 = vsel %vm7479, %v7876, 0.0
        %v7878 = vrot.slane %v7877, 4
        %v7879 = vadd.f32 %v7877, %v7878
        %v7880 = vrot.slane %v7879, 2
        %v7881 = vadd.f32 %v7879, %v7880
        %v7882 = vrot.slane %v7881, 1
        %v7883 = vadd.f32 %v7881, %v7882
        %v7884 = vadd.f32 %v7883, 0.0
        %v7885 = vsub.f32 %v7715, %v7874
        %v7886 = vmul.f32 %v7885, %v7885
        %v7887 = vsel %vm7479, %v7886, 0.0
        %v7888 = vrot.slane %v7887, 4
        %v7889 = vadd.f32 %v7887, %v7888
        %v7890 = vrot.slane %v7889, 2
        %v7891 = vadd.f32 %v7889, %v7890
        %v7892 = vrot.slane %v7891, 1
        %v7893 = vadd.f32 %v7891, %v7892
        %v7894 = vadd.f32 %v7884, %v7893
        %v7896 = vsel %vm737, %v7894, 0
        %7898 = vmatprep.subr.mxu0 0.0
        %7899 = vmatpush1.msra.mxu0 %v5842
        %7900 = vmatprep.subr.mxu0 0.0
        %7901 = vmatpush1.msra.mxu0 %v5843
        %7902 = vmatprep.subr.mxu0 0.0
        %7903 = vmatpush1.msra.mxu0 %v5844
        %7904 = vmatprep.subr.mxu0 0.0
        %7905 = vmatpush1.msra.mxu0 %v5845
        %7906 = vmatprep.subr.mxu0 0.0
        %7907 = vmatpush1.msra.mxu0 %v5846
        %7908 = vmatprep.subr.mxu0 0.0
        %7909 = vmatpush1.msra.mxu0 %v5847
        %7910 = vmatprep.subr.mxu0 0.0
        %7911 = vmatpush1.msra.mxu0 %v5848
        %7912 = vmatprep.subr.mxu0 0.0
        %7913 = vmatpush1.msra.mxu0 %v5849
        %7914 = vmatprep.subr.mxu0 0.0
        %7915 = vmatpush1.msra.mxu0 %v5850
        %7916 = vmatprep.subr.mxu0 0.0
        %7917 = vmatpush1.msra.mxu0 %v5851
        %7918 = vmatprep.subr.mxu0 0.0
        %7919 = vmatpush1.msra.mxu0 0.0
        %7920 = vmatprep.subr.mxu0 0.0
        %7921 = vmatpush1.msra.mxu0 0.0
        %7922 = vmatprep.subr.mxu0 0.0
        %7923 = vmatpush1.msra.mxu0 0.0
        %7924 = vmatprep.subr.mxu0 0.0
        %7925 = vmatpush1.msra.mxu0 0.0
        %7926 = vmatprep.subr.mxu0 0.0
        %7927 = vmatpush1.msra.mxu0 0.0
        %7928 = vmatprep.subr.mxu0 0.0
        %7929 = vmatpush1.msra.mxu0 0.0
        %7930 = vmatprep.subr.mxu0 0.0
        %7931 = vmatpush1.msra.mxu0 0.0
        %7932 = vmatprep.subr.mxu0 0.0
        %7933 = vmatpush1.msra.mxu0 0.0
        %7934 = vmatprep.subr.mxu0 0.0
        %7935 = vmatpush1.msra.mxu0 0.0
        %7936 = vmatprep.subr.mxu0 0.0
        %7937 = vmatpush1.msra.mxu0 0.0
        %7938 = vmatprep.subr.mxu0 0.0
        %7939 = vmatpush1.msra.mxu0 0.0
        %7940 = vmatprep.subr.mxu0 0.0
        %7941 = vmatpush1.msra.mxu0 0.0
        %7942 = vmatprep.subr.mxu0 0.0
        %7943 = vmatpush1.msra.mxu0 0.0
        %7944 = vmatprep.subr.mxu0 0.0
        %7945 = vmatpush1.msra.mxu0 0.0
        %7946 = vmatprep.subr.mxu0 0.0
        %7947 = vmatpush1.msra.mxu0 0.0
        %7948 = vmatprep.subr.mxu0 0.0
        %7949 = vmatpush1.msra.mxu0 0.0
        %7950 = vmatprep.subr.mxu0 0.0
        %7951 = vmatpush1.msra.mxu0 0.0
        %7952 = vmatprep.subr.mxu0 0.0
        %7953 = vmatpush1.msra.mxu0 0.0
        %7954 = vmatprep.subr.mxu0 0.0
        %7955 = vmatpush1.msra.mxu0 0.0
        %7956 = vmatprep.subr.mxu0 0.0
        %7957 = vmatpush1.msra.mxu0 0.0
        %7958 = vmatprep.subr.mxu0 0.0
        %7959 = vmatpush1.msra.mxu0 0.0
        %7960 = vmatprep.subr.mxu0 0.0
        %7961 = vmatpush1.msra.mxu0 0.0
        %7962 = vmatprep.mubr.f32.mxu0 0.0
        %7963 = vmatmul.mubr.f32.gmra.mrb[0].mxu0 %v7896
        %v7964 = vpop.f32.mrb[0].mxu0
        %v7965 = vadd.f32 0.0, %v7964
        %v7966 = vpop.f32.mrb[0].mxu0
        %7967 = vdwg.mxu0
        %v7968 = vmul.f32 %v7965, 0.02
        %v7969 = vadd.f32 %v7968, 1e-05
        %v7970 = vrsqrt.pop %v7969
        %v7972 = vsel %vm5537, %v7970, 0
        %7974 = vmatprep.subr.mxu0 0.0
        %7975 = vmatpush1.msra.mxu0 %v5866
        %7976 = vmatprep.subr.mxu0 0.0
        %7977 = vmatpush1.msra.mxu0 %v5868
        %7978 = vmatprep.subr.mxu0 0.0
        %7979 = vmatpush1.msra.mxu0 0.0
        %7980 = vmatprep.subr.mxu0 0.0
        %7981 = vmatpush1.msra.mxu0 0.0
        %7982 = vmatprep.subr.mxu0 0.0
        %7983 = vmatpush1.msra.mxu0 0.0
        %7984 = vmatprep.subr.mxu0 0.0
        %7985 = vmatpush1.msra.mxu0 0.0
        %7986 = vmatprep.subr.mxu0 0.0
        %7987 = vmatpush1.msra.mxu0 0.0
        %7988 = vmatprep.subr.mxu0 0.0
        %7989 = vmatpush1.msra.mxu0 0.0
        %7990 = vmatprep.subr.mxu0 0.0
        %7991 = vmatpush1.msra.mxu0 0.0
        %7992 = vmatprep.subr.mxu0 0.0
        %7993 = vmatpush1.msra.mxu0 0.0
        %7994 = vmatprep.subr.mxu0 0.0
        %7995 = vmatpush1.msra.mxu0 0.0
        %7996 = vmatprep.subr.mxu0 0.0
        %7997 = vmatpush1.msra.mxu0 0.0
        %7998 = vmatprep.subr.mxu0 0.0
        %7999 = vmatpush1.msra.mxu0 0.0
        %8000 = vmatprep.subr.mxu0 0.0
        %8001 = vmatpush1.msra.mxu0 0.0
        %8002 = vmatprep.subr.mxu0 0.0
        %8003 = vmatpush1.msra.mxu0 0.0
        %8004 = vmatprep.subr.mxu0 0.0
        %8005 = vmatpush1.msra.mxu0 0.0
        %8006 = vmatprep.subr.mxu0 0.0
        %8007 = vmatpush1.msra.mxu0 0.0
        %8008 = vmatprep.subr.mxu0 0.0
        %8009 = vmatpush1.msra.mxu0 0.0
        %8010 = vmatprep.subr.mxu0 0.0
        %8011 = vmatpush1.msra.mxu0 0.0
        %8012 = vmatprep.subr.mxu0 0.0
        %8013 = vmatpush1.msra.mxu0 0.0
        %8014 = vmatprep.subr.mxu0 0.0
        %8015 = vmatpush1.msra.mxu0 0.0
        %8016 = vmatprep.subr.mxu0 0.0
        %8017 = vmatpush1.msra.mxu0 0.0
        %8018 = vmatprep.subr.mxu0 0.0
        %8019 = vmatpush1.msra.mxu0 0.0
        %8020 = vmatprep.subr.mxu0 0.0
        %8021 = vmatpush1.msra.mxu0 0.0
        %8022 = vmatprep.subr.mxu0 0.0
        %8023 = vmatpush1.msra.mxu0 0.0
        %8024 = vmatprep.subr.mxu0 0.0
        %8025 = vmatpush1.msra.mxu0 0.0
        %8026 = vmatprep.subr.mxu0 0.0
        %8027 = vmatpush1.msra.mxu0 0.0
        %8028 = vmatprep.subr.mxu0 0.0
        %8029 = vmatpush1.msra.mxu0 0.0
        %8030 = vmatprep.subr.mxu0 0.0
        %8031 = vmatpush1.msra.mxu0 0.0
        %8032 = vmatprep.subr.mxu0 0.0
        %8033 = vmatpush1.msra.mxu0 0.0
        %8034 = vmatprep.subr.mxu0 0.0
        %8035 = vmatpush1.msra.mxu0 0.0
        %8036 = vmatprep.subr.mxu0 0.0
        %8037 = vmatpush1.msra.mxu0 0.0
        %8038 = vmatprep.mubr.f32.mxu0 0.0
        %8039 = vmatmul.mubr.f32.gmra.mrb[0].mxu0 %v7972
        %v8040 = vpop.f32.mrb[0].mxu0
        %v8041 = vadd.f32 0.0, %v8040
        %v8042 = vpop.f32.mrb[0].mxu0
        %8043 = vdwg.mxu0
        %v8044 = vlaneseq
        %v8045 = vshrl.u32 %v8044, 7
        %v8046 = vsub.s32 0, %v8045
        %v8047 = vrot.slane %v8041, %v8046
        %v8048 = vmul.f32 %v7875, %v8047
        %v8049 = vmax.f32 %v8048, 0.0
        %8050 = vst.msk [vmem:[#allocation8] sm:$0x1f] %vm7479, %v8049
        %v8051 = vld [vmem:[%s7704] sm:$0x1f]
        %v8052 = vsub.f32 %v8051, %v7874
        %v8053 = vmul.f32 %v8052, %v8047
        %v8054 = vmax.f32 %v8053, 0.0
        %8055 = vst.msk [vmem:[%s7704] sm:$0x1f] %vm7479, %v8054
        %v8056 = vld [vmem:[%s7] sm:$0xff]
        %v8057 = vld [vmem:[%s7 + $0x8] sm:$0xff]
        %v8058 = vld [vmem:[#allocation8] sm:$0x1f]
        %v8059 = vsel %vm7479, %v8058, 0.0
        %v8060 = vrot.slane %v8059, 4
        %v8061 = vadd.f32 %v8059, %v8060
        %v8062 = vrot.slane %v8061, 2
        %v8063 = vadd.f32 %v8061, %v8062
        %v8064 = vrot.slane %v8063, 1
        %v8065 = vadd.f32 %v8063, %v8064
        %v8067 = vsel %vm737, %v8065, 0
        %8069 = vmatprep.subr.mxu0 0.0
        %8070 = vmatpush1.msra.mxu0 %v5842
        %8071 = vmatprep.subr.mxu0 0.0
        %8072 = vmatpush1.msra.mxu0 %v5843
        %8073 = vmatprep.subr.mxu0 0.0
        %8074 = vmatpush1.msra.mxu0 %v5844
        %8075 = vmatprep.subr.mxu0 0.0
        %8076 = vmatpush1.msra.mxu0 %v5845
        %8077 = vmatprep.subr.mxu0 0.0
        %8078 = vmatpush1.msra.mxu0 %v5846
        %8079 = vmatprep.subr.mxu0 0.0
        %8080 = vmatpush1.msra.mxu0 %v5847
        %8081 = vmatprep.subr.mxu0 0.0
        %8082 = vmatpush1.msra.mxu0 %v5848
        %8083 = vmatprep.subr.mxu0 0.0
        %8084 = vmatpush1.msra.mxu0 %v5849
        %8085 = vmatprep.subr.mxu0 0.0
        %8086 = vmatpush1.msra.mxu0 %v5850
        %8087 = vmatprep.subr.mxu0 0.0
        %8088 = vmatpush1.msra.mxu0 %v5851
        %8089 = vmatprep.subr.mxu0 0.0
        %8090 = vmatpush1.msra.mxu0 0.0
        %8091 = vmatprep.subr.mxu0 0.0
        %8092 = vmatpush1.msra.mxu0 0.0
        %8093 = vmatprep.subr.mxu0 0.0
        %8094 = vmatpush1.msra.mxu0 0.0
        %8095 = vmatprep.subr.mxu0 0.0
        %8096 = vmatpush1.msra.mxu0 0.0
        %8097 = vmatprep.subr.mxu0 0.0
        %8098 = vmatpush1.msra.mxu0 0.0
        %8099 = vmatprep.subr.mxu0 0.0
        %8100 = vmatpush1.msra.mxu0 0.0
        %8101 = vmatprep.subr.mxu0 0.0
        %8102 = vmatpush1.msra.mxu0 0.0
        %8103 = vmatprep.subr.mxu0 0.0
        %8104 = vmatpush1.msra.mxu0 0.0
        %8105 = vmatprep.subr.mxu0 0.0
        %8106 = vmatpush1.msra.mxu0 0.0
        %8107 = vmatprep.subr.mxu0 0.0
        %8108 = vmatpush1.msra.mxu0 0.0
        %8109 = vmatprep.subr.mxu0 0.0
        %8110 = vmatpush1.msra.mxu0 0.0
        %8111 = vmatprep.subr.mxu0 0.0
        %8112 = vmatpush1.msra.mxu0 0.0
        %8113 = vmatprep.subr.mxu0 0.0
        %8114 = vmatpush1.msra.mxu0 0.0
        %8115 = vmatprep.subr.mxu0 0.0
        %8116 = vmatpush1.msra.mxu0 0.0
        %8117 = vmatprep.subr.mxu0 0.0
        %8118 = vmatpush1.msra.mxu0 0.0
        %8119 = vmatprep.subr.mxu0 0.0
        %8120 = vmatpush1.msra.mxu0 0.0
        %8121 = vmatprep.subr.mxu0 0.0
        %8122 = vmatpush1.msra.mxu0 0.0
        %8123 = vmatprep.subr.mxu0 0.0
        %8124 = vmatpush1.msra.mxu0 0.0
        %8125 = vmatprep.subr.mxu0 0.0
        %8126 = vmatpush1.msra.mxu0 0.0
        %8127 = vmatprep.subr.mxu0 0.0
        %8128 = vmatpush1.msra.mxu0 0.0
        %8129 = vmatprep.subr.mxu0 0.0
        %8130 = vmatpush1.msra.mxu0 0.0
        %8131 = vmatprep.subr.mxu0 0.0
        %8132 = vmatpush1.msra.mxu0 0.0
        %8133 = vmatprep.mubr.f32.mxu0 0.0
        %8134 = vmatmul.mubr.f32.gmra.mrb[0].mxu0 %v8067
        %v8135 = vpop.f32.mrb[0].mxu0
        %v8136 = vadd.f32 0.0, %v8135
        %v8137 = vpop.f32.mrb[0].mxu0
        %8138 = vdwg.mxu0
        %v8139 = vmul.f32 %v8136, 0.04
        %v8141 = vsel %vm5537, %v8139, 0
        %8143 = vmatprep.subr.mxu0 0.0
        %8144 = vmatpush1.msra.mxu0 %v8056
        %8145 = vmatprep.subr.mxu0 0.0
        %8146 = vmatpush1.msra.mxu0 %v8057
        %8147 = vmatprep.subr.mxu0 0.0
        %8148 = vmatpush1.msra.mxu0 0.0
        %8149 = vmatprep.subr.mxu0 0.0
        %8150 = vmatpush1.msra.mxu0 0.0
        %8151 = vmatprep.subr.mxu0 0.0
        %8152 = vmatpush1.msra.mxu0 0.0
        %8153 = vmatprep.subr.mxu0 0.0
        %8154 = vmatpush1.msra.mxu0 0.0
        %8155 = vmatprep.subr.mxu0 0.0
        %8156 = vmatpush1.msra.mxu0 0.0
        %8157 = vmatprep.subr.mxu0 0.0
        %8158 = vmatpush1.msra.mxu0 0.0
        %8159 = vmatprep.subr.mxu0 0.0
        %8160 = vmatpush1.msra.mxu0 0.0
        %8161 = vmatprep.subr.mxu0 0.0
        %8162 = vmatpush1.msra.mxu0 0.0
        %8163 = vmatprep.subr.mxu0 0.0
        %8164 = vmatpush1.msra.mxu0 0.0
        %8165 = vmatprep.subr.mxu0 0.0
        %8166 = vmatpush1.msra.mxu0 0.0
        %8167 = vmatprep.subr.mxu0 0.0
        %8168 = vmatpush1.msra.mxu0 0.0
        %8169 = vmatprep.subr.mxu0 0.0
        %8170 = vmatpush1.msra.mxu0 0.0
        %8171 = vmatprep.subr.mxu0 0.0
        %8172 = vmatpush1.msra.mxu0 0.0
        %8173 = vmatprep.subr.mxu0 0.0
        %8174 = vmatpush1.msra.mxu0 0.0
        %8175 = vmatprep.subr.mxu0 0.0
        %8176 = vmatpush1.msra.mxu0 0.0
        %8177 = vmatprep.subr.mxu0 0.0
        %8178 = vmatpush1.msra.mxu0 0.0
        %8179 = vmatprep.subr.mxu0 0.0
        %8180 = vmatpush1.msra.mxu0 0.0
        %8181 = vmatprep.subr.mxu0 0.0
        %8182 = vmatpush1.msra.mxu0 0.0
        %8183 = vmatprep.subr.mxu0 0.0
        %8184 = vmatpush1.msra.mxu0 0.0
        %8185 = vmatprep.subr.mxu0 0.0
        %8186 = vmatpush1.msra.mxu0 0.0
        %8187 = vmatprep.subr.mxu0 0.0
        %8188 = vmatpush1.msra.mxu0 0.0
        %8189 = vmatprep.subr.mxu0 0.0
        %8190 = vmatpush1.msra.mxu0 0.0
        %8191 = vmatprep.subr.mxu0 0.0
        %8192 = vmatpush1.msra.mxu0 0.0
        %8193 = vmatprep.subr.mxu0 0.0
        %8194 = vmatpush1.msra.mxu0 0.0
        %8195 = vmatprep.subr.mxu0 0.0
        %8196 = vmatpush1.msra.mxu0 0.0
        %8197 = vmatprep.subr.mxu0 0.0
        %8198 = vmatpush1.msra.mxu0 0.0
        %8199 = vmatprep.subr.mxu0 0.0
        %8200 = vmatpush1.msra.mxu0 0.0
        %8201 = vmatprep.subr.mxu0 0.0
        %8202 = vmatpush1.msra.mxu0 0.0
        %8203 = vmatprep.subr.mxu0 0.0
        %8204 = vmatpush1.msra.mxu0 0.0
        %8205 = vmatprep.subr.mxu0 0.0
        %8206 = vmatpush1.msra.mxu0 0.0
        %8207 = vmatprep.mubr.f32.mxu0 0.0
        %8208 = vmatmul.mubr.f32.gmra.mrb[0].mxu0 %v8141
        %v8209 = vpop.f32.mrb[0].mxu0
        %v8210 = vadd.f32 0.0, %v8209
        %v8211 = vpop.f32.mrb[0].mxu0
        %8212 = vdwg.mxu0
        %vm8213 = vcmask 73728
        %v8214 = vsel %vm8213, %v8210, -inf
        %8215 = vmax.xlane.f32.xlu0 %v8214
        %v8216 = vpop.xlane.xlu0 %8215
        %v8217 = vsub.f32 %v8210, %v8216
        %v8218 = vmul.f32 %v8217, 1.442695
        %v8219 = vpow.pop %v8218
        %v8220 = vsel %vm8213, %v8219, 0.0
        %8221 = vadd.xlane.f32.xlu0 %v8220
        %v8222 = vpop.xlane.xlu0 %8221
        %v8223 = vlog2.pop %v8222
        %v8224 = vmul.f32 %v8223, 0.6931472
        %v8225 = vsub.f32 %v8217, %v8224
        %8226 = vst.msk [vmem:[%s366] sm:$0x1] %vm8213, %v8225
        %v8227 = vld [vmem:[%s7704] sm:$0x1f]
        %v8228 = vsel %vm7479, %v8227, 0.0
        %v8229 = vrot.slane %v8228, 4
        %v8230 = vadd.f32 %v8228, %v8229
        %v8231 = vrot.slane %v8230, 2
        %v8232 = vadd.f32 %v8230, %v8231
        %v8233 = vrot.slane %v8232, 1
        %v8234 = vadd.f32 %v8232, %v8233
        %v8236 = vsel %vm737, %v8234, 0
        %8238 = vmatprep.subr.mxu0 0.0
        %8239 = vmatpush1.msra.mxu0 %v5842
        %8240 = vmatprep.subr.mxu0 0.0
        %8241 = vmatpush1.msra.mxu0 %v5843
        %8242 = vmatprep.subr.mxu0 0.0
        %8243 = vmatpush1.msra.mxu0 %v5844
        %8244 = vmatprep.subr.mxu0 0.0
        %8245 = vmatpush1.msra.mxu0 %v5845
        %8246 = vmatprep.subr.mxu0 0.0
        %8247 = vmatpush1.msra.mxu0 %v5846
        %8248 = vmatprep.subr.mxu0 0.0
        %8249 = vmatpush1.msra.mxu0 %v5847
        %8250 = vmatprep.subr.mxu0 0.0
        %8251 = vmatpush1.msra.mxu0 %v5848
        %8252 = vmatprep.subr.mxu0 0.0
        %8253 = vmatpush1.msra.mxu0 %v5849
        %8254 = vmatprep.subr.mxu0 0.0
        %8255 = vmatpush1.msra.mxu0 %v5850
        %8256 = vmatprep.subr.mxu0 0.0
        %8257 = vmatpush1.msra.mxu0 %v5851
        %8258 = vmatprep.subr.mxu0 0.0
        %8259 = vmatpush1.msra.mxu0 0.0
        %8260 = vmatprep.subr.mxu0 0.0
        %8261 = vmatpush1.msra.mxu0 0.0
        %8262 = vmatprep.subr.mxu0 0.0
        %8263 = vmatpush1.msra.mxu0 0.0
        %8264 = vmatprep.subr.mxu0 0.0
        %8265 = vmatpush1.msra.mxu0 0.0
        %8266 = vmatprep.subr.mxu0 0.0
        %8267 = vmatpush1.msra.mxu0 0.0
        %8268 = vmatprep.subr.mxu0 0.0
        %8269 = vmatpush1.msra.mxu0 0.0
        %8270 = vmatprep.subr.mxu0 0.0
        %8271 = vmatpush1.msra.mxu0 0.0
        %8272 = vmatprep.subr.mxu0 0.0
        %8273 = vmatpush1.msra.mxu0 0.0
        %8274 = vmatprep.subr.mxu0 0.0
        %8275 = vmatpush1.msra.mxu0 0.0
        %8276 = vmatprep.subr.mxu0 0.0
        %8277 = vmatpush1.msra.mxu0 0.0
        %8278 = vmatprep.subr.mxu0 0.0
        %8279 = vmatpush1.msra.mxu0 0.0
        %8280 = vmatprep.subr.mxu0 0.0
        %8281 = vmatpush1.msra.mxu0 0.0
        %8282 = vmatprep.subr.mxu0 0.0
        %8283 = vmatpush1.msra.mxu0 0.0
        %8284 = vmatprep.subr.mxu0 0.0
        %8285 = vmatpush1.msra.mxu0 0.0
        %8286 = vmatprep.subr.mxu0 0.0
        %8287 = vmatpush1.msra.mxu0 0.0
        %8288 = vmatprep.subr.mxu0 0.0
        %8289 = vmatpush1.msra.mxu0 0.0
        %8290 = vmatprep.subr.mxu0 0.0
        %8291 = vmatpush1.msra.mxu0 0.0
        %8292 = vmatprep.subr.mxu0 0.0
        %8293 = vmatpush1.msra.mxu0 0.0
        %8294 = vmatprep.subr.mxu0 0.0
        %8295 = vmatpush1.msra.mxu0 0.0
        %8296 = vmatprep.subr.mxu0 0.0
        %8297 = vmatpush1.msra.mxu0 0.0
        %8298 = vmatprep.subr.mxu0 0.0
        %8299 = vmatpush1.msra.mxu0 0.0
        %8300 = vmatprep.subr.mxu0 0.0
        %8301 = vmatpush1.msra.mxu0 0.0
        %8302 = vmatprep.mubr.f32.mxu0 0.0
        %8303 = vmatmul.mubr.f32.gmra.mrb[0].mxu0 %v8236
        %v8304 = vpop.f32.mrb[0].mxu0
        %v8305 = vadd.f32 0.0, %v8304
        %v8306 = vpop.f32.mrb[0].mxu0
        %8307 = vdwg.mxu0
        %v8308 = vmul.f32 %v8305, 0.04
        %v8310 = vsel %vm5537, %v8308, 0
        %8312 = vmatprep.subr.mxu0 0.0
        %8313 = vmatpush1.msra.mxu0 %v8056
        %8314 = vmatprep.subr.mxu0 0.0
        %8315 = vmatpush1.msra.mxu0 %v8057
        %8316 = vmatprep.subr.mxu0 0.0
        %8317 = vmatpush1.msra.mxu0 0.0
        %8318 = vmatprep.subr.mxu0 0.0
        %8319 = vmatpush1.msra.mxu0 0.0
        %8320 = vmatprep.subr.mxu0 0.0
        %8321 = vmatpush1.msra.mxu0 0.0
        %8322 = vmatprep.subr.mxu0 0.0
        %8323 = vmatpush1.msra.mxu0 0.0
        %8324 = vmatprep.subr.mxu0 0.0
        %8325 = vmatpush1.msra.mxu0 0.0
        %8326 = vmatprep.subr.mxu0 0.0
        %8327 = vmatpush1.msra.mxu0 0.0
        %8328 = vmatprep.subr.mxu0 0.0
        %8329 = vmatpush1.msra.mxu0 0.0
        %8330 = vmatprep.subr.mxu0 0.0
        %8331 = vmatpush1.msra.mxu0 0.0
        %8332 = vmatprep.subr.mxu0 0.0
        %8333 = vmatpush1.msra.mxu0 0.0
        %8334 = vmatprep.subr.mxu0 0.0
        %8335 = vmatpush1.msra.mxu0 0.0
        %8336 = vmatprep.subr.mxu0 0.0
        %8337 = vmatpush1.msra.mxu0 0.0
        %8338 = vmatprep.subr.mxu0 0.0
        %8339 = vmatpush1.msra.mxu0 0.0
        %8340 = vmatprep.subr.mxu0 0.0
        %8341 = vmatpush1.msra.mxu0 0.0
        %8342 = vmatprep.subr.mxu0 0.0
        %8343 = vmatpush1.msra.mxu0 0.0
        %8344 = vmatprep.subr.mxu0 0.0
        %8345 = vmatpush1.msra.mxu0 0.0
        %8346 = vmatprep.subr.mxu0 0.0
        %8347 = vmatpush1.msra.mxu0 0.0
        %8348 = vmatprep.subr.mxu0 0.0
        %8349 = vmatpush1.msra.mxu0 0.0
        %8350 = vmatprep.subr.mxu0 0.0
        %8351 = vmatpush1.msra.mxu0 0.0
        %8352 = vmatprep.subr.mxu0 0.0
        %8353 = vmatpush1.msra.mxu0 0.0
        %8354 = vmatprep.subr.mxu0 0.0
        %8355 = vmatpush1.msra.mxu0 0.0
        %8356 = vmatprep.subr.mxu0 0.0
        %8357 = vmatpush1.msra.mxu0 0.0
        %8358 = vmatprep.subr.mxu0 0.0
        %8359 = vmatpush1.msra.mxu0 0.0
        %8360 = vmatprep.subr.mxu0 0.0
        %8361 = vmatpush1.msra.mxu0 0.0
        %8362 = vmatprep.subr.mxu0 0.0
        %8363 = vmatpush1.msra.mxu0 0.0
        %8364 = vmatprep.subr.mxu0 0.0
        %8365 = vmatpush1.msra.mxu0 0.0
        %8366 = vmatprep.subr.mxu0 0.0
        %8367 = vmatpush1.msra.mxu0 0.0
        %8368 = vmatprep.subr.mxu0 0.0
        %8369 = vmatpush1.msra.mxu0 0.0
        %8370 = vmatprep.subr.mxu0 0.0
        %8371 = vmatpush1.msra.mxu0 0.0
        %8372 = vmatprep.subr.mxu0 0.0
        %8373 = vmatpush1.msra.mxu0 0.0
        %8374 = vmatprep.subr.mxu0 0.0
        %8375 = vmatpush1.msra.mxu0 0.0
        %8376 = vmatprep.mubr.f32.mxu0 0.0
        %8377 = vmatmul.mubr.f32.gmra.mrb[0].mxu0 %v8310
        %v8378 = vpop.f32.mrb[0].mxu0
        %v8379 = vadd.f32 0.0, %v8378
        %v8380 = vpop.f32.mrb[0].mxu0
        %8381 = vdwg.mxu0
        %v8382 = vsel %vm8213, %v8379, -inf
        %8383 = vmax.xlane.f32.xlu0 %v8382
        %v8384 = vpop.xlane.xlu0 %8383
        %v8385 = vsub.f32 %v8379, %v8384
        %v8386 = vmul.f32 %v8385, 1.442695
        %v8387 = vpow.pop %v8386
        %v8388 = vsel %vm8213, %v8387, 0.0
        %8389 = vadd.xlane.f32.xlu0 %v8388
        %v8390 = vpop.xlane.xlu0 %8389
        %v8391 = vlog2.pop %v8390
        %v8392 = vmul.f32 %v8391, 0.6931472
        %v8393 = vsub.f32 %v8385, %v8392
        %8394 = vst.msk [vmem:[%s366 + $0x1] sm:$0x1] %vm8213, %v8393
        %p8395 = scmp.lt.s32.totalorder %s19, 1
        %s8396 = scalar_select %p8395, %s19, 1
        %s8397 = smul.addr %s8396, 2
        %s8398 = scalar_lea.vmem %s8, %s8397
        // Predicated region
        $region91: #{gbnnet_forward.1} parent=85 // pred_check
          %p8399 = pneg %p210
        $region92: #{gbnnet_forward.1} parent=85 // pred_check_branch
          %8401 = sbr.rel (%p8399) target = $region94
        $region93: #{gbnnet_forward.1} parent=85 // pred_region
          _
        $region94: #{gbnnet_forward.1} parent=85 // pred_fallthru
          _
      $region86: #{gbnnet_forward.1} parent=5 // pred_fallthru
        _
      %p8402 = scmp.le.s32.totalorder 2, %s14
      // Predicated region
      $region95: #{gbnnet_forward.1} parent=5 // pred_check
        %p8403 = pneg %p8402
      $region96: #{gbnnet_forward.1} parent=5 // pred_check_branch
        %8405 = sbr.rel (%p8403) target = $region98
      $region97: #{gbnnet_forward.1} parent=5 // pred_region
        %s8406 = ssub.s32 %s14, 2
        // Predicated region
        $region99: #{gbnnet_forward.1} parent=97 // pred_check
          %p8407 = pneg %p216
        $region100: #{gbnnet_forward.1} parent=97 // pred_check_branch
          %8409 = sbr.rel (%p8407) target = $region102
        $region101: #{gbnnet_forward.1} parent=97 // pred_region
          %p8410 = scmp.lt.s32.totalorder %s20, 1
          %s8411 = scalar_select %p8410, %s20, 1
          %s8412 = smul.addr %s8411, 2
          %s8413 = scalar_lea.vmem %s8, %s8412
        $region102: #{gbnnet_forward.1} parent=97 // pred_fallthru
          _
      $region98: #{gbnnet_forward.1} parent=5 // pred_fallthru
        _
    $region6: #{gbnnet_forward.1} parent=1 // loop_footer
      %s18 = sadd.s32 1, %s14
    $region7: #{gbnnet_forward.1} parent=1 // loop_footer_branch
      %13 = sbr.rel target = $region3
    $region8: #{gbnnet_forward.1} parent=1 // loop_exit
      _

</llo_original>
